<compile_context>
chip_gen: v7x
topology: tpu7x:2x2x1
jax: 0.10.0
libtpu: 0.0.40
codegen_flags: <defaults>
</compile_context>

<pallas_src>
import jax
import jax.numpy as jnp
from jax import lax
from jax.experimental import pallas as pl
from jax.experimental.pallas import tpu as pltpu

PAD_IDX = 0
NEG_BIG = -1e10


def _sigmoid(x):
    # 1/(1+exp(-x)) with both exp and the reciprocal on the EUP path.
    return pl.reciprocal(1.0 + jnp.exp(-x), approx=True)


def _attention_decoder_kernel(
    ids_ref,      # SMEM (T, B) int32   scalar-prefetched token ids
    mem_ref,      # (1, B, H)  f32      initial hidden  (= memory layer 0)
    ctx0_ref,     # (B, H)     f32      initial context vector
    enc_ref,      # (B, S, H)  bf16     encoder outputs (VMEM resident)
    mask_ref,     # (B, 1, S)  f32      precomputed length mask (1/0)
    emb_ref,      # (V, 1, H)  f32      embedding table (row PAD_IDX is zero)
    wih_ref,      # (2H, 3H)   bf16     GRU W_ih^T, gate cols ordered r|z|n
    whh_ref,      # (H, 3H)    bf16     GRU W_hh^T
    bih_ref,      # (1, 3H)    f32
    bhh_ref,      # (1, 3H)    f32
    wa1_ref,      # (H, H)     bf16     attention.l1 weight^T (no bias)
    wa2_ref,      # (2H, H)    bf16     attention.l2 weight^T (rows: ctx | hidden)
    wo_ref,       # (H, V)     bf16     out weight^T
    bo_ref,       # (1, V)     f32
    scores_ref,   # out (K, B, V) f32   log-softmax scores for this chunk of steps
    attw_ref,     # out (K, B, S) f32   attention weights for this chunk of steps
    hid_ref,      # out (1, B, H) f32   final GRU hidden
    ctxo_ref,     # out (B, H)    f32   final context vector
    h_state,      # scratch (B, H) f32  GRU hidden carry
    c_state,      # scratch (B, H) f32  context-vector carry
):
    g = pl.program_id(0)
    K = scores_ref.shape[0]
    B, H = h_state.shape

    @pl.when(g == 0)
    def _():
        h_state[...] = mem_ref[0]          # memory.transpose(0,1)[:, 0, :]
        c_state[...] = ctx0_ref[...]       # zeros when context_vec is None

    h = h_state[...]
    c = c_state[...]

    # K decoder steps per grid iteration, fully unrolled (amortizes grid overhead,
    # equivalent to lax.fori_loop(..., unroll=True) but with static store indices).
    for k in range(K):
        t = g * K + k

        # ---- embedding gather: SMEM ids -> dynamic row loads from VMEM table ----
        rows = [emb_ref[ids_ref[t, b]] for b in range(B)]        # each (1, H) f32
        emb_t = jnp.concatenate(rows, axis=0).astype(jnp.bfloat16)   # (B, H)

        # ---- GRUCell: concat([emb, ctx]) @ W_ih split into two matmuls ----------
        gi = (jnp.dot(emb_t, wih_ref[0:H, :],
                      preferred_element_type=jnp.float32)
              + jnp.dot(c.astype(jnp.bfloat16), wih_ref[H:2 * H, :],
                        preferred_element_type=jnp.float32)
              + bih_ref[...])                                    # (B, 3H)
        gh = (jnp.dot(h.astype(jnp.bfloat16), whh_ref[...],
                      preferred_element_type=jnp.float32)
              + bhh_ref[...])                                    # (B, 3H)
        r = _sigmoid(gi[:, 0:H] + gh[:, 0:H])
        z = _sigmoid(gi[:, H:2 * H] + gh[:, H:2 * H])
        n = jnp.tanh(gi[:, 2 * H:] + r * gh[:, 2 * H:])
        h = (1.0 - z) * n + z * h                                # (B, H) new hidden

        # ---- AttentionModule: batched MXU einsums (flash style, q-dim = 1) ------
        ax = jnp.dot(h.astype(jnp.bfloat16), wa1_ref[...],
                     preferred_element_type=jnp.float32)         # (B, H)
        att = jnp.einsum('bqh,bsh->bqs',
                         ax[:, None, :].astype(jnp.bfloat16), enc_ref[...],
                         preferred_element_type=jnp.float32)     # (B, 1, S)
        masked = mask_ref[...] * att
        # torch: masked_att[masked_att == 0] = -1e10 (faithfully replicated)
        masked = jnp.where(masked == 0.0, NEG_BIG, masked)
        m = jnp.max(masked, axis=-1, keepdims=True)
        e = jnp.exp(masked - m)
        attn = e * pl.reciprocal(jnp.sum(e, axis=-1, keepdims=True),
                                 approx=True)                    # (B, 1, S)
        ctx_w = jnp.einsum('bqs,bsh->bqh',
                           attn.astype(jnp.bfloat16), enc_ref[...],
                           preferred_element_type=jnp.float32)[:, 0, :]   # (B, H)
        c = jnp.tanh(
            jnp.dot(ctx_w.astype(jnp.bfloat16), wa2_ref[0:H, :],
                    preferred_element_type=jnp.float32)
            + jnp.dot(h.astype(jnp.bfloat16), wa2_ref[H:2 * H, :],
                      preferred_element_type=jnp.float32))       # (B, H) new context

        # ---- output projection + log-softmax ------------------------------------
        logits = jnp.dot(c.astype(jnp.bfloat16), wo_ref[...],
                         preferred_element_type=jnp.float32) + bo_ref[...]
        shifted = logits - jnp.max(logits, axis=1, keepdims=True)
        logp = shifted - jnp.log(jnp.sum(jnp.exp(shifted), axis=1, keepdims=True))

        scores_ref[k] = logp
        attw_ref[k] = attn[:, 0, :]

    # carry recurrent state to the next chunk
    h_state[...] = h
    c_state[...] = c

    @pl.when(g == pl.num_programs(0) - 1)
    def _():
        hid_ref[0] = h
        ctxo_ref[...] = c


def _pick_chunk(T, max_steps):
    for k in range(min(T, max_steps), 0, -1):
        if T % k == 0:
            return k
    return 1


def attention_decoder_forward(x_ids, memory, encoder_output, xs_len, params,
                              context_vec=None, steps_per_block=4):
    """Pallas-backed AttentionDecoder.forward.

    x_ids:          (B, T) int32 target token ids
    memory:         (L, B, H) f32 — only layer 0 is used (matches torch)
    encoder_output: (B, S, H) f32
    xs_len:         (B,) int32 source lengths (max must equal S)
    params:         dict of weights; Linear/GRU weights already transposed to
                    (in, out) so the kernel computes x @ W + b.
    """
    B, T = x_ids.shape
    S = encoder_output.shape[1]
    H = memory.shape[-1]
    V = params["emb"].shape[0]
    K = _pick_chunk(T, steps_per_block)

    ids = jnp.transpose(x_ids.astype(jnp.int32))                 # (T, B) -> SMEM
    if context_vec is None:
        context_vec = jnp.zeros((B, H), jnp.float32)

    # Length mask, computed once in the wrapper.
    # TODO(synk): torch uses max(xs_len).item() as the mask width; the module's own
    # broadcasting requires max(xs_len) == S, which we assume here.
    mask = (jnp.arange(S, dtype=jnp.int32)[None, :]
            < xs_len.astype(jnp.int32)[:, None]).astype(jnp.float32)
    mask3 = mask[:, None, :]                                     # (B, 1, S)

    # bf16 MXU operands, f32 accumulation / biases / state. Embedding table stays
    # f32 (gathered rows are cast once per step).
    enc_bf = encoder_output.astype(jnp.bfloat16)
    emb3 = params["emb"].astype(jnp.float32)[:, None, :]         # (V, 1, H)
    w_ih = params["w_ih"].astype(jnp.bfloat16)
    w_hh = params["w_hh"].astype(jnp.bfloat16)
    wa1 = params["wa1"].astype(jnp.bfloat16)
    wa2 = params["wa2"].astype(jnp.bfloat16)
    wo = params["wo"].astype(jnp.bfloat16)
    b_ih = params["b_ih"].astype(jnp.float32).reshape(1, 3 * H)
    b_hh = params["b_hh"].astype(jnp.float32).reshape(1, 3 * H)
    b_o = params["b_o"].astype(jnp.float32).reshape(1, V)
    mem_f = memory.astype(jnp.float32)[:1]                       # layer 0 only

    const2 = lambda g, ids_ref: (0, 0)
    const3 = lambda g, ids_ref: (0, 0, 0)
    step3 = lambda g, ids_ref: (g, 0, 0)

    # Explicit VMEM budget (resident weights + encoder, double-buffered by the
    # pipeline, + per-chunk output blocks + slack).  Keeps v5e's 16 MiB default
    # scoped limit from failing at realistic H/V while staying well under v7x's
    # 64 MiB physical VMEM at these sizes.
    def nbytes(a):
        return int(a.size) * a.dtype.itemsize
    resident = sum(nbytes(a) for a in (mem_f, context_vec, enc_bf, mask3, w_ih,
                                       w_hh, b_ih, b_hh, wa1, wa2, wo, b_o))
    resident += V * 8 * H * 4                    # emb rows pad to 8 sublanes each
    out_blocks = K * B * (V + S) * 4 + 2 * B * H * 4
    vmem_limit = min(int(2 * resident + 2 * out_blocks) + (16 << 20), 100 << 20)

    scores, attw, dec_hidden, ctx_out = pl.pallas_call(
        _attention_decoder_kernel,
        out_shape=(
            jax.ShapeDtypeStruct((T, B, V), jnp.float32),
            jax.ShapeDtypeStruct((T, B, S), jnp.float32),
            jax.ShapeDtypeStruct((1, B, H), jnp.float32),
            jax.ShapeDtypeStruct((B, H), jnp.float32),
        ),
        grid_spec=pltpu.PrefetchScalarGridSpec(
            num_scalar_prefetch=1,                # token ids -> SMEM
            grid=(T // K,),
            in_specs=[
                pl.BlockSpec((1, B, H), const3),        # memory layer 0
                pl.BlockSpec((B, H), const2),           # initial context_vec
                pl.BlockSpec((B, S, H), const3),        # encoder outputs (resident)
                pl.BlockSpec((B, 1, S), const3),        # length mask
                pl.BlockSpec((V, 1, H), const3),        # embedding table
                pl.BlockSpec((2 * H, 3 * H), const2),   # GRU W_ih^T
                pl.BlockSpec((H, 3 * H), const2),       # GRU W_hh^T
                pl.BlockSpec((1, 3 * H), const2),       # GRU b_ih
                pl.BlockSpec((1, 3 * H), const2),       # GRU b_hh
                pl.BlockSpec((H, H), const2),           # attention.l1^T
                pl.BlockSpec((2 * H, H), const2),       # attention.l2^T
                pl.BlockSpec((H, V), const2),           # out weight^T
                pl.BlockSpec((1, V), const2),           # out bias
            ],
            out_specs=(
                pl.BlockSpec((K, B, V), step3),
                pl.BlockSpec((K, B, S), step3),
                pl.BlockSpec((1, B, H), const3),
                pl.BlockSpec((B, H), const2),
            ),
            scratch_shapes=[
                pltpu.VMEM((B, H), jnp.float32),   # GRU hidden carry
                pltpu.VMEM((B, H), jnp.float32),   # context-vector carry
            ],
        ),
        compiler_params=pltpu.CompilerParams(
            dimension_semantics=("arbitrary",),    # recurrence over T is sequential
            vmem_limit_bytes=vmem_limit,
        ),
    )(ids, mem_f, context_vec, enc_bf, mask3, emb3, w_ih, w_hh, b_ih, b_hh,
      wa1, wa2, wo, b_o)

    return {
        "decoder_output": jnp.transpose(scores, (1, 0, 2)),      # (B, T, V)
        "decoder_hidden": dec_hidden,                            # (1, B, H)
        "attention_weights": jnp.transpose(attw, (1, 0, 2)),     # (B, T, S)
        "context_vector": ctx_out,                               # (B, H)
    }


if __name__ == "__main__":
    # Lane-dense demo sizes (V, S, H multiples of 128), still small overall.
    V = 128       # output_size (target vocab)
    H = 128       # hidden_size
    B = 4         # batch
    T = 8         # decoder steps
    S = 128       # encoder sequence length
    L = 1         # memory "layers" (only layer 0 is used by the module)

    key = jax.random.PRNGKey(0)
    ks = jax.random.split(key, 12)

    # Deterministic synthetic parameters (torch Linear/GRUCell weights are (out,in);
    # we generate the transposed (in,out) form directly).
    emb = jax.random.normal(ks[0], (V, H), jnp.float32) * 0.1
    emb = emb.at[PAD_IDX].set(0.0)                               # padding_idx row
    w_ih = jax.random.normal(ks[1], (2 * H, 3 * H), jnp.float32) * 0.05  # gates r|z|n
    w_hh = jax.random.normal(ks[2], (H, 3 * H), jnp.float32) * 0.05
    b_ih = jax.random.normal(ks[3], (1, 3 * H), jnp.float32) * 0.05
    b_hh = jax.random.normal(ks[4], (1, 3 * H), jnp.float32) * 0.05
    wa1 = jax.random.normal(ks[5], (H, H), jnp.float32) * 0.05           # attention.l1
    wa2 = jax.random.normal(ks[6], (2 * H, H), jnp.float32) * 0.05       # attention.l2
    wo = jax.random.normal(ks[7], (H, V), jnp.float32) * 0.05            # self.out
    b_o = jax.random.normal(ks[8], (1, V), jnp.float32) * 0.05

    params = dict(emb=emb, w_ih=w_ih, w_hh=w_hh, b_ih=b_ih, b_hh=b_hh,
                  wa1=wa1, wa2=wa2, wo=wo, b_o=b_o)

    x_ids = jax.random.randint(ks[9], (B, T), 0, V, dtype=jnp.int32)
    memory = jax.random.normal(ks[10], (L, B, H), jnp.float32) * 0.1
    encoder_output = jax.random.normal(ks[11], (B, S, H), jnp.float32) * 0.1
    xs_len = jnp.array([S, 80, 17, S], dtype=jnp.int32)          # max == S

    out = jax.jit(attention_decoder_forward)(
        x_ids, memory, encoder_output, xs_len, params)
    jax.block_until_ready(out)

    assert out["decoder_output"].shape == (B, T, V)
    assert out["decoder_hidden"].shape == (1, B, H)
    assert out["attention_weights"].shape == (B, T, S)
    assert out["context_vector"].shape == (B, H)
    for v in out.values():
        assert bool(jnp.isfinite(v).all())
    # log-softmax rows sum (in prob space) to 1; attention rows sum to ~1.
    assert bool(jnp.allclose(jnp.exp(out["decoder_output"]).sum(-1), 1.0, atol=1e-3))
    assert bool(jnp.allclose(out["attention_weights"].sum(-1), 1.0, atol=1e-2))

    print("KERNEL_OK")
</pallas_src>

<mosaic_0001>
module attributes {stable_mosaic.version = 11 : i64} {
  func.func @_attention_decoder_kernel(%arg0: i32, %arg1: memref<8x4xi32, #tpu.memory_space<smem>>, %arg2: memref<1x4x128xf32, #tpu.memory_space<vmem>>, %arg3: memref<4x128xf32, #tpu.memory_space<vmem>>, %arg4: memref<4x128x128xbf16, #tpu.memory_space<vmem>>, %arg5: memref<4x1x128xf32, #tpu.memory_space<vmem>>, %arg6: memref<128x1x128xf32, #tpu.memory_space<vmem>>, %arg7: memref<256x384xbf16, #tpu.memory_space<vmem>>, %arg8: memref<128x384xbf16, #tpu.memory_space<vmem>>, %arg9: memref<1x384xf32, #tpu.memory_space<vmem>>, %arg10: memref<1x384xf32, #tpu.memory_space<vmem>>, %arg11: memref<128x128xbf16, #tpu.memory_space<vmem>>, %arg12: memref<256x128xbf16, #tpu.memory_space<vmem>>, %arg13: memref<128x128xbf16, #tpu.memory_space<vmem>>, %arg14: memref<1x128xf32, #tpu.memory_space<vmem>>, %arg15: memref<4x4x128xf32, #tpu.memory_space<vmem>>, %arg16: memref<4x4x128xf32, #tpu.memory_space<vmem>>, %arg17: memref<1x4x128xf32, #tpu.memory_space<vmem>>, %arg18: memref<4x128xf32, #tpu.memory_space<vmem>>, %arg19: memref<4x128xf32, #tpu.memory_space<vmem>>, %arg20: memref<4x128xf32, #tpu.memory_space<vmem>>) attributes {dimension_semantics = [#tpu.dimension_semantics<arbitrary>], iteration_bounds = array<i64: 2>, scalar_prefetch = 1 : i64, scratch_operands = 2 : i64, tpu.core_type = #tpu.core_type<tc>, window_params = [{pipeline_mode = #tpu.pipeline_mode<synchronous>, transform_indices = @transform_0, window_bounds = array<i64: 1, 4, 128>}, {pipeline_mode = #tpu.pipeline_mode<synchronous>, transform_indices = @transform_1, window_bounds = array<i64: 4, 128>}, {pipeline_mode = #tpu.pipeline_mode<synchronous>, transform_indices = @transform_2, window_bounds = array<i64: 4, 128, 128>}, {pipeline_mode = #tpu.pipeline_mode<synchronous>, transform_indices = @transform_3, window_bounds = array<i64: 4, 1, 128>}, {pipeline_mode = #tpu.pipeline_mode<synchronous>, transform_indices = @transform_4, window_bounds = array<i64: 128, 1, 128>}, {pipeline_mode = #tpu.pipeline_mode<synchronous>, transform_indices = @transform_5, window_bounds = array<i64: 256, 384>}, {pipeline_mode = #tpu.pipeline_mode<synchronous>, transform_indices = @transform_6, window_bounds = array<i64: 128, 384>}, {pipeline_mode = #tpu.pipeline_mode<synchronous>, transform_indices = @transform_7, window_bounds = array<i64: 1, 384>}, {pipeline_mode = #tpu.pipeline_mode<synchronous>, transform_indices = @transform_8, window_bounds = array<i64: 1, 384>}, {pipeline_mode = #tpu.pipeline_mode<synchronous>, transform_indices = @transform_9, window_bounds = array<i64: 128, 128>}, {pipeline_mode = #tpu.pipeline_mode<synchronous>, transform_indices = @transform_10, window_bounds = array<i64: 256, 128>}, {pipeline_mode = #tpu.pipeline_mode<synchronous>, transform_indices = @transform_11, window_bounds = array<i64: 128, 128>}, {pipeline_mode = #tpu.pipeline_mode<synchronous>, transform_indices = @transform_12, window_bounds = array<i64: 1, 128>}, {transform_indices = @transform_13, window_bounds = array<i64: 4, 4, 128>}, {transform_indices = @transform_14, window_bounds = array<i64: 4, 4, 128>}, {pipeline_mode = #tpu.pipeline_mode<synchronous>, transform_indices = @transform_15, window_bounds = array<i64: 1, 4, 128>}, {pipeline_mode = #tpu.pipeline_mode<synchronous>, transform_indices = @transform_16, window_bounds = array<i64: 4, 128>}]} {
    %c0_i32 = arith.constant 0 : i32
    %0 = arith.cmpi eq, %arg0, %c0_i32 : i32
    %1 = arith.extui %0 : i1 to i32
    %c0_i32_0 = arith.constant 0 : i32
    %2 = arith.cmpi ne, %1, %c0_i32_0 : i32
    scf.if %2 {
      %c0_277 = arith.constant 0 : index
      %c0_278 = arith.constant 0 : index
      %c0_279 = arith.constant 0 : index
      %510 = vector.load %arg2[%c0_277, %c0_278, %c0_279] : memref<1x4x128xf32, #tpu.memory_space<vmem>>, vector<1x4x128xf32>
      %511 = vector.shape_cast %510 : vector<1x4x128xf32> to vector<4x128xf32>
      %c0_280 = arith.constant 0 : index
      %c0_281 = arith.constant 0 : index
      %512 = vector.load %arg19[%c0_280, %c0_281] : memref<4x128xf32, #tpu.memory_space<vmem>>, vector<4x128xf32>
      tpu.vector_store %arg19[%c0_280, %c0_281], %511 {strides = array<i32>} : memref<4x128xf32, #tpu.memory_space<vmem>>, vector<4x128xf32>,
      %c0_282 = arith.constant 0 : index
      %c0_283 = arith.constant 0 : index
      %513 = vector.load %arg3[%c0_282, %c0_283] : memref<4x128xf32, #tpu.memory_space<vmem>>, vector<4x128xf32>
      %c0_284 = arith.constant 0 : index
      %c0_285 = arith.constant 0 : index
      %514 = vector.load %arg20[%c0_284, %c0_285] : memref<4x128xf32, #tpu.memory_space<vmem>>, vector<4x128xf32>
      tpu.vector_store %arg20[%c0_284, %c0_285], %513 {strides = array<i32>} : memref<4x128xf32, #tpu.memory_space<vmem>>, vector<4x128xf32>,
    } else {
    }
    %c0 = arith.constant 0 : index
    %c0_1 = arith.constant 0 : index
    %3 = vector.load %arg19[%c0, %c0_1] : memref<4x128xf32, #tpu.memory_space<vmem>>, vector<4x128xf32>
    %c0_2 = arith.constant 0 : index
    %c0_3 = arith.constant 0 : index
    %4 = vector.load %arg20[%c0_2, %c0_3] : memref<4x128xf32, #tpu.memory_space<vmem>>, vector<4x128xf32>
    %c4_i32 = arith.constant 4 : i32
    %5 = arith.muli %arg0, %c4_i32 : i32
    %c0_i32_4 = arith.constant 0 : i32
    %6 = arith.addi %5, %c0_i32_4 : i32
    %7 = arith.index_cast %6 : i32 to index
    %c0_5 = arith.constant 0 : index
    %8 = memref.load %arg1[%7, %c0_5] : memref<8x4xi32, #tpu.memory_space<smem>>
    %9 = arith.index_cast %8 : i32 to index
    %c0_6 = arith.constant 0 : index
    %c0_7 = arith.constant 0 : index
    %10 = vector.load %arg6[%9, %c0_6, %c0_7] : memref<128x1x128xf32, #tpu.memory_space<vmem>>, vector<1x1x128xf32>
    %11 = vector.shape_cast %10 : vector<1x1x128xf32> to vector<1x128xf32>
    %12 = arith.index_cast %6 : i32 to index
    %c1 = arith.constant 1 : index
    %13 = memref.load %arg1[%12, %c1] : memref<8x4xi32, #tpu.memory_space<smem>>
    %14 = arith.index_cast %13 : i32 to index
    %c0_8 = arith.constant 0 : index
    %c0_9 = arith.constant 0 : index
    %15 = vector.load %arg6[%14, %c0_8, %c0_9] : memref<128x1x128xf32, #tpu.memory_space<vmem>>, vector<1x1x128xf32>
    %16 = vector.shape_cast %15 : vector<1x1x128xf32> to vector<1x128xf32>
    %17 = arith.index_cast %6 : i32 to index
    %c2 = arith.constant 2 : index
    %18 = memref.load %arg1[%17, %c2] : memref<8x4xi32, #tpu.memory_space<smem>>
    %19 = arith.index_cast %18 : i32 to index
    %c0_10 = arith.constant 0 : index
    %c0_11 = arith.constant 0 : index
    %20 = vector.load %arg6[%19, %c0_10, %c0_11] : memref<128x1x128xf32, #tpu.memory_space<vmem>>, vector<1x1x128xf32>
    %21 = vector.shape_cast %20 : vector<1x1x128xf32> to vector<1x128xf32>
    %22 = arith.index_cast %6 : i32 to index
    %c3 = arith.constant 3 : index
    %23 = memref.load %arg1[%22, %c3] : memref<8x4xi32, #tpu.memory_space<smem>>
    %24 = arith.index_cast %23 : i32 to index
    %c0_12 = arith.constant 0 : index
    %c0_13 = arith.constant 0 : index
    %25 = vector.load %arg6[%24, %c0_12, %c0_13] : memref<128x1x128xf32, #tpu.memory_space<vmem>>, vector<1x1x128xf32>
    %26 = vector.shape_cast %25 : vector<1x1x128xf32> to vector<1x128xf32>
    %27 = tpu.concatenate %11, %16, %21, %26 in 0 : vector<1x128xf32>, vector<1x128xf32>, vector<1x128xf32>, vector<1x128xf32> -> vector<4x128xf32>
    %28 = arith.truncf %27 : vector<4x128xf32> to vector<4x128xbf16>
    %c0_14 = arith.constant 0 : index
    %c0_15 = arith.constant 0 : index
    %29 = vector.load %arg7[%c0_14, %c0_15] : memref<256x384xbf16, #tpu.memory_space<vmem>>, vector<128x384xbf16>
    %cst = arith.constant dense<0.000000e+00> : vector<4x384xf32>
    %30 = tpu.matmul %28, %29, %cst {dimension_numbers = #tpu.dot_dimension_numbers<[1], [0], [0], [1], [0, 0, 1, 1], [], []>} : vector<4x128xbf16>, vector<128x384xbf16>, vector<4x384xf32> -> vector<4x384xf32>
    %31 = arith.truncf %4 : vector<4x128xf32> to vector<4x128xbf16>
    %c128 = arith.constant 128 : index
    %c0_16 = arith.constant 0 : index
    %32 = vector.load %arg7[%c128, %c0_16] : memref<256x384xbf16, #tpu.memory_space<vmem>>, vector<128x384xbf16>
    %cst_17 = arith.constant dense<0.000000e+00> : vector<4x384xf32>
    %33 = tpu.matmul %31, %32, %cst_17 {dimension_numbers = #tpu.dot_dimension_numbers<[1], [0], [0], [1], [0, 0, 1, 1], [], []>} : vector<4x128xbf16>, vector<128x384xbf16>, vector<4x384xf32> -> vector<4x384xf32>
    %34 = arith.addf %30, %33 : vector<4x384xf32>
    %c0_18 = arith.constant 0 : index
    %c0_19 = arith.constant 0 : index
    %35 = vector.load %arg9[%c0_18, %c0_19] : memref<1x384xf32, #tpu.memory_space<vmem>>, vector<1x384xf32>
    %36 = vector.broadcast %35 : vector<1x384xf32> to vector<4x384xf32>
    %37 = arith.addf %34, %36 : vector<4x384xf32>
    %38 = arith.truncf %3 : vector<4x128xf32> to vector<4x128xbf16>
    %c0_20 = arith.constant 0 : index
    %c0_21 = arith.constant 0 : index
    %39 = vector.load %arg8[%c0_20, %c0_21] : memref<128x384xbf16, #tpu.memory_space<vmem>>, vector<128x384xbf16>
    %cst_22 = arith.constant dense<0.000000e+00> : vector<4x384xf32>
    %40 = tpu.matmul %38, %39, %cst_22 {dimension_numbers = #tpu.dot_dimension_numbers<[1], [0], [0], [1], [0, 0, 1, 1], [], []>} : vector<4x128xbf16>, vector<128x384xbf16>, vector<4x384xf32> -> vector<4x384xf32>
    %c0_23 = arith.constant 0 : index
    %c0_24 = arith.constant 0 : index
    %41 = vector.load %arg10[%c0_23, %c0_24] : memref<1x384xf32, #tpu.memory_space<vmem>>, vector<1x384xf32>
    %42 = vector.broadcast %41 : vector<1x384xf32> to vector<4x384xf32>
    %43 = arith.addf %40, %42 : vector<4x384xf32>
    %44 = vector.extract_strided_slice %37 {offsets = [0, 0], sizes = [4, 128], strides = [1, 1]} : vector<4x384xf32> to vector<4x128xf32>
    %45 = vector.extract_strided_slice %43 {offsets = [0, 0], sizes = [4, 128], strides = [1, 1]} : vector<4x384xf32> to vector<4x128xf32>
    %46 = arith.addf %44, %45 : vector<4x128xf32>
    %cst_25 = arith.constant 0.000000e+00 : f32
    %47 = vector.broadcast %cst_25 : f32 to vector<4x128xf32>
    %48 = arith.subf %47, %46 : vector<4x128xf32>
    %49 = math.exp %48 : vector<4x128xf32>
    %cst_26 = arith.constant 1.000000e+00 : f32
    %50 = vector.broadcast %cst_26 : f32 to vector<4x128xf32>
    %51 = arith.addf %50, %49 : vector<4x128xf32>
    %52 = tpu.reciprocal %51 {approx = true} : vector<4x128xf32> -> vector<4x128xf32>
    %53 = vector.extract_strided_slice %37 {offsets = [0, 128], sizes = [4, 128], strides = [1, 1]} : vector<4x384xf32> to vector<4x128xf32>
    %54 = vector.extract_strided_slice %43 {offsets = [0, 128], sizes = [4, 128], strides = [1, 1]} : vector<4x384xf32> to vector<4x128xf32>
    %55 = arith.addf %53, %54 : vector<4x128xf32>
    %cst_27 = arith.constant 0.000000e+00 : f32
    %56 = vector.broadcast %cst_27 : f32 to vector<4x128xf32>
    %57 = arith.subf %56, %55 : vector<4x128xf32>
    %58 = math.exp %57 : vector<4x128xf32>
    %cst_28 = arith.constant 1.000000e+00 : f32
    %59 = vector.broadcast %cst_28 : f32 to vector<4x128xf32>
    %60 = arith.addf %59, %58 : vector<4x128xf32>
    %61 = tpu.reciprocal %60 {approx = true} : vector<4x128xf32> -> vector<4x128xf32>
    %62 = vector.extract_strided_slice %37 {offsets = [0, 256], sizes = [4, 128], strides = [1, 1]} : vector<4x384xf32> to vector<4x128xf32>
    %63 = vector.extract_strided_slice %43 {offsets = [0, 256], sizes = [4, 128], strides = [1, 1]} : vector<4x384xf32> to vector<4x128xf32>
    %64 = arith.mulf %52, %63 : vector<4x128xf32>
    %65 = arith.addf %62, %64 : vector<4x128xf32>
    %66 = math.tanh %65 : vector<4x128xf32>
    %cst_29 = arith.constant 1.000000e+00 : f32
    %67 = vector.broadcast %cst_29 : f32 to vector<4x128xf32>
    %68 = arith.subf %67, %61 : vector<4x128xf32>
    %69 = arith.mulf %68, %66 : vector<4x128xf32>
    %70 = arith.mulf %61, %3 : vector<4x128xf32>
    %71 = arith.addf %69, %70 : vector<4x128xf32>
    %72 = arith.truncf %71 : vector<4x128xf32> to vector<4x128xbf16>
    %c0_30 = arith.constant 0 : index
    %c0_31 = arith.constant 0 : index
    %73 = vector.load %arg11[%c0_30, %c0_31] : memref<128x128xbf16, #tpu.memory_space<vmem>>, vector<128x128xbf16>
    %cst_32 = arith.constant dense<0.000000e+00> : vector<4x128xf32>
    %74 = tpu.matmul %72, %73, %cst_32 {dimension_numbers = #tpu.dot_dimension_numbers<[1], [0], [0], [1], [0, 0, 1, 1], [], []>} : vector<4x128xbf16>, vector<128x128xbf16>, vector<4x128xf32> -> vector<4x128xf32>
    %75 = vector.shape_cast %74 : vector<4x128xf32> to vector<4x1x128xf32>
    %76 = arith.truncf %75 : vector<4x1x128xf32> to vector<4x1x128xbf16>
    %c0_33 = arith.constant 0 : index
    %c0_34 = arith.constant 0 : index
    %c0_35 = arith.constant 0 : index
    %77 = vector.load %arg4[%c0_33, %c0_34, %c0_35] : memref<4x128x128xbf16, #tpu.memory_space<vmem>>, vector<4x128x128xbf16>
    "tpu.trace_start"() <{level = 10 : i32, message = "bqh,bsh->bqs"}> : () -> ()
    %cst_36 = arith.constant dense<0.000000e+00> : vector<4x1x128xf32>
    %78 = tpu.matmul %76, %77, %cst_36 {dimension_numbers = #tpu.dot_dimension_numbers<[2], [2], [1], [1], [0, 0, 0, 1, 1, 1], [0], [0]>} : vector<4x1x128xbf16>, vector<4x128x128xbf16>, vector<4x1x128xf32> -> vector<4x1x128xf32>
    "tpu.trace_stop"() : () -> ()
    %c0_37 = arith.constant 0 : index
    %c0_38 = arith.constant 0 : index
    %c0_39 = arith.constant 0 : index
    %79 = vector.load %arg5[%c0_37, %c0_38, %c0_39] : memref<4x1x128xf32, #tpu.memory_space<vmem>>, vector<4x1x128xf32>
    %80 = arith.mulf %79, %78 : vector<4x1x128xf32>
    %cst_40 = arith.constant 0.000000e+00 : f32
    %81 = vector.broadcast %cst_40 : f32 to vector<4x1x128xf32>
    %82 = arith.cmpf oeq, %80, %81 : vector<4x1x128xf32>
    %cst_41 = arith.constant -1.000000e+10 : f32
    %83 = vector.broadcast %cst_41 : f32 to vector<4x1x128xf32>
    %84 = arith.select %82, %83, %80 : vector<4x1x128xi1>, vector<4x1x128xf32>
    %cst_42 = arith.constant dense<0xFF800000> : vector<4x1xf32>
    %85 = vector.multi_reduction <maximumf>, %84, %cst_42 [2] : vector<4x1x128xf32> to vector<4x1xf32>
    %86 = vector.shape_cast %85 : vector<4x1xf32> to vector<4x1x1xf32>
    %87 = vector.broadcast %86 : vector<4x1x1xf32> to vector<4x1x128xf32>
    %88 = arith.subf %84, %87 : vector<4x1x128xf32>
    %89 = math.exp %88 : vector<4x1x128xf32>
    %cst_43 = arith.constant dense<0.000000e+00> : vector<4x1xf32>
    %90 = vector.multi_reduction <add>, %89, %cst_43 [2] : vector<4x1x128xf32> to vector<4x1xf32>
    %91 = vector.shape_cast %90 : vector<4x1xf32> to vector<4x1x1xf32>
    %92 = tpu.reciprocal %91 {approx = true} : vector<4x1x1xf32> -> vector<4x1x1xf32>
    %93 = vector.broadcast %92 : vector<4x1x1xf32> to vector<4x1x128xf32>
    %94 = arith.mulf %89, %93 : vector<4x1x128xf32>
    %95 = arith.truncf %94 : vector<4x1x128xf32> to vector<4x1x128xbf16>
    %c0_44 = arith.constant 0 : index
    %c0_45 = arith.constant 0 : index
    %c0_46 = arith.constant 0 : index
    %96 = vector.load %arg4[%c0_44, %c0_45, %c0_46] : memref<4x128x128xbf16, #tpu.memory_space<vmem>>, vector<4x128x128xbf16>
    "tpu.trace_start"() <{level = 10 : i32, message = "bqs,bsh->bqh"}> : () -> ()
    %cst_47 = arith.constant dense<0.000000e+00> : vector<4x1x128xf32>
    %97 = tpu.matmul %95, %96, %cst_47 {dimension_numbers = #tpu.dot_dimension_numbers<[2], [1], [1], [2], [0, 0, 0, 1, 1, 2], [0], [0]>} : vector<4x1x128xbf16>, vector<4x128x128xbf16>, vector<4x1x128xf32> -> vector<4x1x128xf32>
    "tpu.trace_stop"() : () -> ()
    %98 = vector.shape_cast %97 : vector<4x1x128xf32> to vector<4x128xf32>
    %99 = arith.truncf %98 : vector<4x128xf32> to vector<4x128xbf16>
    %c0_48 = arith.constant 0 : index
    %c0_49 = arith.constant 0 : index
    %100 = vector.load %arg12[%c0_48, %c0_49] : memref<256x128xbf16, #tpu.memory_space<vmem>>, vector<128x128xbf16>
    %cst_50 = arith.constant dense<0.000000e+00> : vector<4x128xf32>
    %101 = tpu.matmul %99, %100, %cst_50 {dimension_numbers = #tpu.dot_dimension_numbers<[1], [0], [0], [1], [0, 0, 1, 1], [], []>} : vector<4x128xbf16>, vector<128x128xbf16>, vector<4x128xf32> -> vector<4x128xf32>
    %102 = arith.truncf %71 : vector<4x128xf32> to vector<4x128xbf16>
    %c128_51 = arith.constant 128 : index
    %c0_52 = arith.constant 0 : index
    %103 = vector.load %arg12[%c128_51, %c0_52] : memref<256x128xbf16, #tpu.memory_space<vmem>>, vector<128x128xbf16>
    %cst_53 = arith.constant dense<0.000000e+00> : vector<4x128xf32>
    %104 = tpu.matmul %102, %103, %cst_53 {dimension_numbers = #tpu.dot_dimension_numbers<[1], [0], [0], [1], [0, 0, 1, 1], [], []>} : vector<4x128xbf16>, vector<128x128xbf16>, vector<4x128xf32> -> vector<4x128xf32>
    %105 = arith.addf %101, %104 : vector<4x128xf32>
    %106 = math.tanh %105 : vector<4x128xf32>
    %107 = arith.truncf %106 : vector<4x128xf32> to vector<4x128xbf16>
    %c0_54 = arith.constant 0 : index
    %c0_55 = arith.constant 0 : index
    %108 = vector.load %arg13[%c0_54, %c0_55] : memref<128x128xbf16, #tpu.memory_space<vmem>>, vector<128x128xbf16>
    %cst_56 = arith.constant dense<0.000000e+00> : vector<4x128xf32>
    %109 = tpu.matmul %107, %108, %cst_56 {dimension_numbers = #tpu.dot_dimension_numbers<[1], [0], [0], [1], [0, 0, 1, 1], [], []>} : vector<4x128xbf16>, vector<128x128xbf16>, vector<4x128xf32> -> vector<4x128xf32>
    %c0_57 = arith.constant 0 : index
    %c0_58 = arith.constant 0 : index
    %110 = vector.load %arg14[%c0_57, %c0_58] : memref<1x128xf32, #tpu.memory_space<vmem>>, vector<1x128xf32>
    %111 = vector.broadcast %110 : vector<1x128xf32> to vector<4x128xf32>
    %112 = arith.addf %109, %111 : vector<4x128xf32>
    %cst_59 = arith.constant dense<0xFF800000> : vector<4xf32>
    %113 = vector.multi_reduction <maximumf>, %112, %cst_59 [1] : vector<4x128xf32> to vector<4xf32>
    %114 = vector.shape_cast %113 : vector<4xf32> to vector<4x1xf32>
    %115 = vector.broadcast %114 : vector<4x1xf32> to vector<4x128xf32>
    %116 = arith.subf %112, %115 : vector<4x128xf32>
    %117 = math.exp %116 : vector<4x128xf32>
    %cst_60 = arith.constant dense<0.000000e+00> : vector<4xf32>
    %118 = vector.multi_reduction <add>, %117, %cst_60 [1] : vector<4x128xf32> to vector<4xf32>
    %119 = vector.shape_cast %118 : vector<4xf32> to vector<4x1xf32>
    %120 = math.log %119 : vector<4x1xf32>
    %121 = vector.broadcast %120 : vector<4x1xf32> to vector<4x128xf32>
    %122 = arith.subf %116, %121 : vector<4x128xf32>
    %c0_61 = arith.constant 0 : index
    %c0_62 = arith.constant 0 : index
    %c0_63 = arith.constant 0 : index
    %123 = vector.load %arg15[%c0_61, %c0_62, %c0_63] : memref<4x4x128xf32, #tpu.memory_space<vmem>>, vector<1x4x128xf32>
    %124 = vector.shape_cast %123 : vector<1x4x128xf32> to vector<4x128xf32>
    %125 = vector.shape_cast %122 : vector<4x128xf32> to vector<1x4x128xf32>
    tpu.vector_store %arg15[%c0_61, %c0_62, %c0_63], %125 {strides = array<i32>} : memref<4x4x128xf32, #tpu.memory_space<vmem>>, vector<1x4x128xf32>,
    %126 = vector.shape_cast %94 : vector<4x1x128xf32> to vector<4x128xf32>
    %c0_64 = arith.constant 0 : index
    %c0_65 = arith.constant 0 : index
    %c0_66 = arith.constant 0 : index
    %127 = vector.load %arg16[%c0_64, %c0_65, %c0_66] : memref<4x4x128xf32, #tpu.memory_space<vmem>>, vector<1x4x128xf32>
    %128 = vector.shape_cast %127 : vector<1x4x128xf32> to vector<4x128xf32>
    %129 = vector.shape_cast %126 : vector<4x128xf32> to vector<1x4x128xf32>
    tpu.vector_store %arg16[%c0_64, %c0_65, %c0_66], %129 {strides = array<i32>} : memref<4x4x128xf32, #tpu.memory_space<vmem>>, vector<1x4x128xf32>,
    %c4_i32_67 = arith.constant 4 : i32
    %130 = arith.muli %arg0, %c4_i32_67 : i32
    %c1_i32 = arith.constant 1 : i32
    %131 = arith.addi %130, %c1_i32 : i32
    %132 = arith.index_cast %131 : i32 to index
    %c0_68 = arith.constant 0 : index
    %133 = memref.load %arg1[%132, %c0_68] : memref<8x4xi32, #tpu.memory_space<smem>>
    %134 = arith.index_cast %133 : i32 to index
    %c0_69 = arith.constant 0 : index
    %c0_70 = arith.constant 0 : index
    %135 = vector.load %arg6[%134, %c0_69, %c0_70] : memref<128x1x128xf32, #tpu.memory_space<vmem>>, vector<1x1x128xf32>
    %136 = vector.shape_cast %135 : vector<1x1x128xf32> to vector<1x128xf32>
    %137 = arith.index_cast %131 : i32 to index
    %c1_71 = arith.constant 1 : index
    %138 = memref.load %arg1[%137, %c1_71] : memref<8x4xi32, #tpu.memory_space<smem>>
    %139 = arith.index_cast %138 : i32 to index
    %c0_72 = arith.constant 0 : index
    %c0_73 = arith.constant 0 : index
    %140 = vector.load %arg6[%139, %c0_72, %c0_73] : memref<128x1x128xf32, #tpu.memory_space<vmem>>, vector<1x1x128xf32>
    %141 = vector.shape_cast %140 : vector<1x1x128xf32> to vector<1x128xf32>
    %142 = arith.index_cast %131 : i32 to index
    %c2_74 = arith.constant 2 : index
    %143 = memref.load %arg1[%142, %c2_74] : memref<8x4xi32, #tpu.memory_space<smem>>
    %144 = arith.index_cast %143 : i32 to index
    %c0_75 = arith.constant 0 : index
    %c0_76 = arith.constant 0 : index
    %145 = vector.load %arg6[%144, %c0_75, %c0_76] : memref<128x1x128xf32, #tpu.memory_space<vmem>>, vector<1x1x128xf32>
    %146 = vector.shape_cast %145 : vector<1x1x128xf32> to vector<1x128xf32>
    %147 = arith.index_cast %131 : i32 to index
    %c3_77 = arith.constant 3 : index
    %148 = memref.load %arg1[%147, %c3_77] : memref<8x4xi32, #tpu.memory_space<smem>>
    %149 = arith.index_cast %148 : i32 to index
    %c0_78 = arith.constant 0 : index
    %c0_79 = arith.constant 0 : index
    %150 = vector.load %arg6[%149, %c0_78, %c0_79] : memref<128x1x128xf32, #tpu.memory_space<vmem>>, vector<1x1x128xf32>
    %151 = vector.shape_cast %150 : vector<1x1x128xf32> to vector<1x128xf32>
    %152 = tpu.concatenate %136, %141, %146, %151 in 0 : vector<1x128xf32>, vector<1x128xf32>, vector<1x128xf32>, vector<1x128xf32> -> vector<4x128xf32>
    %153 = arith.truncf %152 : vector<4x128xf32> to vector<4x128xbf16>
    %c0_80 = arith.constant 0 : index
    %c0_81 = arith.constant 0 : index
    %154 = vector.load %arg7[%c0_80, %c0_81] : memref<256x384xbf16, #tpu.memory_space<vmem>>, vector<128x384xbf16>
    %cst_82 = arith.constant dense<0.000000e+00> : vector<4x384xf32>
    %155 = tpu.matmul %153, %154, %cst_82 {dimension_numbers = #tpu.dot_dimension_numbers<[1], [0], [0], [1], [0, 0, 1, 1], [], []>} : vector<4x128xbf16>, vector<128x384xbf16>, vector<4x384xf32> -> vector<4x384xf32>
    %156 = arith.truncf %106 : vector<4x128xf32> to vector<4x128xbf16>
    %c128_83 = arith.constant 128 : index
    %c0_84 = arith.constant 0 : index
    %157 = vector.load %arg7[%c128_83, %c0_84] : memref<256x384xbf16, #tpu.memory_space<vmem>>, vector<128x384xbf16>
    %cst_85 = arith.constant dense<0.000000e+00> : vector<4x384xf32>
    %158 = tpu.matmul %156, %157, %cst_85 {dimension_numbers = #tpu.dot_dimension_numbers<[1], [0], [0], [1], [0, 0, 1, 1], [], []>} : vector<4x128xbf16>, vector<128x384xbf16>, vector<4x384xf32> -> vector<4x384xf32>
    %159 = arith.addf %155, %158 : vector<4x384xf32>
    %c0_86 = arith.constant 0 : index
    %c0_87 = arith.constant 0 : index
    %160 = vector.load %arg9[%c0_86, %c0_87] : memref<1x384xf32, #tpu.memory_space<vmem>>, vector<1x384xf32>
    %161 = vector.broadcast %160 : vector<1x384xf32> to vector<4x384xf32>
    %162 = arith.addf %159, %161 : vector<4x384xf32>
    %163 = arith.truncf %71 : vector<4x128xf32> to vector<4x128xbf16>
    %c0_88 = arith.constant 0 : index
    %c0_89 = arith.constant 0 : index
    %164 = vector.load %arg8[%c0_88, %c0_89] : memref<128x384xbf16, #tpu.memory_space<vmem>>, vector<128x384xbf16>
    %cst_90 = arith.constant dense<0.000000e+00> : vector<4x384xf32>
    %165 = tpu.matmul %163, %164, %cst_90 {dimension_numbers = #tpu.dot_dimension_numbers<[1], [0], [0], [1], [0, 0, 1, 1], [], []>} : vector<4x128xbf16>, vector<128x384xbf16>, vector<4x384xf32> -> vector<4x384xf32>
    %c0_91 = arith.constant 0 : index
    %c0_92 = arith.constant 0 : index
    %166 = vector.load %arg10[%c0_91, %c0_92] : memref<1x384xf32, #tpu.memory_space<vmem>>, vector<1x384xf32>
    %167 = vector.broadcast %166 : vector<1x384xf32> to vector<4x384xf32>
    %168 = arith.addf %165, %167 : vector<4x384xf32>
    %169 = vector.extract_strided_slice %162 {offsets = [0, 0], sizes = [4, 128], strides = [1, 1]} : vector<4x384xf32> to vector<4x128xf32>
    %170 = vector.extract_strided_slice %168 {offsets = [0, 0], sizes = [4, 128], strides = [1, 1]} : vector<4x384xf32> to vector<4x128xf32>
    %171 = arith.addf %169, %170 : vector<4x128xf32>
    %cst_93 = arith.constant 0.000000e+00 : f32
    %172 = vector.broadcast %cst_93 : f32 to vector<4x128xf32>
    %173 = arith.subf %172, %171 : vector<4x128xf32>
    %174 = math.exp %173 : vector<4x128xf32>
    %cst_94 = arith.constant 1.000000e+00 : f32
    %175 = vector.broadcast %cst_94 : f32 to vector<4x128xf32>
    %176 = arith.addf %175, %174 : vector<4x128xf32>
    %177 = tpu.reciprocal %176 {approx = true} : vector<4x128xf32> -> vector<4x128xf32>
    %178 = vector.extract_strided_slice %162 {offsets = [0, 128], sizes = [4, 128], strides = [1, 1]} : vector<4x384xf32> to vector<4x128xf32>
    %179 = vector.extract_strided_slice %168 {offsets = [0, 128], sizes = [4, 128], strides = [1, 1]} : vector<4x384xf32> to vector<4x128xf32>
    %180 = arith.addf %178, %179 : vector<4x128xf32>
    %cst_95 = arith.constant 0.000000e+00 : f32
    %181 = vector.broadcast %cst_95 : f32 to vector<4x128xf32>
    %182 = arith.subf %181, %180 : vector<4x128xf32>
    %183 = math.exp %182 : vector<4x128xf32>
    %cst_96 = arith.constant 1.000000e+00 : f32
    %184 = vector.broadcast %cst_96 : f32 to vector<4x128xf32>
    %185 = arith.addf %184, %183 : vector<4x128xf32>
    %186 = tpu.reciprocal %185 {approx = true} : vector<4x128xf32> -> vector<4x128xf32>
    %187 = vector.extract_strided_slice %162 {offsets = [0, 256], sizes = [4, 128], strides = [1, 1]} : vector<4x384xf32> to vector<4x128xf32>
    %188 = vector.extract_strided_slice %168 {offsets = [0, 256], sizes = [4, 128], strides = [1, 1]} : vector<4x384xf32> to vector<4x128xf32>
    %189 = arith.mulf %177, %188 : vector<4x128xf32>
    %190 = arith.addf %187, %189 : vector<4x128xf32>
    %191 = math.tanh %190 : vector<4x128xf32>
    %cst_97 = arith.constant 1.000000e+00 : f32
    %192 = vector.broadcast %cst_97 : f32 to vector<4x128xf32>
    %193 = arith.subf %192, %186 : vector<4x128xf32>
    %194 = arith.mulf %193, %191 : vector<4x128xf32>
    %195 = arith.mulf %186, %71 : vector<4x128xf32>
    %196 = arith.addf %194, %195 : vector<4x128xf32>
    %197 = arith.truncf %196 : vector<4x128xf32> to vector<4x128xbf16>
    %c0_98 = arith.constant 0 : index
    %c0_99 = arith.constant 0 : index
    %198 = vector.load %arg11[%c0_98, %c0_99] : memref<128x128xbf16, #tpu.memory_space<vmem>>, vector<128x128xbf16>
    %cst_100 = arith.constant dense<0.000000e+00> : vector<4x128xf32>
    %199 = tpu.matmul %197, %198, %cst_100 {dimension_numbers = #tpu.dot_dimension_numbers<[1], [0], [0], [1], [0, 0, 1, 1], [], []>} : vector<4x128xbf16>, vector<128x128xbf16>, vector<4x128xf32> -> vector<4x128xf32>
    %200 = vector.shape_cast %199 : vector<4x128xf32> to vector<4x1x128xf32>
    %201 = arith.truncf %200 : vector<4x1x128xf32> to vector<4x1x128xbf16>
    %c0_101 = arith.constant 0 : index
    %c0_102 = arith.constant 0 : index
    %c0_103 = arith.constant 0 : index
    %202 = vector.load %arg4[%c0_101, %c0_102, %c0_103] : memref<4x128x128xbf16, #tpu.memory_space<vmem>>, vector<4x128x128xbf16>
    "tpu.trace_start"() <{level = 10 : i32, message = "bqh,bsh->bqs"}> : () -> ()
    %cst_104 = arith.constant dense<0.000000e+00> : vector<4x1x128xf32>
    %203 = tpu.matmul %201, %202, %cst_104 {dimension_numbers = #tpu.dot_dimension_numbers<[2], [2], [1], [1], [0, 0, 0, 1, 1, 1], [0], [0]>} : vector<4x1x128xbf16>, vector<4x128x128xbf16>, vector<4x1x128xf32> -> vector<4x1x128xf32>
    "tpu.trace_stop"() : () -> ()
    %c0_105 = arith.constant 0 : index
    %c0_106 = arith.constant 0 : index
    %c0_107 = arith.constant 0 : index
    %204 = vector.load %arg5[%c0_105, %c0_106, %c0_107] : memref<4x1x128xf32, #tpu.memory_space<vmem>>, vector<4x1x128xf32>
    %205 = arith.mulf %204, %203 : vector<4x1x128xf32>
    %cst_108 = arith.constant 0.000000e+00 : f32
    %206 = vector.broadcast %cst_108 : f32 to vector<4x1x128xf32>
    %207 = arith.cmpf oeq, %205, %206 : vector<4x1x128xf32>
    %cst_109 = arith.constant -1.000000e+10 : f32
    %208 = vector.broadcast %cst_109 : f32 to vector<4x1x128xf32>
    %209 = arith.select %207, %208, %205 : vector<4x1x128xi1>, vector<4x1x128xf32>
    %cst_110 = arith.constant dense<0xFF800000> : vector<4x1xf32>
    %210 = vector.multi_reduction <maximumf>, %209, %cst_110 [2] : vector<4x1x128xf32> to vector<4x1xf32>
    %211 = vector.shape_cast %210 : vector<4x1xf32> to vector<4x1x1xf32>
    %212 = vector.broadcast %211 : vector<4x1x1xf32> to vector<4x1x128xf32>
    %213 = arith.subf %209, %212 : vector<4x1x128xf32>
    %214 = math.exp %213 : vector<4x1x128xf32>
    %cst_111 = arith.constant dense<0.000000e+00> : vector<4x1xf32>
    %215 = vector.multi_reduction <add>, %214, %cst_111 [2] : vector<4x1x128xf32> to vector<4x1xf32>
    %216 = vector.shape_cast %215 : vector<4x1xf32> to vector<4x1x1xf32>
    %217 = tpu.reciprocal %216 {approx = true} : vector<4x1x1xf32> -> vector<4x1x1xf32>
    %218 = vector.broadcast %217 : vector<4x1x1xf32> to vector<4x1x128xf32>
    %219 = arith.mulf %214, %218 : vector<4x1x128xf32>
    %220 = arith.truncf %219 : vector<4x1x128xf32> to vector<4x1x128xbf16>
    %c0_112 = arith.constant 0 : index
    %c0_113 = arith.constant 0 : index
    %c0_114 = arith.constant 0 : index
    %221 = vector.load %arg4[%c0_112, %c0_113, %c0_114] : memref<4x128x128xbf16, #tpu.memory_space<vmem>>, vector<4x128x128xbf16>
    "tpu.trace_start"() <{level = 10 : i32, message = "bqs,bsh->bqh"}> : () -> ()
    %cst_115 = arith.constant dense<0.000000e+00> : vector<4x1x128xf32>
    %222 = tpu.matmul %220, %221, %cst_115 {dimension_numbers = #tpu.dot_dimension_numbers<[2], [1], [1], [2], [0, 0, 0, 1, 1, 2], [0], [0]>} : vector<4x1x128xbf16>, vector<4x128x128xbf16>, vector<4x1x128xf32> -> vector<4x1x128xf32>
    "tpu.trace_stop"() : () -> ()
    %223 = vector.shape_cast %222 : vector<4x1x128xf32> to vector<4x128xf32>
    %224 = arith.truncf %223 : vector<4x128xf32> to vector<4x128xbf16>
    %c0_116 = arith.constant 0 : index
    %c0_117 = arith.constant 0 : index
    %225 = vector.load %arg12[%c0_116, %c0_117] : memref<256x128xbf16, #tpu.memory_space<vmem>>, vector<128x128xbf16>
    %cst_118 = arith.constant dense<0.000000e+00> : vector<4x128xf32>
    %226 = tpu.matmul %224, %225, %cst_118 {dimension_numbers = #tpu.dot_dimension_numbers<[1], [0], [0], [1], [0, 0, 1, 1], [], []>} : vector<4x128xbf16>, vector<128x128xbf16>, vector<4x128xf32> -> vector<4x128xf32>
    %227 = arith.truncf %196 : vector<4x128xf32> to vector<4x128xbf16>
    %c128_119 = arith.constant 128 : index
    %c0_120 = arith.constant 0 : index
    %228 = vector.load %arg12[%c128_119, %c0_120] : memref<256x128xbf16, #tpu.memory_space<vmem>>, vector<128x128xbf16>
    %cst_121 = arith.constant dense<0.000000e+00> : vector<4x128xf32>
    %229 = tpu.matmul %227, %228, %cst_121 {dimension_numbers = #tpu.dot_dimension_numbers<[1], [0], [0], [1], [0, 0, 1, 1], [], []>} : vector<4x128xbf16>, vector<128x128xbf16>, vector<4x128xf32> -> vector<4x128xf32>
    %230 = arith.addf %226, %229 : vector<4x128xf32>
    %231 = math.tanh %230 : vector<4x128xf32>
    %232 = arith.truncf %231 : vector<4x128xf32> to vector<4x128xbf16>
    %c0_122 = arith.constant 0 : index
    %c0_123 = arith.constant 0 : index
    %233 = vector.load %arg13[%c0_122, %c0_123] : memref<128x128xbf16, #tpu.memory_space<vmem>>, vector<128x128xbf16>
    %cst_124 = arith.constant dense<0.000000e+00> : vector<4x128xf32>
    %234 = tpu.matmul %232, %233, %cst_124 {dimension_numbers = #tpu.dot_dimension_numbers<[1], [0], [0], [1], [0, 0, 1, 1], [], []>} : vector<4x128xbf16>, vector<128x128xbf16>, vector<4x128xf32> -> vector<4x128xf32>
    %c0_125 = arith.constant 0 : index
    %c0_126 = arith.constant 0 : index
    %235 = vector.load %arg14[%c0_125, %c0_126] : memref<1x128xf32, #tpu.memory_space<vmem>>, vector<1x128xf32>
    %236 = vector.broadcast %235 : vector<1x128xf32> to vector<4x128xf32>
    %237 = arith.addf %234, %236 : vector<4x128xf32>
    %cst_127 = arith.constant dense<0xFF800000> : vector<4xf32>
    %238 = vector.multi_reduction <maximumf>, %237, %cst_127 [1] : vector<4x128xf32> to vector<4xf32>
    %239 = vector.shape_cast %238 : vector<4xf32> to vector<4x1xf32>
    %240 = vector.broadcast %239 : vector<4x1xf32> to vector<4x128xf32>
    %241 = arith.subf %237, %240 : vector<4x128xf32>
    %242 = math.exp %241 : vector<4x128xf32>
    %cst_128 = arith.constant dense<0.000000e+00> : vector<4xf32>
    %243 = vector.multi_reduction <add>, %242, %cst_128 [1] : vector<4x128xf32> to vector<4xf32>
    %244 = vector.shape_cast %243 : vector<4xf32> to vector<4x1xf32>
    %245 = math.log %244 : vector<4x1xf32>
    %246 = vector.broadcast %245 : vector<4x1xf32> to vector<4x128xf32>
    %247 = arith.subf %241, %246 : vector<4x128xf32>
    %c1_129 = arith.constant 1 : index
    %c0_130 = arith.constant 0 : index
    %c0_131 = arith.constant 0 : index
    %248 = vector.load %arg15[%c1_129, %c0_130, %c0_131] : memref<4x4x128xf32, #tpu.memory_space<vmem>>, vector<1x4x128xf32>
    %249 = vector.shape_cast %248 : vector<1x4x128xf32> to vector<4x128xf32>
    %250 = vector.shape_cast %247 : vector<4x128xf32> to vector<1x4x128xf32>
    tpu.vector_store %arg15[%c1_129, %c0_130, %c0_131], %250 {strides = array<i32>} : memref<4x4x128xf32, #tpu.memory_space<vmem>>, vector<1x4x128xf32>,
    %251 = vector.shape_cast %219 : vector<4x1x128xf32> to vector<4x128xf32>
    %c1_132 = arith.constant 1 : index
    %c0_133 = arith.constant 0 : index
    %c0_134 = arith.constant 0 : index
    %252 = vector.load %arg16[%c1_132, %c0_133, %c0_134] : memref<4x4x128xf32, #tpu.memory_space<vmem>>, vector<1x4x128xf32>
    %253 = vector.shape_cast %252 : vector<1x4x128xf32> to vector<4x128xf32>
    %254 = vector.shape_cast %251 : vector<4x128xf32> to vector<1x4x128xf32>
    tpu.vector_store %arg16[%c1_132, %c0_133, %c0_134], %254 {strides = array<i32>} : memref<4x4x128xf32, #tpu.memory_space<vmem>>, vector<1x4x128xf32>,
    %c4_i32_135 = arith.constant 4 : i32
    %255 = arith.muli %arg0, %c4_i32_135 : i32
    %c2_i32 = arith.constant 2 : i32
    %256 = arith.addi %255, %c2_i32 : i32
    %257 = arith.index_cast %256 : i32 to index
    %c0_136 = arith.constant 0 : index
    %258 = memref.load %arg1[%257, %c0_136] : memref<8x4xi32, #tpu.memory_space<smem>>
    %259 = arith.index_cast %258 : i32 to index
    %c0_137 = arith.constant 0 : index
    %c0_138 = arith.constant 0 : index
    %260 = vector.load %arg6[%259, %c0_137, %c0_138] : memref<128x1x128xf32, #tpu.memory_space<vmem>>, vector<1x1x128xf32>
    %261 = vector.shape_cast %260 : vector<1x1x128xf32> to vector<1x128xf32>
    %262 = arith.index_cast %256 : i32 to index
    %c1_139 = arith.constant 1 : index
    %263 = memref.load %arg1[%262, %c1_139] : memref<8x4xi32, #tpu.memory_space<smem>>
    %264 = arith.index_cast %263 : i32 to index
    %c0_140 = arith.constant 0 : index
    %c0_141 = arith.constant 0 : index
    %265 = vector.load %arg6[%264, %c0_140, %c0_141] : memref<128x1x128xf32, #tpu.memory_space<vmem>>, vector<1x1x128xf32>
    %266 = vector.shape_cast %265 : vector<1x1x128xf32> to vector<1x128xf32>
    %267 = arith.index_cast %256 : i32 to index
    %c2_142 = arith.constant 2 : index
    %268 = memref.load %arg1[%267, %c2_142] : memref<8x4xi32, #tpu.memory_space<smem>>
    %269 = arith.index_cast %268 : i32 to index
    %c0_143 = arith.constant 0 : index
    %c0_144 = arith.constant 0 : index
    %270 = vector.load %arg6[%269, %c0_143, %c0_144] : memref<128x1x128xf32, #tpu.memory_space<vmem>>, vector<1x1x128xf32>
    %271 = vector.shape_cast %270 : vector<1x1x128xf32> to vector<1x128xf32>
    %272 = arith.index_cast %256 : i32 to index
    %c3_145 = arith.constant 3 : index
    %273 = memref.load %arg1[%272, %c3_145] : memref<8x4xi32, #tpu.memory_space<smem>>
    %274 = arith.index_cast %273 : i32 to index
    %c0_146 = arith.constant 0 : index
    %c0_147 = arith.constant 0 : index
    %275 = vector.load %arg6[%274, %c0_146, %c0_147] : memref<128x1x128xf32, #tpu.memory_space<vmem>>, vector<1x1x128xf32>
    %276 = vector.shape_cast %275 : vector<1x1x128xf32> to vector<1x128xf32>
    %277 = tpu.concatenate %261, %266, %271, %276 in 0 : vector<1x128xf32>, vector<1x128xf32>, vector<1x128xf32>, vector<1x128xf32> -> vector<4x128xf32>
    %278 = arith.truncf %277 : vector<4x128xf32> to vector<4x128xbf16>
    %c0_148 = arith.constant 0 : index
    %c0_149 = arith.constant 0 : index
    %279 = vector.load %arg7[%c0_148, %c0_149] : memref<256x384xbf16, #tpu.memory_space<vmem>>, vector<128x384xbf16>
    %cst_150 = arith.constant dense<0.000000e+00> : vector<4x384xf32>
    %280 = tpu.matmul %278, %279, %cst_150 {dimension_numbers = #tpu.dot_dimension_numbers<[1], [0], [0], [1], [0, 0, 1, 1], [], []>} : vector<4x128xbf16>, vector<128x384xbf16>, vector<4x384xf32> -> vector<4x384xf32>
    %281 = arith.truncf %231 : vector<4x128xf32> to vector<4x128xbf16>
    %c128_151 = arith.constant 128 : index
    %c0_152 = arith.constant 0 : index
    %282 = vector.load %arg7[%c128_151, %c0_152] : memref<256x384xbf16, #tpu.memory_space<vmem>>, vector<128x384xbf16>
    %cst_153 = arith.constant dense<0.000000e+00> : vector<4x384xf32>
    %283 = tpu.matmul %281, %282, %cst_153 {dimension_numbers = #tpu.dot_dimension_numbers<[1], [0], [0], [1], [0, 0, 1, 1], [], []>} : vector<4x128xbf16>, vector<128x384xbf16>, vector<4x384xf32> -> vector<4x384xf32>
    %284 = arith.addf %280, %283 : vector<4x384xf32>
    %c0_154 = arith.constant 0 : index
    %c0_155 = arith.constant 0 : index
    %285 = vector.load %arg9[%c0_154, %c0_155] : memref<1x384xf32, #tpu.memory_space<vmem>>, vector<1x384xf32>
    %286 = vector.broadcast %285 : vector<1x384xf32> to vector<4x384xf32>
    %287 = arith.addf %284, %286 : vector<4x384xf32>
    %288 = arith.truncf %196 : vector<4x128xf32> to vector<4x128xbf16>
    %c0_156 = arith.constant 0 : index
    %c0_157 = arith.constant 0 : index
    %289 = vector.load %arg8[%c0_156, %c0_157] : memref<128x384xbf16, #tpu.memory_space<vmem>>, vector<128x384xbf16>
    %cst_158 = arith.constant dense<0.000000e+00> : vector<4x384xf32>
    %290 = tpu.matmul %288, %289, %cst_158 {dimension_numbers = #tpu.dot_dimension_numbers<[1], [0], [0], [1], [0, 0, 1, 1], [], []>} : vector<4x128xbf16>, vector<128x384xbf16>, vector<4x384xf32> -> vector<4x384xf32>
    %c0_159 = arith.constant 0 : index
    %c0_160 = arith.constant 0 : index
    %291 = vector.load %arg10[%c0_159, %c0_160] : memref<1x384xf32, #tpu.memory_space<vmem>>, vector<1x384xf32>
    %292 = vector.broadcast %291 : vector<1x384xf32> to vector<4x384xf32>
    %293 = arith.addf %290, %292 : vector<4x384xf32>
    %294 = vector.extract_strided_slice %287 {offsets = [0, 0], sizes = [4, 128], strides = [1, 1]} : vector<4x384xf32> to vector<4x128xf32>
    %295 = vector.extract_strided_slice %293 {offsets = [0, 0], sizes = [4, 128], strides = [1, 1]} : vector<4x384xf32> to vector<4x128xf32>
    %296 = arith.addf %294, %295 : vector<4x128xf32>
    %cst_161 = arith.constant 0.000000e+00 : f32
    %297 = vector.broadcast %cst_161 : f32 to vector<4x128xf32>
    %298 = arith.subf %297, %296 : vector<4x128xf32>
    %299 = math.exp %298 : vector<4x128xf32>
    %cst_162 = arith.constant 1.000000e+00 : f32
    %300 = vector.broadcast %cst_162 : f32 to vector<4x128xf32>
    %301 = arith.addf %300, %299 : vector<4x128xf32>
    %302 = tpu.reciprocal %301 {approx = true} : vector<4x128xf32> -> vector<4x128xf32>
    %303 = vector.extract_strided_slice %287 {offsets = [0, 128], sizes = [4, 128], strides = [1, 1]} : vector<4x384xf32> to vector<4x128xf32>
    %304 = vector.extract_strided_slice %293 {offsets = [0, 128], sizes = [4, 128], strides = [1, 1]} : vector<4x384xf32> to vector<4x128xf32>
    %305 = arith.addf %303, %304 : vector<4x128xf32>
    %cst_163 = arith.constant 0.000000e+00 : f32
    %306 = vector.broadcast %cst_163 : f32 to vector<4x128xf32>
    %307 = arith.subf %306, %305 : vector<4x128xf32>
    %308 = math.exp %307 : vector<4x128xf32>
    %cst_164 = arith.constant 1.000000e+00 : f32
    %309 = vector.broadcast %cst_164 : f32 to vector<4x128xf32>
    %310 = arith.addf %309, %308 : vector<4x128xf32>
    %311 = tpu.reciprocal %310 {approx = true} : vector<4x128xf32> -> vector<4x128xf32>
    %312 = vector.extract_strided_slice %287 {offsets = [0, 256], sizes = [4, 128], strides = [1, 1]} : vector<4x384xf32> to vector<4x128xf32>
    %313 = vector.extract_strided_slice %293 {offsets = [0, 256], sizes = [4, 128], strides = [1, 1]} : vector<4x384xf32> to vector<4x128xf32>
    %314 = arith.mulf %302, %313 : vector<4x128xf32>
    %315 = arith.addf %312, %314 : vector<4x128xf32>
    %316 = math.tanh %315 : vector<4x128xf32>
    %cst_165 = arith.constant 1.000000e+00 : f32
    %317 = vector.broadcast %cst_165 : f32 to vector<4x128xf32>
    %318 = arith.subf %317, %311 : vector<4x128xf32>
    %319 = arith.mulf %318, %316 : vector<4x128xf32>
    %320 = arith.mulf %311, %196 : vector<4x128xf32>
    %321 = arith.addf %319, %320 : vector<4x128xf32>
    %322 = arith.truncf %321 : vector<4x128xf32> to vector<4x128xbf16>
    %c0_166 = arith.constant 0 : index
    %c0_167 = arith.constant 0 : index
    %323 = vector.load %arg11[%c0_166, %c0_167] : memref<128x128xbf16, #tpu.memory_space<vmem>>, vector<128x128xbf16>
    %cst_168 = arith.constant dense<0.000000e+00> : vector<4x128xf32>
    %324 = tpu.matmul %322, %323, %cst_168 {dimension_numbers = #tpu.dot_dimension_numbers<[1], [0], [0], [1], [0, 0, 1, 1], [], []>} : vector<4x128xbf16>, vector<128x128xbf16>, vector<4x128xf32> -> vector<4x128xf32>
    %325 = vector.shape_cast %324 : vector<4x128xf32> to vector<4x1x128xf32>
    %326 = arith.truncf %325 : vector<4x1x128xf32> to vector<4x1x128xbf16>
    %c0_169 = arith.constant 0 : index
    %c0_170 = arith.constant 0 : index
    %c0_171 = arith.constant 0 : index
    %327 = vector.load %arg4[%c0_169, %c0_170, %c0_171] : memref<4x128x128xbf16, #tpu.memory_space<vmem>>, vector<4x128x128xbf16>
    "tpu.trace_start"() <{level = 10 : i32, message = "bqh,bsh->bqs"}> : () -> ()
    %cst_172 = arith.constant dense<0.000000e+00> : vector<4x1x128xf32>
    %328 = tpu.matmul %326, %327, %cst_172 {dimension_numbers = #tpu.dot_dimension_numbers<[2], [2], [1], [1], [0, 0, 0, 1, 1, 1], [0], [0]>} : vector<4x1x128xbf16>, vector<4x128x128xbf16>, vector<4x1x128xf32> -> vector<4x1x128xf32>
    "tpu.trace_stop"() : () -> ()
    %c0_173 = arith.constant 0 : index
    %c0_174 = arith.constant 0 : index
    %c0_175 = arith.constant 0 : index
    %329 = vector.load %arg5[%c0_173, %c0_174, %c0_175] : memref<4x1x128xf32, #tpu.memory_space<vmem>>, vector<4x1x128xf32>
    %330 = arith.mulf %329, %328 : vector<4x1x128xf32>
    %cst_176 = arith.constant 0.000000e+00 : f32
    %331 = vector.broadcast %cst_176 : f32 to vector<4x1x128xf32>
    %332 = arith.cmpf oeq, %330, %331 : vector<4x1x128xf32>
    %cst_177 = arith.constant -1.000000e+10 : f32
    %333 = vector.broadcast %cst_177 : f32 to vector<4x1x128xf32>
    %334 = arith.select %332, %333, %330 : vector<4x1x128xi1>, vector<4x1x128xf32>
    %cst_178 = arith.constant dense<0xFF800000> : vector<4x1xf32>
    %335 = vector.multi_reduction <maximumf>, %334, %cst_178 [2] : vector<4x1x128xf32> to vector<4x1xf32>
    %336 = vector.shape_cast %335 : vector<4x1xf32> to vector<4x1x1xf32>
    %337 = vector.broadcast %336 : vector<4x1x1xf32> to vector<4x1x128xf32>
    %338 = arith.subf %334, %337 : vector<4x1x128xf32>
    %339 = math.exp %338 : vector<4x1x128xf32>
    %cst_179 = arith.constant dense<0.000000e+00> : vector<4x1xf32>
    %340 = vector.multi_reduction <add>, %339, %cst_179 [2] : vector<4x1x128xf32> to vector<4x1xf32>
    %341 = vector.shape_cast %340 : vector<4x1xf32> to vector<4x1x1xf32>
    %342 = tpu.reciprocal %341 {approx = true} : vector<4x1x1xf32> -> vector<4x1x1xf32>
    %343 = vector.broadcast %342 : vector<4x1x1xf32> to vector<4x1x128xf32>
    %344 = arith.mulf %339, %343 : vector<4x1x128xf32>
    %345 = arith.truncf %344 : vector<4x1x128xf32> to vector<4x1x128xbf16>
    %c0_180 = arith.constant 0 : index
    %c0_181 = arith.constant 0 : index
    %c0_182 = arith.constant 0 : index
    %346 = vector.load %arg4[%c0_180, %c0_181, %c0_182] : memref<4x128x128xbf16, #tpu.memory_space<vmem>>, vector<4x128x128xbf16>
    "tpu.trace_start"() <{level = 10 : i32, message = "bqs,bsh->bqh"}> : () -> ()
    %cst_183 = arith.constant dense<0.000000e+00> : vector<4x1x128xf32>
    %347 = tpu.matmul %345, %346, %cst_183 {dimension_numbers = #tpu.dot_dimension_numbers<[2], [1], [1], [2], [0, 0, 0, 1, 1, 2], [0], [0]>} : vector<4x1x128xbf16>, vector<4x128x128xbf16>, vector<4x1x128xf32> -> vector<4x1x128xf32>
    "tpu.trace_stop"() : () -> ()
    %348 = vector.shape_cast %347 : vector<4x1x128xf32> to vector<4x128xf32>
    %349 = arith.truncf %348 : vector<4x128xf32> to vector<4x128xbf16>
    %c0_184 = arith.constant 0 : index
    %c0_185 = arith.constant 0 : index
    %350 = vector.load %arg12[%c0_184, %c0_185] : memref<256x128xbf16, #tpu.memory_space<vmem>>, vector<128x128xbf16>
    %cst_186 = arith.constant dense<0.000000e+00> : vector<4x128xf32>
    %351 = tpu.matmul %349, %350, %cst_186 {dimension_numbers = #tpu.dot_dimension_numbers<[1], [0], [0], [1], [0, 0, 1, 1], [], []>} : vector<4x128xbf16>, vector<128x128xbf16>, vector<4x128xf32> -> vector<4x128xf32>
    %352 = arith.truncf %321 : vector<4x128xf32> to vector<4x128xbf16>
    %c128_187 = arith.constant 128 : index
    %c0_188 = arith.constant 0 : index
    %353 = vector.load %arg12[%c128_187, %c0_188] : memref<256x128xbf16, #tpu.memory_space<vmem>>, vector<128x128xbf16>
    %cst_189 = arith.constant dense<0.000000e+00> : vector<4x128xf32>
    %354 = tpu.matmul %352, %353, %cst_189 {dimension_numbers = #tpu.dot_dimension_numbers<[1], [0], [0], [1], [0, 0, 1, 1], [], []>} : vector<4x128xbf16>, vector<128x128xbf16>, vector<4x128xf32> -> vector<4x128xf32>
    %355 = arith.addf %351, %354 : vector<4x128xf32>
    %356 = math.tanh %355 : vector<4x128xf32>
    %357 = arith.truncf %356 : vector<4x128xf32> to vector<4x128xbf16>
    %c0_190 = arith.constant 0 : index
    %c0_191 = arith.constant 0 : index
    %358 = vector.load %arg13[%c0_190, %c0_191] : memref<128x128xbf16, #tpu.memory_space<vmem>>, vector<128x128xbf16>
    %cst_192 = arith.constant dense<0.000000e+00> : vector<4x128xf32>
    %359 = tpu.matmul %357, %358, %cst_192 {dimension_numbers = #tpu.dot_dimension_numbers<[1], [0], [0], [1], [0, 0, 1, 1], [], []>} : vector<4x128xbf16>, vector<128x128xbf16>, vector<4x128xf32> -> vector<4x128xf32>
    %c0_193 = arith.constant 0 : index
    %c0_194 = arith.constant 0 : index
    %360 = vector.load %arg14[%c0_193, %c0_194] : memref<1x128xf32, #tpu.memory_space<vmem>>, vector<1x128xf32>
    %361 = vector.broadcast %360 : vector<1x128xf32> to vector<4x128xf32>
    %362 = arith.addf %359, %361 : vector<4x128xf32>
    %cst_195 = arith.constant dense<0xFF800000> : vector<4xf32>
    %363 = vector.multi_reduction <maximumf>, %362, %cst_195 [1] : vector<4x128xf32> to vector<4xf32>
    %364 = vector.shape_cast %363 : vector<4xf32> to vector<4x1xf32>
    %365 = vector.broadcast %364 : vector<4x1xf32> to vector<4x128xf32>
    %366 = arith.subf %362, %365 : vector<4x128xf32>
    %367 = math.exp %366 : vector<4x128xf32>
    %cst_196 = arith.constant dense<0.000000e+00> : vector<4xf32>
    %368 = vector.multi_reduction <add>, %367, %cst_196 [1] : vector<4x128xf32> to vector<4xf32>
    %369 = vector.shape_cast %368 : vector<4xf32> to vector<4x1xf32>
    %370 = math.log %369 : vector<4x1xf32>
    %371 = vector.broadcast %370 : vector<4x1xf32> to vector<4x128xf32>
    %372 = arith.subf %366, %371 : vector<4x128xf32>
    %c2_197 = arith.constant 2 : index
    %c0_198 = arith.constant 0 : index
    %c0_199 = arith.constant 0 : index
    %373 = vector.load %arg15[%c2_197, %c0_198, %c0_199] : memref<4x4x128xf32, #tpu.memory_space<vmem>>, vector<1x4x128xf32>
    %374 = vector.shape_cast %373 : vector<1x4x128xf32> to vector<4x128xf32>
    %375 = vector.shape_cast %372 : vector<4x128xf32> to vector<1x4x128xf32>
    tpu.vector_store %arg15[%c2_197, %c0_198, %c0_199], %375 {strides = array<i32>} : memref<4x4x128xf32, #tpu.memory_space<vmem>>, vector<1x4x128xf32>,
    %376 = vector.shape_cast %344 : vector<4x1x128xf32> to vector<4x128xf32>
    %c2_200 = arith.constant 2 : index
    %c0_201 = arith.constant 0 : index
    %c0_202 = arith.constant 0 : index
    %377 = vector.load %arg16[%c2_200, %c0_201, %c0_202] : memref<4x4x128xf32, #tpu.memory_space<vmem>>, vector<1x4x128xf32>
    %378 = vector.shape_cast %377 : vector<1x4x128xf32> to vector<4x128xf32>
    %379 = vector.shape_cast %376 : vector<4x128xf32> to vector<1x4x128xf32>
    tpu.vector_store %arg16[%c2_200, %c0_201, %c0_202], %379 {strides = array<i32>} : memref<4x4x128xf32, #tpu.memory_space<vmem>>, vector<1x4x128xf32>,
    %c4_i32_203 = arith.constant 4 : i32
    %380 = arith.muli %arg0, %c4_i32_203 : i32
    %c3_i32 = arith.constant 3 : i32
    %381 = arith.addi %380, %c3_i32 : i32
    %382 = arith.index_cast %381 : i32 to index
    %c0_204 = arith.constant 0 : index
    %383 = memref.load %arg1[%382, %c0_204] : memref<8x4xi32, #tpu.memory_space<smem>>
    %384 = arith.index_cast %383 : i32 to index
    %c0_205 = arith.constant 0 : index
    %c0_206 = arith.constant 0 : index
    %385 = vector.load %arg6[%384, %c0_205, %c0_206] : memref<128x1x128xf32, #tpu.memory_space<vmem>>, vector<1x1x128xf32>
    %386 = vector.shape_cast %385 : vector<1x1x128xf32> to vector<1x128xf32>
    %387 = arith.index_cast %381 : i32 to index
    %c1_207 = arith.constant 1 : index
    %388 = memref.load %arg1[%387, %c1_207] : memref<8x4xi32, #tpu.memory_space<smem>>
    %389 = arith.index_cast %388 : i32 to index
    %c0_208 = arith.constant 0 : index
    %c0_209 = arith.constant 0 : index
    %390 = vector.load %arg6[%389, %c0_208, %c0_209] : memref<128x1x128xf32, #tpu.memory_space<vmem>>, vector<1x1x128xf32>
    %391 = vector.shape_cast %390 : vector<1x1x128xf32> to vector<1x128xf32>
    %392 = arith.index_cast %381 : i32 to index
    %c2_210 = arith.constant 2 : index
    %393 = memref.load %arg1[%392, %c2_210] : memref<8x4xi32, #tpu.memory_space<smem>>
    %394 = arith.index_cast %393 : i32 to index
    %c0_211 = arith.constant 0 : index
    %c0_212 = arith.constant 0 : index
    %395 = vector.load %arg6[%394, %c0_211, %c0_212] : memref<128x1x128xf32, #tpu.memory_space<vmem>>, vector<1x1x128xf32>
    %396 = vector.shape_cast %395 : vector<1x1x128xf32> to vector<1x128xf32>
    %397 = arith.index_cast %381 : i32 to index
    %c3_213 = arith.constant 3 : index
    %398 = memref.load %arg1[%397, %c3_213] : memref<8x4xi32, #tpu.memory_space<smem>>
    %399 = arith.index_cast %398 : i32 to index
    %c0_214 = arith.constant 0 : index
    %c0_215 = arith.constant 0 : index
    %400 = vector.load %arg6[%399, %c0_214, %c0_215] : memref<128x1x128xf32, #tpu.memory_space<vmem>>, vector<1x1x128xf32>
    %401 = vector.shape_cast %400 : vector<1x1x128xf32> to vector<1x128xf32>
    %402 = tpu.concatenate %386, %391, %396, %401 in 0 : vector<1x128xf32>, vector<1x128xf32>, vector<1x128xf32>, vector<1x128xf32> -> vector<4x128xf32>
    %403 = arith.truncf %402 : vector<4x128xf32> to vector<4x128xbf16>
    %c0_216 = arith.constant 0 : index
    %c0_217 = arith.constant 0 : index
    %404 = vector.load %arg7[%c0_216, %c0_217] : memref<256x384xbf16, #tpu.memory_space<vmem>>, vector<128x384xbf16>
    %cst_218 = arith.constant dense<0.000000e+00> : vector<4x384xf32>
    %405 = tpu.matmul %403, %404, %cst_218 {dimension_numbers = #tpu.dot_dimension_numbers<[1], [0], [0], [1], [0, 0, 1, 1], [], []>} : vector<4x128xbf16>, vector<128x384xbf16>, vector<4x384xf32> -> vector<4x384xf32>
    %406 = arith.truncf %356 : vector<4x128xf32> to vector<4x128xbf16>
    %c128_219 = arith.constant 128 : index
    %c0_220 = arith.constant 0 : index
    %407 = vector.load %arg7[%c128_219, %c0_220] : memref<256x384xbf16, #tpu.memory_space<vmem>>, vector<128x384xbf16>
    %cst_221 = arith.constant dense<0.000000e+00> : vector<4x384xf32>
    %408 = tpu.matmul %406, %407, %cst_221 {dimension_numbers = #tpu.dot_dimension_numbers<[1], [0], [0], [1], [0, 0, 1, 1], [], []>} : vector<4x128xbf16>, vector<128x384xbf16>, vector<4x384xf32> -> vector<4x384xf32>
    %409 = arith.addf %405, %408 : vector<4x384xf32>
    %c0_222 = arith.constant 0 : index
    %c0_223 = arith.constant 0 : index
    %410 = vector.load %arg9[%c0_222, %c0_223] : memref<1x384xf32, #tpu.memory_space<vmem>>, vector<1x384xf32>
    %411 = vector.broadcast %410 : vector<1x384xf32> to vector<4x384xf32>
    %412 = arith.addf %409, %411 : vector<4x384xf32>
    %413 = arith.truncf %321 : vector<4x128xf32> to vector<4x128xbf16>
    %c0_224 = arith.constant 0 : index
    %c0_225 = arith.constant 0 : index
    %414 = vector.load %arg8[%c0_224, %c0_225] : memref<128x384xbf16, #tpu.memory_space<vmem>>, vector<128x384xbf16>
    %cst_226 = arith.constant dense<0.000000e+00> : vector<4x384xf32>
    %415 = tpu.matmul %413, %414, %cst_226 {dimension_numbers = #tpu.dot_dimension_numbers<[1], [0], [0], [1], [0, 0, 1, 1], [], []>} : vector<4x128xbf16>, vector<128x384xbf16>, vector<4x384xf32> -> vector<4x384xf32>
    %c0_227 = arith.constant 0 : index
    %c0_228 = arith.constant 0 : index
    %416 = vector.load %arg10[%c0_227, %c0_228] : memref<1x384xf32, #tpu.memory_space<vmem>>, vector<1x384xf32>
    %417 = vector.broadcast %416 : vector<1x384xf32> to vector<4x384xf32>
    %418 = arith.addf %415, %417 : vector<4x384xf32>
    %419 = vector.extract_strided_slice %412 {offsets = [0, 0], sizes = [4, 128], strides = [1, 1]} : vector<4x384xf32> to vector<4x128xf32>
    %420 = vector.extract_strided_slice %418 {offsets = [0, 0], sizes = [4, 128], strides = [1, 1]} : vector<4x384xf32> to vector<4x128xf32>
    %421 = arith.addf %419, %420 : vector<4x128xf32>
    %cst_229 = arith.constant 0.000000e+00 : f32
    %422 = vector.broadcast %cst_229 : f32 to vector<4x128xf32>
    %423 = arith.subf %422, %421 : vector<4x128xf32>
    %424 = math.exp %423 : vector<4x128xf32>
    %cst_230 = arith.constant 1.000000e+00 : f32
    %425 = vector.broadcast %cst_230 : f32 to vector<4x128xf32>
    %426 = arith.addf %425, %424 : vector<4x128xf32>
    %427 = tpu.reciprocal %426 {approx = true} : vector<4x128xf32> -> vector<4x128xf32>
    %428 = vector.extract_strided_slice %412 {offsets = [0, 128], sizes = [4, 128], strides = [1, 1]} : vector<4x384xf32> to vector<4x128xf32>
    %429 = vector.extract_strided_slice %418 {offsets = [0, 128], sizes = [4, 128], strides = [1, 1]} : vector<4x384xf32> to vector<4x128xf32>
    %430 = arith.addf %428, %429 : vector<4x128xf32>
    %cst_231 = arith.constant 0.000000e+00 : f32
    %431 = vector.broadcast %cst_231 : f32 to vector<4x128xf32>
    %432 = arith.subf %431, %430 : vector<4x128xf32>
    %433 = math.exp %432 : vector<4x128xf32>
    %cst_232 = arith.constant 1.000000e+00 : f32
    %434 = vector.broadcast %cst_232 : f32 to vector<4x128xf32>
    %435 = arith.addf %434, %433 : vector<4x128xf32>
    %436 = tpu.reciprocal %435 {approx = true} : vector<4x128xf32> -> vector<4x128xf32>
    %437 = vector.extract_strided_slice %412 {offsets = [0, 256], sizes = [4, 128], strides = [1, 1]} : vector<4x384xf32> to vector<4x128xf32>
    %438 = vector.extract_strided_slice %418 {offsets = [0, 256], sizes = [4, 128], strides = [1, 1]} : vector<4x384xf32> to vector<4x128xf32>
    %439 = arith.mulf %427, %438 : vector<4x128xf32>
    %440 = arith.addf %437, %439 : vector<4x128xf32>
    %441 = math.tanh %440 : vector<4x128xf32>
    %cst_233 = arith.constant 1.000000e+00 : f32
    %442 = vector.broadcast %cst_233 : f32 to vector<4x128xf32>
    %443 = arith.subf %442, %436 : vector<4x128xf32>
    %444 = arith.mulf %443, %441 : vector<4x128xf32>
    %445 = arith.mulf %436, %321 : vector<4x128xf32>
    %446 = arith.addf %444, %445 : vector<4x128xf32>
    %447 = arith.truncf %446 : vector<4x128xf32> to vector<4x128xbf16>
    %c0_234 = arith.constant 0 : index
    %c0_235 = arith.constant 0 : index
    %448 = vector.load %arg11[%c0_234, %c0_235] : memref<128x128xbf16, #tpu.memory_space<vmem>>, vector<128x128xbf16>
    %cst_236 = arith.constant dense<0.000000e+00> : vector<4x128xf32>
    %449 = tpu.matmul %447, %448, %cst_236 {dimension_numbers = #tpu.dot_dimension_numbers<[1], [0], [0], [1], [0, 0, 1, 1], [], []>} : vector<4x128xbf16>, vector<128x128xbf16>, vector<4x128xf32> -> vector<4x128xf32>
    %450 = vector.shape_cast %449 : vector<4x128xf32> to vector<4x1x128xf32>
    %451 = arith.truncf %450 : vector<4x1x128xf32> to vector<4x1x128xbf16>
    %c0_237 = arith.constant 0 : index
    %c0_238 = arith.constant 0 : index
    %c0_239 = arith.constant 0 : index
    %452 = vector.load %arg4[%c0_237, %c0_238, %c0_239] : memref<4x128x128xbf16, #tpu.memory_space<vmem>>, vector<4x128x128xbf16>
    "tpu.trace_start"() <{level = 10 : i32, message = "bqh,bsh->bqs"}> : () -> ()
    %cst_240 = arith.constant dense<0.000000e+00> : vector<4x1x128xf32>
    %453 = tpu.matmul %451, %452, %cst_240 {dimension_numbers = #tpu.dot_dimension_numbers<[2], [2], [1], [1], [0, 0, 0, 1, 1, 1], [0], [0]>} : vector<4x1x128xbf16>, vector<4x128x128xbf16>, vector<4x1x128xf32> -> vector<4x1x128xf32>
    "tpu.trace_stop"() : () -> ()
    %c0_241 = arith.constant 0 : index
    %c0_242 = arith.constant 0 : index
    %c0_243 = arith.constant 0 : index
    %454 = vector.load %arg5[%c0_241, %c0_242, %c0_243] : memref<4x1x128xf32, #tpu.memory_space<vmem>>, vector<4x1x128xf32>
    %455 = arith.mulf %454, %453 : vector<4x1x128xf32>
    %cst_244 = arith.constant 0.000000e+00 : f32
    %456 = vector.broadcast %cst_244 : f32 to vector<4x1x128xf32>
    %457 = arith.cmpf oeq, %455, %456 : vector<4x1x128xf32>
    %cst_245 = arith.constant -1.000000e+10 : f32
    %458 = vector.broadcast %cst_245 : f32 to vector<4x1x128xf32>
    %459 = arith.select %457, %458, %455 : vector<4x1x128xi1>, vector<4x1x128xf32>
    %cst_246 = arith.constant dense<0xFF800000> : vector<4x1xf32>
    %460 = vector.multi_reduction <maximumf>, %459, %cst_246 [2] : vector<4x1x128xf32> to vector<4x1xf32>
    %461 = vector.shape_cast %460 : vector<4x1xf32> to vector<4x1x1xf32>
    %462 = vector.broadcast %461 : vector<4x1x1xf32> to vector<4x1x128xf32>
    %463 = arith.subf %459, %462 : vector<4x1x128xf32>
    %464 = math.exp %463 : vector<4x1x128xf32>
    %cst_247 = arith.constant dense<0.000000e+00> : vector<4x1xf32>
    %465 = vector.multi_reduction <add>, %464, %cst_247 [2] : vector<4x1x128xf32> to vector<4x1xf32>
    %466 = vector.shape_cast %465 : vector<4x1xf32> to vector<4x1x1xf32>
    %467 = tpu.reciprocal %466 {approx = true} : vector<4x1x1xf32> -> vector<4x1x1xf32>
    %468 = vector.broadcast %467 : vector<4x1x1xf32> to vector<4x1x128xf32>
    %469 = arith.mulf %464, %468 : vector<4x1x128xf32>
    %470 = arith.truncf %469 : vector<4x1x128xf32> to vector<4x1x128xbf16>
    %c0_248 = arith.constant 0 : index
    %c0_249 = arith.constant 0 : index
    %c0_250 = arith.constant 0 : index
    %471 = vector.load %arg4[%c0_248, %c0_249, %c0_250] : memref<4x128x128xbf16, #tpu.memory_space<vmem>>, vector<4x128x128xbf16>
    "tpu.trace_start"() <{level = 10 : i32, message = "bqs,bsh->bqh"}> : () -> ()
    %cst_251 = arith.constant dense<0.000000e+00> : vector<4x1x128xf32>
    %472 = tpu.matmul %470, %471, %cst_251 {dimension_numbers = #tpu.dot_dimension_numbers<[2], [1], [1], [2], [0, 0, 0, 1, 1, 2], [0], [0]>} : vector<4x1x128xbf16>, vector<4x128x128xbf16>, vector<4x1x128xf32> -> vector<4x1x128xf32>
    "tpu.trace_stop"() : () -> ()
    %473 = vector.shape_cast %472 : vector<4x1x128xf32> to vector<4x128xf32>
    %474 = arith.truncf %473 : vector<4x128xf32> to vector<4x128xbf16>
    %c0_252 = arith.constant 0 : index
    %c0_253 = arith.constant 0 : index
    %475 = vector.load %arg12[%c0_252, %c0_253] : memref<256x128xbf16, #tpu.memory_space<vmem>>, vector<128x128xbf16>
    %cst_254 = arith.constant dense<0.000000e+00> : vector<4x128xf32>
    %476 = tpu.matmul %474, %475, %cst_254 {dimension_numbers = #tpu.dot_dimension_numbers<[1], [0], [0], [1], [0, 0, 1, 1], [], []>} : vector<4x128xbf16>, vector<128x128xbf16>, vector<4x128xf32> -> vector<4x128xf32>
    %477 = arith.truncf %446 : vector<4x128xf32> to vector<4x128xbf16>
    %c128_255 = arith.constant 128 : index
    %c0_256 = arith.constant 0 : index
    %478 = vector.load %arg12[%c128_255, %c0_256] : memref<256x128xbf16, #tpu.memory_space<vmem>>, vector<128x128xbf16>
    %cst_257 = arith.constant dense<0.000000e+00> : vector<4x128xf32>
    %479 = tpu.matmul %477, %478, %cst_257 {dimension_numbers = #tpu.dot_dimension_numbers<[1], [0], [0], [1], [0, 0, 1, 1], [], []>} : vector<4x128xbf16>, vector<128x128xbf16>, vector<4x128xf32> -> vector<4x128xf32>
    %480 = arith.addf %476, %479 : vector<4x128xf32>
    %481 = math.tanh %480 : vector<4x128xf32>
    %482 = arith.truncf %481 : vector<4x128xf32> to vector<4x128xbf16>
    %c0_258 = arith.constant 0 : index
    %c0_259 = arith.constant 0 : index
    %483 = vector.load %arg13[%c0_258, %c0_259] : memref<128x128xbf16, #tpu.memory_space<vmem>>, vector<128x128xbf16>
    %cst_260 = arith.constant dense<0.000000e+00> : vector<4x128xf32>
    %484 = tpu.matmul %482, %483, %cst_260 {dimension_numbers = #tpu.dot_dimension_numbers<[1], [0], [0], [1], [0, 0, 1, 1], [], []>} : vector<4x128xbf16>, vector<128x128xbf16>, vector<4x128xf32> -> vector<4x128xf32>
    %c0_261 = arith.constant 0 : index
    %c0_262 = arith.constant 0 : index
    %485 = vector.load %arg14[%c0_261, %c0_262] : memref<1x128xf32, #tpu.memory_space<vmem>>, vector<1x128xf32>
    %486 = vector.broadcast %485 : vector<1x128xf32> to vector<4x128xf32>
    %487 = arith.addf %484, %486 : vector<4x128xf32>
    %cst_263 = arith.constant dense<0xFF800000> : vector<4xf32>
    %488 = vector.multi_reduction <maximumf>, %487, %cst_263 [1] : vector<4x128xf32> to vector<4xf32>
    %489 = vector.shape_cast %488 : vector<4xf32> to vector<4x1xf32>
    %490 = vector.broadcast %489 : vector<4x1xf32> to vector<4x128xf32>
    %491 = arith.subf %487, %490 : vector<4x128xf32>
    %492 = math.exp %491 : vector<4x128xf32>
    %cst_264 = arith.constant dense<0.000000e+00> : vector<4xf32>
    %493 = vector.multi_reduction <add>, %492, %cst_264 [1] : vector<4x128xf32> to vector<4xf32>
    %494 = vector.shape_cast %493 : vector<4xf32> to vector<4x1xf32>
    %495 = math.log %494 : vector<4x1xf32>
    %496 = vector.broadcast %495 : vector<4x1xf32> to vector<4x128xf32>
    %497 = arith.subf %491, %496 : vector<4x128xf32>
    %c3_265 = arith.constant 3 : index
    %c0_266 = arith.constant 0 : index
    %c0_267 = arith.constant 0 : index
    %498 = vector.load %arg15[%c3_265, %c0_266, %c0_267] : memref<4x4x128xf32, #tpu.memory_space<vmem>>, vector<1x4x128xf32>
    %499 = vector.shape_cast %498 : vector<1x4x128xf32> to vector<4x128xf32>
    %500 = vector.shape_cast %497 : vector<4x128xf32> to vector<1x4x128xf32>
    tpu.vector_store %arg15[%c3_265, %c0_266, %c0_267], %500 {strides = array<i32>} : memref<4x4x128xf32, #tpu.memory_space<vmem>>, vector<1x4x128xf32>,
    %501 = vector.shape_cast %469 : vector<4x1x128xf32> to vector<4x128xf32>
    %c3_268 = arith.constant 3 : index
    %c0_269 = arith.constant 0 : index
    %c0_270 = arith.constant 0 : index
    %502 = vector.load %arg16[%c3_268, %c0_269, %c0_270] : memref<4x4x128xf32, #tpu.memory_space<vmem>>, vector<1x4x128xf32>
    %503 = vector.shape_cast %502 : vector<1x4x128xf32> to vector<4x128xf32>
    %504 = vector.shape_cast %501 : vector<4x128xf32> to vector<1x4x128xf32>
    tpu.vector_store %arg16[%c3_268, %c0_269, %c0_270], %504 {strides = array<i32>} : memref<4x4x128xf32, #tpu.memory_space<vmem>>, vector<1x4x128xf32>,
    %c0_271 = arith.constant 0 : index
    %c0_272 = arith.constant 0 : index
    %505 = vector.load %arg19[%c0_271, %c0_272] : memref<4x128xf32, #tpu.memory_space<vmem>>, vector<4x128xf32>
    tpu.vector_store %arg19[%c0_271, %c0_272], %446 {strides = array<i32>} : memref<4x128xf32, #tpu.memory_space<vmem>>, vector<4x128xf32>,
    %c0_273 = arith.constant 0 : index
    %c0_274 = arith.constant 0 : index
    %506 = vector.load %arg20[%c0_273, %c0_274] : memref<4x128xf32, #tpu.memory_space<vmem>>, vector<4x128xf32>
    tpu.vector_store %arg20[%c0_273, %c0_274], %481 {strides = array<i32>} : memref<4x128xf32, #tpu.memory_space<vmem>>, vector<4x128xf32>,
    %c1_i32_275 = arith.constant 1 : i32
    %507 = arith.cmpi eq, %arg0, %c1_i32_275 : i32
    %508 = arith.extui %507 : i1 to i32
    %c0_i32_276 = arith.constant 0 : i32
    %509 = arith.cmpi ne, %508, %c0_i32_276 : i32
    scf.if %509 {
      %c0_277 = arith.constant 0 : index
      %c0_278 = arith.constant 0 : index
      %c0_279 = arith.constant 0 : index
      %510 = vector.load %arg17[%c0_277, %c0_278, %c0_279] : memref<1x4x128xf32, #tpu.memory_space<vmem>>, vector<1x4x128xf32>
      %511 = vector.shape_cast %510 : vector<1x4x128xf32> to vector<4x128xf32>
      %512 = vector.shape_cast %446 : vector<4x128xf32> to vector<1x4x128xf32>
      tpu.vector_store %arg17[%c0_277, %c0_278, %c0_279], %512 {strides = array<i32>} : memref<1x4x128xf32, #tpu.memory_space<vmem>>, vector<1x4x128xf32>,
      %c0_280 = arith.constant 0 : index
      %c0_281 = arith.constant 0 : index
      %513 = vector.load %arg18[%c0_280, %c0_281] : memref<4x128xf32, #tpu.memory_space<vmem>>, vector<4x128xf32>
      tpu.vector_store %arg18[%c0_280, %c0_281], %481 {strides = array<i32>} : memref<4x128xf32, #tpu.memory_space<vmem>>, vector<4x128xf32>,
    } else {
    }
    return
  }
  func.func @transform_0(%arg0: i32, %arg1: memref<8x4xi32, #tpu.memory_space<smem>>) -> (i32, i32, i32) {
    %c0_i32 = arith.constant 0 : i32
    %c0_i32_0 = arith.constant 0 : i32
    %c0_i32_1 = arith.constant 0 : i32
    %c0_i32_2 = arith.constant 0 : i32
    return %c0_i32, %c0_i32_0, %c0_i32_1 : i32, i32, i32
  }
  func.func @transform_1(%arg0: i32, %arg1: memref<8x4xi32, #tpu.memory_space<smem>>) -> (i32, i32) {
    %c0_i32 = arith.constant 0 : i32
    %c0_i32_0 = arith.constant 0 : i32
    %c0_i32_1 = arith.constant 0 : i32
    return %c0_i32, %c0_i32_0 : i32, i32
  }
  func.func @transform_2(%arg0: i32, %arg1: memref<8x4xi32, #tpu.memory_space<smem>>) -> (i32, i32, i32) {
    %c0_i32 = arith.constant 0 : i32
    %c0_i32_0 = arith.constant 0 : i32
    %c0_i32_1 = arith.constant 0 : i32
    %c0_i32_2 = arith.constant 0 : i32
    return %c0_i32, %c0_i32_0, %c0_i32_1 : i32, i32, i32
  }
  func.func @transform_3(%arg0: i32, %arg1: memref<8x4xi32, #tpu.memory_space<smem>>) -> (i32, i32, i32) {
    %c0_i32 = arith.constant 0 : i32
    %c0_i32_0 = arith.constant 0 : i32
    %c0_i32_1 = arith.constant 0 : i32
    %c0_i32_2 = arith.constant 0 : i32
    return %c0_i32, %c0_i32_0, %c0_i32_1 : i32, i32, i32
  }
  func.func @transform_4(%arg0: i32, %arg1: memref<8x4xi32, #tpu.memory_space<smem>>) -> (i32, i32, i32) {
    %c0_i32 = arith.constant 0 : i32
    %c0_i32_0 = arith.constant 0 : i32
    %c0_i32_1 = arith.constant 0 : i32
    %c0_i32_2 = arith.constant 0 : i32
    return %c0_i32, %c0_i32_0, %c0_i32_1 : i32, i32, i32
  }
  func.func @transform_5(%arg0: i32, %arg1: memref<8x4xi32, #tpu.memory_space<smem>>) -> (i32, i32) {
    %c0_i32 = arith.constant 0 : i32
    %c0_i32_0 = arith.constant 0 : i32
    %c0_i32_1 = arith.constant 0 : i32
    return %c0_i32, %c0_i32_0 : i32, i32
  }
  func.func @transform_6(%arg0: i32, %arg1: memref<8x4xi32, #tpu.memory_space<smem>>) -> (i32, i32) {
    %c0_i32 = arith.constant 0 : i32
    %c0_i32_0 = arith.constant 0 : i32
    %c0_i32_1 = arith.constant 0 : i32
    return %c0_i32, %c0_i32_0 : i32, i32
  }
  func.func @transform_7(%arg0: i32, %arg1: memref<8x4xi32, #tpu.memory_space<smem>>) -> (i32, i32) {
    %c0_i32 = arith.constant 0 : i32
    %c0_i32_0 = arith.constant 0 : i32
    %c0_i32_1 = arith.constant 0 : i32
    return %c0_i32, %c0_i32_0 : i32, i32
  }
  func.func @transform_8(%arg0: i32, %arg1: memref<8x4xi32, #tpu.memory_space<smem>>) -> (i32, i32) {
    %c0_i32 = arith.constant 0 : i32
    %c0_i32_0 = arith.constant 0 : i32
    %c0_i32_1 = arith.constant 0 : i32
    return %c0_i32, %c0_i32_0 : i32, i32
  }
  func.func @transform_9(%arg0: i32, %arg1: memref<8x4xi32, #tpu.memory_space<smem>>) -> (i32, i32) {
    %c0_i32 = arith.constant 0 : i32
    %c0_i32_0 = arith.constant 0 : i32
    %c0_i32_1 = arith.constant 0 : i32
    return %c0_i32, %c0_i32_0 : i32, i32
  }
  func.func @transform_10(%arg0: i32, %arg1: memref<8x4xi32, #tpu.memory_space<smem>>) -> (i32, i32) {
    %c0_i32 = arith.constant 0 : i32
    %c0_i32_0 = arith.constant 0 : i32
    %c0_i32_1 = arith.constant 0 : i32
    return %c0_i32, %c0_i32_0 : i32, i32
  }
  func.func @transform_11(%arg0: i32, %arg1: memref<8x4xi32, #tpu.memory_space<smem>>) -> (i32, i32) {
    %c0_i32 = arith.constant 0 : i32
    %c0_i32_0 = arith.constant 0 : i32
    %c0_i32_1 = arith.constant 0 : i32
    return %c0_i32, %c0_i32_0 : i32, i32
  }
  func.func @transform_12(%arg0: i32, %arg1: memref<8x4xi32, #tpu.memory_space<smem>>) -> (i32, i32) {
    %c0_i32 = arith.constant 0 : i32
    %c0_i32_0 = arith.constant 0 : i32
    %c0_i32_1 = arith.constant 0 : i32
    return %c0_i32, %c0_i32_0 : i32, i32
  }
  func.func @transform_13(%arg0: i32, %arg1: memref<8x4xi32, #tpu.memory_space<smem>>) -> (i32, i32, i32) {
    %c0_i32 = arith.constant 0 : i32
    %c0_i32_0 = arith.constant 0 : i32
    %c0_i32_1 = arith.constant 0 : i32
    return %arg0, %c0_i32, %c0_i32_0 : i32, i32, i32
  }
  func.func @transform_14(%arg0: i32, %arg1: memref<8x4xi32, #tpu.memory_space<smem>>) -> (i32, i32, i32) {
    %c0_i32 = arith.constant 0 : i32
    %c0_i32_0 = arith.constant 0 : i32
    %c0_i32_1 = arith.constant 0 : i32
    return %arg0, %c0_i32, %c0_i32_0 : i32, i32, i32
  }
  func.func @transform_15(%arg0: i32, %arg1: memref<8x4xi32, #tpu.memory_space<smem>>) -> (i32, i32, i32) {
    %c0_i32 = arith.constant 0 : i32
    %c0_i32_0 = arith.constant 0 : i32
    %c0_i32_1 = arith.constant 0 : i32
    %c0_i32_2 = arith.constant 0 : i32
    return %c0_i32, %c0_i32_0, %c0_i32_1 : i32, i32, i32
  }
  func.func @transform_16(%arg0: i32, %arg1: memref<8x4xi32, #tpu.memory_space<smem>>) -> (i32, i32) {
    %c0_i32 = arith.constant 0 : i32
    %c0_i32_0 = arith.constant 0 : i32
    %c0_i32_1 = arith.constant 0 : i32
    return %c0_i32, %c0_i32_0 : i32, i32
  }
}

</mosaic_0001>

<llo_original>
// kernel: attention_decoder_forward.1
$region0: #{attention_decoder_forward.1}
  #allocation0 [shape = 'u32[]', space=smem, size = 0x4, offset = 0x4, fixed_abs, tag = 'smem constant byte address 0x4 - core index']
  #allocation1 [shape = 'u32[144,128]{1,0:T(1,128)}', space=vmem, size = 0x12000, scoped, tag = 'internal scratch']
  #allocation2 [shape = 'f32[4,128]{1,0:T(4,128)}', space=vmem, size = 0x800, scoped, tag = 'scratch operand']
  #allocation3 [shape = 'f32[4,128]{1,0:T(4,128)}', space=vmem, size = 0x800, scoped, tag = 'scratch operand']
  #allocation4 [shape = 's32[1]{0}', space=sflag, size = 0x4, scoped, tag = 'scoped memory for attention_decoder_forward.1']
  #allocation5 [shape = 'u8[4096]{0}', space=smem, size = 0x1000, scoped, tag = 'prefetched SMEM operand 0']
  %s0 = inlined_call_operand.vmem [shape: s32[8,4], index: 0, kind: input, shape index: {}]
  %s1 = inlined_call_operand.vmem [shape: f32[1,4,128], index: 1, kind: input, shape index: {}]
  %s2 = inlined_call_operand.vmem [shape: f32[4,128], index: 2, kind: input, shape index: {}]
  %s3 = inlined_call_operand.vmem [shape: bf16[4,128,128], index: 3, kind: input, shape index: {}]
  %s4 = inlined_call_operand.vmem [shape: f32[4,1,128], index: 4, kind: input, shape index: {}]
  %s5 = inlined_call_operand.vmem [shape: f32[128,1,128], index: 5, kind: input, shape index: {}]
  %s6 = inlined_call_operand.vmem [shape: bf16[256,384], index: 6, kind: input, shape index: {}]
  %s7 = inlined_call_operand.vmem [shape: bf16[128,384], index: 7, kind: input, shape index: {}]
  %s8 = inlined_call_operand.vmem [shape: f32[1,384], index: 8, kind: input, shape index: {}]
  %s9 = inlined_call_operand.vmem [shape: f32[1,384], index: 9, kind: input, shape index: {}]
  %s10 = inlined_call_operand.vmem [shape: bf16[128,128], index: 10, kind: input, shape index: {}]
  %s11 = inlined_call_operand.vmem [shape: bf16[256,128], index: 11, kind: input, shape index: {}]
  %s12 = inlined_call_operand.vmem [shape: bf16[128,128], index: 12, kind: input, shape index: {}]
  %s13 = inlined_call_operand.vmem [shape: f32[1,128], index: 13, kind: input, shape index: {}]
  %s14 = inlined_call_operand.vmem [shape: f32[8,4,128], index: 14, kind: output, shape index: {0}]
  %s15 = inlined_call_operand.vmem [shape: f32[8,4,128], index: 15, kind: output, shape index: {1}]
  %s16 = inlined_call_operand.hbm [shape: f32[1,4,128], index: 16, kind: output, shape index: {2}]
  %s17 = inlined_call_operand.hbm [shape: f32[4,128], index: 17, kind: output, shape index: {3}]
  %18 = xla_tuple %s14, %s15, %s16, %s17
  %s19 = sld [smem:[#allocation0]]
  $region117: #{attention_decoder_forward.1} parent=0
    _
  %s21 = ssub.s32 1, %s19
  %s22 = scalar_select 0, %s21, %s19
  %s23 = sshll.u32 %s0, 4
  %s24 = int_to_ptr.vmem [resolvable:$true] %s23
  %26 = dma.vmem_to_smem %s24, 128, [#allocation5], [#allocation4]
  %27 = dma.done [#allocation4], 128
  %28 = sfence
  $region1: #{attention_decoder_forward.1} parent=0
    #allocation6 [shape = 'u8[2048]{0}', space=vmem, size = 0x800, scoped, tag = 'output window, operand 2, single buffered']
    #allocation7 [shape = 's32[2]{0}', space=sflag, size = 0x8, scoped, tag = 'scoped memory for attention_decoder_forward.1']
    #allocation8 [shape = 'u8[2048]{0}', space=vmem, size = 0x800, scoped, tag = 'output window, operand 3, single buffered']
    #allocation9 [shape = 's32[1]{0}', space=sflag, size = 0x4, scoped, tag = 'scoped memory for attention_decoder_forward.1']
    %29 = vsyncpa [#allocation7], 0
    %30 = vsyncpa [#allocation9], 0
    loop: start=0, step=1, limit=4
    $region2: #{attention_decoder_forward.1} parent=1 // loop_pre_header
      _
    $region3: #{attention_decoder_forward.1} parent=1 // loop_header
      %s32 = sphi 0, %s36
      %p33 = scmp.ge.s32.totalorder %s32, 4
      %s40 = sphi 0, %s40
      %s42 = sphi 0, %s40
      %s43 = sphi 0, %s42
      %s57 = sphi 0, %s43
      %s61 = sphi 0, %s61
      %s63 = sphi 0, %s61
      %s64 = sphi 0, %s63
      %s78 = sphi 0, %s64
      %s82 = sphi 0, %s82
      %s84 = sphi 0, %s82
      %s85 = sphi 0, %s84
      %s99 = sphi 0, %s85
      %s103 = sphi 0, %s103
      %s105 = sphi 0, %s103
      %s106 = sphi 0, %s105
      %s120 = sphi 0, %s106
      %s124 = sphi 0, %s124
      %s126 = sphi 0, %s124
      %s127 = sphi 0, %s126
      %s141 = sphi 0, %s127
      %s145 = sphi 0, %s145
      %s147 = sphi 0, %s145
      %s148 = sphi 0, %s147
      %s162 = sphi 0, %s148
      %s166 = sphi 0, %s166
      %s168 = sphi 0, %s166
      %s169 = sphi 0, %s168
      %s183 = sphi 0, %s169
      %s187 = sphi 0, %s187
      %s189 = sphi 0, %s187
      %s190 = sphi 0, %s189
      %s204 = sphi 0, %s190
      %s208 = sphi 0, %s208
      %s210 = sphi 0, %s208
      %s211 = sphi 0, %s210
      %s225 = sphi 0, %s211
      %s229 = sphi 0, %s229
      %s231 = sphi 0, %s229
      %s232 = sphi 0, %s231
      %s246 = sphi 0, %s232
      %s250 = sphi 0, %s250
      %s252 = sphi 0, %s250
      %s253 = sphi 0, %s252
      %s267 = sphi 0, %s253
      %s271 = sphi 0, %s271
      %s273 = sphi 0, %s271
      %s274 = sphi 0, %s273
      %s288 = sphi 0, %s274
      %s292 = sphi 0, %s292
      %s294 = sphi 0, %s292
      %s295 = sphi 0, %s294
      %s309 = sphi 0, %s295
      %s315 = sphi 0, %s317
      %s318 = sphi 0, %s315
      %s319 = sphi 0, %s318
      %s335 = sphi 0, %s319
      %s341 = sphi 0, %s343
      %s344 = sphi 0, %s341
      %s345 = sphi 0, %s344
      %s361 = sphi 0, %s345
      %s365 = sphi 0, %s365
      %s367 = sphi 0, %s365
      %s368 = sphi 0, %s367
      %s382 = sphi 0, %s368
      %s386 = sphi 0, %s386
      %s388 = sphi 0, %s386
      %s389 = sphi 0, %s388
      %s403 = sphi 0, %s389
    $region4: #{attention_decoder_forward.1} parent=1 // loop_header_branch
      %35 = sbr.rel (%p33) target = $region8
    $region5: #{attention_decoder_forward.1} parent=1 // loop_body
      %s37 = ssub.s32 %s32, 1
      %s38 = ssub.s32 %s32, 2
      %s39 = sadd.s32 %s32, 1
      %s41 = sadd.s32 %s40, 1
      %p44 = scmp.eq.s32.totalorder %s32, 1
      %p45 = scmp.ne.s32.totalorder %s40, %s42
      %p46 = scmp.eq.s32.totalorder %s32, 0
      %p47 = por %p45, %p46
      %p48 = scmp.ne.s32.totalorder %s40, %s42
      %p49 = scmp.eq.s32.totalorder %s37, 1
      %p50 = por %p48, %p49
      %p51 = scmp.ne.s32.totalorder %s42, %s43
      %p52 = scmp.eq.s32.totalorder %s37, 0
      %p53 = por %p51, %p52
      %p54 = scmp.ne.s32.totalorder %s42, %s43
      %p55 = scmp.eq.s32.totalorder %s38, 1
      %p56 = por %p54, %p55
      %p58 = scmp.ne.s32.totalorder %s43, %s57
      %p59 = scmp.eq.s32.totalorder %s38, 0
      %p60 = por %p58, %p59
      %s62 = sadd.s32 %s61, 1
      %p65 = scmp.eq.s32.totalorder %s32, 1
      %p66 = scmp.ne.s32.totalorder %s61, %s63
      %p67 = scmp.eq.s32.totalorder %s32, 0
      %p68 = por %p66, %p67
      %p69 = scmp.ne.s32.totalorder %s61, %s63
      %p70 = scmp.eq.s32.totalorder %s37, 1
      %p71 = por %p69, %p70
      %p72 = scmp.ne.s32.totalorder %s63, %s64
      %p73 = scmp.eq.s32.totalorder %s37, 0
      %p74 = por %p72, %p73
      %p75 = scmp.ne.s32.totalorder %s63, %s64
      %p76 = scmp.eq.s32.totalorder %s38, 1
      %p77 = por %p75, %p76
      %p79 = scmp.ne.s32.totalorder %s64, %s78
      %p80 = scmp.eq.s32.totalorder %s38, 0
      %p81 = por %p79, %p80
      %s83 = sadd.s32 %s82, 1
      %p86 = scmp.eq.s32.totalorder %s32, 1
      %p87 = scmp.ne.s32.totalorder %s82, %s84
      %p88 = scmp.eq.s32.totalorder %s32, 0
      %p89 = por %p87, %p88
      %p90 = scmp.ne.s32.totalorder %s82, %s84
      %p91 = scmp.eq.s32.totalorder %s37, 1
      %p92 = por %p90, %p91
      %p93 = scmp.ne.s32.totalorder %s84, %s85
      %p94 = scmp.eq.s32.totalorder %s37, 0
      %p95 = por %p93, %p94
      %p96 = scmp.ne.s32.totalorder %s84, %s85
      %p97 = scmp.eq.s32.totalorder %s38, 1
      %p98 = por %p96, %p97
      %p100 = scmp.ne.s32.totalorder %s85, %s99
      %p101 = scmp.eq.s32.totalorder %s38, 0
      %p102 = por %p100, %p101
      %s104 = sadd.s32 %s103, 1
      %p107 = scmp.eq.s32.totalorder %s32, 1
      %p108 = scmp.ne.s32.totalorder %s103, %s105
      %p109 = scmp.eq.s32.totalorder %s32, 0
      %p110 = por %p108, %p109
      %p111 = scmp.ne.s32.totalorder %s103, %s105
      %p112 = scmp.eq.s32.totalorder %s37, 1
      %p113 = por %p111, %p112
      %p114 = scmp.ne.s32.totalorder %s105, %s106
      %p115 = scmp.eq.s32.totalorder %s37, 0
      %p116 = por %p114, %p115
      %p117 = scmp.ne.s32.totalorder %s105, %s106
      %p118 = scmp.eq.s32.totalorder %s38, 1
      %p119 = por %p117, %p118
      %p121 = scmp.ne.s32.totalorder %s106, %s120
      %p122 = scmp.eq.s32.totalorder %s38, 0
      %p123 = por %p121, %p122
      %s125 = sadd.s32 %s124, 1
      %p128 = scmp.eq.s32.totalorder %s32, 1
      %p129 = scmp.ne.s32.totalorder %s124, %s126
      %p130 = scmp.eq.s32.totalorder %s32, 0
      %p131 = por %p129, %p130
      %p132 = scmp.ne.s32.totalorder %s124, %s126
      %p133 = scmp.eq.s32.totalorder %s37, 1
      %p134 = por %p132, %p133
      %p135 = scmp.ne.s32.totalorder %s126, %s127
      %p136 = scmp.eq.s32.totalorder %s37, 0
      %p137 = por %p135, %p136
      %p138 = scmp.ne.s32.totalorder %s126, %s127
      %p139 = scmp.eq.s32.totalorder %s38, 1
      %p140 = por %p138, %p139
      %p142 = scmp.ne.s32.totalorder %s127, %s141
      %p143 = scmp.eq.s32.totalorder %s38, 0
      %p144 = por %p142, %p143
      %s146 = sadd.s32 %s145, 1
      %p149 = scmp.eq.s32.totalorder %s32, 1
      %p150 = scmp.ne.s32.totalorder %s145, %s147
      %p151 = scmp.eq.s32.totalorder %s32, 0
      %p152 = por %p150, %p151
      %p153 = scmp.ne.s32.totalorder %s145, %s147
      %p154 = scmp.eq.s32.totalorder %s37, 1
      %p155 = por %p153, %p154
      %p156 = scmp.ne.s32.totalorder %s147, %s148
      %p157 = scmp.eq.s32.totalorder %s37, 0
      %p158 = por %p156, %p157
      %p159 = scmp.ne.s32.totalorder %s147, %s148
      %p160 = scmp.eq.s32.totalorder %s38, 1
      %p161 = por %p159, %p160
      %p163 = scmp.ne.s32.totalorder %s148, %s162
      %p164 = scmp.eq.s32.totalorder %s38, 0
      %p165 = por %p163, %p164
      %s167 = sadd.s32 %s166, 1
      %p170 = scmp.eq.s32.totalorder %s32, 1
      %p171 = scmp.ne.s32.totalorder %s166, %s168
      %p172 = scmp.eq.s32.totalorder %s32, 0
      %p173 = por %p171, %p172
      %p174 = scmp.ne.s32.totalorder %s166, %s168
      %p175 = scmp.eq.s32.totalorder %s37, 1
      %p176 = por %p174, %p175
      %p177 = scmp.ne.s32.totalorder %s168, %s169
      %p178 = scmp.eq.s32.totalorder %s37, 0
      %p179 = por %p177, %p178
      %p180 = scmp.ne.s32.totalorder %s168, %s169
      %p181 = scmp.eq.s32.totalorder %s38, 1
      %p182 = por %p180, %p181
      %p184 = scmp.ne.s32.totalorder %s169, %s183
      %p185 = scmp.eq.s32.totalorder %s38, 0
      %p186 = por %p184, %p185
      %s188 = sadd.s32 %s187, 1
      %p191 = scmp.eq.s32.totalorder %s32, 1
      %p192 = scmp.ne.s32.totalorder %s187, %s189
      %p193 = scmp.eq.s32.totalorder %s32, 0
      %p194 = por %p192, %p193
      %p195 = scmp.ne.s32.totalorder %s187, %s189
      %p196 = scmp.eq.s32.totalorder %s37, 1
      %p197 = por %p195, %p196
      %p198 = scmp.ne.s32.totalorder %s189, %s190
      %p199 = scmp.eq.s32.totalorder %s37, 0
      %p200 = por %p198, %p199
      %p201 = scmp.ne.s32.totalorder %s189, %s190
      %p202 = scmp.eq.s32.totalorder %s38, 1
      %p203 = por %p201, %p202
      %p205 = scmp.ne.s32.totalorder %s190, %s204
      %p206 = scmp.eq.s32.totalorder %s38, 0
      %p207 = por %p205, %p206
      %s209 = sadd.s32 %s208, 1
      %p212 = scmp.eq.s32.totalorder %s32, 1
      %p213 = scmp.ne.s32.totalorder %s208, %s210
      %p214 = scmp.eq.s32.totalorder %s32, 0
      %p215 = por %p213, %p214
      %p216 = scmp.ne.s32.totalorder %s208, %s210
      %p217 = scmp.eq.s32.totalorder %s37, 1
      %p218 = por %p216, %p217
      %p219 = scmp.ne.s32.totalorder %s210, %s211
      %p220 = scmp.eq.s32.totalorder %s37, 0
      %p221 = por %p219, %p220
      %p222 = scmp.ne.s32.totalorder %s210, %s211
      %p223 = scmp.eq.s32.totalorder %s38, 1
      %p224 = por %p222, %p223
      %p226 = scmp.ne.s32.totalorder %s211, %s225
      %p227 = scmp.eq.s32.totalorder %s38, 0
      %p228 = por %p226, %p227
      %s230 = sadd.s32 %s229, 1
      %p233 = scmp.eq.s32.totalorder %s32, 1
      %p234 = scmp.ne.s32.totalorder %s229, %s231
      %p235 = scmp.eq.s32.totalorder %s32, 0
      %p236 = por %p234, %p235
      %p237 = scmp.ne.s32.totalorder %s229, %s231
      %p238 = scmp.eq.s32.totalorder %s37, 1
      %p239 = por %p237, %p238
      %p240 = scmp.ne.s32.totalorder %s231, %s232
      %p241 = scmp.eq.s32.totalorder %s37, 0
      %p242 = por %p240, %p241
      %p243 = scmp.ne.s32.totalorder %s231, %s232
      %p244 = scmp.eq.s32.totalorder %s38, 1
      %p245 = por %p243, %p244
      %p247 = scmp.ne.s32.totalorder %s232, %s246
      %p248 = scmp.eq.s32.totalorder %s38, 0
      %p249 = por %p247, %p248
      %s251 = sadd.s32 %s250, 1
      %p254 = scmp.eq.s32.totalorder %s32, 1
      %p255 = scmp.ne.s32.totalorder %s250, %s252
      %p256 = scmp.eq.s32.totalorder %s32, 0
      %p257 = por %p255, %p256
      %p258 = scmp.ne.s32.totalorder %s250, %s252
      %p259 = scmp.eq.s32.totalorder %s37, 1
      %p260 = por %p258, %p259
      %p261 = scmp.ne.s32.totalorder %s252, %s253
      %p262 = scmp.eq.s32.totalorder %s37, 0
      %p263 = por %p261, %p262
      %p264 = scmp.ne.s32.totalorder %s252, %s253
      %p265 = scmp.eq.s32.totalorder %s38, 1
      %p266 = por %p264, %p265
      %p268 = scmp.ne.s32.totalorder %s253, %s267
      %p269 = scmp.eq.s32.totalorder %s38, 0
      %p270 = por %p268, %p269
      %s272 = sadd.s32 %s271, 1
      %p275 = scmp.eq.s32.totalorder %s32, 1
      %p276 = scmp.ne.s32.totalorder %s271, %s273
      %p277 = scmp.eq.s32.totalorder %s32, 0
      %p278 = por %p276, %p277
      %p279 = scmp.ne.s32.totalorder %s271, %s273
      %p280 = scmp.eq.s32.totalorder %s37, 1
      %p281 = por %p279, %p280
      %p282 = scmp.ne.s32.totalorder %s273, %s274
      %p283 = scmp.eq.s32.totalorder %s37, 0
      %p284 = por %p282, %p283
      %p285 = scmp.ne.s32.totalorder %s273, %s274
      %p286 = scmp.eq.s32.totalorder %s38, 1
      %p287 = por %p285, %p286
      %p289 = scmp.ne.s32.totalorder %s274, %s288
      %p290 = scmp.eq.s32.totalorder %s38, 0
      %p291 = por %p289, %p290
      %s293 = sadd.s32 %s292, 1
      %p296 = scmp.eq.s32.totalorder %s32, 1
      %p297 = scmp.ne.s32.totalorder %s292, %s294
      %p298 = scmp.eq.s32.totalorder %s32, 0
      %p299 = por %p297, %p298
      %p300 = scmp.ne.s32.totalorder %s292, %s294
      %p301 = scmp.eq.s32.totalorder %s37, 1
      %p302 = por %p300, %p301
      %p303 = scmp.ne.s32.totalorder %s294, %s295
      %p304 = scmp.eq.s32.totalorder %s37, 0
      %p305 = por %p303, %p304
      %p306 = scmp.ne.s32.totalorder %s294, %s295
      %p307 = scmp.eq.s32.totalorder %s38, 1
      %p308 = por %p306, %p307
      %p310 = scmp.ne.s32.totalorder %s295, %s309
      %p311 = scmp.eq.s32.totalorder %s38, 0
      %p312 = por %p310, %p311
      %s313 = ssub.s32 %s32, %s39
      %p314 = scmp.eq.s32.totalorder %s313, 0
      %s316 = sadd.s32 %s315, 1
      %s317 = scalar_select %p314, %s315, %s316
      %p320 = pneg %p314
      %p321 = scmp.eq.s32.totalorder %s32, 1
      %p322 = por %p320, %p321
      %p323 = scmp.ne.s32.totalorder %s315, %s318
      %p324 = scmp.eq.s32.totalorder %s32, 0
      %p325 = por %p323, %p324
      %p326 = scmp.ne.s32.totalorder %s315, %s318
      %p327 = scmp.eq.s32.totalorder %s37, 1
      %p328 = por %p326, %p327
      %p329 = scmp.ne.s32.totalorder %s318, %s319
      %p330 = scmp.eq.s32.totalorder %s37, 0
      %p331 = por %p329, %p330
      %p332 = scmp.ne.s32.totalorder %s318, %s319
      %p333 = scmp.eq.s32.totalorder %s38, 1
      %p334 = por %p332, %p333
      %p336 = scmp.ne.s32.totalorder %s319, %s335
      %p337 = scmp.eq.s32.totalorder %s38, 0
      %p338 = por %p336, %p337
      %s339 = ssub.s32 %s32, %s39
      %p340 = scmp.eq.s32.totalorder %s339, 0
      %s342 = sadd.s32 %s341, 1
      %s343 = scalar_select %p340, %s341, %s342
      %p346 = pneg %p340
      %p347 = scmp.eq.s32.totalorder %s32, 1
      %p348 = por %p346, %p347
      %p349 = scmp.ne.s32.totalorder %s341, %s344
      %p350 = scmp.eq.s32.totalorder %s32, 0
      %p351 = por %p349, %p350
      %p352 = scmp.ne.s32.totalorder %s341, %s344
      %p353 = scmp.eq.s32.totalorder %s37, 1
      %p354 = por %p352, %p353
      %p355 = scmp.ne.s32.totalorder %s344, %s345
      %p356 = scmp.eq.s32.totalorder %s37, 0
      %p357 = por %p355, %p356
      %p358 = scmp.ne.s32.totalorder %s344, %s345
      %p359 = scmp.eq.s32.totalorder %s38, 1
      %p360 = por %p358, %p359
      %p362 = scmp.ne.s32.totalorder %s345, %s361
      %p363 = scmp.eq.s32.totalorder %s38, 0
      %p364 = por %p362, %p363
      %s366 = sadd.s32 %s365, 1
      %p369 = scmp.eq.s32.totalorder %s32, 1
      %p370 = scmp.ne.s32.totalorder %s365, %s367
      %p371 = scmp.eq.s32.totalorder %s32, 0
      %p372 = por %p370, %p371
      %p373 = scmp.ne.s32.totalorder %s365, %s367
      %p374 = scmp.eq.s32.totalorder %s37, 1
      %p375 = por %p373, %p374
      %p376 = scmp.ne.s32.totalorder %s367, %s368
      %p377 = scmp.eq.s32.totalorder %s37, 0
      %p378 = por %p376, %p377
      %p379 = scmp.ne.s32.totalorder %s367, %s368
      %p380 = scmp.eq.s32.totalorder %s38, 1
      %p381 = por %p379, %p380
      %p383 = scmp.ne.s32.totalorder %s368, %s382
      %p384 = scmp.eq.s32.totalorder %s38, 0
      %p385 = por %p383, %p384
      %s387 = sadd.s32 %s386, 1
      %p390 = scmp.eq.s32.totalorder %s32, 1
      %p391 = scmp.ne.s32.totalorder %s386, %s388
      %p392 = scmp.eq.s32.totalorder %s32, 0
      %p393 = por %p391, %p392
      %p394 = scmp.ne.s32.totalorder %s386, %s388
      %p395 = scmp.eq.s32.totalorder %s37, 1
      %p396 = por %p394, %p395
      %p397 = scmp.ne.s32.totalorder %s388, %s389
      %p398 = scmp.eq.s32.totalorder %s37, 0
      %p399 = por %p397, %p398
      %p400 = scmp.ne.s32.totalorder %s388, %s389
      %p401 = scmp.eq.s32.totalorder %s38, 1
      %p402 = por %p400, %p401
      %p404 = scmp.ne.s32.totalorder %s389, %s403
      %p405 = scmp.eq.s32.totalorder %s38, 0
      %p406 = por %p404, %p405
      %p407 = scmp.le.s32.totalorder 1, %s32
      %p408 = scmp.lt.s32.totalorder %s32, 3
      %p409 = pnand %p407, %p408
      %p410 = pneg %p409
      // Predicated region
      $region9: #{attention_decoder_forward.1} parent=5 // pred_check
        _
      $region10: #{attention_decoder_forward.1} parent=5 // pred_check_branch
        %412 = sbr.rel (%p409) target = $region12
      $region11: #{attention_decoder_forward.1} parent=5 // pred_region
        %s413 = ssub.s32 %s32, 1
        // Predicated region
        $region13: #{attention_decoder_forward.1} parent=11 // pred_check
          %p414 = pneg %p53
        $region14: #{attention_decoder_forward.1} parent=11 // pred_check_branch
          %416 = sbr.rel (%p414) target = $region16
        $region15: #{attention_decoder_forward.1} parent=11 // pred_region
          _
        $region16: #{attention_decoder_forward.1} parent=11 // pred_fallthru
          _
        // Predicated region
        $region17: #{attention_decoder_forward.1} parent=11 // pred_check
          %p417 = pneg %p74
        $region18: #{attention_decoder_forward.1} parent=11 // pred_check_branch
          %419 = sbr.rel (%p417) target = $region20
        $region19: #{attention_decoder_forward.1} parent=11 // pred_region
          _
        $region20: #{attention_decoder_forward.1} parent=11 // pred_fallthru
          _
        // Predicated region
        $region21: #{attention_decoder_forward.1} parent=11 // pred_check
          %p420 = pneg %p95
        $region22: #{attention_decoder_forward.1} parent=11 // pred_check_branch
          %422 = sbr.rel (%p420) target = $region24
        $region23: #{attention_decoder_forward.1} parent=11 // pred_region
          _
        $region24: #{attention_decoder_forward.1} parent=11 // pred_fallthru
          _
        // Predicated region
        $region25: #{attention_decoder_forward.1} parent=11 // pred_check
          %p423 = pneg %p116
        $region26: #{attention_decoder_forward.1} parent=11 // pred_check_branch
          %425 = sbr.rel (%p423) target = $region28
        $region27: #{attention_decoder_forward.1} parent=11 // pred_region
          _
        $region28: #{attention_decoder_forward.1} parent=11 // pred_fallthru
          _
        // Predicated region
        $region29: #{attention_decoder_forward.1} parent=11 // pred_check
          %p426 = pneg %p137
        $region30: #{attention_decoder_forward.1} parent=11 // pred_check_branch
          %428 = sbr.rel (%p426) target = $region32
        $region31: #{attention_decoder_forward.1} parent=11 // pred_region
          _
        $region32: #{attention_decoder_forward.1} parent=11 // pred_fallthru
          _
        // Predicated region
        $region33: #{attention_decoder_forward.1} parent=11 // pred_check
          %p429 = pneg %p158
        $region34: #{attention_decoder_forward.1} parent=11 // pred_check_branch
          %431 = sbr.rel (%p429) target = $region36
        $region35: #{attention_decoder_forward.1} parent=11 // pred_region
          _
        $region36: #{attention_decoder_forward.1} parent=11 // pred_fallthru
          _
        // Predicated region
        $region37: #{attention_decoder_forward.1} parent=11 // pred_check
          %p432 = pneg %p179
        $region38: #{attention_decoder_forward.1} parent=11 // pred_check_branch
          %434 = sbr.rel (%p432) target = $region40
        $region39: #{attention_decoder_forward.1} parent=11 // pred_region
          _
        $region40: #{attention_decoder_forward.1} parent=11 // pred_fallthru
          _
        // Predicated region
        $region41: #{attention_decoder_forward.1} parent=11 // pred_check
          %p435 = pneg %p200
        $region42: #{attention_decoder_forward.1} parent=11 // pred_check_branch
          %437 = sbr.rel (%p435) target = $region44
        $region43: #{attention_decoder_forward.1} parent=11 // pred_region
          _
        $region44: #{attention_decoder_forward.1} parent=11 // pred_fallthru
          _
        // Predicated region
        $region45: #{attention_decoder_forward.1} parent=11 // pred_check
          %p438 = pneg %p221
        $region46: #{attention_decoder_forward.1} parent=11 // pred_check_branch
          %440 = sbr.rel (%p438) target = $region48
        $region47: #{attention_decoder_forward.1} parent=11 // pred_region
          _
        $region48: #{attention_decoder_forward.1} parent=11 // pred_fallthru
          _
        // Predicated region
        $region49: #{attention_decoder_forward.1} parent=11 // pred_check
          %p441 = pneg %p242
        $region50: #{attention_decoder_forward.1} parent=11 // pred_check_branch
          %443 = sbr.rel (%p441) target = $region52
        $region51: #{attention_decoder_forward.1} parent=11 // pred_region
          _
        $region52: #{attention_decoder_forward.1} parent=11 // pred_fallthru
          _
        // Predicated region
        $region53: #{attention_decoder_forward.1} parent=11 // pred_check
          %p444 = pneg %p263
        $region54: #{attention_decoder_forward.1} parent=11 // pred_check_branch
          %446 = sbr.rel (%p444) target = $region56
        $region55: #{attention_decoder_forward.1} parent=11 // pred_region
          _
        $region56: #{attention_decoder_forward.1} parent=11 // pred_fallthru
          _
        // Predicated region
        $region57: #{attention_decoder_forward.1} parent=11 // pred_check
          %p447 = pneg %p284
        $region58: #{attention_decoder_forward.1} parent=11 // pred_check_branch
          %449 = sbr.rel (%p447) target = $region60
        $region59: #{attention_decoder_forward.1} parent=11 // pred_region
          _
        $region60: #{attention_decoder_forward.1} parent=11 // pred_fallthru
          _
        // Predicated region
        $region61: #{attention_decoder_forward.1} parent=11 // pred_check
          %p450 = pneg %p305
        $region62: #{attention_decoder_forward.1} parent=11 // pred_check_branch
          %452 = sbr.rel (%p450) target = $region64
        $region63: #{attention_decoder_forward.1} parent=11 // pred_region
          _
        $region64: #{attention_decoder_forward.1} parent=11 // pred_fallthru
          _
      $region12: #{attention_decoder_forward.1} parent=5 // pred_fallthru
        _
      %p453 = scmp.lt.s32.totalorder %s32, 2
      // Predicated region
      $region65: #{attention_decoder_forward.1} parent=5 // pred_check
        %p454 = pneg %p453
      $region66: #{attention_decoder_forward.1} parent=5 // pred_check_branch
        %456 = sbr.rel (%p454) target = $region68
      $region67: #{attention_decoder_forward.1} parent=5 // pred_region
        _
      $region68: #{attention_decoder_forward.1} parent=5 // pred_fallthru
        _
      %p457 = scmp.le.s32.totalorder 1, %s32
      %p458 = scmp.lt.s32.totalorder %s32, 3
      %p459 = pnand %p457, %p458
      %p460 = pneg %p459
      // Predicated region
      $region69: #{attention_decoder_forward.1} parent=5 // pred_check
        _
      $region70: #{attention_decoder_forward.1} parent=5 // pred_check_branch
        %462 = sbr.rel (%p459) target = $region72
      $region71: #{attention_decoder_forward.1} parent=5 // pred_region
        %s463 = ssub.s32 %s32, 1
        %p464 = pneg %p53
        %p465 = pneg %p50
        %p466 = pneg %p74
        %p467 = pneg %p71
        %p468 = pneg %p95
        %p469 = pneg %p92
        %p470 = pneg %p116
        %p471 = pneg %p113
        %p472 = pneg %p137
        %p473 = pneg %p134
        %p474 = pneg %p158
        %p475 = pneg %p155
        %p476 = pneg %p179
        %p477 = pneg %p176
        %p478 = pneg %p200
        %p479 = pneg %p197
        %p480 = pneg %p221
        %p481 = pneg %p218
        %p482 = pneg %p242
        %p483 = pneg %p239
        %p484 = pneg %p263
        %p485 = pneg %p260
        %p486 = pneg %p284
        %p487 = pneg %p281
        %p488 = pneg %p305
        %p489 = pneg %p302
        %p490 = pneg %p331
        %p491 = pneg %p328
        %s492 = smul.u32 4, %s37
        %p493 = scmp.lt.s32.totalorder %s492, 7
        %s494 = scalar_select %p493, %s492, 7
        %s495 = smul.addr %s494, 4
        %s496 = scalar_lea.vmem %s14, %s495
        %p497 = pneg %p357
        %p498 = pneg %p354
        %s499 = smul.u32 4, %s37
        %p500 = scmp.lt.s32.totalorder %s499, 7
        %s501 = scalar_select %p500, %s499, 7
        %s502 = smul.addr %s501, 4
        %s503 = scalar_lea.vmem %s15, %s502
        %p504 = pneg %p378
        %p505 = pneg %p375
        %p506 = pneg %p399
        %p507 = pneg %p396
        %s508 = smul.u32 4, %s37
        %p509 = scmp.lt.s32.totalorder %s508, 7
        %s510 = scalar_select %p509, %s508, 7
        %s511 = smul.addr %s510, 4
        %s512 = scalar_lea.vmem %s14, %s511
        %s513 = smul.u32 4, %s37
        %s514 = smul.u32 4, %s37
        %p515 = scmp.lt.s32.totalorder %s514, 7
        %s516 = scalar_select %p515, %s514, 7
        %s517 = smul.addr %s516, 4
        %s518 = scalar_lea.vmem %s15, %s517
        %s519 = smul.u32 4, %s37
        %p521 = scmp.eq.s32.totalorder %s37, 0
        // Predicated region
        $region73: #{attention_decoder_forward.1} parent=71 // pred_check
          %p522 = pneg %p521
        $region74: #{attention_decoder_forward.1} parent=71 // pred_check_branch
          %524 = sbr.rel (%p522) target = $region76
        $region75: #{attention_decoder_forward.1} parent=71 // pred_region
          %v525 = vld [vmem:[%s1] sm:$0xf]
          %526 = vst [vmem:[#allocation2] sm:$0xf] %v525
          %v527 = vld [vmem:[%s2] sm:$0xf]
          %528 = vst [vmem:[#allocation3] sm:$0xf] %v527
        $region76: #{attention_decoder_forward.1} parent=71 // pred_fallthru
          _
        %v529 = vld [vmem:[#allocation2] sm:$0xf]
        %v530 = vld [vmem:[#allocation3] sm:$0xf]
        %s531 = smul.u32 %s37, 4
        %s532 = smul.u32 %s531, 128
        %s533 = sld [smem:[#allocation5 + %s532]]
        %s534 = scalar_lea.vmem %s5, %s533
        %v535 = vld [vmem:[%s534] sm:$0x1]
        %s536 = sadd.s32 %s532, 1
        %s537 = sld [smem:[#allocation5 + %s536]]
        %s538 = scalar_lea.vmem %s5, %s537
        %v539 = vld [vmem:[%s538] sm:$0x1]
        %s540 = sadd.s32 %s532, 2
        %s541 = sld [smem:[#allocation5 + %s540]]
        %s542 = scalar_lea.vmem %s5, %s541
        %v543 = vld [vmem:[%s542] sm:$0x1]
        %s544 = sadd.s32 %s532, 3
        %s545 = sld [smem:[#allocation5 + %s544]]
        %s546 = scalar_lea.vmem %s5, %s545
        %v547 = vld [vmem:[%s546] sm:$0x1]
        %v549 = vlaneseq
        %v550 = vshrl.u32 %v549, 7
        %v551 = vsub.s32 0, %v550
        %v552 = vrot.slane %v539, %v551
        %v555 = vlaneseq
        %v556 = vshrl.u32 %v555, 7
        %v557 = vsub.s32 0, %v556
        %v558 = vrot.slane %v543, %v557
        %v561 = vlaneseq
        %v562 = vshrl.u32 %v561, 7
        %v563 = vsub.s32 0, %v562
        %v564 = vrot.slane %v547, %v563
        %vm566 = vcmask 1040384
        %v567 = vsel %vm566, %v535, %v552
        %vm568 = vcmask 1041408
        %v569 = vsel %vm568, %v567, %v558
        %vm570 = vcmask 1042432
        %v571 = vsel %vm570, %v569, %v564
        %v572 = vpack.c.bf16 %v571, %v571
        %v573 = vld [vmem:[%s6] sm:$0xff]
        %v574 = vld [vmem:[%s6 + $0x8] sm:$0xf]
        %v575 = vld [vmem:[%s6 + $0xc] sm:$0xff]
        %v576 = vld [vmem:[%s6 + $0x14] sm:$0xf]
        %v577 = vld [vmem:[%s6 + $0x18] sm:$0xff]
        %v578 = vld [vmem:[%s6 + $0x20] sm:$0xf]
        %v579 = vld [vmem:[%s6 + $0x24] sm:$0xff]
        %v580 = vld [vmem:[%s6 + $0x2c] sm:$0xf]
        %v581 = vld [vmem:[%s6 + $0x30] sm:$0xff]
        %v582 = vld [vmem:[%s6 + $0x38] sm:$0xf]
        %v583 = vld [vmem:[%s6 + $0x3c] sm:$0xff]
        %v584 = vld [vmem:[%s6 + $0x44] sm:$0xf]
        %v585 = vld [vmem:[%s6 + $0x48] sm:$0xff]
        %v586 = vld [vmem:[%s6 + $0x50] sm:$0xf]
        %v587 = vld [vmem:[%s6 + $0x54] sm:$0xff]
        %v588 = vld [vmem:[%s6 + $0x5c] sm:$0xf]
        %v589 = vld [vmem:[%s6 + $0x60] sm:$0xff]
        %v590 = vld [vmem:[%s6 + $0x68] sm:$0xf]
        %v591 = vld [vmem:[%s6 + $0x6c] sm:$0xff]
        %v592 = vld [vmem:[%s6 + $0x74] sm:$0xf]
        %v593 = vld [vmem:[%s6 + $0x78] sm:$0xff]
        %v594 = vld [vmem:[%s6 + $0x80] sm:$0xf]
        %v595 = vld [vmem:[%s6 + $0x84] sm:$0xff]
        %v596 = vld [vmem:[%s6 + $0x8c] sm:$0xf]
        %v597 = vld [vmem:[%s6 + $0x90] sm:$0xff]
        %v598 = vld [vmem:[%s6 + $0x98] sm:$0xf]
        %v599 = vld [vmem:[%s6 + $0x9c] sm:$0xff]
        %v600 = vld [vmem:[%s6 + $0xa4] sm:$0xf]
        %v601 = vld [vmem:[%s6 + $0xa8] sm:$0xff]
        %v602 = vld [vmem:[%s6 + $0xb0] sm:$0xf]
        %v603 = vld [vmem:[%s6 + $0xb4] sm:$0xff]
        %v604 = vld [vmem:[%s6 + $0xbc] sm:$0xf]
        %v605 = vpack.c.bf16 %v530, %v530
        %v606 = vld [vmem:[%s6 + $0xc0] sm:$0xff]
        %v607 = vld [vmem:[%s6 + $0xc8] sm:$0xf]
        %v608 = vld [vmem:[%s6 + $0xcc] sm:$0xff]
        %v609 = vld [vmem:[%s6 + $0xd4] sm:$0xf]
        %v610 = vld [vmem:[%s6 + $0xd8] sm:$0xff]
        %v611 = vld [vmem:[%s6 + $0xe0] sm:$0xf]
        %v612 = vld [vmem:[%s6 + $0xe4] sm:$0xff]
        %v613 = vld [vmem:[%s6 + $0xec] sm:$0xf]
        %v614 = vld [vmem:[%s6 + $0xf0] sm:$0xff]
        %v615 = vld [vmem:[%s6 + $0xf8] sm:$0xf]
        %v616 = vld [vmem:[%s6 + $0xfc] sm:$0xff]
        %v617 = vld [vmem:[%s6 + $0x104] sm:$0xf]
        %v618 = vld [vmem:[%s6 + $0x108] sm:$0xff]
        %v619 = vld [vmem:[%s6 + $0x110] sm:$0xf]
        %v620 = vld [vmem:[%s6 + $0x114] sm:$0xff]
        %v621 = vld [vmem:[%s6 + $0x11c] sm:$0xf]
        %v622 = vld [vmem:[%s6 + $0x120] sm:$0xff]
        %v623 = vld [vmem:[%s6 + $0x128] sm:$0xf]
        %v624 = vld [vmem:[%s6 + $0x12c] sm:$0xff]
        %v625 = vld [vmem:[%s6 + $0x134] sm:$0xf]
        %v626 = vld [vmem:[%s6 + $0x138] sm:$0xff]
        %v627 = vld [vmem:[%s6 + $0x140] sm:$0xf]
        %v628 = vld [vmem:[%s6 + $0x144] sm:$0xff]
        %v629 = vld [vmem:[%s6 + $0x14c] sm:$0xf]
        %v630 = vld [vmem:[%s6 + $0x150] sm:$0xff]
        %v631 = vld [vmem:[%s6 + $0x158] sm:$0xf]
        %v632 = vld [vmem:[%s6 + $0x15c] sm:$0xff]
        %v633 = vld [vmem:[%s6 + $0x164] sm:$0xf]
        %v634 = vld [vmem:[%s6 + $0x168] sm:$0xff]
        %v635 = vld [vmem:[%s6 + $0x170] sm:$0xf]
        %v636 = vld [vmem:[%s6 + $0x174] sm:$0xff]
        %v637 = vld [vmem:[%s6 + $0x17c] sm:$0xf]
        %v670 = vunpack.c.l.b16 %v606
        %v671 = vunpack.c.h.b16 %v606
        %v672 = vunpack.c.l.b16 %v607
        %v673 = vunpack.c.l.b16 %v608
        %v674 = vunpack.c.h.b16 %v608
        %v675 = vunpack.c.l.b16 %v609
        %v676 = vunpack.c.l.b16 %v610
        %v677 = vunpack.c.h.b16 %v610
        %v678 = vunpack.c.l.b16 %v611
        %v679 = vunpack.c.l.b16 %v612
        %v680 = vunpack.c.h.b16 %v612
        %v681 = vunpack.c.l.b16 %v613
        %v682 = vunpack.c.l.b16 %v614
        %v683 = vunpack.c.h.b16 %v614
        %v684 = vunpack.c.l.b16 %v615
        %v685 = vunpack.c.l.b16 %v616
        %v686 = vunpack.c.h.b16 %v616
        %v687 = vunpack.c.l.b16 %v617
        %v688 = vunpack.c.l.b16 %v618
        %v689 = vunpack.c.h.b16 %v618
        %v690 = vunpack.c.l.b16 %v619
        %v691 = vunpack.c.l.b16 %v620
        %v692 = vunpack.c.h.b16 %v620
        %v693 = vunpack.c.l.b16 %v621
        %v694 = vunpack.c.l.b16 %v622
        %v695 = vunpack.c.h.b16 %v622
        %v696 = vunpack.c.l.b16 %v623
        %v697 = vunpack.c.l.b16 %v624
        %v698 = vunpack.c.h.b16 %v624
        %v699 = vunpack.c.l.b16 %v625
        %v700 = vunpack.c.l.b16 %v626
        %v701 = vunpack.c.h.b16 %v626
        %v702 = vunpack.c.l.b16 %v627
        %v703 = vunpack.c.l.b16 %v628
        %v704 = vunpack.c.h.b16 %v628
        %v705 = vunpack.c.l.b16 %v629
        %v706 = vunpack.c.l.b16 %v630
        %v707 = vunpack.c.h.b16 %v630
        %v708 = vunpack.c.l.b16 %v631
        %v709 = vunpack.c.l.b16 %v632
        %v710 = vunpack.c.h.b16 %v632
        %v711 = vunpack.c.l.b16 %v633
        %v712 = vunpack.c.l.b16 %v634
        %v713 = vunpack.c.h.b16 %v634
        %v714 = vunpack.c.l.b16 %v635
        %v715 = vunpack.c.l.b16 %v636
        %v716 = vunpack.c.h.b16 %v636
        %v717 = vunpack.c.l.b16 %v637
        %v718 = vpack.c.b16 %v673, %v670
        %v719 = vpack.c.b16 %v674, %v671
        %v720 = vpack.c.b16 %v675, %v672
        %v721 = vpack.c.b16 %v679, %v676
        %v722 = vpack.c.b16 %v680, %v677
        %v723 = vpack.c.b16 %v681, %v678
        %v724 = vpack.c.b16 %v685, %v682
        %v725 = vpack.c.b16 %v686, %v683
        %v726 = vpack.c.b16 %v687, %v684
        %v727 = vpack.c.b16 %v691, %v688
        %v728 = vpack.c.b16 %v692, %v689
        %v729 = vpack.c.b16 %v693, %v690
        %v730 = vpack.c.b16 %v697, %v694
        %v731 = vpack.c.b16 %v698, %v695
        %v732 = vpack.c.b16 %v699, %v696
        %v733 = vpack.c.b16 %v703, %v700
        %v734 = vpack.c.b16 %v704, %v701
        %v735 = vpack.c.b16 %v705, %v702
        %v736 = vpack.c.b16 %v709, %v706
        %v737 = vpack.c.b16 %v710, %v707
        %v738 = vpack.c.b16 %v711, %v708
        %v739 = vpack.c.b16 %v715, %v712
        %v740 = vpack.c.b16 %v716, %v713
        %v741 = vpack.c.b16 %v717, %v714
        %766 = vmatprep.subr.bf16.mxu0 %v719
        %767 = vmatpush1.bf16.msra.mxu0 %v718
        %768 = vmatprep.subr.bf16.mxu0 %v722
        %769 = vmatpush1.bf16.msra.mxu0 %v721
        %770 = vmatprep.subr.bf16.mxu0 %v725
        %771 = vmatpush1.bf16.msra.mxu0 %v724
        %772 = vmatprep.subr.bf16.mxu0 %v728
        %773 = vmatpush1.bf16.msra.mxu0 %v727
        %774 = vmatprep.subr.bf16.mxu0 %v731
        %775 = vmatpush1.bf16.msra.mxu0 %v730
        %776 = vmatprep.subr.bf16.mxu0 %v734
        %777 = vmatpush1.bf16.msra.mxu0 %v733
        %778 = vmatprep.subr.bf16.mxu0 %v737
        %779 = vmatpush1.bf16.msra.mxu0 %v736
        %780 = vmatprep.subr.bf16.mxu0 %v740
        %781 = vmatpush1.bf16.msra.mxu0 %v739
        %782 = vmatprep.subr.bf16.mxu0 0
        %783 = vmatpush1.bf16.msra.mxu0 0
        %784 = vmatprep.subr.bf16.mxu0 0
        %785 = vmatpush1.bf16.msra.mxu0 0
        %786 = vmatprep.subr.bf16.mxu0 0
        %787 = vmatpush1.bf16.msra.mxu0 0
        %788 = vmatprep.subr.bf16.mxu0 0
        %789 = vmatpush1.bf16.msra.mxu0 0
        %790 = vmatprep.subr.bf16.mxu0 0
        %791 = vmatpush1.bf16.msra.mxu0 0
        %792 = vmatprep.subr.bf16.mxu0 0
        %793 = vmatpush1.bf16.msra.mxu0 0
        %794 = vmatprep.subr.bf16.mxu0 0
        %795 = vmatpush1.bf16.msra.mxu0 0
        %796 = vmatprep.subr.bf16.mxu0 0
        %797 = vmatpush1.bf16.msra.mxu0 0
        %798 = vmatprep.mubr.bf16.mxu0 0
        %799 = vmatmul.mubr.bf16.gmra.mrb[0].mxu0 %v605
        %v800 = vpop.f32.mrb[0].mxu0
        %v801 = vadd.f32 0.0, %v800
        %v802 = vpop.f32.mrb[0].mxu0
        %v803 = vadd.f32 0.0, %v802
        %v804 = vpop.f32.mrb[0].mxu0
        %v805 = vpop.f32.mrb[0].mxu0
        %806 = vdwg.mxu0
        %807 = vmatprep.subr.bf16.mxu0 0
        %808 = vmatpush1.bf16.msra.mxu0 %v720
        %809 = vmatprep.subr.bf16.mxu0 0
        %810 = vmatpush1.bf16.msra.mxu0 %v723
        %811 = vmatprep.subr.bf16.mxu0 0
        %812 = vmatpush1.bf16.msra.mxu0 %v726
        %813 = vmatprep.subr.bf16.mxu0 0
        %814 = vmatpush1.bf16.msra.mxu0 %v729
        %815 = vmatprep.subr.bf16.mxu0 0
        %816 = vmatpush1.bf16.msra.mxu0 %v732
        %817 = vmatprep.subr.bf16.mxu0 0
        %818 = vmatpush1.bf16.msra.mxu0 %v735
        %819 = vmatprep.subr.bf16.mxu0 0
        %820 = vmatpush1.bf16.msra.mxu0 %v738
        %821 = vmatprep.subr.bf16.mxu0 0
        %822 = vmatpush1.bf16.msra.mxu0 %v741
        %823 = vmatprep.subr.bf16.mxu0 0
        %824 = vmatpush1.bf16.msra.mxu0 0
        %825 = vmatprep.subr.bf16.mxu0 0
        %826 = vmatpush1.bf16.msra.mxu0 0
        %827 = vmatprep.subr.bf16.mxu0 0
        %828 = vmatpush1.bf16.msra.mxu0 0
        %829 = vmatprep.subr.bf16.mxu0 0
        %830 = vmatpush1.bf16.msra.mxu0 0
        %831 = vmatprep.subr.bf16.mxu0 0
        %832 = vmatpush1.bf16.msra.mxu0 0
        %833 = vmatprep.subr.bf16.mxu0 0
        %834 = vmatpush1.bf16.msra.mxu0 0
        %835 = vmatprep.subr.bf16.mxu0 0
        %836 = vmatpush1.bf16.msra.mxu0 0
        %837 = vmatprep.subr.bf16.mxu0 0
        %838 = vmatpush1.bf16.msra.mxu0 0
        %839 = vmatprep.mubr.bf16.mxu0 0
        %840 = vmatmul.mubr.bf16.gmra.mrb[0].mxu0 %v605
        %v841 = vpop.f32.mrb[0].mxu0
        %v842 = vadd.f32 0.0, %v841
        %v843 = vpop.f32.mrb[0].mxu0
        %v844 = vpop.f32.mrb[0].mxu0
        %v845 = vpop.f32.mrb[0].mxu0
        %846 = vdwg.mxu0
        %v879 = vunpack.c.l.b16 %v573
        %v880 = vunpack.c.h.b16 %v573
        %v881 = vunpack.c.l.b16 %v574
        %v882 = vunpack.c.l.b16 %v575
        %v883 = vunpack.c.h.b16 %v575
        %v884 = vunpack.c.l.b16 %v576
        %v885 = vunpack.c.l.b16 %v577
        %v886 = vunpack.c.h.b16 %v577
        %v887 = vunpack.c.l.b16 %v578
        %v888 = vunpack.c.l.b16 %v579
        %v889 = vunpack.c.h.b16 %v579
        %v890 = vunpack.c.l.b16 %v580
        %v891 = vunpack.c.l.b16 %v581
        %v892 = vunpack.c.h.b16 %v581
        %v893 = vunpack.c.l.b16 %v582
        %v894 = vunpack.c.l.b16 %v583
        %v895 = vunpack.c.h.b16 %v583
        %v896 = vunpack.c.l.b16 %v584
        %v897 = vunpack.c.l.b16 %v585
        %v898 = vunpack.c.h.b16 %v585
        %v899 = vunpack.c.l.b16 %v586
        %v900 = vunpack.c.l.b16 %v587
        %v901 = vunpack.c.h.b16 %v587
        %v902 = vunpack.c.l.b16 %v588
        %v903 = vunpack.c.l.b16 %v589
        %v904 = vunpack.c.h.b16 %v589
        %v905 = vunpack.c.l.b16 %v590
        %v906 = vunpack.c.l.b16 %v591
        %v907 = vunpack.c.h.b16 %v591
        %v908 = vunpack.c.l.b16 %v592
        %v909 = vunpack.c.l.b16 %v593
        %v910 = vunpack.c.h.b16 %v593
        %v911 = vunpack.c.l.b16 %v594
        %v912 = vunpack.c.l.b16 %v595
        %v913 = vunpack.c.h.b16 %v595
        %v914 = vunpack.c.l.b16 %v596
        %v915 = vunpack.c.l.b16 %v597
        %v916 = vunpack.c.h.b16 %v597
        %v917 = vunpack.c.l.b16 %v598
        %v918 = vunpack.c.l.b16 %v599
        %v919 = vunpack.c.h.b16 %v599
        %v920 = vunpack.c.l.b16 %v600
        %v921 = vunpack.c.l.b16 %v601
        %v922 = vunpack.c.h.b16 %v601
        %v923 = vunpack.c.l.b16 %v602
        %v924 = vunpack.c.l.b16 %v603
        %v925 = vunpack.c.h.b16 %v603
        %v926 = vunpack.c.l.b16 %v604
        %v927 = vpack.c.b16 %v882, %v879
        %v928 = vpack.c.b16 %v883, %v880
        %v929 = vpack.c.b16 %v884, %v881
        %v930 = vpack.c.b16 %v888, %v885
        %v931 = vpack.c.b16 %v889, %v886
        %v932 = vpack.c.b16 %v890, %v887
        %v933 = vpack.c.b16 %v894, %v891
        %v934 = vpack.c.b16 %v895, %v892
        %v935 = vpack.c.b16 %v896, %v893
        %v936 = vpack.c.b16 %v900, %v897
        %v937 = vpack.c.b16 %v901, %v898
        %v938 = vpack.c.b16 %v902, %v899
        %v939 = vpack.c.b16 %v906, %v903
        %v940 = vpack.c.b16 %v907, %v904
        %v941 = vpack.c.b16 %v908, %v905
        %v942 = vpack.c.b16 %v912, %v909
        %v943 = vpack.c.b16 %v913, %v910
        %v944 = vpack.c.b16 %v914, %v911
        %v945 = vpack.c.b16 %v918, %v915
        %v946 = vpack.c.b16 %v919, %v916
        %v947 = vpack.c.b16 %v920, %v917
        %v948 = vpack.c.b16 %v924, %v921
        %v949 = vpack.c.b16 %v925, %v922
        %v950 = vpack.c.b16 %v926, %v923
        %975 = vmatprep.subr.bf16.mxu0 %v928
        %976 = vmatpush1.bf16.msra.mxu0 %v927
        %977 = vmatprep.subr.bf16.mxu0 %v931
        %978 = vmatpush1.bf16.msra.mxu0 %v930
        %979 = vmatprep.subr.bf16.mxu0 %v934
        %980 = vmatpush1.bf16.msra.mxu0 %v933
        %981 = vmatprep.subr.bf16.mxu0 %v937
        %982 = vmatpush1.bf16.msra.mxu0 %v936
        %983 = vmatprep.subr.bf16.mxu0 %v940
        %984 = vmatpush1.bf16.msra.mxu0 %v939
        %985 = vmatprep.subr.bf16.mxu0 %v943
        %986 = vmatpush1.bf16.msra.mxu0 %v942
        %987 = vmatprep.subr.bf16.mxu0 %v946
        %988 = vmatpush1.bf16.msra.mxu0 %v945
        %989 = vmatprep.subr.bf16.mxu0 %v949
        %990 = vmatpush1.bf16.msra.mxu0 %v948
        %991 = vmatprep.subr.bf16.mxu0 0
        %992 = vmatpush1.bf16.msra.mxu0 0
        %993 = vmatprep.subr.bf16.mxu0 0
        %994 = vmatpush1.bf16.msra.mxu0 0
        %995 = vmatprep.subr.bf16.mxu0 0
        %996 = vmatpush1.bf16.msra.mxu0 0
        %997 = vmatprep.subr.bf16.mxu0 0
        %998 = vmatpush1.bf16.msra.mxu0 0
        %999 = vmatprep.subr.bf16.mxu0 0
        %1000 = vmatpush1.bf16.msra.mxu0 0
        %1001 = vmatprep.subr.bf16.mxu0 0
        %1002 = vmatpush1.bf16.msra.mxu0 0
        %1003 = vmatprep.subr.bf16.mxu0 0
        %1004 = vmatpush1.bf16.msra.mxu0 0
        %1005 = vmatprep.subr.bf16.mxu0 0
        %1006 = vmatpush1.bf16.msra.mxu0 0
        %1007 = vmatprep.mubr.bf16.mxu0 0
        %1008 = vmatmul.mubr.bf16.gmra.mrb[0].mxu0 %v572
        %v1009 = vpop.f32.mrb[0].mxu0
        %v1010 = vadd.f32 %v801, %v1009
        %v1011 = vpop.f32.mrb[0].mxu0
        %v1012 = vadd.f32 %v803, %v1011
        %v1013 = vpop.f32.mrb[0].mxu0
        %v1014 = vpop.f32.mrb[0].mxu0
        %1015 = vdwg.mxu0
        %1016 = vmatprep.subr.bf16.mxu0 0
        %1017 = vmatpush1.bf16.msra.mxu0 %v929
        %1018 = vmatprep.subr.bf16.mxu0 0
        %1019 = vmatpush1.bf16.msra.mxu0 %v932
        %1020 = vmatprep.subr.bf16.mxu0 0
        %1021 = vmatpush1.bf16.msra.mxu0 %v935
        %1022 = vmatprep.subr.bf16.mxu0 0
        %1023 = vmatpush1.bf16.msra.mxu0 %v938
        %1024 = vmatprep.subr.bf16.mxu0 0
        %1025 = vmatpush1.bf16.msra.mxu0 %v941
        %1026 = vmatprep.subr.bf16.mxu0 0
        %1027 = vmatpush1.bf16.msra.mxu0 %v944
        %1028 = vmatprep.subr.bf16.mxu0 0
        %1029 = vmatpush1.bf16.msra.mxu0 %v947
        %1030 = vmatprep.subr.bf16.mxu0 0
        %1031 = vmatpush1.bf16.msra.mxu0 %v950
        %1032 = vmatprep.subr.bf16.mxu0 0
        %1033 = vmatpush1.bf16.msra.mxu0 0
        %1034 = vmatprep.subr.bf16.mxu0 0
        %1035 = vmatpush1.bf16.msra.mxu0 0
        %1036 = vmatprep.subr.bf16.mxu0 0
        %1037 = vmatpush1.bf16.msra.mxu0 0
        %1038 = vmatprep.subr.bf16.mxu0 0
        %1039 = vmatpush1.bf16.msra.mxu0 0
        %1040 = vmatprep.subr.bf16.mxu0 0
        %1041 = vmatpush1.bf16.msra.mxu0 0
        %1042 = vmatprep.subr.bf16.mxu0 0
        %1043 = vmatpush1.bf16.msra.mxu0 0
        %1044 = vmatprep.subr.bf16.mxu0 0
        %1045 = vmatpush1.bf16.msra.mxu0 0
        %1046 = vmatprep.subr.bf16.mxu0 0
        %1047 = vmatpush1.bf16.msra.mxu0 0
        %1048 = vmatprep.mubr.bf16.mxu0 0
        %1049 = vmatmul.mubr.bf16.gmra.mrb[0].mxu0 %v572
        %v1050 = vpop.f32.mrb[0].mxu0
        %v1051 = vadd.f32 %v842, %v1050
        %v1052 = vpop.f32.mrb[0].mxu0
        %v1053 = vpop.f32.mrb[0].mxu0
        %v1054 = vpop.f32.mrb[0].mxu0
        %1055 = vdwg.mxu0
        %v1056 = vld [vmem:[%s8] sm:$0x7]
        %v1058 = vlaneseq
        %v1059 = vshrl.u32 %v1058, 7
        %v1060 = vsub.s32 0, %v1059
        %v1061 = vrot.slane %v1056, %v1060
        %v1062 = vlaneseq
        %v1063 = vshrl.u32 %v1062, 7
        %v1064 = vsub.s32 1, %v1063
        %v1065 = vrot.slane %v1056, %v1064
        %v1066 = vlaneseq
        %v1067 = vshrl.u32 %v1066, 7
        %v1068 = vsub.s32 2, %v1067
        %v1069 = vrot.slane %v1056, %v1068
        %v1073 = vadd.f32 %v1010, %v1061
        %v1074 = vadd.f32 %v1012, %v1065
        %v1075 = vadd.f32 %v1051, %v1069
        %v1076 = vpack.c.bf16 %v529, %v529
        %v1077 = vld [vmem:[%s7] sm:$0xff]
        %v1078 = vld [vmem:[%s7 + $0x8] sm:$0xf]
        %v1079 = vld [vmem:[%s7 + $0xc] sm:$0xff]
        %v1080 = vld [vmem:[%s7 + $0x14] sm:$0xf]
        %v1081 = vld [vmem:[%s7 + $0x18] sm:$0xff]
        %v1082 = vld [vmem:[%s7 + $0x20] sm:$0xf]
        %v1083 = vld [vmem:[%s7 + $0x24] sm:$0xff]
        %v1084 = vld [vmem:[%s7 + $0x2c] sm:$0xf]
        %v1085 = vld [vmem:[%s7 + $0x30] sm:$0xff]
        %v1086 = vld [vmem:[%s7 + $0x38] sm:$0xf]
        %v1087 = vld [vmem:[%s7 + $0x3c] sm:$0xff]
        %v1088 = vld [vmem:[%s7 + $0x44] sm:$0xf]
        %v1089 = vld [vmem:[%s7 + $0x48] sm:$0xff]
        %v1090 = vld [vmem:[%s7 + $0x50] sm:$0xf]
        %v1091 = vld [vmem:[%s7 + $0x54] sm:$0xff]
        %v1092 = vld [vmem:[%s7 + $0x5c] sm:$0xf]
        %v1093 = vld [vmem:[%s7 + $0x60] sm:$0xff]
        %v1094 = vld [vmem:[%s7 + $0x68] sm:$0xf]
        %v1095 = vld [vmem:[%s7 + $0x6c] sm:$0xff]
        %v1096 = vld [vmem:[%s7 + $0x74] sm:$0xf]
        %v1097 = vld [vmem:[%s7 + $0x78] sm:$0xff]
        %v1098 = vld [vmem:[%s7 + $0x80] sm:$0xf]
        %v1099 = vld [vmem:[%s7 + $0x84] sm:$0xff]
        %v1100 = vld [vmem:[%s7 + $0x8c] sm:$0xf]
        %v1101 = vld [vmem:[%s7 + $0x90] sm:$0xff]
        %v1102 = vld [vmem:[%s7 + $0x98] sm:$0xf]
        %v1103 = vld [vmem:[%s7 + $0x9c] sm:$0xff]
        %v1104 = vld [vmem:[%s7 + $0xa4] sm:$0xf]
        %v1105 = vld [vmem:[%s7 + $0xa8] sm:$0xff]
        %v1106 = vld [vmem:[%s7 + $0xb0] sm:$0xf]
        %v1107 = vld [vmem:[%s7 + $0xb4] sm:$0xff]
        %v1108 = vld [vmem:[%s7 + $0xbc] sm:$0xf]
        %v1109 = vld [vmem:[%s9] sm:$0x7]
        %v1111 = vlaneseq
        %v1112 = vshrl.u32 %v1111, 7
        %v1113 = vsub.s32 0, %v1112
        %v1114 = vrot.slane %v1109, %v1113
        %v1115 = vlaneseq
        %v1116 = vshrl.u32 %v1115, 7
        %v1117 = vsub.s32 1, %v1116
        %v1118 = vrot.slane %v1109, %v1117
        %v1119 = vlaneseq
        %v1120 = vshrl.u32 %v1119, 7
        %v1121 = vsub.s32 2, %v1120
        %v1122 = vrot.slane %v1109, %v1121
        %v1158 = vunpack.c.l.b16 %v1077
        %v1159 = vunpack.c.h.b16 %v1077
        %v1160 = vunpack.c.l.b16 %v1078
        %v1161 = vunpack.c.l.b16 %v1079
        %v1162 = vunpack.c.h.b16 %v1079
        %v1163 = vunpack.c.l.b16 %v1080
        %v1164 = vunpack.c.l.b16 %v1081
        %v1165 = vunpack.c.h.b16 %v1081
        %v1166 = vunpack.c.l.b16 %v1082
        %v1167 = vunpack.c.l.b16 %v1083
        %v1168 = vunpack.c.h.b16 %v1083
        %v1169 = vunpack.c.l.b16 %v1084
        %v1170 = vunpack.c.l.b16 %v1085
        %v1171 = vunpack.c.h.b16 %v1085
        %v1172 = vunpack.c.l.b16 %v1086
        %v1173 = vunpack.c.l.b16 %v1087
        %v1174 = vunpack.c.h.b16 %v1087
        %v1175 = vunpack.c.l.b16 %v1088
        %v1176 = vunpack.c.l.b16 %v1089
        %v1177 = vunpack.c.h.b16 %v1089
        %v1178 = vunpack.c.l.b16 %v1090
        %v1179 = vunpack.c.l.b16 %v1091
        %v1180 = vunpack.c.h.b16 %v1091
        %v1181 = vunpack.c.l.b16 %v1092
        %v1182 = vunpack.c.l.b16 %v1093
        %v1183 = vunpack.c.h.b16 %v1093
        %v1184 = vunpack.c.l.b16 %v1094
        %v1185 = vunpack.c.l.b16 %v1095
        %v1186 = vunpack.c.h.b16 %v1095
        %v1187 = vunpack.c.l.b16 %v1096
        %v1188 = vunpack.c.l.b16 %v1097
        %v1189 = vunpack.c.h.b16 %v1097
        %v1190 = vunpack.c.l.b16 %v1098
        %v1191 = vunpack.c.l.b16 %v1099
        %v1192 = vunpack.c.h.b16 %v1099
        %v1193 = vunpack.c.l.b16 %v1100
        %v1194 = vunpack.c.l.b16 %v1101
        %v1195 = vunpack.c.h.b16 %v1101
        %v1196 = vunpack.c.l.b16 %v1102
        %v1197 = vunpack.c.l.b16 %v1103
        %v1198 = vunpack.c.h.b16 %v1103
        %v1199 = vunpack.c.l.b16 %v1104
        %v1200 = vunpack.c.l.b16 %v1105
        %v1201 = vunpack.c.h.b16 %v1105
        %v1202 = vunpack.c.l.b16 %v1106
        %v1203 = vunpack.c.l.b16 %v1107
        %v1204 = vunpack.c.h.b16 %v1107
        %v1205 = vunpack.c.l.b16 %v1108
        %v1206 = vpack.c.b16 %v1161, %v1158
        %v1207 = vpack.c.b16 %v1162, %v1159
        %v1208 = vpack.c.b16 %v1163, %v1160
        %v1209 = vpack.c.b16 %v1167, %v1164
        %v1210 = vpack.c.b16 %v1168, %v1165
        %v1211 = vpack.c.b16 %v1169, %v1166
        %v1212 = vpack.c.b16 %v1173, %v1170
        %v1213 = vpack.c.b16 %v1174, %v1171
        %v1214 = vpack.c.b16 %v1175, %v1172
        %v1215 = vpack.c.b16 %v1179, %v1176
        %v1216 = vpack.c.b16 %v1180, %v1177
        %v1217 = vpack.c.b16 %v1181, %v1178
        %v1218 = vpack.c.b16 %v1185, %v1182
        %v1219 = vpack.c.b16 %v1186, %v1183
        %v1220 = vpack.c.b16 %v1187, %v1184
        %v1221 = vpack.c.b16 %v1191, %v1188
        %v1222 = vpack.c.b16 %v1192, %v1189
        %v1223 = vpack.c.b16 %v1193, %v1190
        %v1224 = vpack.c.b16 %v1197, %v1194
        %v1225 = vpack.c.b16 %v1198, %v1195
        %v1226 = vpack.c.b16 %v1199, %v1196
        %v1227 = vpack.c.b16 %v1203, %v1200
        %v1228 = vpack.c.b16 %v1204, %v1201
        %v1229 = vpack.c.b16 %v1205, %v1202
        %1254 = vmatprep.subr.bf16.mxu0 %v1207
        %1255 = vmatpush1.bf16.msra.mxu0 %v1206
        %1256 = vmatprep.subr.bf16.mxu0 %v1210
        %1257 = vmatpush1.bf16.msra.mxu0 %v1209
        %1258 = vmatprep.subr.bf16.mxu0 %v1213
        %1259 = vmatpush1.bf16.msra.mxu0 %v1212
        %1260 = vmatprep.subr.bf16.mxu0 %v1216
        %1261 = vmatpush1.bf16.msra.mxu0 %v1215
        %1262 = vmatprep.subr.bf16.mxu0 %v1219
        %1263 = vmatpush1.bf16.msra.mxu0 %v1218
        %1264 = vmatprep.subr.bf16.mxu0 %v1222
        %1265 = vmatpush1.bf16.msra.mxu0 %v1221
        %1266 = vmatprep.subr.bf16.mxu0 %v1225
        %1267 = vmatpush1.bf16.msra.mxu0 %v1224
        %1268 = vmatprep.subr.bf16.mxu0 %v1228
        %1269 = vmatpush1.bf16.msra.mxu0 %v1227
        %1270 = vmatprep.subr.bf16.mxu0 0
        %1271 = vmatpush1.bf16.msra.mxu0 0
        %1272 = vmatprep.subr.bf16.mxu0 0
        %1273 = vmatpush1.bf16.msra.mxu0 0
        %1274 = vmatprep.subr.bf16.mxu0 0
        %1275 = vmatpush1.bf16.msra.mxu0 0
        %1276 = vmatprep.subr.bf16.mxu0 0
        %1277 = vmatpush1.bf16.msra.mxu0 0
        %1278 = vmatprep.subr.bf16.mxu0 0
        %1279 = vmatpush1.bf16.msra.mxu0 0
        %1280 = vmatprep.subr.bf16.mxu0 0
        %1281 = vmatpush1.bf16.msra.mxu0 0
        %1282 = vmatprep.subr.bf16.mxu0 0
        %1283 = vmatpush1.bf16.msra.mxu0 0
        %1284 = vmatprep.subr.bf16.mxu0 0
        %1285 = vmatpush1.bf16.msra.mxu0 0
        %1286 = vmatprep.mubr.bf16.mxu0 0
        %1287 = vmatmul.mubr.bf16.gmra.mrb[0].mxu0 %v1076
        %v1288 = vpop.f32.mrb[0].mxu0
        %v1289 = vadd.f32 %v1114, %v1288
        %v1290 = vpop.f32.mrb[0].mxu0
        %v1291 = vadd.f32 %v1118, %v1290
        %v1292 = vpop.f32.mrb[0].mxu0
        %v1293 = vpop.f32.mrb[0].mxu0
        %1294 = vdwg.mxu0
        %1295 = vmatprep.subr.bf16.mxu0 0
        %1296 = vmatpush1.bf16.msra.mxu0 %v1208
        %1297 = vmatprep.subr.bf16.mxu0 0
        %1298 = vmatpush1.bf16.msra.mxu0 %v1211
        %1299 = vmatprep.subr.bf16.mxu0 0
        %1300 = vmatpush1.bf16.msra.mxu0 %v1214
        %1301 = vmatprep.subr.bf16.mxu0 0
        %1302 = vmatpush1.bf16.msra.mxu0 %v1217
        %1303 = vmatprep.subr.bf16.mxu0 0
        %1304 = vmatpush1.bf16.msra.mxu0 %v1220
        %1305 = vmatprep.subr.bf16.mxu0 0
        %1306 = vmatpush1.bf16.msra.mxu0 %v1223
        %1307 = vmatprep.subr.bf16.mxu0 0
        %1308 = vmatpush1.bf16.msra.mxu0 %v1226
        %1309 = vmatprep.subr.bf16.mxu0 0
        %1310 = vmatpush1.bf16.msra.mxu0 %v1229
        %1311 = vmatprep.subr.bf16.mxu0 0
        %1312 = vmatpush1.bf16.msra.mxu0 0
        %1313 = vmatprep.subr.bf16.mxu0 0
        %1314 = vmatpush1.bf16.msra.mxu0 0
        %1315 = vmatprep.subr.bf16.mxu0 0
        %1316 = vmatpush1.bf16.msra.mxu0 0
        %1317 = vmatprep.subr.bf16.mxu0 0
        %1318 = vmatpush1.bf16.msra.mxu0 0
        %1319 = vmatprep.subr.bf16.mxu0 0
        %1320 = vmatpush1.bf16.msra.mxu0 0
        %1321 = vmatprep.subr.bf16.mxu0 0
        %1322 = vmatpush1.bf16.msra.mxu0 0
        %1323 = vmatprep.subr.bf16.mxu0 0
        %1324 = vmatpush1.bf16.msra.mxu0 0
        %1325 = vmatprep.subr.bf16.mxu0 0
        %1326 = vmatpush1.bf16.msra.mxu0 0
        %1327 = vmatprep.mubr.bf16.mxu0 0
        %1328 = vmatmul.mubr.bf16.gmra.mrb[0].mxu0 %v1076
        %v1329 = vpop.f32.mrb[0].mxu0
        %v1330 = vadd.f32 %v1122, %v1329
        %v1331 = vpop.f32.mrb[0].mxu0
        %v1332 = vpop.f32.mrb[0].mxu0
        %v1333 = vpop.f32.mrb[0].mxu0
        %1334 = vdwg.mxu0
        %v1335 = vadd.f32 %v1073, %v1289
        %v1336 = vsub.f32 0.0, %v1335
        %v1337 = vmul.f32 %v1336, 1.442695
        %v1338 = vpow.pop %v1337
        %v1339 = vadd.f32 %v1338, 1.0
        %v1340 = vrcp.pop %v1339
        %v1341 = vadd.f32 %v1074, %v1291
        %v1342 = vsub.f32 0.0, %v1341
        %v1343 = vmul.f32 %v1342, 1.442695
        %v1344 = vpow.pop %v1343
        %v1345 = vadd.f32 %v1344, 1.0
        %v1346 = vrcp.pop %v1345
        %v1347 = vmul.f32 %v1340, %v1330
        %v1348 = vadd.f32 %v1075, %v1347
        %v1349 = vtanh.pop %v1348
        %v1350 = vsub.f32 1.0, %v1346
        %v1351 = vmul.f32 %v1350, %v1349
        %v1352 = vmul.f32 %v1346, %v529
        %v1353 = vadd.f32 %v1351, %v1352
        %v1354 = vpack.c.bf16 %v1353, %v1353
        %v1355 = vld [vmem:[%s10] sm:$0xf]
        %v1356 = vld [vmem:[%s10 + $0x4] sm:$0xf]
        %v1357 = vld [vmem:[%s10 + $0x8] sm:$0xf]
        %v1358 = vld [vmem:[%s10 + $0xc] sm:$0xf]
        %v1359 = vld [vmem:[%s10 + $0x10] sm:$0xf]
        %v1360 = vld [vmem:[%s10 + $0x14] sm:$0xf]
        %v1361 = vld [vmem:[%s10 + $0x18] sm:$0xf]
        %v1362 = vld [vmem:[%s10 + $0x1c] sm:$0xf]
        %v1363 = vld [vmem:[%s10 + $0x20] sm:$0xf]
        %v1364 = vld [vmem:[%s10 + $0x24] sm:$0xf]
        %v1365 = vld [vmem:[%s10 + $0x28] sm:$0xf]
        %v1366 = vld [vmem:[%s10 + $0x2c] sm:$0xf]
        %v1367 = vld [vmem:[%s10 + $0x30] sm:$0xf]
        %v1368 = vld [vmem:[%s10 + $0x34] sm:$0xf]
        %v1369 = vld [vmem:[%s10 + $0x38] sm:$0xf]
        %v1370 = vld [vmem:[%s10 + $0x3c] sm:$0xf]
        %v1387 = vunpack.c.l.b16 %v1355
        %v1388 = vunpack.c.l.b16 %v1356
        %v1389 = vunpack.c.l.b16 %v1357
        %v1390 = vunpack.c.l.b16 %v1358
        %v1391 = vunpack.c.l.b16 %v1359
        %v1392 = vunpack.c.l.b16 %v1360
        %v1393 = vunpack.c.l.b16 %v1361
        %v1394 = vunpack.c.l.b16 %v1362
        %v1395 = vunpack.c.l.b16 %v1363
        %v1396 = vunpack.c.l.b16 %v1364
        %v1397 = vunpack.c.l.b16 %v1365
        %v1398 = vunpack.c.l.b16 %v1366
        %v1399 = vunpack.c.l.b16 %v1367
        %v1400 = vunpack.c.l.b16 %v1368
        %v1401 = vunpack.c.l.b16 %v1369
        %v1402 = vunpack.c.l.b16 %v1370
        %v1403 = vpack.c.b16 %v1388, %v1387
        %v1404 = vpack.c.b16 %v1390, %v1389
        %v1405 = vpack.c.b16 %v1392, %v1391
        %v1406 = vpack.c.b16 %v1394, %v1393
        %v1407 = vpack.c.b16 %v1396, %v1395
        %v1408 = vpack.c.b16 %v1398, %v1397
        %v1409 = vpack.c.b16 %v1400, %v1399
        %v1410 = vpack.c.b16 %v1402, %v1401
        %1419 = vmatprep.subr.bf16.mxu0 0
        %1420 = vmatpush1.bf16.msra.mxu0 %v1403
        %1421 = vmatprep.subr.bf16.mxu0 0
        %1422 = vmatpush1.bf16.msra.mxu0 %v1404
        %1423 = vmatprep.subr.bf16.mxu0 0
        %1424 = vmatpush1.bf16.msra.mxu0 %v1405
        %1425 = vmatprep.subr.bf16.mxu0 0
        %1426 = vmatpush1.bf16.msra.mxu0 %v1406
        %1427 = vmatprep.subr.bf16.mxu0 0
        %1428 = vmatpush1.bf16.msra.mxu0 %v1407
        %1429 = vmatprep.subr.bf16.mxu0 0
        %1430 = vmatpush1.bf16.msra.mxu0 %v1408
        %1431 = vmatprep.subr.bf16.mxu0 0
        %1432 = vmatpush1.bf16.msra.mxu0 %v1409
        %1433 = vmatprep.subr.bf16.mxu0 0
        %1434 = vmatpush1.bf16.msra.mxu0 %v1410
        %1435 = vmatprep.subr.bf16.mxu0 0
        %1436 = vmatpush1.bf16.msra.mxu0 0
        %1437 = vmatprep.subr.bf16.mxu0 0
        %1438 = vmatpush1.bf16.msra.mxu0 0
        %1439 = vmatprep.subr.bf16.mxu0 0
        %1440 = vmatpush1.bf16.msra.mxu0 0
        %1441 = vmatprep.subr.bf16.mxu0 0
        %1442 = vmatpush1.bf16.msra.mxu0 0
        %1443 = vmatprep.subr.bf16.mxu0 0
        %1444 = vmatpush1.bf16.msra.mxu0 0
        %1445 = vmatprep.subr.bf16.mxu0 0
        %1446 = vmatpush1.bf16.msra.mxu0 0
        %1447 = vmatprep.subr.bf16.mxu0 0
        %1448 = vmatpush1.bf16.msra.mxu0 0
        %1449 = vmatprep.subr.bf16.mxu0 0
        %1450 = vmatpush1.bf16.msra.mxu0 0
        %1451 = vmatprep.mubr.bf16.mxu0 0
        %1452 = vmatmul.mubr.bf16.gmra.mrb[0].mxu0 %v1354
        %v1453 = vpop.f32.mrb[0].mxu0
        %v1454 = vadd.f32 0.0, %v1453
        %v1455 = vpop.f32.mrb[0].mxu0
        %v1456 = vpop.f32.mrb[0].mxu0
        %v1457 = vpop.f32.mrb[0].mxu0
        %1458 = vdwg.mxu0
        %v1461 = vunpack.c.l.s4 1966171168
        %v1462 = vunpack.c.0.s8 %v1461
        %v1463 = vlaneseq
        %v1464 = vshrl.u32 %v1463, 7
        %v1465 = vsub.s32 %v1462, %v1464
        %v1466 = vrot.slane %v1454, %v1465
        %v1467 = vcombine.high %v1466, %v1466
        %v1469 = vunpack.c.l.s4 1966171168
        %v1470 = vunpack.c.0.s8 %v1469
        %v1471 = vlaneseq
        %v1472 = vshrl.u32 %v1471, 7
        %v1473 = vsub.s32 %v1470, %v1472
        %v1474 = vrot.slane %v1466, %v1473
        %v1476 = vunpack.c.l.s4 1966171168
        %v1477 = vunpack.c.0.s8 %v1476
        %v1478 = vlaneseq
        %v1479 = vshrl.u32 %v1478, 7
        %v1480 = vsub.s32 %v1477, %v1479
        %v1481 = vrot.slane %v1467, %v1480
        %v1482 = vcombine.high %v1474, %v1474
        %v1483 = vcombine.high %v1481, %v1481
        %v1488 = vpack.c.bf16 %v1474, %v1474
        %v1489 = vpack.c.bf16 %v1481, %v1481
        %v1490 = vpack.c.bf16 %v1482, %v1482
        %v1491 = vpack.c.bf16 %v1483, %v1483
        %v1492 = vld [vmem:[%s3] sm:$0xf]
        %v1493 = vld [vmem:[%s3 + $0x4] sm:$0xf]
        %v1494 = vld [vmem:[%s3 + $0x8] sm:$0xf]
        %v1495 = vld [vmem:[%s3 + $0xc] sm:$0xf]
        %v1496 = vld [vmem:[%s3 + $0x10] sm:$0xf]
        %v1497 = vld [vmem:[%s3 + $0x14] sm:$0xf]
        %v1498 = vld [vmem:[%s3 + $0x18] sm:$0xf]
        %v1499 = vld [vmem:[%s3 + $0x1c] sm:$0xf]
        %v1500 = vld [vmem:[%s3 + $0x20] sm:$0xf]
        %v1501 = vld [vmem:[%s3 + $0x24] sm:$0xf]
        %v1502 = vld [vmem:[%s3 + $0x28] sm:$0xf]
        %v1503 = vld [vmem:[%s3 + $0x2c] sm:$0xf]
        %v1504 = vld [vmem:[%s3 + $0x30] sm:$0xf]
        %v1505 = vld [vmem:[%s3 + $0x34] sm:$0xf]
        %v1506 = vld [vmem:[%s3 + $0x38] sm:$0xf]
        %v1507 = vld [vmem:[%s3 + $0x3c] sm:$0xf]
        %v1508 = vld [vmem:[%s3 + $0x40] sm:$0xf]
        %v1509 = vld [vmem:[%s3 + $0x44] sm:$0xf]
        %v1510 = vld [vmem:[%s3 + $0x48] sm:$0xf]
        %v1511 = vld [vmem:[%s3 + $0x4c] sm:$0xf]
        %v1512 = vld [vmem:[%s3 + $0x50] sm:$0xf]
        %v1513 = vld [vmem:[%s3 + $0x54] sm:$0xf]
        %v1514 = vld [vmem:[%s3 + $0x58] sm:$0xf]
        %v1515 = vld [vmem:[%s3 + $0x5c] sm:$0xf]
        %v1516 = vld [vmem:[%s3 + $0x60] sm:$0xf]
        %v1517 = vld [vmem:[%s3 + $0x64] sm:$0xf]
        %v1518 = vld [vmem:[%s3 + $0x68] sm:$0xf]
        %v1519 = vld [vmem:[%s3 + $0x6c] sm:$0xf]
        %v1520 = vld [vmem:[%s3 + $0x70] sm:$0xf]
        %v1521 = vld [vmem:[%s3 + $0x74] sm:$0xf]
        %v1522 = vld [vmem:[%s3 + $0x78] sm:$0xf]
        %v1523 = vld [vmem:[%s3 + $0x7c] sm:$0xf]
        %v1524 = vld [vmem:[%s3 + $0x80] sm:$0xf]
        %v1525 = vld [vmem:[%s3 + $0x84] sm:$0xf]
        %v1526 = vld [vmem:[%s3 + $0x88] sm:$0xf]
        %v1527 = vld [vmem:[%s3 + $0x8c] sm:$0xf]
        %v1528 = vld [vmem:[%s3 + $0x90] sm:$0xf]
        %v1529 = vld [vmem:[%s3 + $0x94] sm:$0xf]
        %v1530 = vld [vmem:[%s3 + $0x98] sm:$0xf]
        %v1531 = vld [vmem:[%s3 + $0x9c] sm:$0xf]
        %v1532 = vld [vmem:[%s3 + $0xa0] sm:$0xf]
        %v1533 = vld [vmem:[%s3 + $0xa4] sm:$0xf]
        %v1534 = vld [vmem:[%s3 + $0xa8] sm:$0xf]
        %v1535 = vld [vmem:[%s3 + $0xac] sm:$0xf]
        %v1536 = vld [vmem:[%s3 + $0xb0] sm:$0xf]
        %v1537 = vld [vmem:[%s3 + $0xb4] sm:$0xf]
        %v1538 = vld [vmem:[%s3 + $0xb8] sm:$0xf]
        %v1539 = vld [vmem:[%s3 + $0xbc] sm:$0xf]
        %v1540 = vld [vmem:[%s3 + $0xc0] sm:$0xf]
        %v1541 = vld [vmem:[%s3 + $0xc4] sm:$0xf]
        %v1542 = vld [vmem:[%s3 + $0xc8] sm:$0xf]
        %v1543 = vld [vmem:[%s3 + $0xcc] sm:$0xf]
        %v1544 = vld [vmem:[%s3 + $0xd0] sm:$0xf]
        %v1545 = vld [vmem:[%s3 + $0xd4] sm:$0xf]
        %v1546 = vld [vmem:[%s3 + $0xd8] sm:$0xf]
        %v1547 = vld [vmem:[%s3 + $0xdc] sm:$0xf]
        %v1548 = vld [vmem:[%s3 + $0xe0] sm:$0xf]
        %v1549 = vld [vmem:[%s3 + $0xe4] sm:$0xf]
        %v1550 = vld [vmem:[%s3 + $0xe8] sm:$0xf]
        %v1551 = vld [vmem:[%s3 + $0xec] sm:$0xf]
        %v1552 = vld [vmem:[%s3 + $0xf0] sm:$0xf]
        %v1553 = vld [vmem:[%s3 + $0xf4] sm:$0xf]
        %v1554 = vld [vmem:[%s3 + $0xf8] sm:$0xf]
        %v1555 = vld [vmem:[%s3 + $0xfc] sm:$0xf]
        %v1572 = vunpack.c.l.b16 %v1492
        %v1573 = vunpack.c.l.b16 %v1493
        %v1574 = vunpack.c.l.b16 %v1494
        %v1575 = vunpack.c.l.b16 %v1495
        %v1576 = vunpack.c.l.b16 %v1496
        %v1577 = vunpack.c.l.b16 %v1497
        %v1578 = vunpack.c.l.b16 %v1498
        %v1579 = vunpack.c.l.b16 %v1499
        %v1580 = vunpack.c.l.b16 %v1500
        %v1581 = vunpack.c.l.b16 %v1501
        %v1582 = vunpack.c.l.b16 %v1502
        %v1583 = vunpack.c.l.b16 %v1503
        %v1584 = vunpack.c.l.b16 %v1504
        %v1585 = vunpack.c.l.b16 %v1505
        %v1586 = vunpack.c.l.b16 %v1506
        %v1587 = vunpack.c.l.b16 %v1507
        %v1588 = vpack.c.b16 %v1573, %v1572
        %v1589 = vpack.c.b16 %v1575, %v1574
        %v1590 = vpack.c.b16 %v1577, %v1576
        %v1591 = vpack.c.b16 %v1579, %v1578
        %v1592 = vpack.c.b16 %v1581, %v1580
        %v1593 = vpack.c.b16 %v1583, %v1582
        %v1594 = vpack.c.b16 %v1585, %v1584
        %v1595 = vpack.c.b16 %v1587, %v1586
        %1604 = vmatprep.subr.bf16.mxu0 0
        %1605 = vmatpush1.bf16.xpose.msra.mxu0 %v1588
        %1606 = vmatprep.subr.bf16.mxu0 0
        %1607 = vmatpush1.bf16.xpose.msra.mxu0 %v1589
        %1608 = vmatprep.subr.bf16.mxu0 0
        %1609 = vmatpush1.bf16.xpose.msra.mxu0 %v1590
        %1610 = vmatprep.subr.bf16.mxu0 0
        %1611 = vmatpush1.bf16.xpose.msra.mxu0 %v1591
        %1612 = vmatprep.subr.bf16.mxu0 0
        %1613 = vmatpush1.bf16.xpose.msra.mxu0 %v1592
        %1614 = vmatprep.subr.bf16.mxu0 0
        %1615 = vmatpush1.bf16.xpose.msra.mxu0 %v1593
        %1616 = vmatprep.subr.bf16.mxu0 0
        %1617 = vmatpush1.bf16.xpose.msra.mxu0 %v1594
        %1618 = vmatprep.subr.bf16.mxu0 0
        %1619 = vmatpush1.bf16.xpose.msra.mxu0 %v1595
        %1620 = vmatprep.subr.bf16.mxu0 0
        %1621 = vmatpush1.bf16.xpose.msra.mxu0 0
        %1622 = vmatprep.subr.bf16.mxu0 0
        %1623 = vmatpush1.bf16.xpose.msra.mxu0 0
        %1624 = vmatprep.subr.bf16.mxu0 0
        %1625 = vmatpush1.bf16.xpose.msra.mxu0 0
        %1626 = vmatprep.subr.bf16.mxu0 0
        %1627 = vmatpush1.bf16.xpose.msra.mxu0 0
        %1628 = vmatprep.subr.bf16.mxu0 0
        %1629 = vmatpush1.bf16.xpose.msra.mxu0 0
        %1630 = vmatprep.subr.bf16.mxu0 0
        %1631 = vmatpush1.bf16.xpose.msra.mxu0 0
        %1632 = vmatprep.subr.bf16.mxu0 0
        %1633 = vmatpush1.bf16.xpose.msra.mxu0 0
        %1634 = vmatprep.subr.bf16.mxu0 0
        %1635 = vmatpush1.bf16.xpose.msra.mxu0 0
        %1636 = vmatprep.mubr.bf16.mxu0 0
        %1637 = vmatmul.mubr.bf16.gmra.mrb[0].mxu0 %v1488
        %v1638 = vpop.f32.mrb[0].mxu0
        %v1639 = vadd.f32 0.0, %v1638
        %v1640 = vpop.f32.mrb[0].mxu0
        %v1641 = vpop.f32.mrb[0].mxu0
        %v1642 = vpop.f32.mrb[0].mxu0
        %1643 = vdwg.mxu0
        %v1660 = vunpack.c.l.b16 %v1508
        %v1661 = vunpack.c.l.b16 %v1509
        %v1662 = vunpack.c.l.b16 %v1510
        %v1663 = vunpack.c.l.b16 %v1511
        %v1664 = vunpack.c.l.b16 %v1512
        %v1665 = vunpack.c.l.b16 %v1513
        %v1666 = vunpack.c.l.b16 %v1514
        %v1667 = vunpack.c.l.b16 %v1515
        %v1668 = vunpack.c.l.b16 %v1516
        %v1669 = vunpack.c.l.b16 %v1517
        %v1670 = vunpack.c.l.b16 %v1518
        %v1671 = vunpack.c.l.b16 %v1519
        %v1672 = vunpack.c.l.b16 %v1520
        %v1673 = vunpack.c.l.b16 %v1521
        %v1674 = vunpack.c.l.b16 %v1522
        %v1675 = vunpack.c.l.b16 %v1523
        %v1676 = vpack.c.b16 %v1661, %v1660
        %v1677 = vpack.c.b16 %v1663, %v1662
        %v1678 = vpack.c.b16 %v1665, %v1664
        %v1679 = vpack.c.b16 %v1667, %v1666
        %v1680 = vpack.c.b16 %v1669, %v1668
        %v1681 = vpack.c.b16 %v1671, %v1670
        %v1682 = vpack.c.b16 %v1673, %v1672
        %v1683 = vpack.c.b16 %v1675, %v1674
        %1692 = vmatprep.subr.bf16.mxu0 0
        %1693 = vmatpush1.bf16.xpose.msra.mxu0 %v1676
        %1694 = vmatprep.subr.bf16.mxu0 0
        %1695 = vmatpush1.bf16.xpose.msra.mxu0 %v1677
        %1696 = vmatprep.subr.bf16.mxu0 0
        %1697 = vmatpush1.bf16.xpose.msra.mxu0 %v1678
        %1698 = vmatprep.subr.bf16.mxu0 0
        %1699 = vmatpush1.bf16.xpose.msra.mxu0 %v1679
        %1700 = vmatprep.subr.bf16.mxu0 0
        %1701 = vmatpush1.bf16.xpose.msra.mxu0 %v1680
        %1702 = vmatprep.subr.bf16.mxu0 0
        %1703 = vmatpush1.bf16.xpose.msra.mxu0 %v1681
        %1704 = vmatprep.subr.bf16.mxu0 0
        %1705 = vmatpush1.bf16.xpose.msra.mxu0 %v1682
        %1706 = vmatprep.subr.bf16.mxu0 0
        %1707 = vmatpush1.bf16.xpose.msra.mxu0 %v1683
        %1708 = vmatprep.subr.bf16.mxu0 0
        %1709 = vmatpush1.bf16.xpose.msra.mxu0 0
        %1710 = vmatprep.subr.bf16.mxu0 0
        %1711 = vmatpush1.bf16.xpose.msra.mxu0 0
        %1712 = vmatprep.subr.bf16.mxu0 0
        %1713 = vmatpush1.bf16.xpose.msra.mxu0 0
        %1714 = vmatprep.subr.bf16.mxu0 0
        %1715 = vmatpush1.bf16.xpose.msra.mxu0 0
        %1716 = vmatprep.subr.bf16.mxu0 0
        %1717 = vmatpush1.bf16.xpose.msra.mxu0 0
        %1718 = vmatprep.subr.bf16.mxu0 0
        %1719 = vmatpush1.bf16.xpose.msra.mxu0 0
        %1720 = vmatprep.subr.bf16.mxu0 0
        %1721 = vmatpush1.bf16.xpose.msra.mxu0 0
        %1722 = vmatprep.subr.bf16.mxu0 0
        %1723 = vmatpush1.bf16.xpose.msra.mxu0 0
        %1724 = vmatprep.mubr.bf16.mxu0 0
        %1725 = vmatmul.mubr.bf16.gmra.mrb[0].mxu0 %v1489
        %v1726 = vpop.f32.mrb[0].mxu0
        %v1727 = vadd.f32 0.0, %v1726
        %v1728 = vpop.f32.mrb[0].mxu0
        %v1729 = vpop.f32.mrb[0].mxu0
        %v1730 = vpop.f32.mrb[0].mxu0
        %1731 = vdwg.mxu0
        %v1748 = vunpack.c.l.b16 %v1524
        %v1749 = vunpack.c.l.b16 %v1525
        %v1750 = vunpack.c.l.b16 %v1526
        %v1751 = vunpack.c.l.b16 %v1527
        %v1752 = vunpack.c.l.b16 %v1528
        %v1753 = vunpack.c.l.b16 %v1529
        %v1754 = vunpack.c.l.b16 %v1530
        %v1755 = vunpack.c.l.b16 %v1531
        %v1756 = vunpack.c.l.b16 %v1532
        %v1757 = vunpack.c.l.b16 %v1533
        %v1758 = vunpack.c.l.b16 %v1534
        %v1759 = vunpack.c.l.b16 %v1535
        %v1760 = vunpack.c.l.b16 %v1536
        %v1761 = vunpack.c.l.b16 %v1537
        %v1762 = vunpack.c.l.b16 %v1538
        %v1763 = vunpack.c.l.b16 %v1539
        %v1764 = vpack.c.b16 %v1749, %v1748
        %v1765 = vpack.c.b16 %v1751, %v1750
        %v1766 = vpack.c.b16 %v1753, %v1752
        %v1767 = vpack.c.b16 %v1755, %v1754
        %v1768 = vpack.c.b16 %v1757, %v1756
        %v1769 = vpack.c.b16 %v1759, %v1758
        %v1770 = vpack.c.b16 %v1761, %v1760
        %v1771 = vpack.c.b16 %v1763, %v1762
        %1780 = vmatprep.subr.bf16.mxu0 0
        %1781 = vmatpush1.bf16.xpose.msra.mxu0 %v1764
        %1782 = vmatprep.subr.bf16.mxu0 0
        %1783 = vmatpush1.bf16.xpose.msra.mxu0 %v1765
        %1784 = vmatprep.subr.bf16.mxu0 0
        %1785 = vmatpush1.bf16.xpose.msra.mxu0 %v1766
        %1786 = vmatprep.subr.bf16.mxu0 0
        %1787 = vmatpush1.bf16.xpose.msra.mxu0 %v1767
        %1788 = vmatprep.subr.bf16.mxu0 0
        %1789 = vmatpush1.bf16.xpose.msra.mxu0 %v1768
        %1790 = vmatprep.subr.bf16.mxu0 0
        %1791 = vmatpush1.bf16.xpose.msra.mxu0 %v1769
        %1792 = vmatprep.subr.bf16.mxu0 0
        %1793 = vmatpush1.bf16.xpose.msra.mxu0 %v1770
        %1794 = vmatprep.subr.bf16.mxu0 0
        %1795 = vmatpush1.bf16.xpose.msra.mxu0 %v1771
        %1796 = vmatprep.subr.bf16.mxu0 0
        %1797 = vmatpush1.bf16.xpose.msra.mxu0 0
        %1798 = vmatprep.subr.bf16.mxu0 0
        %1799 = vmatpush1.bf16.xpose.msra.mxu0 0
        %1800 = vmatprep.subr.bf16.mxu0 0
        %1801 = vmatpush1.bf16.xpose.msra.mxu0 0
        %1802 = vmatprep.subr.bf16.mxu0 0
        %1803 = vmatpush1.bf16.xpose.msra.mxu0 0
        %1804 = vmatprep.subr.bf16.mxu0 0
        %1805 = vmatpush1.bf16.xpose.msra.mxu0 0
        %1806 = vmatprep.subr.bf16.mxu0 0
        %1807 = vmatpush1.bf16.xpose.msra.mxu0 0
        %1808 = vmatprep.subr.bf16.mxu0 0
        %1809 = vmatpush1.bf16.xpose.msra.mxu0 0
        %1810 = vmatprep.subr.bf16.mxu0 0
        %1811 = vmatpush1.bf16.xpose.msra.mxu0 0
        %1812 = vmatprep.mubr.bf16.mxu0 0
        %1813 = vmatmul.mubr.bf16.gmra.mrb[0].mxu0 %v1490
        %v1814 = vpop.f32.mrb[0].mxu0
        %v1815 = vadd.f32 0.0, %v1814
        %v1816 = vpop.f32.mrb[0].mxu0
        %v1817 = vpop.f32.mrb[0].mxu0
        %v1818 = vpop.f32.mrb[0].mxu0
        %1819 = vdwg.mxu0
        %v1836 = vunpack.c.l.b16 %v1540
        %v1837 = vunpack.c.l.b16 %v1541
        %v1838 = vunpack.c.l.b16 %v1542
        %v1839 = vunpack.c.l.b16 %v1543
        %v1840 = vunpack.c.l.b16 %v1544
        %v1841 = vunpack.c.l.b16 %v1545
        %v1842 = vunpack.c.l.b16 %v1546
        %v1843 = vunpack.c.l.b16 %v1547
        %v1844 = vunpack.c.l.b16 %v1548
        %v1845 = vunpack.c.l.b16 %v1549
        %v1846 = vunpack.c.l.b16 %v1550
        %v1847 = vunpack.c.l.b16 %v1551
        %v1848 = vunpack.c.l.b16 %v1552
        %v1849 = vunpack.c.l.b16 %v1553
        %v1850 = vunpack.c.l.b16 %v1554
        %v1851 = vunpack.c.l.b16 %v1555
        %v1852 = vpack.c.b16 %v1837, %v1836
        %v1853 = vpack.c.b16 %v1839, %v1838
        %v1854 = vpack.c.b16 %v1841, %v1840
        %v1855 = vpack.c.b16 %v1843, %v1842
        %v1856 = vpack.c.b16 %v1845, %v1844
        %v1857 = vpack.c.b16 %v1847, %v1846
        %v1858 = vpack.c.b16 %v1849, %v1848
        %v1859 = vpack.c.b16 %v1851, %v1850
        %1868 = vmatprep.subr.bf16.mxu0 0
        %1869 = vmatpush1.bf16.xpose.msra.mxu0 %v1852
        %1870 = vmatprep.subr.bf16.mxu0 0
        %1871 = vmatpush1.bf16.xpose.msra.mxu0 %v1853
        %1872 = vmatprep.subr.bf16.mxu0 0
        %1873 = vmatpush1.bf16.xpose.msra.mxu0 %v1854
        %1874 = vmatprep.subr.bf16.mxu0 0
        %1875 = vmatpush1.bf16.xpose.msra.mxu0 %v1855
        %1876 = vmatprep.subr.bf16.mxu0 0
        %1877 = vmatpush1.bf16.xpose.msra.mxu0 %v1856
        %1878 = vmatprep.subr.bf16.mxu0 0
        %1879 = vmatpush1.bf16.xpose.msra.mxu0 %v1857
        %1880 = vmatprep.subr.bf16.mxu0 0
        %1881 = vmatpush1.bf16.xpose.msra.mxu0 %v1858
        %1882 = vmatprep.subr.bf16.mxu0 0
        %1883 = vmatpush1.bf16.xpose.msra.mxu0 %v1859
        %1884 = vmatprep.subr.bf16.mxu0 0
        %1885 = vmatpush1.bf16.xpose.msra.mxu0 0
        %1886 = vmatprep.subr.bf16.mxu0 0
        %1887 = vmatpush1.bf16.xpose.msra.mxu0 0
        %1888 = vmatprep.subr.bf16.mxu0 0
        %1889 = vmatpush1.bf16.xpose.msra.mxu0 0
        %1890 = vmatprep.subr.bf16.mxu0 0
        %1891 = vmatpush1.bf16.xpose.msra.mxu0 0
        %1892 = vmatprep.subr.bf16.mxu0 0
        %1893 = vmatpush1.bf16.xpose.msra.mxu0 0
        %1894 = vmatprep.subr.bf16.mxu0 0
        %1895 = vmatpush1.bf16.xpose.msra.mxu0 0
        %1896 = vmatprep.subr.bf16.mxu0 0
        %1897 = vmatpush1.bf16.xpose.msra.mxu0 0
        %1898 = vmatprep.subr.bf16.mxu0 0
        %1899 = vmatpush1.bf16.xpose.msra.mxu0 0
        %1900 = vmatprep.mubr.bf16.mxu0 0
        %1901 = vmatmul.mubr.bf16.gmra.mrb[0].mxu0 %v1491
        %v1902 = vpop.f32.mrb[0].mxu0
        %v1903 = vadd.f32 0.0, %v1902
        %v1904 = vpop.f32.mrb[0].mxu0
        %v1905 = vpop.f32.mrb[0].mxu0
        %v1906 = vpop.f32.mrb[0].mxu0
        %1907 = vdwg.mxu0
        %v1908 = vld [vmem:[%s4] sm:$0x1]
        %v1909 = vld [vmem:[%s4 + $0x1] sm:$0x1]
        %v1910 = vld [vmem:[%s4 + $0x2] sm:$0x1]
        %v1911 = vld [vmem:[%s4 + $0x3] sm:$0x1]
        %v1912 = vmul.f32 %v1908, %v1639
        %v1913 = vmul.f32 %v1909, %v1727
        %v1914 = vmul.f32 %v1910, %v1815
        %v1915 = vmul.f32 %v1911, %v1903
        %vm1916 = vcmp.eq.f32.partialorder %v1912, 0.0
        %vm1917 = vcmp.eq.f32.partialorder %v1913, 0.0
        %vm1918 = vcmp.eq.f32.partialorder %v1914, 0.0
        %vm1919 = vcmp.eq.f32.partialorder %v1915, 0.0
        %v1920 = vsel %vm1916, -1e+10, %v1912
        %v1921 = vsel %vm1917, -1e+10, %v1913
        %v1922 = vsel %vm1918, -1e+10, %v1914
        %v1923 = vsel %vm1919, -1e+10, %v1915
        %v1924 = vsel %vm566, %v1920, -inf
        %1925 = vmax.xlane.f32.xlu0 %v1924
        %v1926 = vpop.xlane.xlu0 %1925
        %v1927 = vsel %vm566, %v1921, -inf
        %1928 = vmax.xlane.f32.xlu0 %v1927
        %v1929 = vpop.xlane.xlu0 %1928
        %v1930 = vsel %vm566, %v1922, -inf
        %1931 = vmax.xlane.f32.xlu0 %v1930
        %v1932 = vpop.xlane.xlu0 %1931
        %v1933 = vsel %vm566, %v1923, -inf
        %1934 = vmax.xlane.f32.xlu0 %v1933
        %v1935 = vpop.xlane.xlu0 %1934
        %v1936 = vsub.f32 %v1920, %v1926
        %v1937 = vsub.f32 %v1921, %v1929
        %v1938 = vsub.f32 %v1922, %v1932
        %v1939 = vsub.f32 %v1923, %v1935
        %v1940 = vmul.f32 %v1936, 1.442695
        %v1941 = vpow.pop %v1940
        %v1942 = vmul.f32 %v1937, 1.442695
        %v1943 = vpow.pop %v1942
        %v1944 = vmul.f32 %v1938, 1.442695
        %v1945 = vpow.pop %v1944
        %v1946 = vmul.f32 %v1939, 1.442695
        %v1947 = vpow.pop %v1946
        %v1948 = vsel %vm566, %v1941, 0.0
        %1949 = vadd.xlane.f32.xlu0 %v1948
        %v1950 = vpop.xlane.xlu0 %1949
        %v1951 = vsel %vm566, %v1943, 0.0
        %1952 = vadd.xlane.f32.xlu0 %v1951
        %v1953 = vpop.xlane.xlu0 %1952
        %v1954 = vsel %vm566, %v1945, 0.0
        %1955 = vadd.xlane.f32.xlu0 %v1954
        %v1956 = vpop.xlane.xlu0 %1955
        %v1957 = vsel %vm566, %v1947, 0.0
        %1958 = vadd.xlane.f32.xlu0 %v1957
        %v1959 = vpop.xlane.xlu0 %1958
        %v1960 = vrcp.pop %v1950
        %v1961 = vrcp.pop %v1953
        %v1962 = vrcp.pop %v1956
        %v1963 = vrcp.pop %v1959
        %v1964 = vmul.f32 %v1941, %v1960
        %v1965 = vmul.f32 %v1943, %v1961
        %v1966 = vmul.f32 %v1945, %v1962
        %v1967 = vmul.f32 %v1947, %v1963
        %v1968 = vpack.c.bf16 %v1964, %v1964
        %v1969 = vpack.c.bf16 %v1965, %v1965
        %v1970 = vpack.c.bf16 %v1966, %v1966
        %v1971 = vpack.c.bf16 %v1967, %v1967
        %v1972 = vld [vmem:[%s3] sm:$0xf]
        %v1973 = vld [vmem:[%s3 + $0x4] sm:$0xf]
        %v1974 = vld [vmem:[%s3 + $0x8] sm:$0xf]
        %v1975 = vld [vmem:[%s3 + $0xc] sm:$0xf]
        %v1976 = vld [vmem:[%s3 + $0x10] sm:$0xf]
        %v1977 = vld [vmem:[%s3 + $0x14] sm:$0xf]
        %v1978 = vld [vmem:[%s3 + $0x18] sm:$0xf]
        %v1979 = vld [vmem:[%s3 + $0x1c] sm:$0xf]
        %v1980 = vld [vmem:[%s3 + $0x20] sm:$0xf]
        %v1981 = vld [vmem:[%s3 + $0x24] sm:$0xf]
        %v1982 = vld [vmem:[%s3 + $0x28] sm:$0xf]
        %v1983 = vld [vmem:[%s3 + $0x2c] sm:$0xf]
        %v1984 = vld [vmem:[%s3 + $0x30] sm:$0xf]
        %v1985 = vld [vmem:[%s3 + $0x34] sm:$0xf]
        %v1986 = vld [vmem:[%s3 + $0x38] sm:$0xf]
        %v1987 = vld [vmem:[%s3 + $0x3c] sm:$0xf]
        %v1988 = vld [vmem:[%s3 + $0x40] sm:$0xf]
        %v1989 = vld [vmem:[%s3 + $0x44] sm:$0xf]
        %v1990 = vld [vmem:[%s3 + $0x48] sm:$0xf]
        %v1991 = vld [vmem:[%s3 + $0x4c] sm:$0xf]
        %v1992 = vld [vmem:[%s3 + $0x50] sm:$0xf]
        %v1993 = vld [vmem:[%s3 + $0x54] sm:$0xf]
        %v1994 = vld [vmem:[%s3 + $0x58] sm:$0xf]
        %v1995 = vld [vmem:[%s3 + $0x5c] sm:$0xf]
        %v1996 = vld [vmem:[%s3 + $0x60] sm:$0xf]
        %v1997 = vld [vmem:[%s3 + $0x64] sm:$0xf]
        %v1998 = vld [vmem:[%s3 + $0x68] sm:$0xf]
        %v1999 = vld [vmem:[%s3 + $0x6c] sm:$0xf]
        %v2000 = vld [vmem:[%s3 + $0x70] sm:$0xf]
        %v2001 = vld [vmem:[%s3 + $0x74] sm:$0xf]
        %v2002 = vld [vmem:[%s3 + $0x78] sm:$0xf]
        %v2003 = vld [vmem:[%s3 + $0x7c] sm:$0xf]
        %v2004 = vld [vmem:[%s3 + $0x80] sm:$0xf]
        %v2005 = vld [vmem:[%s3 + $0x84] sm:$0xf]
        %v2006 = vld [vmem:[%s3 + $0x88] sm:$0xf]
        %v2007 = vld [vmem:[%s3 + $0x8c] sm:$0xf]
        %v2008 = vld [vmem:[%s3 + $0x90] sm:$0xf]
        %v2009 = vld [vmem:[%s3 + $0x94] sm:$0xf]
        %v2010 = vld [vmem:[%s3 + $0x98] sm:$0xf]
        %v2011 = vld [vmem:[%s3 + $0x9c] sm:$0xf]
        %v2012 = vld [vmem:[%s3 + $0xa0] sm:$0xf]
        %v2013 = vld [vmem:[%s3 + $0xa4] sm:$0xf]
        %v2014 = vld [vmem:[%s3 + $0xa8] sm:$0xf]
        %v2015 = vld [vmem:[%s3 + $0xac] sm:$0xf]
        %v2016 = vld [vmem:[%s3 + $0xb0] sm:$0xf]
        %v2017 = vld [vmem:[%s3 + $0xb4] sm:$0xf]
        %v2018 = vld [vmem:[%s3 + $0xb8] sm:$0xf]
        %v2019 = vld [vmem:[%s3 + $0xbc] sm:$0xf]
        %v2020 = vld [vmem:[%s3 + $0xc0] sm:$0xf]
        %v2021 = vld [vmem:[%s3 + $0xc4] sm:$0xf]
        %v2022 = vld [vmem:[%s3 + $0xc8] sm:$0xf]
        %v2023 = vld [vmem:[%s3 + $0xcc] sm:$0xf]
        %v2024 = vld [vmem:[%s3 + $0xd0] sm:$0xf]
        %v2025 = vld [vmem:[%s3 + $0xd4] sm:$0xf]
        %v2026 = vld [vmem:[%s3 + $0xd8] sm:$0xf]
        %v2027 = vld [vmem:[%s3 + $0xdc] sm:$0xf]
        %v2028 = vld [vmem:[%s3 + $0xe0] sm:$0xf]
        %v2029 = vld [vmem:[%s3 + $0xe4] sm:$0xf]
        %v2030 = vld [vmem:[%s3 + $0xe8] sm:$0xf]
        %v2031 = vld [vmem:[%s3 + $0xec] sm:$0xf]
        %v2032 = vld [vmem:[%s3 + $0xf0] sm:$0xf]
        %v2033 = vld [vmem:[%s3 + $0xf4] sm:$0xf]
        %v2034 = vld [vmem:[%s3 + $0xf8] sm:$0xf]
        %v2035 = vld [vmem:[%s3 + $0xfc] sm:$0xf]
        %v2052 = vunpack.c.l.b16 %v1972
        %v2053 = vunpack.c.l.b16 %v1973
        %v2054 = vunpack.c.l.b16 %v1974
        %v2055 = vunpack.c.l.b16 %v1975
        %v2056 = vunpack.c.l.b16 %v1976
        %v2057 = vunpack.c.l.b16 %v1977
        %v2058 = vunpack.c.l.b16 %v1978
        %v2059 = vunpack.c.l.b16 %v1979
        %v2060 = vunpack.c.l.b16 %v1980
        %v2061 = vunpack.c.l.b16 %v1981
        %v2062 = vunpack.c.l.b16 %v1982
        %v2063 = vunpack.c.l.b16 %v1983
        %v2064 = vunpack.c.l.b16 %v1984
        %v2065 = vunpack.c.l.b16 %v1985
        %v2066 = vunpack.c.l.b16 %v1986
        %v2067 = vunpack.c.l.b16 %v1987
        %v2068 = vpack.c.b16 %v2053, %v2052
        %v2069 = vpack.c.b16 %v2055, %v2054
        %v2070 = vpack.c.b16 %v2057, %v2056
        %v2071 = vpack.c.b16 %v2059, %v2058
        %v2072 = vpack.c.b16 %v2061, %v2060
        %v2073 = vpack.c.b16 %v2063, %v2062
        %v2074 = vpack.c.b16 %v2065, %v2064
        %v2075 = vpack.c.b16 %v2067, %v2066
        %2084 = vmatprep.subr.bf16.mxu0 0
        %2085 = vmatpush1.bf16.msra.mxu0 %v2068
        %2086 = vmatprep.subr.bf16.mxu0 0
        %2087 = vmatpush1.bf16.msra.mxu0 %v2069
        %2088 = vmatprep.subr.bf16.mxu0 0
        %2089 = vmatpush1.bf16.msra.mxu0 %v2070
        %2090 = vmatprep.subr.bf16.mxu0 0
        %2091 = vmatpush1.bf16.msra.mxu0 %v2071
        %2092 = vmatprep.subr.bf16.mxu0 0
        %2093 = vmatpush1.bf16.msra.mxu0 %v2072
        %2094 = vmatprep.subr.bf16.mxu0 0
        %2095 = vmatpush1.bf16.msra.mxu0 %v2073
        %2096 = vmatprep.subr.bf16.mxu0 0
        %2097 = vmatpush1.bf16.msra.mxu0 %v2074
        %2098 = vmatprep.subr.bf16.mxu0 0
        %2099 = vmatpush1.bf16.msra.mxu0 %v2075
        %2100 = vmatprep.subr.bf16.mxu0 0
        %2101 = vmatpush1.bf16.msra.mxu0 0
        %2102 = vmatprep.subr.bf16.mxu0 0
        %2103 = vmatpush1.bf16.msra.mxu0 0
        %2104 = vmatprep.subr.bf16.mxu0 0
        %2105 = vmatpush1.bf16.msra.mxu0 0
        %2106 = vmatprep.subr.bf16.mxu0 0
        %2107 = vmatpush1.bf16.msra.mxu0 0
        %2108 = vmatprep.subr.bf16.mxu0 0
        %2109 = vmatpush1.bf16.msra.mxu0 0
        %2110 = vmatprep.subr.bf16.mxu0 0
        %2111 = vmatpush1.bf16.msra.mxu0 0
        %2112 = vmatprep.subr.bf16.mxu0 0
        %2113 = vmatpush1.bf16.msra.mxu0 0
        %2114 = vmatprep.subr.bf16.mxu0 0
        %2115 = vmatpush1.bf16.msra.mxu0 0
        %2116 = vmatprep.mubr.bf16.mxu0 0
        %2117 = vmatmul.mubr.bf16.gmra.mrb[0].mxu0 %v1968
        %v2118 = vpop.f32.mrb[0].mxu0
        %v2119 = vadd.f32 0.0, %v2118
        %v2120 = vpop.f32.mrb[0].mxu0
        %v2121 = vpop.f32.mrb[0].mxu0
        %v2122 = vpop.f32.mrb[0].mxu0
        %2123 = vdwg.mxu0
        %v2140 = vunpack.c.l.b16 %v1988
        %v2141 = vunpack.c.l.b16 %v1989
        %v2142 = vunpack.c.l.b16 %v1990
        %v2143 = vunpack.c.l.b16 %v1991
        %v2144 = vunpack.c.l.b16 %v1992
        %v2145 = vunpack.c.l.b16 %v1993
        %v2146 = vunpack.c.l.b16 %v1994
        %v2147 = vunpack.c.l.b16 %v1995
        %v2148 = vunpack.c.l.b16 %v1996
        %v2149 = vunpack.c.l.b16 %v1997
        %v2150 = vunpack.c.l.b16 %v1998
        %v2151 = vunpack.c.l.b16 %v1999
        %v2152 = vunpack.c.l.b16 %v2000
        %v2153 = vunpack.c.l.b16 %v2001
        %v2154 = vunpack.c.l.b16 %v2002
        %v2155 = vunpack.c.l.b16 %v2003
        %v2156 = vpack.c.b16 %v2141, %v2140
        %v2157 = vpack.c.b16 %v2143, %v2142
        %v2158 = vpack.c.b16 %v2145, %v2144
        %v2159 = vpack.c.b16 %v2147, %v2146
        %v2160 = vpack.c.b16 %v2149, %v2148
        %v2161 = vpack.c.b16 %v2151, %v2150
        %v2162 = vpack.c.b16 %v2153, %v2152
        %v2163 = vpack.c.b16 %v2155, %v2154
        %2172 = vmatprep.subr.bf16.mxu0 0
        %2173 = vmatpush1.bf16.msra.mxu0 %v2156
        %2174 = vmatprep.subr.bf16.mxu0 0
        %2175 = vmatpush1.bf16.msra.mxu0 %v2157
        %2176 = vmatprep.subr.bf16.mxu0 0
        %2177 = vmatpush1.bf16.msra.mxu0 %v2158
        %2178 = vmatprep.subr.bf16.mxu0 0
        %2179 = vmatpush1.bf16.msra.mxu0 %v2159
        %2180 = vmatprep.subr.bf16.mxu0 0
        %2181 = vmatpush1.bf16.msra.mxu0 %v2160
        %2182 = vmatprep.subr.bf16.mxu0 0
        %2183 = vmatpush1.bf16.msra.mxu0 %v2161
        %2184 = vmatprep.subr.bf16.mxu0 0
        %2185 = vmatpush1.bf16.msra.mxu0 %v2162
        %2186 = vmatprep.subr.bf16.mxu0 0
        %2187 = vmatpush1.bf16.msra.mxu0 %v2163
        %2188 = vmatprep.subr.bf16.mxu0 0
        %2189 = vmatpush1.bf16.msra.mxu0 0
        %2190 = vmatprep.subr.bf16.mxu0 0
        %2191 = vmatpush1.bf16.msra.mxu0 0
        %2192 = vmatprep.subr.bf16.mxu0 0
        %2193 = vmatpush1.bf16.msra.mxu0 0
        %2194 = vmatprep.subr.bf16.mxu0 0
        %2195 = vmatpush1.bf16.msra.mxu0 0
        %2196 = vmatprep.subr.bf16.mxu0 0
        %2197 = vmatpush1.bf16.msra.mxu0 0
        %2198 = vmatprep.subr.bf16.mxu0 0
        %2199 = vmatpush1.bf16.msra.mxu0 0
        %2200 = vmatprep.subr.bf16.mxu0 0
        %2201 = vmatpush1.bf16.msra.mxu0 0
        %2202 = vmatprep.subr.bf16.mxu0 0
        %2203 = vmatpush1.bf16.msra.mxu0 0
        %2204 = vmatprep.mubr.bf16.mxu0 0
        %2205 = vmatmul.mubr.bf16.gmra.mrb[0].mxu0 %v1969
        %v2206 = vpop.f32.mrb[0].mxu0
        %v2207 = vadd.f32 0.0, %v2206
        %v2208 = vpop.f32.mrb[0].mxu0
        %v2209 = vpop.f32.mrb[0].mxu0
        %v2210 = vpop.f32.mrb[0].mxu0
        %2211 = vdwg.mxu0
        %v2228 = vunpack.c.l.b16 %v2004
        %v2229 = vunpack.c.l.b16 %v2005
        %v2230 = vunpack.c.l.b16 %v2006
        %v2231 = vunpack.c.l.b16 %v2007
        %v2232 = vunpack.c.l.b16 %v2008
        %v2233 = vunpack.c.l.b16 %v2009
        %v2234 = vunpack.c.l.b16 %v2010
        %v2235 = vunpack.c.l.b16 %v2011
        %v2236 = vunpack.c.l.b16 %v2012
        %v2237 = vunpack.c.l.b16 %v2013
        %v2238 = vunpack.c.l.b16 %v2014
        %v2239 = vunpack.c.l.b16 %v2015
        %v2240 = vunpack.c.l.b16 %v2016
        %v2241 = vunpack.c.l.b16 %v2017
        %v2242 = vunpack.c.l.b16 %v2018
        %v2243 = vunpack.c.l.b16 %v2019
        %v2244 = vpack.c.b16 %v2229, %v2228
        %v2245 = vpack.c.b16 %v2231, %v2230
        %v2246 = vpack.c.b16 %v2233, %v2232
        %v2247 = vpack.c.b16 %v2235, %v2234
        %v2248 = vpack.c.b16 %v2237, %v2236
        %v2249 = vpack.c.b16 %v2239, %v2238
        %v2250 = vpack.c.b16 %v2241, %v2240
        %v2251 = vpack.c.b16 %v2243, %v2242
        %2260 = vmatprep.subr.bf16.mxu0 0
        %2261 = vmatpush1.bf16.msra.mxu0 %v2244
        %2262 = vmatprep.subr.bf16.mxu0 0
        %2263 = vmatpush1.bf16.msra.mxu0 %v2245
        %2264 = vmatprep.subr.bf16.mxu0 0
        %2265 = vmatpush1.bf16.msra.mxu0 %v2246
        %2266 = vmatprep.subr.bf16.mxu0 0
        %2267 = vmatpush1.bf16.msra.mxu0 %v2247
        %2268 = vmatprep.subr.bf16.mxu0 0
        %2269 = vmatpush1.bf16.msra.mxu0 %v2248
        %2270 = vmatprep.subr.bf16.mxu0 0
        %2271 = vmatpush1.bf16.msra.mxu0 %v2249
        %2272 = vmatprep.subr.bf16.mxu0 0
        %2273 = vmatpush1.bf16.msra.mxu0 %v2250
        %2274 = vmatprep.subr.bf16.mxu0 0
        %2275 = vmatpush1.bf16.msra.mxu0 %v2251
        %2276 = vmatprep.subr.bf16.mxu0 0
        %2277 = vmatpush1.bf16.msra.mxu0 0
        %2278 = vmatprep.subr.bf16.mxu0 0
        %2279 = vmatpush1.bf16.msra.mxu0 0
        %2280 = vmatprep.subr.bf16.mxu0 0
        %2281 = vmatpush1.bf16.msra.mxu0 0
        %2282 = vmatprep.subr.bf16.mxu0 0
        %2283 = vmatpush1.bf16.msra.mxu0 0
        %2284 = vmatprep.subr.bf16.mxu0 0
        %2285 = vmatpush1.bf16.msra.mxu0 0
        %2286 = vmatprep.subr.bf16.mxu0 0
        %2287 = vmatpush1.bf16.msra.mxu0 0
        %2288 = vmatprep.subr.bf16.mxu0 0
        %2289 = vmatpush1.bf16.msra.mxu0 0
        %2290 = vmatprep.subr.bf16.mxu0 0
        %2291 = vmatpush1.bf16.msra.mxu0 0
        %2292 = vmatprep.mubr.bf16.mxu0 0
        %2293 = vmatmul.mubr.bf16.gmra.mrb[0].mxu0 %v1970
        %v2294 = vpop.f32.mrb[0].mxu0
        %v2295 = vadd.f32 0.0, %v2294
        %v2296 = vpop.f32.mrb[0].mxu0
        %v2297 = vpop.f32.mrb[0].mxu0
        %v2298 = vpop.f32.mrb[0].mxu0
        %2299 = vdwg.mxu0
        %v2316 = vunpack.c.l.b16 %v2020
        %v2317 = vunpack.c.l.b16 %v2021
        %v2318 = vunpack.c.l.b16 %v2022
        %v2319 = vunpack.c.l.b16 %v2023
        %v2320 = vunpack.c.l.b16 %v2024
        %v2321 = vunpack.c.l.b16 %v2025
        %v2322 = vunpack.c.l.b16 %v2026
        %v2323 = vunpack.c.l.b16 %v2027
        %v2324 = vunpack.c.l.b16 %v2028
        %v2325 = vunpack.c.l.b16 %v2029
        %v2326 = vunpack.c.l.b16 %v2030
        %v2327 = vunpack.c.l.b16 %v2031
        %v2328 = vunpack.c.l.b16 %v2032
        %v2329 = vunpack.c.l.b16 %v2033
        %v2330 = vunpack.c.l.b16 %v2034
        %v2331 = vunpack.c.l.b16 %v2035
        %v2332 = vpack.c.b16 %v2317, %v2316
        %v2333 = vpack.c.b16 %v2319, %v2318
        %v2334 = vpack.c.b16 %v2321, %v2320
        %v2335 = vpack.c.b16 %v2323, %v2322
        %v2336 = vpack.c.b16 %v2325, %v2324
        %v2337 = vpack.c.b16 %v2327, %v2326
        %v2338 = vpack.c.b16 %v2329, %v2328
        %v2339 = vpack.c.b16 %v2331, %v2330
        %2348 = vmatprep.subr.bf16.mxu0 0
        %2349 = vmatpush1.bf16.msra.mxu0 %v2332
        %2350 = vmatprep.subr.bf16.mxu0 0
        %2351 = vmatpush1.bf16.msra.mxu0 %v2333
        %2352 = vmatprep.subr.bf16.mxu0 0
        %2353 = vmatpush1.bf16.msra.mxu0 %v2334
        %2354 = vmatprep.subr.bf16.mxu0 0
        %2355 = vmatpush1.bf16.msra.mxu0 %v2335
        %2356 = vmatprep.subr.bf16.mxu0 0
        %2357 = vmatpush1.bf16.msra.mxu0 %v2336
        %2358 = vmatprep.subr.bf16.mxu0 0
        %2359 = vmatpush1.bf16.msra.mxu0 %v2337
        %2360 = vmatprep.subr.bf16.mxu0 0
        %2361 = vmatpush1.bf16.msra.mxu0 %v2338
        %2362 = vmatprep.subr.bf16.mxu0 0
        %2363 = vmatpush1.bf16.msra.mxu0 %v2339
        %2364 = vmatprep.subr.bf16.mxu0 0
        %2365 = vmatpush1.bf16.msra.mxu0 0
        %2366 = vmatprep.subr.bf16.mxu0 0
        %2367 = vmatpush1.bf16.msra.mxu0 0
        %2368 = vmatprep.subr.bf16.mxu0 0
        %2369 = vmatpush1.bf16.msra.mxu0 0
        %2370 = vmatprep.subr.bf16.mxu0 0
        %2371 = vmatpush1.bf16.msra.mxu0 0
        %2372 = vmatprep.subr.bf16.mxu0 0
        %2373 = vmatpush1.bf16.msra.mxu0 0
        %2374 = vmatprep.subr.bf16.mxu0 0
        %2375 = vmatpush1.bf16.msra.mxu0 0
        %2376 = vmatprep.subr.bf16.mxu0 0
        %2377 = vmatpush1.bf16.msra.mxu0 0
        %2378 = vmatprep.subr.bf16.mxu0 0
        %2379 = vmatpush1.bf16.msra.mxu0 0
        %2380 = vmatprep.mubr.bf16.mxu0 0
        %2381 = vmatmul.mubr.bf16.gmra.mrb[0].mxu0 %v1971
        %v2382 = vpop.f32.mrb[0].mxu0
        %v2383 = vadd.f32 0.0, %v2382
        %v2384 = vpop.f32.mrb[0].mxu0
        %v2385 = vpop.f32.mrb[0].mxu0
        %v2386 = vpop.f32.mrb[0].mxu0
        %2387 = vdwg.mxu0
        %v2388 = vpack.c.bf16 %v2119, %v2119
        %v2389 = vpack.c.bf16 %v2207, %v2207
        %v2390 = vpack.c.bf16 %v2295, %v2295
        %v2391 = vpack.c.bf16 %v2383, %v2383
        %v2392 = vld [vmem:[%s11] sm:$0xf]
        %v2393 = vld [vmem:[%s11 + $0x4] sm:$0xf]
        %v2394 = vld [vmem:[%s11 + $0x8] sm:$0xf]
        %v2395 = vld [vmem:[%s11 + $0xc] sm:$0xf]
        %v2396 = vld [vmem:[%s11 + $0x10] sm:$0xf]
        %v2397 = vld [vmem:[%s11 + $0x14] sm:$0xf]
        %v2398 = vld [vmem:[%s11 + $0x18] sm:$0xf]
        %v2399 = vld [vmem:[%s11 + $0x1c] sm:$0xf]
        %v2400 = vld [vmem:[%s11 + $0x20] sm:$0xf]
        %v2401 = vld [vmem:[%s11 + $0x24] sm:$0xf]
        %v2402 = vld [vmem:[%s11 + $0x28] sm:$0xf]
        %v2403 = vld [vmem:[%s11 + $0x2c] sm:$0xf]
        %v2404 = vld [vmem:[%s11 + $0x30] sm:$0xf]
        %v2405 = vld [vmem:[%s11 + $0x34] sm:$0xf]
        %v2406 = vld [vmem:[%s11 + $0x38] sm:$0xf]
        %v2407 = vld [vmem:[%s11 + $0x3c] sm:$0xf]
        %v2408 = vld [vmem:[%s11 + $0x40] sm:$0xf]
        %v2409 = vld [vmem:[%s11 + $0x44] sm:$0xf]
        %v2410 = vld [vmem:[%s11 + $0x48] sm:$0xf]
        %v2411 = vld [vmem:[%s11 + $0x4c] sm:$0xf]
        %v2412 = vld [vmem:[%s11 + $0x50] sm:$0xf]
        %v2413 = vld [vmem:[%s11 + $0x54] sm:$0xf]
        %v2414 = vld [vmem:[%s11 + $0x58] sm:$0xf]
        %v2415 = vld [vmem:[%s11 + $0x5c] sm:$0xf]
        %v2416 = vld [vmem:[%s11 + $0x60] sm:$0xf]
        %v2417 = vld [vmem:[%s11 + $0x64] sm:$0xf]
        %v2418 = vld [vmem:[%s11 + $0x68] sm:$0xf]
        %v2419 = vld [vmem:[%s11 + $0x6c] sm:$0xf]
        %v2420 = vld [vmem:[%s11 + $0x70] sm:$0xf]
        %v2421 = vld [vmem:[%s11 + $0x74] sm:$0xf]
        %v2422 = vld [vmem:[%s11 + $0x78] sm:$0xf]
        %v2423 = vld [vmem:[%s11 + $0x7c] sm:$0xf]
        %v2440 = vunpack.c.l.b16 %v2408
        %v2441 = vunpack.c.l.b16 %v2409
        %v2442 = vunpack.c.l.b16 %v2410
        %v2443 = vunpack.c.l.b16 %v2411
        %v2444 = vunpack.c.l.b16 %v2412
        %v2445 = vunpack.c.l.b16 %v2413
        %v2446 = vunpack.c.l.b16 %v2414
        %v2447 = vunpack.c.l.b16 %v2415
        %v2448 = vunpack.c.l.b16 %v2416
        %v2449 = vunpack.c.l.b16 %v2417
        %v2450 = vunpack.c.l.b16 %v2418
        %v2451 = vunpack.c.l.b16 %v2419
        %v2452 = vunpack.c.l.b16 %v2420
        %v2453 = vunpack.c.l.b16 %v2421
        %v2454 = vunpack.c.l.b16 %v2422
        %v2455 = vunpack.c.l.b16 %v2423
        %v2456 = vpack.c.b16 %v2441, %v2440
        %v2457 = vpack.c.b16 %v2443, %v2442
        %v2458 = vpack.c.b16 %v2445, %v2444
        %v2459 = vpack.c.b16 %v2447, %v2446
        %v2460 = vpack.c.b16 %v2449, %v2448
        %v2461 = vpack.c.b16 %v2451, %v2450
        %v2462 = vpack.c.b16 %v2453, %v2452
        %v2463 = vpack.c.b16 %v2455, %v2454
        %2472 = vmatprep.subr.bf16.mxu0 0
        %2473 = vmatpush1.bf16.msra.mxu0 %v2456
        %2474 = vmatprep.subr.bf16.mxu0 0
        %2475 = vmatpush1.bf16.msra.mxu0 %v2457
        %2476 = vmatprep.subr.bf16.mxu0 0
        %2477 = vmatpush1.bf16.msra.mxu0 %v2458
        %2478 = vmatprep.subr.bf16.mxu0 0
        %2479 = vmatpush1.bf16.msra.mxu0 %v2459
        %2480 = vmatprep.subr.bf16.mxu0 0
        %2481 = vmatpush1.bf16.msra.mxu0 %v2460
        %2482 = vmatprep.subr.bf16.mxu0 0
        %2483 = vmatpush1.bf16.msra.mxu0 %v2461
        %2484 = vmatprep.subr.bf16.mxu0 0
        %2485 = vmatpush1.bf16.msra.mxu0 %v2462
        %2486 = vmatprep.subr.bf16.mxu0 0
        %2487 = vmatpush1.bf16.msra.mxu0 %v2463
        %2488 = vmatprep.subr.bf16.mxu0 0
        %2489 = vmatpush1.bf16.msra.mxu0 0
        %2490 = vmatprep.subr.bf16.mxu0 0
        %2491 = vmatpush1.bf16.msra.mxu0 0
        %2492 = vmatprep.subr.bf16.mxu0 0
        %2493 = vmatpush1.bf16.msra.mxu0 0
        %2494 = vmatprep.subr.bf16.mxu0 0
        %2495 = vmatpush1.bf16.msra.mxu0 0
        %2496 = vmatprep.subr.bf16.mxu0 0
        %2497 = vmatpush1.bf16.msra.mxu0 0
        %2498 = vmatprep.subr.bf16.mxu0 0
        %2499 = vmatpush1.bf16.msra.mxu0 0
        %2500 = vmatprep.subr.bf16.mxu0 0
        %2501 = vmatpush1.bf16.msra.mxu0 0
        %2502 = vmatprep.subr.bf16.mxu0 0
        %2503 = vmatpush1.bf16.msra.mxu0 0
        %2504 = vmatprep.mubr.bf16.mxu0 0
        %2505 = vmatmul.mubr.bf16.gmra.mrb[0].mxu0 %v1354
        %v2506 = vpop.f32.mrb[0].mxu0
        %v2507 = vadd.f32 0.0, %v2506
        %v2508 = vpop.f32.mrb[0].mxu0
        %v2509 = vpop.f32.mrb[0].mxu0
        %v2510 = vpop.f32.mrb[0].mxu0
        %2511 = vdwg.mxu0
        %v2516 = vunpack.c.l.b16 %v2388
        %v2517 = vunpack.c.l.b16 %v2389
        %v2518 = vunpack.c.l.b16 %v2390
        %v2519 = vunpack.c.l.b16 %v2391
        %v2520 = vrot.slane %v2517, 7
        %vm2521 = vcmask 1041409
        %v2522 = vsel %vm2521, %v2520, %v2516
        %v2523 = vrot.slane %v2518, 6
        %vm2524 = vcmask 1042434
        %v2525 = vsel %vm2524, %v2523, %v2522
        %v2526 = vrot.slane %v2519, 5
        %vm2527 = vcmask 1043459
        %v2528 = vsel %vm2527, %v2526, %v2525
        %v2529 = vpack.c.b16 %v2528, %v2528
        %v2547 = vunpack.c.l.b16 %v2392
        %v2548 = vunpack.c.l.b16 %v2393
        %v2549 = vunpack.c.l.b16 %v2394
        %v2550 = vunpack.c.l.b16 %v2395
        %v2551 = vunpack.c.l.b16 %v2396
        %v2552 = vunpack.c.l.b16 %v2397
        %v2553 = vunpack.c.l.b16 %v2398
        %v2554 = vunpack.c.l.b16 %v2399
        %v2555 = vunpack.c.l.b16 %v2400
        %v2556 = vunpack.c.l.b16 %v2401
        %v2557 = vunpack.c.l.b16 %v2402
        %v2558 = vunpack.c.l.b16 %v2403
        %v2559 = vunpack.c.l.b16 %v2404
        %v2560 = vunpack.c.l.b16 %v2405
        %v2561 = vunpack.c.l.b16 %v2406
        %v2562 = vunpack.c.l.b16 %v2407
        %v2563 = vpack.c.b16 %v2548, %v2547
        %v2564 = vpack.c.b16 %v2550, %v2549
        %v2565 = vpack.c.b16 %v2552, %v2551
        %v2566 = vpack.c.b16 %v2554, %v2553
        %v2567 = vpack.c.b16 %v2556, %v2555
        %v2568 = vpack.c.b16 %v2558, %v2557
        %v2569 = vpack.c.b16 %v2560, %v2559
        %v2570 = vpack.c.b16 %v2562, %v2561
        %2579 = vmatprep.subr.bf16.mxu0 0
        %2580 = vmatpush1.bf16.msra.mxu0 %v2563
        %2581 = vmatprep.subr.bf16.mxu0 0
        %2582 = vmatpush1.bf16.msra.mxu0 %v2564
        %2583 = vmatprep.subr.bf16.mxu0 0
        %2584 = vmatpush1.bf16.msra.mxu0 %v2565
        %2585 = vmatprep.subr.bf16.mxu0 0
        %2586 = vmatpush1.bf16.msra.mxu0 %v2566
        %2587 = vmatprep.subr.bf16.mxu0 0
        %2588 = vmatpush1.bf16.msra.mxu0 %v2567
        %2589 = vmatprep.subr.bf16.mxu0 0
        %2590 = vmatpush1.bf16.msra.mxu0 %v2568
        %2591 = vmatprep.subr.bf16.mxu0 0
        %2592 = vmatpush1.bf16.msra.mxu0 %v2569
        %2593 = vmatprep.subr.bf16.mxu0 0
        %2594 = vmatpush1.bf16.msra.mxu0 %v2570
        %2595 = vmatprep.subr.bf16.mxu0 0
        %2596 = vmatpush1.bf16.msra.mxu0 0
        %2597 = vmatprep.subr.bf16.mxu0 0
        %2598 = vmatpush1.bf16.msra.mxu0 0
        %2599 = vmatprep.subr.bf16.mxu0 0
        %2600 = vmatpush1.bf16.msra.mxu0 0
        %2601 = vmatprep.subr.bf16.mxu0 0
        %2602 = vmatpush1.bf16.msra.mxu0 0
        %2603 = vmatprep.subr.bf16.mxu0 0
        %2604 = vmatpush1.bf16.msra.mxu0 0
        %2605 = vmatprep.subr.bf16.mxu0 0
        %2606 = vmatpush1.bf16.msra.mxu0 0
        %2607 = vmatprep.subr.bf16.mxu0 0
        %2608 = vmatpush1.bf16.msra.mxu0 0
        %2609 = vmatprep.subr.bf16.mxu0 0
        %2610 = vmatpush1.bf16.msra.mxu0 0
        %2611 = vmatprep.mubr.bf16.mxu0 0
        %2612 = vmatmul.mubr.bf16.gmra.mrb[0].mxu0 %v2529
        %v2613 = vpop.f32.mrb[0].mxu0
        %v2614 = vadd.f32 %v2507, %v2613
        %v2615 = vpop.f32.mrb[0].mxu0
        %v2616 = vpop.f32.mrb[0].mxu0
        %v2617 = vpop.f32.mrb[0].mxu0
        %2618 = vdwg.mxu0
        %v2619 = vtanh.pop %v2614
        %v2620 = vpack.c.bf16 %v2619, %v2619
        %v2621 = vld [vmem:[%s12] sm:$0xf]
        %v2622 = vld [vmem:[%s12 + $0x4] sm:$0xf]
        %v2623 = vld [vmem:[%s12 + $0x8] sm:$0xf]
        %v2624 = vld [vmem:[%s12 + $0xc] sm:$0xf]
        %v2625 = vld [vmem:[%s12 + $0x10] sm:$0xf]
        %v2626 = vld [vmem:[%s12 + $0x14] sm:$0xf]
        %v2627 = vld [vmem:[%s12 + $0x18] sm:$0xf]
        %v2628 = vld [vmem:[%s12 + $0x1c] sm:$0xf]
        %v2629 = vld [vmem:[%s12 + $0x20] sm:$0xf]
        %v2630 = vld [vmem:[%s12 + $0x24] sm:$0xf]
        %v2631 = vld [vmem:[%s12 + $0x28] sm:$0xf]
        %v2632 = vld [vmem:[%s12 + $0x2c] sm:$0xf]
        %v2633 = vld [vmem:[%s12 + $0x30] sm:$0xf]
        %v2634 = vld [vmem:[%s12 + $0x34] sm:$0xf]
        %v2635 = vld [vmem:[%s12 + $0x38] sm:$0xf]
        %v2636 = vld [vmem:[%s12 + $0x3c] sm:$0xf]
        %v2637 = vld [vmem:[%s13] sm:$0x1]
        %v2639 = vlaneseq
        %v2640 = vshrl.u32 %v2639, 7
        %v2641 = vsub.s32 0, %v2640
        %v2642 = vrot.slane %v2637, %v2641
        %v2660 = vunpack.c.l.b16 %v2621
        %v2661 = vunpack.c.l.b16 %v2622
        %v2662 = vunpack.c.l.b16 %v2623
        %v2663 = vunpack.c.l.b16 %v2624
        %v2664 = vunpack.c.l.b16 %v2625
        %v2665 = vunpack.c.l.b16 %v2626
        %v2666 = vunpack.c.l.b16 %v2627
        %v2667 = vunpack.c.l.b16 %v2628
        %v2668 = vunpack.c.l.b16 %v2629
        %v2669 = vunpack.c.l.b16 %v2630
        %v2670 = vunpack.c.l.b16 %v2631
        %v2671 = vunpack.c.l.b16 %v2632
        %v2672 = vunpack.c.l.b16 %v2633
        %v2673 = vunpack.c.l.b16 %v2634
        %v2674 = vunpack.c.l.b16 %v2635
        %v2675 = vunpack.c.l.b16 %v2636
        %v2676 = vpack.c.b16 %v2661, %v2660
        %v2677 = vpack.c.b16 %v2663, %v2662
        %v2678 = vpack.c.b16 %v2665, %v2664
        %v2679 = vpack.c.b16 %v2667, %v2666
        %v2680 = vpack.c.b16 %v2669, %v2668
        %v2681 = vpack.c.b16 %v2671, %v2670
        %v2682 = vpack.c.b16 %v2673, %v2672
        %v2683 = vpack.c.b16 %v2675, %v2674
        %2692 = vmatprep.subr.bf16.mxu0 0
        %2693 = vmatpush1.bf16.msra.mxu0 %v2676
        %2694 = vmatprep.subr.bf16.mxu0 0
        %2695 = vmatpush1.bf16.msra.mxu0 %v2677
        %2696 = vmatprep.subr.bf16.mxu0 0
        %2697 = vmatpush1.bf16.msra.mxu0 %v2678
        %2698 = vmatprep.subr.bf16.mxu0 0
        %2699 = vmatpush1.bf16.msra.mxu0 %v2679
        %2700 = vmatprep.subr.bf16.mxu0 0
        %2701 = vmatpush1.bf16.msra.mxu0 %v2680
        %2702 = vmatprep.subr.bf16.mxu0 0
        %2703 = vmatpush1.bf16.msra.mxu0 %v2681
        %2704 = vmatprep.subr.bf16.mxu0 0
        %2705 = vmatpush1.bf16.msra.mxu0 %v2682
        %2706 = vmatprep.subr.bf16.mxu0 0
        %2707 = vmatpush1.bf16.msra.mxu0 %v2683
        %2708 = vmatprep.subr.bf16.mxu0 0
        %2709 = vmatpush1.bf16.msra.mxu0 0
        %2710 = vmatprep.subr.bf16.mxu0 0
        %2711 = vmatpush1.bf16.msra.mxu0 0
        %2712 = vmatprep.subr.bf16.mxu0 0
        %2713 = vmatpush1.bf16.msra.mxu0 0
        %2714 = vmatprep.subr.bf16.mxu0 0
        %2715 = vmatpush1.bf16.msra.mxu0 0
        %2716 = vmatprep.subr.bf16.mxu0 0
        %2717 = vmatpush1.bf16.msra.mxu0 0
        %2718 = vmatprep.subr.bf16.mxu0 0
        %2719 = vmatpush1.bf16.msra.mxu0 0
        %2720 = vmatprep.subr.bf16.mxu0 0
        %2721 = vmatpush1.bf16.msra.mxu0 0
        %2722 = vmatprep.subr.bf16.mxu0 0
        %2723 = vmatpush1.bf16.msra.mxu0 0
        %2724 = vmatprep.mubr.bf16.mxu0 0
        %2725 = vmatmul.mubr.bf16.gmra.mrb[0].mxu0 %v2620
        %v2726 = vpop.f32.mrb[0].mxu0
        %v2727 = vadd.f32 %v2642, %v2726
        %v2728 = vpop.f32.mrb[0].mxu0
        %v2729 = vpop.f32.mrb[0].mxu0
        %v2730 = vpop.f32.mrb[0].mxu0
        %2731 = vdwg.mxu0
        %vm2732 = vcmask 1043456
        %v2733 = vsel %vm2732, %v2727, -inf
        %2734 = vmax.xlane.f32.xlu0 %v2733
        %v2735 = vpop.xlane.xlu0 %2734
        %v2736 = vsub.f32 %v2727, %v2735
        %v2737 = vmul.f32 %v2736, 1.442695
        %v2738 = vpow.pop %v2737
        %v2739 = vsel %vm2732, %v2738, 0.0
        %2740 = vadd.xlane.f32.xlu0 %v2739
        %v2741 = vpop.xlane.xlu0 %2740
        %v2742 = vlog2.pop %v2741
        %v2743 = vmul.f32 %v2742, 0.6931472
        %v2744 = vsub.f32 %v2736, %v2743
        %2745 = vst [vmem:[%s512] sm:$0xf] %v2744
        %v2750 = vcombine.low %v1964, %v1965
        %v2751 = vcombine.low %v1966, %v1967
        %v2753 = vunpack.c.l.s4 1966171168
        %v2754 = vunpack.c.0.s8 %v2753
        %v2755 = vlaneseq
        %v2756 = vshrl.u32 %v2755, 7
        %v2757 = vsub.s32 %v2754, %v2756
        %v2758 = vrot.slane %v2750, %v2757
        %v2760 = vunpack.c.l.s4 1966171168
        %v2761 = vunpack.c.0.s8 %v2760
        %v2762 = vlaneseq
        %v2763 = vshrl.u32 %v2762, 7
        %v2764 = vsub.s32 %v2761, %v2763
        %v2765 = vrot.slane %v2751, %v2764
        %v2766 = vcombine.low %v2758, %v2765
        %v2768 = vunpack.c.l.s4 1966171168
        %v2769 = vunpack.c.0.s8 %v2768
        %v2770 = vlaneseq
        %v2771 = vshrl.u32 %v2770, 7
        %v2772 = vsub.s32 %v2769, %v2771
        %v2773 = vrot.slane %v2766, %v2772
        %2775 = vst [vmem:[%s518] sm:$0xf] %v2773
        %s2776 = sadd.s32 %s531, 1
        %s2777 = smul.u32 %s2776, 128
        %s2778 = sld [smem:[#allocation5 + %s2777]]
        %s2779 = scalar_lea.vmem %s5, %s2778
        %v2780 = vld [vmem:[%s2779] sm:$0x1]
        %s2781 = sadd.s32 %s2777, 1
        %s2782 = sld [smem:[#allocation5 + %s2781]]
        %s2783 = scalar_lea.vmem %s5, %s2782
        %v2784 = vld [vmem:[%s2783] sm:$0x1]
        %s2785 = sadd.s32 %s2777, 2
        %s2786 = sld [smem:[#allocation5 + %s2785]]
        %s2787 = scalar_lea.vmem %s5, %s2786
        %v2788 = vld [vmem:[%s2787] sm:$0x1]
        %s2789 = sadd.s32 %s2777, 3
        %s2790 = sld [smem:[#allocation5 + %s2789]]
        %s2791 = scalar_lea.vmem %s5, %s2790
        %v2792 = vld [vmem:[%s2791] sm:$0x1]
        %v2794 = vlaneseq
        %v2795 = vshrl.u32 %v2794, 7
        %v2796 = vsub.s32 0, %v2795
        %v2797 = vrot.slane %v2784, %v2796
        %v2800 = vlaneseq
        %v2801 = vshrl.u32 %v2800, 7
        %v2802 = vsub.s32 0, %v2801
        %v2803 = vrot.slane %v2788, %v2802
        %v2806 = vlaneseq
        %v2807 = vshrl.u32 %v2806, 7
        %v2808 = vsub.s32 0, %v2807
        %v2809 = vrot.slane %v2792, %v2808
        %v2811 = vsel %vm566, %v2780, %v2797
        %v2812 = vsel %vm568, %v2811, %v2803
        %v2813 = vsel %vm570, %v2812, %v2809
        %v2814 = vpack.c.bf16 %v2813, %v2813
        %v2815 = vld [vmem:[%s6] sm:$0xff]
        %v2816 = vld [vmem:[%s6 + $0x8] sm:$0xf]
        %v2817 = vld [vmem:[%s6 + $0xc] sm:$0xff]
        %v2818 = vld [vmem:[%s6 + $0x14] sm:$0xf]
        %v2819 = vld [vmem:[%s6 + $0x18] sm:$0xff]
        %v2820 = vld [vmem:[%s6 + $0x20] sm:$0xf]
        %v2821 = vld [vmem:[%s6 + $0x24] sm:$0xff]
        %v2822 = vld [vmem:[%s6 + $0x2c] sm:$0xf]
        %v2823 = vld [vmem:[%s6 + $0x30] sm:$0xff]
        %v2824 = vld [vmem:[%s6 + $0x38] sm:$0xf]
        %v2825 = vld [vmem:[%s6 + $0x3c] sm:$0xff]
        %v2826 = vld [vmem:[%s6 + $0x44] sm:$0xf]
        %v2827 = vld [vmem:[%s6 + $0x48] sm:$0xff]
        %v2828 = vld [vmem:[%s6 + $0x50] sm:$0xf]
        %v2829 = vld [vmem:[%s6 + $0x54] sm:$0xff]
        %v2830 = vld [vmem:[%s6 + $0x5c] sm:$0xf]
        %v2831 = vld [vmem:[%s6 + $0x60] sm:$0xff]
        %v2832 = vld [vmem:[%s6 + $0x68] sm:$0xf]
        %v2833 = vld [vmem:[%s6 + $0x6c] sm:$0xff]
        %v2834 = vld [vmem:[%s6 + $0x74] sm:$0xf]
        %v2835 = vld [vmem:[%s6 + $0x78] sm:$0xff]
        %v2836 = vld [vmem:[%s6 + $0x80] sm:$0xf]
        %v2837 = vld [vmem:[%s6 + $0x84] sm:$0xff]
        %v2838 = vld [vmem:[%s6 + $0x8c] sm:$0xf]
        %v2839 = vld [vmem:[%s6 + $0x90] sm:$0xff]
        %v2840 = vld [vmem:[%s6 + $0x98] sm:$0xf]
        %v2841 = vld [vmem:[%s6 + $0x9c] sm:$0xff]
        %v2842 = vld [vmem:[%s6 + $0xa4] sm:$0xf]
        %v2843 = vld [vmem:[%s6 + $0xa8] sm:$0xff]
        %v2844 = vld [vmem:[%s6 + $0xb0] sm:$0xf]
        %v2845 = vld [vmem:[%s6 + $0xb4] sm:$0xff]
        %v2846 = vld [vmem:[%s6 + $0xbc] sm:$0xf]
        %v2847 = vld [vmem:[%s6 + $0xc0] sm:$0xff]
        %v2848 = vld [vmem:[%s6 + $0xc8] sm:$0xf]
        %v2849 = vld [vmem:[%s6 + $0xcc] sm:$0xff]
        %v2850 = vld [vmem:[%s6 + $0xd4] sm:$0xf]
        %v2851 = vld [vmem:[%s6 + $0xd8] sm:$0xff]
        %v2852 = vld [vmem:[%s6 + $0xe0] sm:$0xf]
        %v2853 = vld [vmem:[%s6 + $0xe4] sm:$0xff]
        %v2854 = vld [vmem:[%s6 + $0xec] sm:$0xf]
        %v2855 = vld [vmem:[%s6 + $0xf0] sm:$0xff]
        %v2856 = vld [vmem:[%s6 + $0xf8] sm:$0xf]
        %v2857 = vld [vmem:[%s6 + $0xfc] sm:$0xff]
        %v2858 = vld [vmem:[%s6 + $0x104] sm:$0xf]
        %v2859 = vld [vmem:[%s6 + $0x108] sm:$0xff]
        %v2860 = vld [vmem:[%s6 + $0x110] sm:$0xf]
        %v2861 = vld [vmem:[%s6 + $0x114] sm:$0xff]
        %v2862 = vld [vmem:[%s6 + $0x11c] sm:$0xf]
        %v2863 = vld [vmem:[%s6 + $0x120] sm:$0xff]
        %v2864 = vld [vmem:[%s6 + $0x128] sm:$0xf]
        %v2865 = vld [vmem:[%s6 + $0x12c] sm:$0xff]
        %v2866 = vld [vmem:[%s6 + $0x134] sm:$0xf]
        %v2867 = vld [vmem:[%s6 + $0x138] sm:$0xff]
        %v2868 = vld [vmem:[%s6 + $0x140] sm:$0xf]
        %v2869 = vld [vmem:[%s6 + $0x144] sm:$0xff]
        %v2870 = vld [vmem:[%s6 + $0x14c] sm:$0xf]
        %v2871 = vld [vmem:[%s6 + $0x150] sm:$0xff]
        %v2872 = vld [vmem:[%s6 + $0x158] sm:$0xf]
        %v2873 = vld [vmem:[%s6 + $0x15c] sm:$0xff]
        %v2874 = vld [vmem:[%s6 + $0x164] sm:$0xf]
        %v2875 = vld [vmem:[%s6 + $0x168] sm:$0xff]
        %v2876 = vld [vmem:[%s6 + $0x170] sm:$0xf]
        %v2877 = vld [vmem:[%s6 + $0x174] sm:$0xff]
        %v2878 = vld [vmem:[%s6 + $0x17c] sm:$0xf]
        %v2911 = vunpack.c.l.b16 %v2847
        %v2912 = vunpack.c.h.b16 %v2847
        %v2913 = vunpack.c.l.b16 %v2848
        %v2914 = vunpack.c.l.b16 %v2849
        %v2915 = vunpack.c.h.b16 %v2849
        %v2916 = vunpack.c.l.b16 %v2850
        %v2917 = vunpack.c.l.b16 %v2851
        %v2918 = vunpack.c.h.b16 %v2851
        %v2919 = vunpack.c.l.b16 %v2852
        %v2920 = vunpack.c.l.b16 %v2853
        %v2921 = vunpack.c.h.b16 %v2853
        %v2922 = vunpack.c.l.b16 %v2854
        %v2923 = vunpack.c.l.b16 %v2855
        %v2924 = vunpack.c.h.b16 %v2855
        %v2925 = vunpack.c.l.b16 %v2856
        %v2926 = vunpack.c.l.b16 %v2857
        %v2927 = vunpack.c.h.b16 %v2857
        %v2928 = vunpack.c.l.b16 %v2858
        %v2929 = vunpack.c.l.b16 %v2859
        %v2930 = vunpack.c.h.b16 %v2859
        %v2931 = vunpack.c.l.b16 %v2860
        %v2932 = vunpack.c.l.b16 %v2861
        %v2933 = vunpack.c.h.b16 %v2861
        %v2934 = vunpack.c.l.b16 %v2862
        %v2935 = vunpack.c.l.b16 %v2863
        %v2936 = vunpack.c.h.b16 %v2863
        %v2937 = vunpack.c.l.b16 %v2864
        %v2938 = vunpack.c.l.b16 %v2865
        %v2939 = vunpack.c.h.b16 %v2865
        %v2940 = vunpack.c.l.b16 %v2866
        %v2941 = vunpack.c.l.b16 %v2867
        %v2942 = vunpack.c.h.b16 %v2867
        %v2943 = vunpack.c.l.b16 %v2868
        %v2944 = vunpack.c.l.b16 %v2869
        %v2945 = vunpack.c.h.b16 %v2869
        %v2946 = vunpack.c.l.b16 %v2870
        %v2947 = vunpack.c.l.b16 %v2871
        %v2948 = vunpack.c.h.b16 %v2871
        %v2949 = vunpack.c.l.b16 %v2872
        %v2950 = vunpack.c.l.b16 %v2873
        %v2951 = vunpack.c.h.b16 %v2873
        %v2952 = vunpack.c.l.b16 %v2874
        %v2953 = vunpack.c.l.b16 %v2875
        %v2954 = vunpack.c.h.b16 %v2875
        %v2955 = vunpack.c.l.b16 %v2876
        %v2956 = vunpack.c.l.b16 %v2877
        %v2957 = vunpack.c.h.b16 %v2877
        %v2958 = vunpack.c.l.b16 %v2878
        %v2959 = vpack.c.b16 %v2914, %v2911
        %v2960 = vpack.c.b16 %v2915, %v2912
        %v2961 = vpack.c.b16 %v2916, %v2913
        %v2962 = vpack.c.b16 %v2920, %v2917
        %v2963 = vpack.c.b16 %v2921, %v2918
        %v2964 = vpack.c.b16 %v2922, %v2919
        %v2965 = vpack.c.b16 %v2926, %v2923
        %v2966 = vpack.c.b16 %v2927, %v2924
        %v2967 = vpack.c.b16 %v2928, %v2925
        %v2968 = vpack.c.b16 %v2932, %v2929
        %v2969 = vpack.c.b16 %v2933, %v2930
        %v2970 = vpack.c.b16 %v2934, %v2931
        %v2971 = vpack.c.b16 %v2938, %v2935
        %v2972 = vpack.c.b16 %v2939, %v2936
        %v2973 = vpack.c.b16 %v2940, %v2937
        %v2974 = vpack.c.b16 %v2944, %v2941
        %v2975 = vpack.c.b16 %v2945, %v2942
        %v2976 = vpack.c.b16 %v2946, %v2943
        %v2977 = vpack.c.b16 %v2950, %v2947
        %v2978 = vpack.c.b16 %v2951, %v2948
        %v2979 = vpack.c.b16 %v2952, %v2949
        %v2980 = vpack.c.b16 %v2956, %v2953
        %v2981 = vpack.c.b16 %v2957, %v2954
        %v2982 = vpack.c.b16 %v2958, %v2955
        %3007 = vmatprep.subr.bf16.mxu0 %v2960
        %3008 = vmatpush1.bf16.msra.mxu0 %v2959
        %3009 = vmatprep.subr.bf16.mxu0 %v2963
        %3010 = vmatpush1.bf16.msra.mxu0 %v2962
        %3011 = vmatprep.subr.bf16.mxu0 %v2966
        %3012 = vmatpush1.bf16.msra.mxu0 %v2965
        %3013 = vmatprep.subr.bf16.mxu0 %v2969
        %3014 = vmatpush1.bf16.msra.mxu0 %v2968
        %3015 = vmatprep.subr.bf16.mxu0 %v2972
        %3016 = vmatpush1.bf16.msra.mxu0 %v2971
        %3017 = vmatprep.subr.bf16.mxu0 %v2975
        %3018 = vmatpush1.bf16.msra.mxu0 %v2974
        %3019 = vmatprep.subr.bf16.mxu0 %v2978
        %3020 = vmatpush1.bf16.msra.mxu0 %v2977
        %3021 = vmatprep.subr.bf16.mxu0 %v2981
        %3022 = vmatpush1.bf16.msra.mxu0 %v2980
        %3023 = vmatprep.subr.bf16.mxu0 0
        %3024 = vmatpush1.bf16.msra.mxu0 0
        %3025 = vmatprep.subr.bf16.mxu0 0
        %3026 = vmatpush1.bf16.msra.mxu0 0
        %3027 = vmatprep.subr.bf16.mxu0 0
        %3028 = vmatpush1.bf16.msra.mxu0 0
        %3029 = vmatprep.subr.bf16.mxu0 0
        %3030 = vmatpush1.bf16.msra.mxu0 0
        %3031 = vmatprep.subr.bf16.mxu0 0
        %3032 = vmatpush1.bf16.msra.mxu0 0
        %3033 = vmatprep.subr.bf16.mxu0 0
        %3034 = vmatpush1.bf16.msra.mxu0 0
        %3035 = vmatprep.subr.bf16.mxu0 0
        %3036 = vmatpush1.bf16.msra.mxu0 0
        %3037 = vmatprep.subr.bf16.mxu0 0
        %3038 = vmatpush1.bf16.msra.mxu0 0
        %3039 = vmatprep.mubr.bf16.mxu0 0
        %3040 = vmatmul.mubr.bf16.gmra.mrb[0].mxu0 %v2620
        %v3041 = vpop.f32.mrb[0].mxu0
        %v3042 = vadd.f32 0.0, %v3041
        %v3043 = vpop.f32.mrb[0].mxu0
        %v3044 = vadd.f32 0.0, %v3043
        %v3045 = vpop.f32.mrb[0].mxu0
        %v3046 = vpop.f32.mrb[0].mxu0
        %3047 = vdwg.mxu0
        %3048 = vmatprep.subr.bf16.mxu0 0
        %3049 = vmatpush1.bf16.msra.mxu0 %v2961
        %3050 = vmatprep.subr.bf16.mxu0 0
        %3051 = vmatpush1.bf16.msra.mxu0 %v2964
        %3052 = vmatprep.subr.bf16.mxu0 0
        %3053 = vmatpush1.bf16.msra.mxu0 %v2967
        %3054 = vmatprep.subr.bf16.mxu0 0
        %3055 = vmatpush1.bf16.msra.mxu0 %v2970
        %3056 = vmatprep.subr.bf16.mxu0 0
        %3057 = vmatpush1.bf16.msra.mxu0 %v2973
        %3058 = vmatprep.subr.bf16.mxu0 0
        %3059 = vmatpush1.bf16.msra.mxu0 %v2976
        %3060 = vmatprep.subr.bf16.mxu0 0
        %3061 = vmatpush1.bf16.msra.mxu0 %v2979
        %3062 = vmatprep.subr.bf16.mxu0 0
        %3063 = vmatpush1.bf16.msra.mxu0 %v2982
        %3064 = vmatprep.subr.bf16.mxu0 0
        %3065 = vmatpush1.bf16.msra.mxu0 0
        %3066 = vmatprep.subr.bf16.mxu0 0
        %3067 = vmatpush1.bf16.msra.mxu0 0
        %3068 = vmatprep.subr.bf16.mxu0 0
        %3069 = vmatpush1.bf16.msra.mxu0 0
        %3070 = vmatprep.subr.bf16.mxu0 0
        %3071 = vmatpush1.bf16.msra.mxu0 0
        %3072 = vmatprep.subr.bf16.mxu0 0
        %3073 = vmatpush1.bf16.msra.mxu0 0
        %3074 = vmatprep.subr.bf16.mxu0 0
        %3075 = vmatpush1.bf16.msra.mxu0 0
        %3076 = vmatprep.subr.bf16.mxu0 0
        %3077 = vmatpush1.bf16.msra.mxu0 0
        %3078 = vmatprep.subr.bf16.mxu0 0
        %3079 = vmatpush1.bf16.msra.mxu0 0
        %3080 = vmatprep.mubr.bf16.mxu0 0
        %3081 = vmatmul.mubr.bf16.gmra.mrb[0].mxu0 %v2620
        %v3082 = vpop.f32.mrb[0].mxu0
        %v3083 = vadd.f32 0.0, %v3082
        %v3084 = vpop.f32.mrb[0].mxu0
        %v3085 = vpop.f32.mrb[0].mxu0
        %v3086 = vpop.f32.mrb[0].mxu0
        %3087 = vdwg.mxu0
        %v3120 = vunpack.c.l.b16 %v2815
        %v3121 = vunpack.c.h.b16 %v2815
        %v3122 = vunpack.c.l.b16 %v2816
        %v3123 = vunpack.c.l.b16 %v2817
        %v3124 = vunpack.c.h.b16 %v2817
        %v3125 = vunpack.c.l.b16 %v2818
        %v3126 = vunpack.c.l.b16 %v2819
        %v3127 = vunpack.c.h.b16 %v2819
        %v3128 = vunpack.c.l.b16 %v2820
        %v3129 = vunpack.c.l.b16 %v2821
        %v3130 = vunpack.c.h.b16 %v2821
        %v3131 = vunpack.c.l.b16 %v2822
        %v3132 = vunpack.c.l.b16 %v2823
        %v3133 = vunpack.c.h.b16 %v2823
        %v3134 = vunpack.c.l.b16 %v2824
        %v3135 = vunpack.c.l.b16 %v2825
        %v3136 = vunpack.c.h.b16 %v2825
        %v3137 = vunpack.c.l.b16 %v2826
        %v3138 = vunpack.c.l.b16 %v2827
        %v3139 = vunpack.c.h.b16 %v2827
        %v3140 = vunpack.c.l.b16 %v2828
        %v3141 = vunpack.c.l.b16 %v2829
        %v3142 = vunpack.c.h.b16 %v2829
        %v3143 = vunpack.c.l.b16 %v2830
        %v3144 = vunpack.c.l.b16 %v2831
        %v3145 = vunpack.c.h.b16 %v2831
        %v3146 = vunpack.c.l.b16 %v2832
        %v3147 = vunpack.c.l.b16 %v2833
        %v3148 = vunpack.c.h.b16 %v2833
        %v3149 = vunpack.c.l.b16 %v2834
        %v3150 = vunpack.c.l.b16 %v2835
        %v3151 = vunpack.c.h.b16 %v2835
        %v3152 = vunpack.c.l.b16 %v2836
        %v3153 = vunpack.c.l.b16 %v2837
        %v3154 = vunpack.c.h.b16 %v2837
        %v3155 = vunpack.c.l.b16 %v2838
        %v3156 = vunpack.c.l.b16 %v2839
        %v3157 = vunpack.c.h.b16 %v2839
        %v3158 = vunpack.c.l.b16 %v2840
        %v3159 = vunpack.c.l.b16 %v2841
        %v3160 = vunpack.c.h.b16 %v2841
        %v3161 = vunpack.c.l.b16 %v2842
        %v3162 = vunpack.c.l.b16 %v2843
        %v3163 = vunpack.c.h.b16 %v2843
        %v3164 = vunpack.c.l.b16 %v2844
        %v3165 = vunpack.c.l.b16 %v2845
        %v3166 = vunpack.c.h.b16 %v2845
        %v3167 = vunpack.c.l.b16 %v2846
        %v3168 = vpack.c.b16 %v3123, %v3120
        %v3169 = vpack.c.b16 %v3124, %v3121
        %v3170 = vpack.c.b16 %v3125, %v3122
        %v3171 = vpack.c.b16 %v3129, %v3126
        %v3172 = vpack.c.b16 %v3130, %v3127
        %v3173 = vpack.c.b16 %v3131, %v3128
        %v3174 = vpack.c.b16 %v3135, %v3132
        %v3175 = vpack.c.b16 %v3136, %v3133
        %v3176 = vpack.c.b16 %v3137, %v3134
        %v3177 = vpack.c.b16 %v3141, %v3138
        %v3178 = vpack.c.b16 %v3142, %v3139
        %v3179 = vpack.c.b16 %v3143, %v3140
        %v3180 = vpack.c.b16 %v3147, %v3144
        %v3181 = vpack.c.b16 %v3148, %v3145
        %v3182 = vpack.c.b16 %v3149, %v3146
        %v3183 = vpack.c.b16 %v3153, %v3150
        %v3184 = vpack.c.b16 %v3154, %v3151
        %v3185 = vpack.c.b16 %v3155, %v3152
        %v3186 = vpack.c.b16 %v3159, %v3156
        %v3187 = vpack.c.b16 %v3160, %v3157
        %v3188 = vpack.c.b16 %v3161, %v3158
        %v3189 = vpack.c.b16 %v3165, %v3162
        %v3190 = vpack.c.b16 %v3166, %v3163
        %v3191 = vpack.c.b16 %v3167, %v3164
        %3216 = vmatprep.subr.bf16.mxu0 %v3169
        %3217 = vmatpush1.bf16.msra.mxu0 %v3168
        %3218 = vmatprep.subr.bf16.mxu0 %v3172
        %3219 = vmatpush1.bf16.msra.mxu0 %v3171
        %3220 = vmatprep.subr.bf16.mxu0 %v3175
        %3221 = vmatpush1.bf16.msra.mxu0 %v3174
        %3222 = vmatprep.subr.bf16.mxu0 %v3178
        %3223 = vmatpush1.bf16.msra.mxu0 %v3177
        %3224 = vmatprep.subr.bf16.mxu0 %v3181
        %3225 = vmatpush1.bf16.msra.mxu0 %v3180
        %3226 = vmatprep.subr.bf16.mxu0 %v3184
        %3227 = vmatpush1.bf16.msra.mxu0 %v3183
        %3228 = vmatprep.subr.bf16.mxu0 %v3187
        %3229 = vmatpush1.bf16.msra.mxu0 %v3186
        %3230 = vmatprep.subr.bf16.mxu0 %v3190
        %3231 = vmatpush1.bf16.msra.mxu0 %v3189
        %3232 = vmatprep.subr.bf16.mxu0 0
        %3233 = vmatpush1.bf16.msra.mxu0 0
        %3234 = vmatprep.subr.bf16.mxu0 0
        %3235 = vmatpush1.bf16.msra.mxu0 0
        %3236 = vmatprep.subr.bf16.mxu0 0
        %3237 = vmatpush1.bf16.msra.mxu0 0
        %3238 = vmatprep.subr.bf16.mxu0 0
        %3239 = vmatpush1.bf16.msra.mxu0 0
        %3240 = vmatprep.subr.bf16.mxu0 0
        %3241 = vmatpush1.bf16.msra.mxu0 0
        %3242 = vmatprep.subr.bf16.mxu0 0
        %3243 = vmatpush1.bf16.msra.mxu0 0
        %3244 = vmatprep.subr.bf16.mxu0 0
        %3245 = vmatpush1.bf16.msra.mxu0 0
        %3246 = vmatprep.subr.bf16.mxu0 0
        %3247 = vmatpush1.bf16.msra.mxu0 0
        %3248 = vmatprep.mubr.bf16.mxu0 0
        %3249 = vmatmul.mubr.bf16.gmra.mrb[0].mxu0 %v2814
        %v3250 = vpop.f32.mrb[0].mxu0
        %v3251 = vadd.f32 %v3042, %v3250
        %v3252 = vpop.f32.mrb[0].mxu0
        %v3253 = vadd.f32 %v3044, %v3252
        %v3254 = vpop.f32.mrb[0].mxu0
        %v3255 = vpop.f32.mrb[0].mxu0
        %3256 = vdwg.mxu0
        %3257 = vmatprep.subr.bf16.mxu0 0
        %3258 = vmatpush1.bf16.msra.mxu0 %v3170
        %3259 = vmatprep.subr.bf16.mxu0 0
        %3260 = vmatpush1.bf16.msra.mxu0 %v3173
        %3261 = vmatprep.subr.bf16.mxu0 0
        %3262 = vmatpush1.bf16.msra.mxu0 %v3176
        %3263 = vmatprep.subr.bf16.mxu0 0
        %3264 = vmatpush1.bf16.msra.mxu0 %v3179
        %3265 = vmatprep.subr.bf16.mxu0 0
        %3266 = vmatpush1.bf16.msra.mxu0 %v3182
        %3267 = vmatprep.subr.bf16.mxu0 0
        %3268 = vmatpush1.bf16.msra.mxu0 %v3185
        %3269 = vmatprep.subr.bf16.mxu0 0
        %3270 = vmatpush1.bf16.msra.mxu0 %v3188
        %3271 = vmatprep.subr.bf16.mxu0 0
        %3272 = vmatpush1.bf16.msra.mxu0 %v3191
        %3273 = vmatprep.subr.bf16.mxu0 0
        %3274 = vmatpush1.bf16.msra.mxu0 0
        %3275 = vmatprep.subr.bf16.mxu0 0
        %3276 = vmatpush1.bf16.msra.mxu0 0
        %3277 = vmatprep.subr.bf16.mxu0 0
        %3278 = vmatpush1.bf16.msra.mxu0 0
        %3279 = vmatprep.subr.bf16.mxu0 0
        %3280 = vmatpush1.bf16.msra.mxu0 0
        %3281 = vmatprep.subr.bf16.mxu0 0
        %3282 = vmatpush1.bf16.msra.mxu0 0
        %3283 = vmatprep.subr.bf16.mxu0 0
        %3284 = vmatpush1.bf16.msra.mxu0 0
        %3285 = vmatprep.subr.bf16.mxu0 0
        %3286 = vmatpush1.bf16.msra.mxu0 0
        %3287 = vmatprep.subr.bf16.mxu0 0
        %3288 = vmatpush1.bf16.msra.mxu0 0
        %3289 = vmatprep.mubr.bf16.mxu0 0
        %3290 = vmatmul.mubr.bf16.gmra.mrb[0].mxu0 %v2814
        %v3291 = vpop.f32.mrb[0].mxu0
        %v3292 = vadd.f32 %v3083, %v3291
        %v3293 = vpop.f32.mrb[0].mxu0
        %v3294 = vpop.f32.mrb[0].mxu0
        %v3295 = vpop.f32.mrb[0].mxu0
        %3296 = vdwg.mxu0
        %v3297 = vld [vmem:[%s8] sm:$0x7]
        %v3299 = vlaneseq
        %v3300 = vshrl.u32 %v3299, 7
        %v3301 = vsub.s32 0, %v3300
        %v3302 = vrot.slane %v3297, %v3301
        %v3303 = vlaneseq
        %v3304 = vshrl.u32 %v3303, 7
        %v3305 = vsub.s32 1, %v3304
        %v3306 = vrot.slane %v3297, %v3305
        %v3307 = vlaneseq
        %v3308 = vshrl.u32 %v3307, 7
        %v3309 = vsub.s32 2, %v3308
        %v3310 = vrot.slane %v3297, %v3309
        %v3314 = vadd.f32 %v3251, %v3302
        %v3315 = vadd.f32 %v3253, %v3306
        %v3316 = vadd.f32 %v3292, %v3310
        %v3317 = vld [vmem:[%s7] sm:$0xff]
        %v3318 = vld [vmem:[%s7 + $0x8] sm:$0xf]
        %v3319 = vld [vmem:[%s7 + $0xc] sm:$0xff]
        %v3320 = vld [vmem:[%s7 + $0x14] sm:$0xf]
        %v3321 = vld [vmem:[%s7 + $0x18] sm:$0xff]
        %v3322 = vld [vmem:[%s7 + $0x20] sm:$0xf]
        %v3323 = vld [vmem:[%s7 + $0x24] sm:$0xff]
        %v3324 = vld [vmem:[%s7 + $0x2c] sm:$0xf]
        %v3325 = vld [vmem:[%s7 + $0x30] sm:$0xff]
        %v3326 = vld [vmem:[%s7 + $0x38] sm:$0xf]
        %v3327 = vld [vmem:[%s7 + $0x3c] sm:$0xff]
        %v3328 = vld [vmem:[%s7 + $0x44] sm:$0xf]
        %v3329 = vld [vmem:[%s7 + $0x48] sm:$0xff]
        %v3330 = vld [vmem:[%s7 + $0x50] sm:$0xf]
        %v3331 = vld [vmem:[%s7 + $0x54] sm:$0xff]
        %v3332 = vld [vmem:[%s7 + $0x5c] sm:$0xf]
        %v3333 = vld [vmem:[%s7 + $0x60] sm:$0xff]
        %v3334 = vld [vmem:[%s7 + $0x68] sm:$0xf]
        %v3335 = vld [vmem:[%s7 + $0x6c] sm:$0xff]
        %v3336 = vld [vmem:[%s7 + $0x74] sm:$0xf]
        %v3337 = vld [vmem:[%s7 + $0x78] sm:$0xff]
        %v3338 = vld [vmem:[%s7 + $0x80] sm:$0xf]
        %v3339 = vld [vmem:[%s7 + $0x84] sm:$0xff]
        %v3340 = vld [vmem:[%s7 + $0x8c] sm:$0xf]
        %v3341 = vld [vmem:[%s7 + $0x90] sm:$0xff]
        %v3342 = vld [vmem:[%s7 + $0x98] sm:$0xf]
        %v3343 = vld [vmem:[%s7 + $0x9c] sm:$0xff]
        %v3344 = vld [vmem:[%s7 + $0xa4] sm:$0xf]
        %v3345 = vld [vmem:[%s7 + $0xa8] sm:$0xff]
        %v3346 = vld [vmem:[%s7 + $0xb0] sm:$0xf]
        %v3347 = vld [vmem:[%s7 + $0xb4] sm:$0xff]
        %v3348 = vld [vmem:[%s7 + $0xbc] sm:$0xf]
        %v3349 = vld [vmem:[%s9] sm:$0x7]
        %v3351 = vlaneseq
        %v3352 = vshrl.u32 %v3351, 7
        %v3353 = vsub.s32 0, %v3352
        %v3354 = vrot.slane %v3349, %v3353
        %v3355 = vlaneseq
        %v3356 = vshrl.u32 %v3355, 7
        %v3357 = vsub.s32 1, %v3356
        %v3358 = vrot.slane %v3349, %v3357
        %v3359 = vlaneseq
        %v3360 = vshrl.u32 %v3359, 7
        %v3361 = vsub.s32 2, %v3360
        %v3362 = vrot.slane %v3349, %v3361
        %v3398 = vunpack.c.l.b16 %v3317
        %v3399 = vunpack.c.h.b16 %v3317
        %v3400 = vunpack.c.l.b16 %v3318
        %v3401 = vunpack.c.l.b16 %v3319
        %v3402 = vunpack.c.h.b16 %v3319
        %v3403 = vunpack.c.l.b16 %v3320
        %v3404 = vunpack.c.l.b16 %v3321
        %v3405 = vunpack.c.h.b16 %v3321
        %v3406 = vunpack.c.l.b16 %v3322
        %v3407 = vunpack.c.l.b16 %v3323
        %v3408 = vunpack.c.h.b16 %v3323
        %v3409 = vunpack.c.l.b16 %v3324
        %v3410 = vunpack.c.l.b16 %v3325
        %v3411 = vunpack.c.h.b16 %v3325
        %v3412 = vunpack.c.l.b16 %v3326
        %v3413 = vunpack.c.l.b16 %v3327
        %v3414 = vunpack.c.h.b16 %v3327
        %v3415 = vunpack.c.l.b16 %v3328
        %v3416 = vunpack.c.l.b16 %v3329
        %v3417 = vunpack.c.h.b16 %v3329
        %v3418 = vunpack.c.l.b16 %v3330
        %v3419 = vunpack.c.l.b16 %v3331
        %v3420 = vunpack.c.h.b16 %v3331
        %v3421 = vunpack.c.l.b16 %v3332
        %v3422 = vunpack.c.l.b16 %v3333
        %v3423 = vunpack.c.h.b16 %v3333
        %v3424 = vunpack.c.l.b16 %v3334
        %v3425 = vunpack.c.l.b16 %v3335
        %v3426 = vunpack.c.h.b16 %v3335
        %v3427 = vunpack.c.l.b16 %v3336
        %v3428 = vunpack.c.l.b16 %v3337
        %v3429 = vunpack.c.h.b16 %v3337
        %v3430 = vunpack.c.l.b16 %v3338
        %v3431 = vunpack.c.l.b16 %v3339
        %v3432 = vunpack.c.h.b16 %v3339
        %v3433 = vunpack.c.l.b16 %v3340
        %v3434 = vunpack.c.l.b16 %v3341
        %v3435 = vunpack.c.h.b16 %v3341
        %v3436 = vunpack.c.l.b16 %v3342
        %v3437 = vunpack.c.l.b16 %v3343
        %v3438 = vunpack.c.h.b16 %v3343
        %v3439 = vunpack.c.l.b16 %v3344
        %v3440 = vunpack.c.l.b16 %v3345
        %v3441 = vunpack.c.h.b16 %v3345
        %v3442 = vunpack.c.l.b16 %v3346
        %v3443 = vunpack.c.l.b16 %v3347
        %v3444 = vunpack.c.h.b16 %v3347
        %v3445 = vunpack.c.l.b16 %v3348
        %v3446 = vpack.c.b16 %v3401, %v3398
        %v3447 = vpack.c.b16 %v3402, %v3399
        %v3448 = vpack.c.b16 %v3403, %v3400
        %v3449 = vpack.c.b16 %v3407, %v3404
        %v3450 = vpack.c.b16 %v3408, %v3405
        %v3451 = vpack.c.b16 %v3409, %v3406
        %v3452 = vpack.c.b16 %v3413, %v3410
        %v3453 = vpack.c.b16 %v3414, %v3411
        %v3454 = vpack.c.b16 %v3415, %v3412
        %v3455 = vpack.c.b16 %v3419, %v3416
        %v3456 = vpack.c.b16 %v3420, %v3417
        %v3457 = vpack.c.b16 %v3421, %v3418
        %v3458 = vpack.c.b16 %v3425, %v3422
        %v3459 = vpack.c.b16 %v3426, %v3423
        %v3460 = vpack.c.b16 %v3427, %v3424
        %v3461 = vpack.c.b16 %v3431, %v3428
        %v3462 = vpack.c.b16 %v3432, %v3429
        %v3463 = vpack.c.b16 %v3433, %v3430
        %v3464 = vpack.c.b16 %v3437, %v3434
        %v3465 = vpack.c.b16 %v3438, %v3435
        %v3466 = vpack.c.b16 %v3439, %v3436
        %v3467 = vpack.c.b16 %v3443, %v3440
        %v3468 = vpack.c.b16 %v3444, %v3441
        %v3469 = vpack.c.b16 %v3445, %v3442
        %3494 = vmatprep.subr.bf16.mxu0 %v3447
        %3495 = vmatpush1.bf16.msra.mxu0 %v3446
        %3496 = vmatprep.subr.bf16.mxu0 %v3450
        %3497 = vmatpush1.bf16.msra.mxu0 %v3449
        %3498 = vmatprep.subr.bf16.mxu0 %v3453
        %3499 = vmatpush1.bf16.msra.mxu0 %v3452
        %3500 = vmatprep.subr.bf16.mxu0 %v3456
        %3501 = vmatpush1.bf16.msra.mxu0 %v3455
        %3502 = vmatprep.subr.bf16.mxu0 %v3459
        %3503 = vmatpush1.bf16.msra.mxu0 %v3458
        %3504 = vmatprep.subr.bf16.mxu0 %v3462
        %3505 = vmatpush1.bf16.msra.mxu0 %v3461
        %3506 = vmatprep.subr.bf16.mxu0 %v3465
        %3507 = vmatpush1.bf16.msra.mxu0 %v3464
        %3508 = vmatprep.subr.bf16.mxu0 %v3468
        %3509 = vmatpush1.bf16.msra.mxu0 %v3467
        %3510 = vmatprep.subr.bf16.mxu0 0
        %3511 = vmatpush1.bf16.msra.mxu0 0
        %3512 = vmatprep.subr.bf16.mxu0 0
        %3513 = vmatpush1.bf16.msra.mxu0 0
        %3514 = vmatprep.subr.bf16.mxu0 0
        %3515 = vmatpush1.bf16.msra.mxu0 0
        %3516 = vmatprep.subr.bf16.mxu0 0
        %3517 = vmatpush1.bf16.msra.mxu0 0
        %3518 = vmatprep.subr.bf16.mxu0 0
        %3519 = vmatpush1.bf16.msra.mxu0 0
        %3520 = vmatprep.subr.bf16.mxu0 0
        %3521 = vmatpush1.bf16.msra.mxu0 0
        %3522 = vmatprep.subr.bf16.mxu0 0
        %3523 = vmatpush1.bf16.msra.mxu0 0
        %3524 = vmatprep.subr.bf16.mxu0 0
        %3525 = vmatpush1.bf16.msra.mxu0 0
        %3526 = vmatprep.mubr.bf16.mxu0 0
        %3527 = vmatmul.mubr.bf16.gmra.mrb[0].mxu0 %v1354
        %v3528 = vpop.f32.mrb[0].mxu0
        %v3529 = vadd.f32 %v3354, %v3528
        %v3530 = vpop.f32.mrb[0].mxu0
        %v3531 = vadd.f32 %v3358, %v3530
        %v3532 = vpop.f32.mrb[0].mxu0
        %v3533 = vpop.f32.mrb[0].mxu0
        %3534 = vdwg.mxu0
        %3535 = vmatprep.subr.bf16.mxu0 0
        %3536 = vmatpush1.bf16.msra.mxu0 %v3448
        %3537 = vmatprep.subr.bf16.mxu0 0
        %3538 = vmatpush1.bf16.msra.mxu0 %v3451
        %3539 = vmatprep.subr.bf16.mxu0 0
        %3540 = vmatpush1.bf16.msra.mxu0 %v3454
        %3541 = vmatprep.subr.bf16.mxu0 0
        %3542 = vmatpush1.bf16.msra.mxu0 %v3457
        %3543 = vmatprep.subr.bf16.mxu0 0
        %3544 = vmatpush1.bf16.msra.mxu0 %v3460
        %3545 = vmatprep.subr.bf16.mxu0 0
        %3546 = vmatpush1.bf16.msra.mxu0 %v3463
        %3547 = vmatprep.subr.bf16.mxu0 0
        %3548 = vmatpush1.bf16.msra.mxu0 %v3466
        %3549 = vmatprep.subr.bf16.mxu0 0
        %3550 = vmatpush1.bf16.msra.mxu0 %v3469
        %3551 = vmatprep.subr.bf16.mxu0 0
        %3552 = vmatpush1.bf16.msra.mxu0 0
        %3553 = vmatprep.subr.bf16.mxu0 0
        %3554 = vmatpush1.bf16.msra.mxu0 0
        %3555 = vmatprep.subr.bf16.mxu0 0
        %3556 = vmatpush1.bf16.msra.mxu0 0
        %3557 = vmatprep.subr.bf16.mxu0 0
        %3558 = vmatpush1.bf16.msra.mxu0 0
        %3559 = vmatprep.subr.bf16.mxu0 0
        %3560 = vmatpush1.bf16.msra.mxu0 0
        %3561 = vmatprep.subr.bf16.mxu0 0
        %3562 = vmatpush1.bf16.msra.mxu0 0
        %3563 = vmatprep.subr.bf16.mxu0 0
        %3564 = vmatpush1.bf16.msra.mxu0 0
        %3565 = vmatprep.subr.bf16.mxu0 0
        %3566 = vmatpush1.bf16.msra.mxu0 0
        %3567 = vmatprep.mubr.bf16.mxu0 0
        %3568 = vmatmul.mubr.bf16.gmra.mrb[0].mxu0 %v1354
        %v3569 = vpop.f32.mrb[0].mxu0
        %v3570 = vadd.f32 %v3362, %v3569
        %v3571 = vpop.f32.mrb[0].mxu0
        %v3572 = vpop.f32.mrb[0].mxu0
        %v3573 = vpop.f32.mrb[0].mxu0
        %3574 = vdwg.mxu0
        %v3575 = vadd.f32 %v3314, %v3529
        %v3576 = vsub.f32 0.0, %v3575
        %v3577 = vmul.f32 %v3576, 1.442695
        %v3578 = vpow.pop %v3577
        %v3579 = vadd.f32 %v3578, 1.0
        %v3580 = vrcp.pop %v3579
        %v3581 = vadd.f32 %v3315, %v3531
        %v3582 = vsub.f32 0.0, %v3581
        %v3583 = vmul.f32 %v3582, 1.442695
        %v3584 = vpow.pop %v3583
        %v3585 = vadd.f32 %v3584, 1.0
        %v3586 = vrcp.pop %v3585
        %v3587 = vmul.f32 %v3580, %v3570
        %v3588 = vadd.f32 %v3316, %v3587
        %v3589 = vtanh.pop %v3588
        %v3590 = vsub.f32 1.0, %v3586
        %v3591 = vmul.f32 %v3590, %v3589
        %v3592 = vmul.f32 %v3586, %v1353
        %v3593 = vadd.f32 %v3591, %v3592
        %v3594 = vpack.c.bf16 %v3593, %v3593
        %v3595 = vld [vmem:[%s10] sm:$0xf]
        %v3596 = vld [vmem:[%s10 + $0x4] sm:$0xf]
        %v3597 = vld [vmem:[%s10 + $0x8] sm:$0xf]
        %v3598 = vld [vmem:[%s10 + $0xc] sm:$0xf]
        %v3599 = vld [vmem:[%s10 + $0x10] sm:$0xf]
        %v3600 = vld [vmem:[%s10 + $0x14] sm:$0xf]
        %v3601 = vld [vmem:[%s10 + $0x18] sm:$0xf]
        %v3602 = vld [vmem:[%s10 + $0x1c] sm:$0xf]
        %v3603 = vld [vmem:[%s10 + $0x20] sm:$0xf]
        %v3604 = vld [vmem:[%s10 + $0x24] sm:$0xf]
        %v3605 = vld [vmem:[%s10 + $0x28] sm:$0xf]
        %v3606 = vld [vmem:[%s10 + $0x2c] sm:$0xf]
        %v3607 = vld [vmem:[%s10 + $0x30] sm:$0xf]
        %v3608 = vld [vmem:[%s10 + $0x34] sm:$0xf]
        %v3609 = vld [vmem:[%s10 + $0x38] sm:$0xf]
        %v3610 = vld [vmem:[%s10 + $0x3c] sm:$0xf]
        %v3627 = vunpack.c.l.b16 %v3595
        %v3628 = vunpack.c.l.b16 %v3596
        %v3629 = vunpack.c.l.b16 %v3597
        %v3630 = vunpack.c.l.b16 %v3598
        %v3631 = vunpack.c.l.b16 %v3599
        %v3632 = vunpack.c.l.b16 %v3600
        %v3633 = vunpack.c.l.b16 %v3601
        %v3634 = vunpack.c.l.b16 %v3602
        %v3635 = vunpack.c.l.b16 %v3603
        %v3636 = vunpack.c.l.b16 %v3604
        %v3637 = vunpack.c.l.b16 %v3605
        %v3638 = vunpack.c.l.b16 %v3606
        %v3639 = vunpack.c.l.b16 %v3607
        %v3640 = vunpack.c.l.b16 %v3608
        %v3641 = vunpack.c.l.b16 %v3609
        %v3642 = vunpack.c.l.b16 %v3610
        %v3643 = vpack.c.b16 %v3628, %v3627
        %v3644 = vpack.c.b16 %v3630, %v3629
        %v3645 = vpack.c.b16 %v3632, %v3631
        %v3646 = vpack.c.b16 %v3634, %v3633
        %v3647 = vpack.c.b16 %v3636, %v3635
        %v3648 = vpack.c.b16 %v3638, %v3637
        %v3649 = vpack.c.b16 %v3640, %v3639
        %v3650 = vpack.c.b16 %v3642, %v3641
        %3659 = vmatprep.subr.bf16.mxu0 0
        %3660 = vmatpush1.bf16.msra.mxu0 %v3643
        %3661 = vmatprep.subr.bf16.mxu0 0
        %3662 = vmatpush1.bf16.msra.mxu0 %v3644
        %3663 = vmatprep.subr.bf16.mxu0 0
        %3664 = vmatpush1.bf16.msra.mxu0 %v3645
        %3665 = vmatprep.subr.bf16.mxu0 0
        %3666 = vmatpush1.bf16.msra.mxu0 %v3646
        %3667 = vmatprep.subr.bf16.mxu0 0
        %3668 = vmatpush1.bf16.msra.mxu0 %v3647
        %3669 = vmatprep.subr.bf16.mxu0 0
        %3670 = vmatpush1.bf16.msra.mxu0 %v3648
        %3671 = vmatprep.subr.bf16.mxu0 0
        %3672 = vmatpush1.bf16.msra.mxu0 %v3649
        %3673 = vmatprep.subr.bf16.mxu0 0
        %3674 = vmatpush1.bf16.msra.mxu0 %v3650
        %3675 = vmatprep.subr.bf16.mxu0 0
        %3676 = vmatpush1.bf16.msra.mxu0 0
        %3677 = vmatprep.subr.bf16.mxu0 0
        %3678 = vmatpush1.bf16.msra.mxu0 0
        %3679 = vmatprep.subr.bf16.mxu0 0
        %3680 = vmatpush1.bf16.msra.mxu0 0
        %3681 = vmatprep.subr.bf16.mxu0 0
        %3682 = vmatpush1.bf16.msra.mxu0 0
        %3683 = vmatprep.subr.bf16.mxu0 0
        %3684 = vmatpush1.bf16.msra.mxu0 0
        %3685 = vmatprep.subr.bf16.mxu0 0
        %3686 = vmatpush1.bf16.msra.mxu0 0
        %3687 = vmatprep.subr.bf16.mxu0 0
        %3688 = vmatpush1.bf16.msra.mxu0 0
        %3689 = vmatprep.subr.bf16.mxu0 0
        %3690 = vmatpush1.bf16.msra.mxu0 0
        %3691 = vmatprep.mubr.bf16.mxu0 0
        %3692 = vmatmul.mubr.bf16.gmra.mrb[0].mxu0 %v3594
        %v3693 = vpop.f32.mrb[0].mxu0
        %v3694 = vadd.f32 0.0, %v3693
        %v3695 = vpop.f32.mrb[0].mxu0
        %v3696 = vpop.f32.mrb[0].mxu0
        %v3697 = vpop.f32.mrb[0].mxu0
        %3698 = vdwg.mxu0
        %v3701 = vunpack.c.l.s4 1966171168
        %v3702 = vunpack.c.0.s8 %v3701
        %v3703 = vlaneseq
        %v3704 = vshrl.u32 %v3703, 7
        %v3705 = vsub.s32 %v3702, %v3704
        %v3706 = vrot.slane %v3694, %v3705
        %v3707 = vcombine.high %v3706, %v3706
        %v3709 = vunpack.c.l.s4 1966171168
        %v3710 = vunpack.c.0.s8 %v3709
        %v3711 = vlaneseq
        %v3712 = vshrl.u32 %v3711, 7
        %v3713 = vsub.s32 %v3710, %v3712
        %v3714 = vrot.slane %v3706, %v3713
        %v3716 = vunpack.c.l.s4 1966171168
        %v3717 = vunpack.c.0.s8 %v3716
        %v3718 = vlaneseq
        %v3719 = vshrl.u32 %v3718, 7
        %v3720 = vsub.s32 %v3717, %v3719
        %v3721 = vrot.slane %v3707, %v3720
        %v3722 = vcombine.high %v3714, %v3714
        %v3723 = vcombine.high %v3721, %v3721
        %v3728 = vpack.c.bf16 %v3714, %v3714
        %v3729 = vpack.c.bf16 %v3721, %v3721
        %v3730 = vpack.c.bf16 %v3722, %v3722
        %v3731 = vpack.c.bf16 %v3723, %v3723
        %v3732 = vld [vmem:[%s3] sm:$0xf]
        %v3733 = vld [vmem:[%s3 + $0x4] sm:$0xf]
        %v3734 = vld [vmem:[%s3 + $0x8] sm:$0xf]
        %v3735 = vld [vmem:[%s3 + $0xc] sm:$0xf]
        %v3736 = vld [vmem:[%s3 + $0x10] sm:$0xf]
        %v3737 = vld [vmem:[%s3 + $0x14] sm:$0xf]
        %v3738 = vld [vmem:[%s3 + $0x18] sm:$0xf]
        %v3739 = vld [vmem:[%s3 + $0x1c] sm:$0xf]
        %v3740 = vld [vmem:[%s3 + $0x20] sm:$0xf]
        %v3741 = vld [vmem:[%s3 + $0x24] sm:$0xf]
        %v3742 = vld [vmem:[%s3 + $0x28] sm:$0xf]
        %v3743 = vld [vmem:[%s3 + $0x2c] sm:$0xf]
        %v3744 = vld [vmem:[%s3 + $0x30] sm:$0xf]
        %v3745 = vld [vmem:[%s3 + $0x34] sm:$0xf]
        %v3746 = vld [vmem:[%s3 + $0x38] sm:$0xf]
        %v3747 = vld [vmem:[%s3 + $0x3c] sm:$0xf]
        %v3748 = vld [vmem:[%s3 + $0x40] sm:$0xf]
        %v3749 = vld [vmem:[%s3 + $0x44] sm:$0xf]
        %v3750 = vld [vmem:[%s3 + $0x48] sm:$0xf]
        %v3751 = vld [vmem:[%s3 + $0x4c] sm:$0xf]
        %v3752 = vld [vmem:[%s3 + $0x50] sm:$0xf]
        %v3753 = vld [vmem:[%s3 + $0x54] sm:$0xf]
        %v3754 = vld [vmem:[%s3 + $0x58] sm:$0xf]
        %v3755 = vld [vmem:[%s3 + $0x5c] sm:$0xf]
        %v3756 = vld [vmem:[%s3 + $0x60] sm:$0xf]
        %v3757 = vld [vmem:[%s3 + $0x64] sm:$0xf]
        %v3758 = vld [vmem:[%s3 + $0x68] sm:$0xf]
        %v3759 = vld [vmem:[%s3 + $0x6c] sm:$0xf]
        %v3760 = vld [vmem:[%s3 + $0x70] sm:$0xf]
        %v3761 = vld [vmem:[%s3 + $0x74] sm:$0xf]
        %v3762 = vld [vmem:[%s3 + $0x78] sm:$0xf]
        %v3763 = vld [vmem:[%s3 + $0x7c] sm:$0xf]
        %v3764 = vld [vmem:[%s3 + $0x80] sm:$0xf]
        %v3765 = vld [vmem:[%s3 + $0x84] sm:$0xf]
        %v3766 = vld [vmem:[%s3 + $0x88] sm:$0xf]
        %v3767 = vld [vmem:[%s3 + $0x8c] sm:$0xf]
        %v3768 = vld [vmem:[%s3 + $0x90] sm:$0xf]
        %v3769 = vld [vmem:[%s3 + $0x94] sm:$0xf]
        %v3770 = vld [vmem:[%s3 + $0x98] sm:$0xf]
        %v3771 = vld [vmem:[%s3 + $0x9c] sm:$0xf]
        %v3772 = vld [vmem:[%s3 + $0xa0] sm:$0xf]
        %v3773 = vld [vmem:[%s3 + $0xa4] sm:$0xf]
        %v3774 = vld [vmem:[%s3 + $0xa8] sm:$0xf]
        %v3775 = vld [vmem:[%s3 + $0xac] sm:$0xf]
        %v3776 = vld [vmem:[%s3 + $0xb0] sm:$0xf]
        %v3777 = vld [vmem:[%s3 + $0xb4] sm:$0xf]
        %v3778 = vld [vmem:[%s3 + $0xb8] sm:$0xf]
        %v3779 = vld [vmem:[%s3 + $0xbc] sm:$0xf]
        %v3780 = vld [vmem:[%s3 + $0xc0] sm:$0xf]
        %v3781 = vld [vmem:[%s3 + $0xc4] sm:$0xf]
        %v3782 = vld [vmem:[%s3 + $0xc8] sm:$0xf]
        %v3783 = vld [vmem:[%s3 + $0xcc] sm:$0xf]
        %v3784 = vld [vmem:[%s3 + $0xd0] sm:$0xf]
        %v3785 = vld [vmem:[%s3 + $0xd4] sm:$0xf]
        %v3786 = vld [vmem:[%s3 + $0xd8] sm:$0xf]
        %v3787 = vld [vmem:[%s3 + $0xdc] sm:$0xf]
        %v3788 = vld [vmem:[%s3 + $0xe0] sm:$0xf]
        %v3789 = vld [vmem:[%s3 + $0xe4] sm:$0xf]
        %v3790 = vld [vmem:[%s3 + $0xe8] sm:$0xf]
        %v3791 = vld [vmem:[%s3 + $0xec] sm:$0xf]
        %v3792 = vld [vmem:[%s3 + $0xf0] sm:$0xf]
        %v3793 = vld [vmem:[%s3 + $0xf4] sm:$0xf]
        %v3794 = vld [vmem:[%s3 + $0xf8] sm:$0xf]
        %v3795 = vld [vmem:[%s3 + $0xfc] sm:$0xf]
        %v3812 = vunpack.c.l.b16 %v3732
        %v3813 = vunpack.c.l.b16 %v3733
        %v3814 = vunpack.c.l.b16 %v3734
        %v3815 = vunpack.c.l.b16 %v3735
        %v3816 = vunpack.c.l.b16 %v3736
        %v3817 = vunpack.c.l.b16 %v3737
        %v3818 = vunpack.c.l.b16 %v3738
        %v3819 = vunpack.c.l.b16 %v3739
        %v3820 = vunpack.c.l.b16 %v3740
        %v3821 = vunpack.c.l.b16 %v3741
        %v3822 = vunpack.c.l.b16 %v3742
        %v3823 = vunpack.c.l.b16 %v3743
        %v3824 = vunpack.c.l.b16 %v3744
        %v3825 = vunpack.c.l.b16 %v3745
        %v3826 = vunpack.c.l.b16 %v3746
        %v3827 = vunpack.c.l.b16 %v3747
        %v3828 = vpack.c.b16 %v3813, %v3812
        %v3829 = vpack.c.b16 %v3815, %v3814
        %v3830 = vpack.c.b16 %v3817, %v3816
        %v3831 = vpack.c.b16 %v3819, %v3818
        %v3832 = vpack.c.b16 %v3821, %v3820
        %v3833 = vpack.c.b16 %v3823, %v3822
        %v3834 = vpack.c.b16 %v3825, %v3824
        %v3835 = vpack.c.b16 %v3827, %v3826
        %3844 = vmatprep.subr.bf16.mxu0 0
        %3845 = vmatpush1.bf16.xpose.msra.mxu0 %v3828
        %3846 = vmatprep.subr.bf16.mxu0 0
        %3847 = vmatpush1.bf16.xpose.msra.mxu0 %v3829
        %3848 = vmatprep.subr.bf16.mxu0 0
        %3849 = vmatpush1.bf16.xpose.msra.mxu0 %v3830
        %3850 = vmatprep.subr.bf16.mxu0 0
        %3851 = vmatpush1.bf16.xpose.msra.mxu0 %v3831
        %3852 = vmatprep.subr.bf16.mxu0 0
        %3853 = vmatpush1.bf16.xpose.msra.mxu0 %v3832
        %3854 = vmatprep.subr.bf16.mxu0 0
        %3855 = vmatpush1.bf16.xpose.msra.mxu0 %v3833
        %3856 = vmatprep.subr.bf16.mxu0 0
        %3857 = vmatpush1.bf16.xpose.msra.mxu0 %v3834
        %3858 = vmatprep.subr.bf16.mxu0 0
        %3859 = vmatpush1.bf16.xpose.msra.mxu0 %v3835
        %3860 = vmatprep.subr.bf16.mxu0 0
        %3861 = vmatpush1.bf16.xpose.msra.mxu0 0
        %3862 = vmatprep.subr.bf16.mxu0 0
        %3863 = vmatpush1.bf16.xpose.msra.mxu0 0
        %3864 = vmatprep.subr.bf16.mxu0 0
        %3865 = vmatpush1.bf16.xpose.msra.mxu0 0
        %3866 = vmatprep.subr.bf16.mxu0 0
        %3867 = vmatpush1.bf16.xpose.msra.mxu0 0
        %3868 = vmatprep.subr.bf16.mxu0 0
        %3869 = vmatpush1.bf16.xpose.msra.mxu0 0
        %3870 = vmatprep.subr.bf16.mxu0 0
        %3871 = vmatpush1.bf16.xpose.msra.mxu0 0
        %3872 = vmatprep.subr.bf16.mxu0 0
        %3873 = vmatpush1.bf16.xpose.msra.mxu0 0
        %3874 = vmatprep.subr.bf16.mxu0 0
        %3875 = vmatpush1.bf16.xpose.msra.mxu0 0
        %3876 = vmatprep.mubr.bf16.mxu0 0
        %3877 = vmatmul.mubr.bf16.gmra.mrb[0].mxu0 %v3728
        %v3878 = vpop.f32.mrb[0].mxu0
        %v3879 = vadd.f32 0.0, %v3878
        %v3880 = vpop.f32.mrb[0].mxu0
        %v3881 = vpop.f32.mrb[0].mxu0
        %v3882 = vpop.f32.mrb[0].mxu0
        %3883 = vdwg.mxu0
        %v3900 = vunpack.c.l.b16 %v3748
        %v3901 = vunpack.c.l.b16 %v3749
        %v3902 = vunpack.c.l.b16 %v3750
        %v3903 = vunpack.c.l.b16 %v3751
        %v3904 = vunpack.c.l.b16 %v3752
        %v3905 = vunpack.c.l.b16 %v3753
        %v3906 = vunpack.c.l.b16 %v3754
        %v3907 = vunpack.c.l.b16 %v3755
        %v3908 = vunpack.c.l.b16 %v3756
        %v3909 = vunpack.c.l.b16 %v3757
        %v3910 = vunpack.c.l.b16 %v3758
        %v3911 = vunpack.c.l.b16 %v3759
        %v3912 = vunpack.c.l.b16 %v3760
        %v3913 = vunpack.c.l.b16 %v3761
        %v3914 = vunpack.c.l.b16 %v3762
        %v3915 = vunpack.c.l.b16 %v3763
        %v3916 = vpack.c.b16 %v3901, %v3900
        %v3917 = vpack.c.b16 %v3903, %v3902
        %v3918 = vpack.c.b16 %v3905, %v3904
        %v3919 = vpack.c.b16 %v3907, %v3906
        %v3920 = vpack.c.b16 %v3909, %v3908
        %v3921 = vpack.c.b16 %v3911, %v3910
        %v3922 = vpack.c.b16 %v3913, %v3912
        %v3923 = vpack.c.b16 %v3915, %v3914
        %3932 = vmatprep.subr.bf16.mxu0 0
        %3933 = vmatpush1.bf16.xpose.msra.mxu0 %v3916
        %3934 = vmatprep.subr.bf16.mxu0 0
        %3935 = vmatpush1.bf16.xpose.msra.mxu0 %v3917
        %3936 = vmatprep.subr.bf16.mxu0 0
        %3937 = vmatpush1.bf16.xpose.msra.mxu0 %v3918
        %3938 = vmatprep.subr.bf16.mxu0 0
        %3939 = vmatpush1.bf16.xpose.msra.mxu0 %v3919
        %3940 = vmatprep.subr.bf16.mxu0 0
        %3941 = vmatpush1.bf16.xpose.msra.mxu0 %v3920
        %3942 = vmatprep.subr.bf16.mxu0 0
        %3943 = vmatpush1.bf16.xpose.msra.mxu0 %v3921
        %3944 = vmatprep.subr.bf16.mxu0 0
        %3945 = vmatpush1.bf16.xpose.msra.mxu0 %v3922
        %3946 = vmatprep.subr.bf16.mxu0 0
        %3947 = vmatpush1.bf16.xpose.msra.mxu0 %v3923
        %3948 = vmatprep.subr.bf16.mxu0 0
        %3949 = vmatpush1.bf16.xpose.msra.mxu0 0
        %3950 = vmatprep.subr.bf16.mxu0 0
        %3951 = vmatpush1.bf16.xpose.msra.mxu0 0
        %3952 = vmatprep.subr.bf16.mxu0 0
        %3953 = vmatpush1.bf16.xpose.msra.mxu0 0
        %3954 = vmatprep.subr.bf16.mxu0 0
        %3955 = vmatpush1.bf16.xpose.msra.mxu0 0
        %3956 = vmatprep.subr.bf16.mxu0 0
        %3957 = vmatpush1.bf16.xpose.msra.mxu0 0
        %3958 = vmatprep.subr.bf16.mxu0 0
        %3959 = vmatpush1.bf16.xpose.msra.mxu0 0
        %3960 = vmatprep.subr.bf16.mxu0 0
        %3961 = vmatpush1.bf16.xpose.msra.mxu0 0
        %3962 = vmatprep.subr.bf16.mxu0 0
        %3963 = vmatpush1.bf16.xpose.msra.mxu0 0
        %3964 = vmatprep.mubr.bf16.mxu0 0
        %3965 = vmatmul.mubr.bf16.gmra.mrb[0].mxu0 %v3729
        %v3966 = vpop.f32.mrb[0].mxu0
        %v3967 = vadd.f32 0.0, %v3966
        %v3968 = vpop.f32.mrb[0].mxu0
        %v3969 = vpop.f32.mrb[0].mxu0
        %v3970 = vpop.f32.mrb[0].mxu0
        %3971 = vdwg.mxu0
        %v3988 = vunpack.c.l.b16 %v3764
        %v3989 = vunpack.c.l.b16 %v3765
        %v3990 = vunpack.c.l.b16 %v3766
        %v3991 = vunpack.c.l.b16 %v3767
        %v3992 = vunpack.c.l.b16 %v3768
        %v3993 = vunpack.c.l.b16 %v3769
        %v3994 = vunpack.c.l.b16 %v3770
        %v3995 = vunpack.c.l.b16 %v3771
        %v3996 = vunpack.c.l.b16 %v3772
        %v3997 = vunpack.c.l.b16 %v3773
        %v3998 = vunpack.c.l.b16 %v3774
        %v3999 = vunpack.c.l.b16 %v3775
        %v4000 = vunpack.c.l.b16 %v3776
        %v4001 = vunpack.c.l.b16 %v3777
        %v4002 = vunpack.c.l.b16 %v3778
        %v4003 = vunpack.c.l.b16 %v3779
        %v4004 = vpack.c.b16 %v3989, %v3988
        %v4005 = vpack.c.b16 %v3991, %v3990
        %v4006 = vpack.c.b16 %v3993, %v3992
        %v4007 = vpack.c.b16 %v3995, %v3994
        %v4008 = vpack.c.b16 %v3997, %v3996
        %v4009 = vpack.c.b16 %v3999, %v3998
        %v4010 = vpack.c.b16 %v4001, %v4000
        %v4011 = vpack.c.b16 %v4003, %v4002
        %4020 = vmatprep.subr.bf16.mxu0 0
        %4021 = vmatpush1.bf16.xpose.msra.mxu0 %v4004
        %4022 = vmatprep.subr.bf16.mxu0 0
        %4023 = vmatpush1.bf16.xpose.msra.mxu0 %v4005
        %4024 = vmatprep.subr.bf16.mxu0 0
        %4025 = vmatpush1.bf16.xpose.msra.mxu0 %v4006
        %4026 = vmatprep.subr.bf16.mxu0 0
        %4027 = vmatpush1.bf16.xpose.msra.mxu0 %v4007
        %4028 = vmatprep.subr.bf16.mxu0 0
        %4029 = vmatpush1.bf16.xpose.msra.mxu0 %v4008
        %4030 = vmatprep.subr.bf16.mxu0 0
        %4031 = vmatpush1.bf16.xpose.msra.mxu0 %v4009
        %4032 = vmatprep.subr.bf16.mxu0 0
        %4033 = vmatpush1.bf16.xpose.msra.mxu0 %v4010
        %4034 = vmatprep.subr.bf16.mxu0 0
        %4035 = vmatpush1.bf16.xpose.msra.mxu0 %v4011
        %4036 = vmatprep.subr.bf16.mxu0 0
        %4037 = vmatpush1.bf16.xpose.msra.mxu0 0
        %4038 = vmatprep.subr.bf16.mxu0 0
        %4039 = vmatpush1.bf16.xpose.msra.mxu0 0
        %4040 = vmatprep.subr.bf16.mxu0 0
        %4041 = vmatpush1.bf16.xpose.msra.mxu0 0
        %4042 = vmatprep.subr.bf16.mxu0 0
        %4043 = vmatpush1.bf16.xpose.msra.mxu0 0
        %4044 = vmatprep.subr.bf16.mxu0 0
        %4045 = vmatpush1.bf16.xpose.msra.mxu0 0
        %4046 = vmatprep.subr.bf16.mxu0 0
        %4047 = vmatpush1.bf16.xpose.msra.mxu0 0
        %4048 = vmatprep.subr.bf16.mxu0 0
        %4049 = vmatpush1.bf16.xpose.msra.mxu0 0
        %4050 = vmatprep.subr.bf16.mxu0 0
        %4051 = vmatpush1.bf16.xpose.msra.mxu0 0
        %4052 = vmatprep.mubr.bf16.mxu0 0
        %4053 = vmatmul.mubr.bf16.gmra.mrb[0].mxu0 %v3730
        %v4054 = vpop.f32.mrb[0].mxu0
        %v4055 = vadd.f32 0.0, %v4054
        %v4056 = vpop.f32.mrb[0].mxu0
        %v4057 = vpop.f32.mrb[0].mxu0
        %v4058 = vpop.f32.mrb[0].mxu0
        %4059 = vdwg.mxu0
        %v4076 = vunpack.c.l.b16 %v3780
        %v4077 = vunpack.c.l.b16 %v3781
        %v4078 = vunpack.c.l.b16 %v3782
        %v4079 = vunpack.c.l.b16 %v3783
        %v4080 = vunpack.c.l.b16 %v3784
        %v4081 = vunpack.c.l.b16 %v3785
        %v4082 = vunpack.c.l.b16 %v3786
        %v4083 = vunpack.c.l.b16 %v3787
        %v4084 = vunpack.c.l.b16 %v3788
        %v4085 = vunpack.c.l.b16 %v3789
        %v4086 = vunpack.c.l.b16 %v3790
        %v4087 = vunpack.c.l.b16 %v3791
        %v4088 = vunpack.c.l.b16 %v3792
        %v4089 = vunpack.c.l.b16 %v3793
        %v4090 = vunpack.c.l.b16 %v3794
        %v4091 = vunpack.c.l.b16 %v3795
        %v4092 = vpack.c.b16 %v4077, %v4076
        %v4093 = vpack.c.b16 %v4079, %v4078
        %v4094 = vpack.c.b16 %v4081, %v4080
        %v4095 = vpack.c.b16 %v4083, %v4082
        %v4096 = vpack.c.b16 %v4085, %v4084
        %v4097 = vpack.c.b16 %v4087, %v4086
        %v4098 = vpack.c.b16 %v4089, %v4088
        %v4099 = vpack.c.b16 %v4091, %v4090
        %4108 = vmatprep.subr.bf16.mxu0 0
        %4109 = vmatpush1.bf16.xpose.msra.mxu0 %v4092
        %4110 = vmatprep.subr.bf16.mxu0 0
        %4111 = vmatpush1.bf16.xpose.msra.mxu0 %v4093
        %4112 = vmatprep.subr.bf16.mxu0 0
        %4113 = vmatpush1.bf16.xpose.msra.mxu0 %v4094
        %4114 = vmatprep.subr.bf16.mxu0 0
        %4115 = vmatpush1.bf16.xpose.msra.mxu0 %v4095
        %4116 = vmatprep.subr.bf16.mxu0 0
        %4117 = vmatpush1.bf16.xpose.msra.mxu0 %v4096
        %4118 = vmatprep.subr.bf16.mxu0 0
        %4119 = vmatpush1.bf16.xpose.msra.mxu0 %v4097
        %4120 = vmatprep.subr.bf16.mxu0 0
        %4121 = vmatpush1.bf16.xpose.msra.mxu0 %v4098
        %4122 = vmatprep.subr.bf16.mxu0 0
        %4123 = vmatpush1.bf16.xpose.msra.mxu0 %v4099
        %4124 = vmatprep.subr.bf16.mxu0 0
        %4125 = vmatpush1.bf16.xpose.msra.mxu0 0
        %4126 = vmatprep.subr.bf16.mxu0 0
        %4127 = vmatpush1.bf16.xpose.msra.mxu0 0
        %4128 = vmatprep.subr.bf16.mxu0 0
        %4129 = vmatpush1.bf16.xpose.msra.mxu0 0
        %4130 = vmatprep.subr.bf16.mxu0 0
        %4131 = vmatpush1.bf16.xpose.msra.mxu0 0
        %4132 = vmatprep.subr.bf16.mxu0 0
        %4133 = vmatpush1.bf16.xpose.msra.mxu0 0
        %4134 = vmatprep.subr.bf16.mxu0 0
        %4135 = vmatpush1.bf16.xpose.msra.mxu0 0
        %4136 = vmatprep.subr.bf16.mxu0 0
        %4137 = vmatpush1.bf16.xpose.msra.mxu0 0
        %4138 = vmatprep.subr.bf16.mxu0 0
        %4139 = vmatpush1.bf16.xpose.msra.mxu0 0
        %4140 = vmatprep.mubr.bf16.mxu0 0
        %4141 = vmatmul.mubr.bf16.gmra.mrb[0].mxu0 %v3731
        %v4142 = vpop.f32.mrb[0].mxu0
        %v4143 = vadd.f32 0.0, %v4142
        %v4144 = vpop.f32.mrb[0].mxu0
        %v4145 = vpop.f32.mrb[0].mxu0
        %v4146 = vpop.f32.mrb[0].mxu0
        %4147 = vdwg.mxu0
        %v4148 = vld [vmem:[%s4] sm:$0x1]
        %v4149 = vld [vmem:[%s4 + $0x1] sm:$0x1]
        %v4150 = vld [vmem:[%s4 + $0x2] sm:$0x1]
        %v4151 = vld [vmem:[%s4 + $0x3] sm:$0x1]
        %v4152 = vmul.f32 %v4148, %v3879
        %v4153 = vmul.f32 %v4149, %v3967
        %v4154 = vmul.f32 %v4150, %v4055
        %v4155 = vmul.f32 %v4151, %v4143
        %vm4156 = vcmp.eq.f32.partialorder %v4152, 0.0
        %vm4157 = vcmp.eq.f32.partialorder %v4153, 0.0
        %vm4158 = vcmp.eq.f32.partialorder %v4154, 0.0
        %vm4159 = vcmp.eq.f32.partialorder %v4155, 0.0
        %v4160 = vsel %vm4156, -1e+10, %v4152
        %v4161 = vsel %vm4157, -1e+10, %v4153
        %v4162 = vsel %vm4158, -1e+10, %v4154
        %v4163 = vsel %vm4159, -1e+10, %v4155
        %v4164 = vsel %vm566, %v4160, -inf
        %4165 = vmax.xlane.f32.xlu0 %v4164
        %v4166 = vpop.xlane.xlu0 %4165
        %v4167 = vsel %vm566, %v4161, -inf
        %4168 = vmax.xlane.f32.xlu0 %v4167
        %v4169 = vpop.xlane.xlu0 %4168
        %v4170 = vsel %vm566, %v4162, -inf
        %4171 = vmax.xlane.f32.xlu0 %v4170
        %v4172 = vpop.xlane.xlu0 %4171
        %v4173 = vsel %vm566, %v4163, -inf
        %4174 = vmax.xlane.f32.xlu0 %v4173
        %v4175 = vpop.xlane.xlu0 %4174
        %v4176 = vsub.f32 %v4160, %v4166
        %v4177 = vsub.f32 %v4161, %v4169
        %v4178 = vsub.f32 %v4162, %v4172
        %v4179 = vsub.f32 %v4163, %v4175
        %v4180 = vmul.f32 %v4176, 1.442695
        %v4181 = vpow.pop %v4180
        %v4182 = vmul.f32 %v4177, 1.442695
        %v4183 = vpow.pop %v4182
        %v4184 = vmul.f32 %v4178, 1.442695
        %v4185 = vpow.pop %v4184
        %v4186 = vmul.f32 %v4179, 1.442695
        %v4187 = vpow.pop %v4186
        %v4188 = vsel %vm566, %v4181, 0.0
        %4189 = vadd.xlane.f32.xlu0 %v4188
        %v4190 = vpop.xlane.xlu0 %4189
        %v4191 = vsel %vm566, %v4183, 0.0
        %4192 = vadd.xlane.f32.xlu0 %v4191
        %v4193 = vpop.xlane.xlu0 %4192
        %v4194 = vsel %vm566, %v4185, 0.0
        %4195 = vadd.xlane.f32.xlu0 %v4194
        %v4196 = vpop.xlane.xlu0 %4195
        %v4197 = vsel %vm566, %v4187, 0.0
        %4198 = vadd.xlane.f32.xlu0 %v4197
        %v4199 = vpop.xlane.xlu0 %4198
        %v4200 = vrcp.pop %v4190
        %v4201 = vrcp.pop %v4193
        %v4202 = vrcp.pop %v4196
        %v4203 = vrcp.pop %v4199
        %v4204 = vmul.f32 %v4181, %v4200
        %v4205 = vmul.f32 %v4183, %v4201
        %v4206 = vmul.f32 %v4185, %v4202
        %v4207 = vmul.f32 %v4187, %v4203
        %v4208 = vpack.c.bf16 %v4204, %v4204
        %v4209 = vpack.c.bf16 %v4205, %v4205
        %v4210 = vpack.c.bf16 %v4206, %v4206
        %v4211 = vpack.c.bf16 %v4207, %v4207
        %v4212 = vld [vmem:[%s3] sm:$0xf]
        %v4213 = vld [vmem:[%s3 + $0x4] sm:$0xf]
        %v4214 = vld [vmem:[%s3 + $0x8] sm:$0xf]
        %v4215 = vld [vmem:[%s3 + $0xc] sm:$0xf]
        %v4216 = vld [vmem:[%s3 + $0x10] sm:$0xf]
        %v4217 = vld [vmem:[%s3 + $0x14] sm:$0xf]
        %v4218 = vld [vmem:[%s3 + $0x18] sm:$0xf]
        %v4219 = vld [vmem:[%s3 + $0x1c] sm:$0xf]
        %v4220 = vld [vmem:[%s3 + $0x20] sm:$0xf]
        %v4221 = vld [vmem:[%s3 + $0x24] sm:$0xf]
        %v4222 = vld [vmem:[%s3 + $0x28] sm:$0xf]
        %v4223 = vld [vmem:[%s3 + $0x2c] sm:$0xf]
        %v4224 = vld [vmem:[%s3 + $0x30] sm:$0xf]
        %v4225 = vld [vmem:[%s3 + $0x34] sm:$0xf]
        %v4226 = vld [vmem:[%s3 + $0x38] sm:$0xf]
        %v4227 = vld [vmem:[%s3 + $0x3c] sm:$0xf]
        %v4228 = vld [vmem:[%s3 + $0x40] sm:$0xf]
        %v4229 = vld [vmem:[%s3 + $0x44] sm:$0xf]
        %v4230 = vld [vmem:[%s3 + $0x48] sm:$0xf]
        %v4231 = vld [vmem:[%s3 + $0x4c] sm:$0xf]
        %v4232 = vld [vmem:[%s3 + $0x50] sm:$0xf]
        %v4233 = vld [vmem:[%s3 + $0x54] sm:$0xf]
        %v4234 = vld [vmem:[%s3 + $0x58] sm:$0xf]
        %v4235 = vld [vmem:[%s3 + $0x5c] sm:$0xf]
        %v4236 = vld [vmem:[%s3 + $0x60] sm:$0xf]
        %v4237 = vld [vmem:[%s3 + $0x64] sm:$0xf]
        %v4238 = vld [vmem:[%s3 + $0x68] sm:$0xf]
        %v4239 = vld [vmem:[%s3 + $0x6c] sm:$0xf]
        %v4240 = vld [vmem:[%s3 + $0x70] sm:$0xf]
        %v4241 = vld [vmem:[%s3 + $0x74] sm:$0xf]
        %v4242 = vld [vmem:[%s3 + $0x78] sm:$0xf]
        %v4243 = vld [vmem:[%s3 + $0x7c] sm:$0xf]
        %v4244 = vld [vmem:[%s3 + $0x80] sm:$0xf]
        %v4245 = vld [vmem:[%s3 + $0x84] sm:$0xf]
        %v4246 = vld [vmem:[%s3 + $0x88] sm:$0xf]
        %v4247 = vld [vmem:[%s3 + $0x8c] sm:$0xf]
        %v4248 = vld [vmem:[%s3 + $0x90] sm:$0xf]
        %v4249 = vld [vmem:[%s3 + $0x94] sm:$0xf]
        %v4250 = vld [vmem:[%s3 + $0x98] sm:$0xf]
        %v4251 = vld [vmem:[%s3 + $0x9c] sm:$0xf]
        %v4252 = vld [vmem:[%s3 + $0xa0] sm:$0xf]
        %v4253 = vld [vmem:[%s3 + $0xa4] sm:$0xf]
        %v4254 = vld [vmem:[%s3 + $0xa8] sm:$0xf]
        %v4255 = vld [vmem:[%s3 + $0xac] sm:$0xf]
        %v4256 = vld [vmem:[%s3 + $0xb0] sm:$0xf]
        %v4257 = vld [vmem:[%s3 + $0xb4] sm:$0xf]
        %v4258 = vld [vmem:[%s3 + $0xb8] sm:$0xf]
        %v4259 = vld [vmem:[%s3 + $0xbc] sm:$0xf]
        %v4260 = vld [vmem:[%s3 + $0xc0] sm:$0xf]
        %v4261 = vld [vmem:[%s3 + $0xc4] sm:$0xf]
        %v4262 = vld [vmem:[%s3 + $0xc8] sm:$0xf]
        %v4263 = vld [vmem:[%s3 + $0xcc] sm:$0xf]
        %v4264 = vld [vmem:[%s3 + $0xd0] sm:$0xf]
        %v4265 = vld [vmem:[%s3 + $0xd4] sm:$0xf]
        %v4266 = vld [vmem:[%s3 + $0xd8] sm:$0xf]
        %v4267 = vld [vmem:[%s3 + $0xdc] sm:$0xf]
        %v4268 = vld [vmem:[%s3 + $0xe0] sm:$0xf]
        %v4269 = vld [vmem:[%s3 + $0xe4] sm:$0xf]
        %v4270 = vld [vmem:[%s3 + $0xe8] sm:$0xf]
        %v4271 = vld [vmem:[%s3 + $0xec] sm:$0xf]
        %v4272 = vld [vmem:[%s3 + $0xf0] sm:$0xf]
        %v4273 = vld [vmem:[%s3 + $0xf4] sm:$0xf]
        %v4274 = vld [vmem:[%s3 + $0xf8] sm:$0xf]
        %v4275 = vld [vmem:[%s3 + $0xfc] sm:$0xf]
        %v4292 = vunpack.c.l.b16 %v4212
        %v4293 = vunpack.c.l.b16 %v4213
        %v4294 = vunpack.c.l.b16 %v4214
        %v4295 = vunpack.c.l.b16 %v4215
        %v4296 = vunpack.c.l.b16 %v4216
        %v4297 = vunpack.c.l.b16 %v4217
        %v4298 = vunpack.c.l.b16 %v4218
        %v4299 = vunpack.c.l.b16 %v4219
        %v4300 = vunpack.c.l.b16 %v4220
        %v4301 = vunpack.c.l.b16 %v4221
        %v4302 = vunpack.c.l.b16 %v4222
        %v4303 = vunpack.c.l.b16 %v4223
        %v4304 = vunpack.c.l.b16 %v4224
        %v4305 = vunpack.c.l.b16 %v4225
        %v4306 = vunpack.c.l.b16 %v4226
        %v4307 = vunpack.c.l.b16 %v4227
        %v4308 = vpack.c.b16 %v4293, %v4292
        %v4309 = vpack.c.b16 %v4295, %v4294
        %v4310 = vpack.c.b16 %v4297, %v4296
        %v4311 = vpack.c.b16 %v4299, %v4298
        %v4312 = vpack.c.b16 %v4301, %v4300
        %v4313 = vpack.c.b16 %v4303, %v4302
        %v4314 = vpack.c.b16 %v4305, %v4304
        %v4315 = vpack.c.b16 %v4307, %v4306
        %4324 = vmatprep.subr.bf16.mxu0 0
        %4325 = vmatpush1.bf16.msra.mxu0 %v4308
        %4326 = vmatprep.subr.bf16.mxu0 0
        %4327 = vmatpush1.bf16.msra.mxu0 %v4309
        %4328 = vmatprep.subr.bf16.mxu0 0
        %4329 = vmatpush1.bf16.msra.mxu0 %v4310
        %4330 = vmatprep.subr.bf16.mxu0 0
        %4331 = vmatpush1.bf16.msra.mxu0 %v4311
        %4332 = vmatprep.subr.bf16.mxu0 0
        %4333 = vmatpush1.bf16.msra.mxu0 %v4312
        %4334 = vmatprep.subr.bf16.mxu0 0
        %4335 = vmatpush1.bf16.msra.mxu0 %v4313
        %4336 = vmatprep.subr.bf16.mxu0 0
        %4337 = vmatpush1.bf16.msra.mxu0 %v4314
        %4338 = vmatprep.subr.bf16.mxu0 0
        %4339 = vmatpush1.bf16.msra.mxu0 %v4315
        %4340 = vmatprep.subr.bf16.mxu0 0
        %4341 = vmatpush1.bf16.msra.mxu0 0
        %4342 = vmatprep.subr.bf16.mxu0 0
        %4343 = vmatpush1.bf16.msra.mxu0 0
        %4344 = vmatprep.subr.bf16.mxu0 0
        %4345 = vmatpush1.bf16.msra.mxu0 0
        %4346 = vmatprep.subr.bf16.mxu0 0
        %4347 = vmatpush1.bf16.msra.mxu0 0
        %4348 = vmatprep.subr.bf16.mxu0 0
        %4349 = vmatpush1.bf16.msra.mxu0 0
        %4350 = vmatprep.subr.bf16.mxu0 0
        %4351 = vmatpush1.bf16.msra.mxu0 0
        %4352 = vmatprep.subr.bf16.mxu0 0
        %4353 = vmatpush1.bf16.msra.mxu0 0
        %4354 = vmatprep.subr.bf16.mxu0 0
        %4355 = vmatpush1.bf16.msra.mxu0 0
        %4356 = vmatprep.mubr.bf16.mxu0 0
        %4357 = vmatmul.mubr.bf16.gmra.mrb[0].mxu0 %v4208
        %v4358 = vpop.f32.mrb[0].mxu0
        %v4359 = vadd.f32 0.0, %v4358
        %v4360 = vpop.f32.mrb[0].mxu0
        %v4361 = vpop.f32.mrb[0].mxu0
        %v4362 = vpop.f32.mrb[0].mxu0
        %4363 = vdwg.mxu0
        %v4380 = vunpack.c.l.b16 %v4228
        %v4381 = vunpack.c.l.b16 %v4229
        %v4382 = vunpack.c.l.b16 %v4230
        %v4383 = vunpack.c.l.b16 %v4231
        %v4384 = vunpack.c.l.b16 %v4232
        %v4385 = vunpack.c.l.b16 %v4233
        %v4386 = vunpack.c.l.b16 %v4234
        %v4387 = vunpack.c.l.b16 %v4235
        %v4388 = vunpack.c.l.b16 %v4236
        %v4389 = vunpack.c.l.b16 %v4237
        %v4390 = vunpack.c.l.b16 %v4238
        %v4391 = vunpack.c.l.b16 %v4239
        %v4392 = vunpack.c.l.b16 %v4240
        %v4393 = vunpack.c.l.b16 %v4241
        %v4394 = vunpack.c.l.b16 %v4242
        %v4395 = vunpack.c.l.b16 %v4243
        %v4396 = vpack.c.b16 %v4381, %v4380
        %v4397 = vpack.c.b16 %v4383, %v4382
        %v4398 = vpack.c.b16 %v4385, %v4384
        %v4399 = vpack.c.b16 %v4387, %v4386
        %v4400 = vpack.c.b16 %v4389, %v4388
        %v4401 = vpack.c.b16 %v4391, %v4390
        %v4402 = vpack.c.b16 %v4393, %v4392
        %v4403 = vpack.c.b16 %v4395, %v4394
        %4412 = vmatprep.subr.bf16.mxu0 0
        %4413 = vmatpush1.bf16.msra.mxu0 %v4396
        %4414 = vmatprep.subr.bf16.mxu0 0
        %4415 = vmatpush1.bf16.msra.mxu0 %v4397
        %4416 = vmatprep.subr.bf16.mxu0 0
        %4417 = vmatpush1.bf16.msra.mxu0 %v4398
        %4418 = vmatprep.subr.bf16.mxu0 0
        %4419 = vmatpush1.bf16.msra.mxu0 %v4399
        %4420 = vmatprep.subr.bf16.mxu0 0
        %4421 = vmatpush1.bf16.msra.mxu0 %v4400
        %4422 = vmatprep.subr.bf16.mxu0 0
        %4423 = vmatpush1.bf16.msra.mxu0 %v4401
        %4424 = vmatprep.subr.bf16.mxu0 0
        %4425 = vmatpush1.bf16.msra.mxu0 %v4402
        %4426 = vmatprep.subr.bf16.mxu0 0
        %4427 = vmatpush1.bf16.msra.mxu0 %v4403
        %4428 = vmatprep.subr.bf16.mxu0 0
        %4429 = vmatpush1.bf16.msra.mxu0 0
        %4430 = vmatprep.subr.bf16.mxu0 0
        %4431 = vmatpush1.bf16.msra.mxu0 0
        %4432 = vmatprep.subr.bf16.mxu0 0
        %4433 = vmatpush1.bf16.msra.mxu0 0
        %4434 = vmatprep.subr.bf16.mxu0 0
        %4435 = vmatpush1.bf16.msra.mxu0 0
        %4436 = vmatprep.subr.bf16.mxu0 0
        %4437 = vmatpush1.bf16.msra.mxu0 0
        %4438 = vmatprep.subr.bf16.mxu0 0
        %4439 = vmatpush1.bf16.msra.mxu0 0
        %4440 = vmatprep.subr.bf16.mxu0 0
        %4441 = vmatpush1.bf16.msra.mxu0 0
        %4442 = vmatprep.subr.bf16.mxu0 0
        %4443 = vmatpush1.bf16.msra.mxu0 0
        %4444 = vmatprep.mubr.bf16.mxu0 0
        %4445 = vmatmul.mubr.bf16.gmra.mrb[0].mxu0 %v4209
        %v4446 = vpop.f32.mrb[0].mxu0
        %v4447 = vadd.f32 0.0, %v4446
        %v4448 = vpop.f32.mrb[0].mxu0
        %v4449 = vpop.f32.mrb[0].mxu0
        %v4450 = vpop.f32.mrb[0].mxu0
        %4451 = vdwg.mxu0
        %v4468 = vunpack.c.l.b16 %v4244
        %v4469 = vunpack.c.l.b16 %v4245
        %v4470 = vunpack.c.l.b16 %v4246
        %v4471 = vunpack.c.l.b16 %v4247
        %v4472 = vunpack.c.l.b16 %v4248
        %v4473 = vunpack.c.l.b16 %v4249
        %v4474 = vunpack.c.l.b16 %v4250
        %v4475 = vunpack.c.l.b16 %v4251
        %v4476 = vunpack.c.l.b16 %v4252
        %v4477 = vunpack.c.l.b16 %v4253
        %v4478 = vunpack.c.l.b16 %v4254
        %v4479 = vunpack.c.l.b16 %v4255
        %v4480 = vunpack.c.l.b16 %v4256
        %v4481 = vunpack.c.l.b16 %v4257
        %v4482 = vunpack.c.l.b16 %v4258
        %v4483 = vunpack.c.l.b16 %v4259
        %v4484 = vpack.c.b16 %v4469, %v4468
        %v4485 = vpack.c.b16 %v4471, %v4470
        %v4486 = vpack.c.b16 %v4473, %v4472
        %v4487 = vpack.c.b16 %v4475, %v4474
        %v4488 = vpack.c.b16 %v4477, %v4476
        %v4489 = vpack.c.b16 %v4479, %v4478
        %v4490 = vpack.c.b16 %v4481, %v4480
        %v4491 = vpack.c.b16 %v4483, %v4482
        %4500 = vmatprep.subr.bf16.mxu0 0
        %4501 = vmatpush1.bf16.msra.mxu0 %v4484
        %4502 = vmatprep.subr.bf16.mxu0 0
        %4503 = vmatpush1.bf16.msra.mxu0 %v4485
        %4504 = vmatprep.subr.bf16.mxu0 0
        %4505 = vmatpush1.bf16.msra.mxu0 %v4486
        %4506 = vmatprep.subr.bf16.mxu0 0
        %4507 = vmatpush1.bf16.msra.mxu0 %v4487
        %4508 = vmatprep.subr.bf16.mxu0 0
        %4509 = vmatpush1.bf16.msra.mxu0 %v4488
        %4510 = vmatprep.subr.bf16.mxu0 0
        %4511 = vmatpush1.bf16.msra.mxu0 %v4489
        %4512 = vmatprep.subr.bf16.mxu0 0
        %4513 = vmatpush1.bf16.msra.mxu0 %v4490
        %4514 = vmatprep.subr.bf16.mxu0 0
        %4515 = vmatpush1.bf16.msra.mxu0 %v4491
        %4516 = vmatprep.subr.bf16.mxu0 0
        %4517 = vmatpush1.bf16.msra.mxu0 0
        %4518 = vmatprep.subr.bf16.mxu0 0
        %4519 = vmatpush1.bf16.msra.mxu0 0
        %4520 = vmatprep.subr.bf16.mxu0 0
        %4521 = vmatpush1.bf16.msra.mxu0 0
        %4522 = vmatprep.subr.bf16.mxu0 0
        %4523 = vmatpush1.bf16.msra.mxu0 0
        %4524 = vmatprep.subr.bf16.mxu0 0
        %4525 = vmatpush1.bf16.msra.mxu0 0
        %4526 = vmatprep.subr.bf16.mxu0 0
        %4527 = vmatpush1.bf16.msra.mxu0 0
        %4528 = vmatprep.subr.bf16.mxu0 0
        %4529 = vmatpush1.bf16.msra.mxu0 0
        %4530 = vmatprep.subr.bf16.mxu0 0
        %4531 = vmatpush1.bf16.msra.mxu0 0
        %4532 = vmatprep.mubr.bf16.mxu0 0
        %4533 = vmatmul.mubr.bf16.gmra.mrb[0].mxu0 %v4210
        %v4534 = vpop.f32.mrb[0].mxu0
        %v4535 = vadd.f32 0.0, %v4534
        %v4536 = vpop.f32.mrb[0].mxu0
        %v4537 = vpop.f32.mrb[0].mxu0
        %v4538 = vpop.f32.mrb[0].mxu0
        %4539 = vdwg.mxu0
        %v4556 = vunpack.c.l.b16 %v4260
        %v4557 = vunpack.c.l.b16 %v4261
        %v4558 = vunpack.c.l.b16 %v4262
        %v4559 = vunpack.c.l.b16 %v4263
        %v4560 = vunpack.c.l.b16 %v4264
        %v4561 = vunpack.c.l.b16 %v4265
        %v4562 = vunpack.c.l.b16 %v4266
        %v4563 = vunpack.c.l.b16 %v4267
        %v4564 = vunpack.c.l.b16 %v4268
        %v4565 = vunpack.c.l.b16 %v4269
        %v4566 = vunpack.c.l.b16 %v4270
        %v4567 = vunpack.c.l.b16 %v4271
        %v4568 = vunpack.c.l.b16 %v4272
        %v4569 = vunpack.c.l.b16 %v4273
        %v4570 = vunpack.c.l.b16 %v4274
        %v4571 = vunpack.c.l.b16 %v4275
        %v4572 = vpack.c.b16 %v4557, %v4556
        %v4573 = vpack.c.b16 %v4559, %v4558
        %v4574 = vpack.c.b16 %v4561, %v4560
        %v4575 = vpack.c.b16 %v4563, %v4562
        %v4576 = vpack.c.b16 %v4565, %v4564
        %v4577 = vpack.c.b16 %v4567, %v4566
        %v4578 = vpack.c.b16 %v4569, %v4568
        %v4579 = vpack.c.b16 %v4571, %v4570
        %4588 = vmatprep.subr.bf16.mxu0 0
        %4589 = vmatpush1.bf16.msra.mxu0 %v4572
        %4590 = vmatprep.subr.bf16.mxu0 0
        %4591 = vmatpush1.bf16.msra.mxu0 %v4573
        %4592 = vmatprep.subr.bf16.mxu0 0
        %4593 = vmatpush1.bf16.msra.mxu0 %v4574
        %4594 = vmatprep.subr.bf16.mxu0 0
        %4595 = vmatpush1.bf16.msra.mxu0 %v4575
        %4596 = vmatprep.subr.bf16.mxu0 0
        %4597 = vmatpush1.bf16.msra.mxu0 %v4576
        %4598 = vmatprep.subr.bf16.mxu0 0
        %4599 = vmatpush1.bf16.msra.mxu0 %v4577
        %4600 = vmatprep.subr.bf16.mxu0 0
        %4601 = vmatpush1.bf16.msra.mxu0 %v4578
        %4602 = vmatprep.subr.bf16.mxu0 0
        %4603 = vmatpush1.bf16.msra.mxu0 %v4579
        %4604 = vmatprep.subr.bf16.mxu0 0
        %4605 = vmatpush1.bf16.msra.mxu0 0
        %4606 = vmatprep.subr.bf16.mxu0 0
        %4607 = vmatpush1.bf16.msra.mxu0 0
        %4608 = vmatprep.subr.bf16.mxu0 0
        %4609 = vmatpush1.bf16.msra.mxu0 0
        %4610 = vmatprep.subr.bf16.mxu0 0
        %4611 = vmatpush1.bf16.msra.mxu0 0
        %4612 = vmatprep.subr.bf16.mxu0 0
        %4613 = vmatpush1.bf16.msra.mxu0 0
        %4614 = vmatprep.subr.bf16.mxu0 0
        %4615 = vmatpush1.bf16.msra.mxu0 0
        %4616 = vmatprep.subr.bf16.mxu0 0
        %4617 = vmatpush1.bf16.msra.mxu0 0
        %4618 = vmatprep.subr.bf16.mxu0 0
        %4619 = vmatpush1.bf16.msra.mxu0 0
        %4620 = vmatprep.mubr.bf16.mxu0 0
        %4621 = vmatmul.mubr.bf16.gmra.mrb[0].mxu0 %v4211
        %v4622 = vpop.f32.mrb[0].mxu0
        %v4623 = vadd.f32 0.0, %v4622
        %v4624 = vpop.f32.mrb[0].mxu0
        %v4625 = vpop.f32.mrb[0].mxu0
        %v4626 = vpop.f32.mrb[0].mxu0
        %4627 = vdwg.mxu0
        %v4628 = vpack.c.bf16 %v4359, %v4359
        %v4629 = vpack.c.bf16 %v4447, %v4447
        %v4630 = vpack.c.bf16 %v4535, %v4535
        %v4631 = vpack.c.bf16 %v4623, %v4623
        %v4632 = vld [vmem:[%s11] sm:$0xf]
        %v4633 = vld [vmem:[%s11 + $0x4] sm:$0xf]
        %v4634 = vld [vmem:[%s11 + $0x8] sm:$0xf]
        %v4635 = vld [vmem:[%s11 + $0xc] sm:$0xf]
        %v4636 = vld [vmem:[%s11 + $0x10] sm:$0xf]
        %v4637 = vld [vmem:[%s11 + $0x14] sm:$0xf]
        %v4638 = vld [vmem:[%s11 + $0x18] sm:$0xf]
        %v4639 = vld [vmem:[%s11 + $0x1c] sm:$0xf]
        %v4640 = vld [vmem:[%s11 + $0x20] sm:$0xf]
        %v4641 = vld [vmem:[%s11 + $0x24] sm:$0xf]
        %v4642 = vld [vmem:[%s11 + $0x28] sm:$0xf]
        %v4643 = vld [vmem:[%s11 + $0x2c] sm:$0xf]
        %v4644 = vld [vmem:[%s11 + $0x30] sm:$0xf]
        %v4645 = vld [vmem:[%s11 + $0x34] sm:$0xf]
        %v4646 = vld [vmem:[%s11 + $0x38] sm:$0xf]
        %v4647 = vld [vmem:[%s11 + $0x3c] sm:$0xf]
        %v4648 = vld [vmem:[%s11 + $0x40] sm:$0xf]
        %v4649 = vld [vmem:[%s11 + $0x44] sm:$0xf]
        %v4650 = vld [vmem:[%s11 + $0x48] sm:$0xf]
        %v4651 = vld [vmem:[%s11 + $0x4c] sm:$0xf]
        %v4652 = vld [vmem:[%s11 + $0x50] sm:$0xf]
        %v4653 = vld [vmem:[%s11 + $0x54] sm:$0xf]
        %v4654 = vld [vmem:[%s11 + $0x58] sm:$0xf]
        %v4655 = vld [vmem:[%s11 + $0x5c] sm:$0xf]
        %v4656 = vld [vmem:[%s11 + $0x60] sm:$0xf]
        %v4657 = vld [vmem:[%s11 + $0x64] sm:$0xf]
        %v4658 = vld [vmem:[%s11 + $0x68] sm:$0xf]
        %v4659 = vld [vmem:[%s11 + $0x6c] sm:$0xf]
        %v4660 = vld [vmem:[%s11 + $0x70] sm:$0xf]
        %v4661 = vld [vmem:[%s11 + $0x74] sm:$0xf]
        %v4662 = vld [vmem:[%s11 + $0x78] sm:$0xf]
        %v4663 = vld [vmem:[%s11 + $0x7c] sm:$0xf]
        %v4680 = vunpack.c.l.b16 %v4648
        %v4681 = vunpack.c.l.b16 %v4649
        %v4682 = vunpack.c.l.b16 %v4650
        %v4683 = vunpack.c.l.b16 %v4651
        %v4684 = vunpack.c.l.b16 %v4652
        %v4685 = vunpack.c.l.b16 %v4653
        %v4686 = vunpack.c.l.b16 %v4654
        %v4687 = vunpack.c.l.b16 %v4655
        %v4688 = vunpack.c.l.b16 %v4656
        %v4689 = vunpack.c.l.b16 %v4657
        %v4690 = vunpack.c.l.b16 %v4658
        %v4691 = vunpack.c.l.b16 %v4659
        %v4692 = vunpack.c.l.b16 %v4660
        %v4693 = vunpack.c.l.b16 %v4661
        %v4694 = vunpack.c.l.b16 %v4662
        %v4695 = vunpack.c.l.b16 %v4663
        %v4696 = vpack.c.b16 %v4681, %v4680
        %v4697 = vpack.c.b16 %v4683, %v4682
        %v4698 = vpack.c.b16 %v4685, %v4684
        %v4699 = vpack.c.b16 %v4687, %v4686
        %v4700 = vpack.c.b16 %v4689, %v4688
        %v4701 = vpack.c.b16 %v4691, %v4690
        %v4702 = vpack.c.b16 %v4693, %v4692
        %v4703 = vpack.c.b16 %v4695, %v4694
        %4712 = vmatprep.subr.bf16.mxu0 0
        %4713 = vmatpush1.bf16.msra.mxu0 %v4696
        %4714 = vmatprep.subr.bf16.mxu0 0
        %4715 = vmatpush1.bf16.msra.mxu0 %v4697
        %4716 = vmatprep.subr.bf16.mxu0 0
        %4717 = vmatpush1.bf16.msra.mxu0 %v4698
        %4718 = vmatprep.subr.bf16.mxu0 0
        %4719 = vmatpush1.bf16.msra.mxu0 %v4699
        %4720 = vmatprep.subr.bf16.mxu0 0
        %4721 = vmatpush1.bf16.msra.mxu0 %v4700
        %4722 = vmatprep.subr.bf16.mxu0 0
        %4723 = vmatpush1.bf16.msra.mxu0 %v4701
        %4724 = vmatprep.subr.bf16.mxu0 0
        %4725 = vmatpush1.bf16.msra.mxu0 %v4702
        %4726 = vmatprep.subr.bf16.mxu0 0
        %4727 = vmatpush1.bf16.msra.mxu0 %v4703
        %4728 = vmatprep.subr.bf16.mxu0 0
        %4729 = vmatpush1.bf16.msra.mxu0 0
        %4730 = vmatprep.subr.bf16.mxu0 0
        %4731 = vmatpush1.bf16.msra.mxu0 0
        %4732 = vmatprep.subr.bf16.mxu0 0
        %4733 = vmatpush1.bf16.msra.mxu0 0
        %4734 = vmatprep.subr.bf16.mxu0 0
        %4735 = vmatpush1.bf16.msra.mxu0 0
        %4736 = vmatprep.subr.bf16.mxu0 0
        %4737 = vmatpush1.bf16.msra.mxu0 0
        %4738 = vmatprep.subr.bf16.mxu0 0
        %4739 = vmatpush1.bf16.msra.mxu0 0
        %4740 = vmatprep.subr.bf16.mxu0 0
        %4741 = vmatpush1.bf16.msra.mxu0 0
        %4742 = vmatprep.subr.bf16.mxu0 0
        %4743 = vmatpush1.bf16.msra.mxu0 0
        %4744 = vmatprep.mubr.bf16.mxu0 0
        %4745 = vmatmul.mubr.bf16.gmra.mrb[0].mxu0 %v3594
        %v4746 = vpop.f32.mrb[0].mxu0
        %v4747 = vadd.f32 0.0, %v4746
        %v4748 = vpop.f32.mrb[0].mxu0
        %v4749 = vpop.f32.mrb[0].mxu0
        %v4750 = vpop.f32.mrb[0].mxu0
        %4751 = vdwg.mxu0
        %v4756 = vunpack.c.l.b16 %v4628
        %v4757 = vunpack.c.l.b16 %v4629
        %v4758 = vunpack.c.l.b16 %v4630
        %v4759 = vunpack.c.l.b16 %v4631
        %v4760 = vrot.slane %v4757, 7
        %v4761 = vsel %vm2521, %v4760, %v4756
        %v4762 = vrot.slane %v4758, 6
        %v4763 = vsel %vm2524, %v4762, %v4761
        %v4764 = vrot.slane %v4759, 5
        %v4765 = vsel %vm2527, %v4764, %v4763
        %v4766 = vpack.c.b16 %v4765, %v4765
        %v4784 = vunpack.c.l.b16 %v4632
        %v4785 = vunpack.c.l.b16 %v4633
        %v4786 = vunpack.c.l.b16 %v4634
        %v4787 = vunpack.c.l.b16 %v4635
        %v4788 = vunpack.c.l.b16 %v4636
        %v4789 = vunpack.c.l.b16 %v4637
        %v4790 = vunpack.c.l.b16 %v4638
        %v4791 = vunpack.c.l.b16 %v4639
        %v4792 = vunpack.c.l.b16 %v4640
        %v4793 = vunpack.c.l.b16 %v4641
        %v4794 = vunpack.c.l.b16 %v4642
        %v4795 = vunpack.c.l.b16 %v4643
        %v4796 = vunpack.c.l.b16 %v4644
        %v4797 = vunpack.c.l.b16 %v4645
        %v4798 = vunpack.c.l.b16 %v4646
        %v4799 = vunpack.c.l.b16 %v4647
        %v4800 = vpack.c.b16 %v4785, %v4784
        %v4801 = vpack.c.b16 %v4787, %v4786
        %v4802 = vpack.c.b16 %v4789, %v4788
        %v4803 = vpack.c.b16 %v4791, %v4790
        %v4804 = vpack.c.b16 %v4793, %v4792
        %v4805 = vpack.c.b16 %v4795, %v4794
        %v4806 = vpack.c.b16 %v4797, %v4796
        %v4807 = vpack.c.b16 %v4799, %v4798
        %4816 = vmatprep.subr.bf16.mxu0 0
        %4817 = vmatpush1.bf16.msra.mxu0 %v4800
        %4818 = vmatprep.subr.bf16.mxu0 0
        %4819 = vmatpush1.bf16.msra.mxu0 %v4801
        %4820 = vmatprep.subr.bf16.mxu0 0
        %4821 = vmatpush1.bf16.msra.mxu0 %v4802
        %4822 = vmatprep.subr.bf16.mxu0 0
        %4823 = vmatpush1.bf16.msra.mxu0 %v4803
        %4824 = vmatprep.subr.bf16.mxu0 0
        %4825 = vmatpush1.bf16.msra.mxu0 %v4804
        %4826 = vmatprep.subr.bf16.mxu0 0
        %4827 = vmatpush1.bf16.msra.mxu0 %v4805
        %4828 = vmatprep.subr.bf16.mxu0 0
        %4829 = vmatpush1.bf16.msra.mxu0 %v4806
        %4830 = vmatprep.subr.bf16.mxu0 0
        %4831 = vmatpush1.bf16.msra.mxu0 %v4807
        %4832 = vmatprep.subr.bf16.mxu0 0
        %4833 = vmatpush1.bf16.msra.mxu0 0
        %4834 = vmatprep.subr.bf16.mxu0 0
        %4835 = vmatpush1.bf16.msra.mxu0 0
        %4836 = vmatprep.subr.bf16.mxu0 0
        %4837 = vmatpush1.bf16.msra.mxu0 0
        %4838 = vmatprep.subr.bf16.mxu0 0
        %4839 = vmatpush1.bf16.msra.mxu0 0
        %4840 = vmatprep.subr.bf16.mxu0 0
        %4841 = vmatpush1.bf16.msra.mxu0 0
        %4842 = vmatprep.subr.bf16.mxu0 0
        %4843 = vmatpush1.bf16.msra.mxu0 0
        %4844 = vmatprep.subr.bf16.mxu0 0
        %4845 = vmatpush1.bf16.msra.mxu0 0
        %4846 = vmatprep.subr.bf16.mxu0 0
        %4847 = vmatpush1.bf16.msra.mxu0 0
        %4848 = vmatprep.mubr.bf16.mxu0 0
        %4849 = vmatmul.mubr.bf16.gmra.mrb[0].mxu0 %v4766
        %v4850 = vpop.f32.mrb[0].mxu0
        %v4851 = vadd.f32 %v4747, %v4850
        %v4852 = vpop.f32.mrb[0].mxu0
        %v4853 = vpop.f32.mrb[0].mxu0
        %v4854 = vpop.f32.mrb[0].mxu0
        %4855 = vdwg.mxu0
        %v4856 = vtanh.pop %v4851
        %v4857 = vpack.c.bf16 %v4856, %v4856
        %v4858 = vld [vmem:[%s12] sm:$0xf]
        %v4859 = vld [vmem:[%s12 + $0x4] sm:$0xf]
        %v4860 = vld [vmem:[%s12 + $0x8] sm:$0xf]
        %v4861 = vld [vmem:[%s12 + $0xc] sm:$0xf]
        %v4862 = vld [vmem:[%s12 + $0x10] sm:$0xf]
        %v4863 = vld [vmem:[%s12 + $0x14] sm:$0xf]
        %v4864 = vld [vmem:[%s12 + $0x18] sm:$0xf]
        %v4865 = vld [vmem:[%s12 + $0x1c] sm:$0xf]
        %v4866 = vld [vmem:[%s12 + $0x20] sm:$0xf]
        %v4867 = vld [vmem:[%s12 + $0x24] sm:$0xf]
        %v4868 = vld [vmem:[%s12 + $0x28] sm:$0xf]
        %v4869 = vld [vmem:[%s12 + $0x2c] sm:$0xf]
        %v4870 = vld [vmem:[%s12 + $0x30] sm:$0xf]
        %v4871 = vld [vmem:[%s12 + $0x34] sm:$0xf]
        %v4872 = vld [vmem:[%s12 + $0x38] sm:$0xf]
        %v4873 = vld [vmem:[%s12 + $0x3c] sm:$0xf]
        %v4874 = vld [vmem:[%s13] sm:$0x1]
        %v4876 = vlaneseq
        %v4877 = vshrl.u32 %v4876, 7
        %v4878 = vsub.s32 0, %v4877
        %v4879 = vrot.slane %v4874, %v4878
        %v4897 = vunpack.c.l.b16 %v4858
        %v4898 = vunpack.c.l.b16 %v4859
        %v4899 = vunpack.c.l.b16 %v4860
        %v4900 = vunpack.c.l.b16 %v4861
        %v4901 = vunpack.c.l.b16 %v4862
        %v4902 = vunpack.c.l.b16 %v4863
        %v4903 = vunpack.c.l.b16 %v4864
        %v4904 = vunpack.c.l.b16 %v4865
        %v4905 = vunpack.c.l.b16 %v4866
        %v4906 = vunpack.c.l.b16 %v4867
        %v4907 = vunpack.c.l.b16 %v4868
        %v4908 = vunpack.c.l.b16 %v4869
        %v4909 = vunpack.c.l.b16 %v4870
        %v4910 = vunpack.c.l.b16 %v4871
        %v4911 = vunpack.c.l.b16 %v4872
        %v4912 = vunpack.c.l.b16 %v4873
        %v4913 = vpack.c.b16 %v4898, %v4897
        %v4914 = vpack.c.b16 %v4900, %v4899
        %v4915 = vpack.c.b16 %v4902, %v4901
        %v4916 = vpack.c.b16 %v4904, %v4903
        %v4917 = vpack.c.b16 %v4906, %v4905
        %v4918 = vpack.c.b16 %v4908, %v4907
        %v4919 = vpack.c.b16 %v4910, %v4909
        %v4920 = vpack.c.b16 %v4912, %v4911
        %4929 = vmatprep.subr.bf16.mxu0 0
        %4930 = vmatpush1.bf16.msra.mxu0 %v4913
        %4931 = vmatprep.subr.bf16.mxu0 0
        %4932 = vmatpush1.bf16.msra.mxu0 %v4914
        %4933 = vmatprep.subr.bf16.mxu0 0
        %4934 = vmatpush1.bf16.msra.mxu0 %v4915
        %4935 = vmatprep.subr.bf16.mxu0 0
        %4936 = vmatpush1.bf16.msra.mxu0 %v4916
        %4937 = vmatprep.subr.bf16.mxu0 0
        %4938 = vmatpush1.bf16.msra.mxu0 %v4917
        %4939 = vmatprep.subr.bf16.mxu0 0
        %4940 = vmatpush1.bf16.msra.mxu0 %v4918
        %4941 = vmatprep.subr.bf16.mxu0 0
        %4942 = vmatpush1.bf16.msra.mxu0 %v4919
        %4943 = vmatprep.subr.bf16.mxu0 0
        %4944 = vmatpush1.bf16.msra.mxu0 %v4920
        %4945 = vmatprep.subr.bf16.mxu0 0
        %4946 = vmatpush1.bf16.msra.mxu0 0
        %4947 = vmatprep.subr.bf16.mxu0 0
        %4948 = vmatpush1.bf16.msra.mxu0 0
        %4949 = vmatprep.subr.bf16.mxu0 0
        %4950 = vmatpush1.bf16.msra.mxu0 0
        %4951 = vmatprep.subr.bf16.mxu0 0
        %4952 = vmatpush1.bf16.msra.mxu0 0
        %4953 = vmatprep.subr.bf16.mxu0 0
        %4954 = vmatpush1.bf16.msra.mxu0 0
        %4955 = vmatprep.subr.bf16.mxu0 0
        %4956 = vmatpush1.bf16.msra.mxu0 0
        %4957 = vmatprep.subr.bf16.mxu0 0
        %4958 = vmatpush1.bf16.msra.mxu0 0
        %4959 = vmatprep.subr.bf16.mxu0 0
        %4960 = vmatpush1.bf16.msra.mxu0 0
        %4961 = vmatprep.mubr.bf16.mxu0 0
        %4962 = vmatmul.mubr.bf16.gmra.mrb[0].mxu0 %v4857
        %v4963 = vpop.f32.mrb[0].mxu0
        %v4964 = vadd.f32 %v4879, %v4963
        %v4965 = vpop.f32.mrb[0].mxu0
        %v4966 = vpop.f32.mrb[0].mxu0
        %v4967 = vpop.f32.mrb[0].mxu0
        %4968 = vdwg.mxu0
        %v4969 = vsel %vm2732, %v4964, -inf
        %4970 = vmax.xlane.f32.xlu0 %v4969
        %v4971 = vpop.xlane.xlu0 %4970
        %v4972 = vsub.f32 %v4964, %v4971
        %v4973 = vmul.f32 %v4972, 1.442695
        %v4974 = vpow.pop %v4973
        %v4975 = vsel %vm2732, %v4974, 0.0
        %4976 = vadd.xlane.f32.xlu0 %v4975
        %v4977 = vpop.xlane.xlu0 %4976
        %v4978 = vlog2.pop %v4977
        %v4979 = vmul.f32 %v4978, 0.6931472
        %v4980 = vsub.f32 %v4972, %v4979
        %s4981 = scalar_lea.vmem %s512, 4
        %4982 = vst [vmem:[%s4981] sm:$0xf] %v4980
        %v4987 = vcombine.low %v4204, %v4205
        %v4988 = vcombine.low %v4206, %v4207
        %v4990 = vunpack.c.l.s4 1966171168
        %v4991 = vunpack.c.0.s8 %v4990
        %v4992 = vlaneseq
        %v4993 = vshrl.u32 %v4992, 7
        %v4994 = vsub.s32 %v4991, %v4993
        %v4995 = vrot.slane %v4987, %v4994
        %v4997 = vunpack.c.l.s4 1966171168
        %v4998 = vunpack.c.0.s8 %v4997
        %v4999 = vlaneseq
        %v5000 = vshrl.u32 %v4999, 7
        %v5001 = vsub.s32 %v4998, %v5000
        %v5002 = vrot.slane %v4988, %v5001
        %v5003 = vcombine.low %v4995, %v5002
        %v5005 = vunpack.c.l.s4 1966171168
        %v5006 = vunpack.c.0.s8 %v5005
        %v5007 = vlaneseq
        %v5008 = vshrl.u32 %v5007, 7
        %v5009 = vsub.s32 %v5006, %v5008
        %v5010 = vrot.slane %v5003, %v5009
        %s5012 = scalar_lea.vmem %s518, 4
        %5013 = vst [vmem:[%s5012] sm:$0xf] %v5010
        %s5014 = sadd.s32 %s531, 2
        %s5015 = smul.u32 %s5014, 128
        %s5016 = sld [smem:[#allocation5 + %s5015]]
        %s5017 = scalar_lea.vmem %s5, %s5016
        %v5018 = vld [vmem:[%s5017] sm:$0x1]
        %s5019 = sadd.s32 %s5015, 1
        %s5020 = sld [smem:[#allocation5 + %s5019]]
        %s5021 = scalar_lea.vmem %s5, %s5020
        %v5022 = vld [vmem:[%s5021] sm:$0x1]
        %s5023 = sadd.s32 %s5015, 2
        %s5024 = sld [smem:[#allocation5 + %s5023]]
        %s5025 = scalar_lea.vmem %s5, %s5024
        %v5026 = vld [vmem:[%s5025] sm:$0x1]
        %s5027 = sadd.s32 %s5015, 3
        %s5028 = sld [smem:[#allocation5 + %s5027]]
        %s5029 = scalar_lea.vmem %s5, %s5028
        %v5030 = vld [vmem:[%s5029] sm:$0x1]
        %v5032 = vlaneseq
        %v5033 = vshrl.u32 %v5032, 7
        %v5034 = vsub.s32 0, %v5033
        %v5035 = vrot.slane %v5022, %v5034
        %v5038 = vlaneseq
        %v5039 = vshrl.u32 %v5038, 7
        %v5040 = vsub.s32 0, %v5039
        %v5041 = vrot.slane %v5026, %v5040
        %v5044 = vlaneseq
        %v5045 = vshrl.u32 %v5044, 7
        %v5046 = vsub.s32 0, %v5045
        %v5047 = vrot.slane %v5030, %v5046
        %v5049 = vsel %vm566, %v5018, %v5035
        %v5050 = vsel %vm568, %v5049, %v5041
        %v5051 = vsel %vm570, %v5050, %v5047
        %v5052 = vpack.c.bf16 %v5051, %v5051
        %v5053 = vld [vmem:[%s6] sm:$0xff]
        %v5054 = vld [vmem:[%s6 + $0x8] sm:$0xf]
        %v5055 = vld [vmem:[%s6 + $0xc] sm:$0xff]
        %v5056 = vld [vmem:[%s6 + $0x14] sm:$0xf]
        %v5057 = vld [vmem:[%s6 + $0x18] sm:$0xff]
        %v5058 = vld [vmem:[%s6 + $0x20] sm:$0xf]
        %v5059 = vld [vmem:[%s6 + $0x24] sm:$0xff]
        %v5060 = vld [vmem:[%s6 + $0x2c] sm:$0xf]
        %v5061 = vld [vmem:[%s6 + $0x30] sm:$0xff]
        %v5062 = vld [vmem:[%s6 + $0x38] sm:$0xf]
        %v5063 = vld [vmem:[%s6 + $0x3c] sm:$0xff]
        %v5064 = vld [vmem:[%s6 + $0x44] sm:$0xf]
        %v5065 = vld [vmem:[%s6 + $0x48] sm:$0xff]
        %v5066 = vld [vmem:[%s6 + $0x50] sm:$0xf]
        %v5067 = vld [vmem:[%s6 + $0x54] sm:$0xff]
        %v5068 = vld [vmem:[%s6 + $0x5c] sm:$0xf]
        %v5069 = vld [vmem:[%s6 + $0x60] sm:$0xff]
        %v5070 = vld [vmem:[%s6 + $0x68] sm:$0xf]
        %v5071 = vld [vmem:[%s6 + $0x6c] sm:$0xff]
        %v5072 = vld [vmem:[%s6 + $0x74] sm:$0xf]
        %v5073 = vld [vmem:[%s6 + $0x78] sm:$0xff]
        %v5074 = vld [vmem:[%s6 + $0x80] sm:$0xf]
        %v5075 = vld [vmem:[%s6 + $0x84] sm:$0xff]
        %v5076 = vld [vmem:[%s6 + $0x8c] sm:$0xf]
        %v5077 = vld [vmem:[%s6 + $0x90] sm:$0xff]
        %v5078 = vld [vmem:[%s6 + $0x98] sm:$0xf]
        %v5079 = vld [vmem:[%s6 + $0x9c] sm:$0xff]
        %v5080 = vld [vmem:[%s6 + $0xa4] sm:$0xf]
        %v5081 = vld [vmem:[%s6 + $0xa8] sm:$0xff]
        %v5082 = vld [vmem:[%s6 + $0xb0] sm:$0xf]
        %v5083 = vld [vmem:[%s6 + $0xb4] sm:$0xff]
        %v5084 = vld [vmem:[%s6 + $0xbc] sm:$0xf]
        %v5085 = vld [vmem:[%s6 + $0xc0] sm:$0xff]
        %v5086 = vld [vmem:[%s6 + $0xc8] sm:$0xf]
        %v5087 = vld [vmem:[%s6 + $0xcc] sm:$0xff]
        %v5088 = vld [vmem:[%s6 + $0xd4] sm:$0xf]
        %v5089 = vld [vmem:[%s6 + $0xd8] sm:$0xff]
        %v5090 = vld [vmem:[%s6 + $0xe0] sm:$0xf]
        %v5091 = vld [vmem:[%s6 + $0xe4] sm:$0xff]
        %v5092 = vld [vmem:[%s6 + $0xec] sm:$0xf]
        %v5093 = vld [vmem:[%s6 + $0xf0] sm:$0xff]
        %v5094 = vld [vmem:[%s6 + $0xf8] sm:$0xf]
        %v5095 = vld [vmem:[%s6 + $0xfc] sm:$0xff]
        %v5096 = vld [vmem:[%s6 + $0x104] sm:$0xf]
        %v5097 = vld [vmem:[%s6 + $0x108] sm:$0xff]
        %v5098 = vld [vmem:[%s6 + $0x110] sm:$0xf]
        %v5099 = vld [vmem:[%s6 + $0x114] sm:$0xff]
        %v5100 = vld [vmem:[%s6 + $0x11c] sm:$0xf]
        %v5101 = vld [vmem:[%s6 + $0x120] sm:$0xff]
        %v5102 = vld [vmem:[%s6 + $0x128] sm:$0xf]
        %v5103 = vld [vmem:[%s6 + $0x12c] sm:$0xff]
        %v5104 = vld [vmem:[%s6 + $0x134] sm:$0xf]
        %v5105 = vld [vmem:[%s6 + $0x138] sm:$0xff]
        %v5106 = vld [vmem:[%s6 + $0x140] sm:$0xf]
        %v5107 = vld [vmem:[%s6 + $0x144] sm:$0xff]
        %v5108 = vld [vmem:[%s6 + $0x14c] sm:$0xf]
        %v5109 = vld [vmem:[%s6 + $0x150] sm:$0xff]
        %v5110 = vld [vmem:[%s6 + $0x158] sm:$0xf]
        %v5111 = vld [vmem:[%s6 + $0x15c] sm:$0xff]
        %v5112 = vld [vmem:[%s6 + $0x164] sm:$0xf]
        %v5113 = vld [vmem:[%s6 + $0x168] sm:$0xff]
        %v5114 = vld [vmem:[%s6 + $0x170] sm:$0xf]
        %v5115 = vld [vmem:[%s6 + $0x174] sm:$0xff]
        %v5116 = vld [vmem:[%s6 + $0x17c] sm:$0xf]
        %v5149 = vunpack.c.l.b16 %v5085
        %v5150 = vunpack.c.h.b16 %v5085
        %v5151 = vunpack.c.l.b16 %v5086
        %v5152 = vunpack.c.l.b16 %v5087
        %v5153 = vunpack.c.h.b16 %v5087
        %v5154 = vunpack.c.l.b16 %v5088
        %v5155 = vunpack.c.l.b16 %v5089
        %v5156 = vunpack.c.h.b16 %v5089
        %v5157 = vunpack.c.l.b16 %v5090
        %v5158 = vunpack.c.l.b16 %v5091
        %v5159 = vunpack.c.h.b16 %v5091
        %v5160 = vunpack.c.l.b16 %v5092
        %v5161 = vunpack.c.l.b16 %v5093
        %v5162 = vunpack.c.h.b16 %v5093
        %v5163 = vunpack.c.l.b16 %v5094
        %v5164 = vunpack.c.l.b16 %v5095
        %v5165 = vunpack.c.h.b16 %v5095
        %v5166 = vunpack.c.l.b16 %v5096
        %v5167 = vunpack.c.l.b16 %v5097
        %v5168 = vunpack.c.h.b16 %v5097
        %v5169 = vunpack.c.l.b16 %v5098
        %v5170 = vunpack.c.l.b16 %v5099
        %v5171 = vunpack.c.h.b16 %v5099
        %v5172 = vunpack.c.l.b16 %v5100
        %v5173 = vunpack.c.l.b16 %v5101
        %v5174 = vunpack.c.h.b16 %v5101
        %v5175 = vunpack.c.l.b16 %v5102
        %v5176 = vunpack.c.l.b16 %v5103
        %v5177 = vunpack.c.h.b16 %v5103
        %v5178 = vunpack.c.l.b16 %v5104
        %v5179 = vunpack.c.l.b16 %v5105
        %v5180 = vunpack.c.h.b16 %v5105
        %v5181 = vunpack.c.l.b16 %v5106
        %v5182 = vunpack.c.l.b16 %v5107
        %v5183 = vunpack.c.h.b16 %v5107
        %v5184 = vunpack.c.l.b16 %v5108
        %v5185 = vunpack.c.l.b16 %v5109
        %v5186 = vunpack.c.h.b16 %v5109
        %v5187 = vunpack.c.l.b16 %v5110
        %v5188 = vunpack.c.l.b16 %v5111
        %v5189 = vunpack.c.h.b16 %v5111
        %v5190 = vunpack.c.l.b16 %v5112
        %v5191 = vunpack.c.l.b16 %v5113
        %v5192 = vunpack.c.h.b16 %v5113
        %v5193 = vunpack.c.l.b16 %v5114
        %v5194 = vunpack.c.l.b16 %v5115
        %v5195 = vunpack.c.h.b16 %v5115
        %v5196 = vunpack.c.l.b16 %v5116
        %v5197 = vpack.c.b16 %v5152, %v5149
        %v5198 = vpack.c.b16 %v5153, %v5150
        %v5199 = vpack.c.b16 %v5154, %v5151
        %v5200 = vpack.c.b16 %v5158, %v5155
        %v5201 = vpack.c.b16 %v5159, %v5156
        %v5202 = vpack.c.b16 %v5160, %v5157
        %v5203 = vpack.c.b16 %v5164, %v5161
        %v5204 = vpack.c.b16 %v5165, %v5162
        %v5205 = vpack.c.b16 %v5166, %v5163
        %v5206 = vpack.c.b16 %v5170, %v5167
        %v5207 = vpack.c.b16 %v5171, %v5168
        %v5208 = vpack.c.b16 %v5172, %v5169
        %v5209 = vpack.c.b16 %v5176, %v5173
        %v5210 = vpack.c.b16 %v5177, %v5174
        %v5211 = vpack.c.b16 %v5178, %v5175
        %v5212 = vpack.c.b16 %v5182, %v5179
        %v5213 = vpack.c.b16 %v5183, %v5180
        %v5214 = vpack.c.b16 %v5184, %v5181
        %v5215 = vpack.c.b16 %v5188, %v5185
        %v5216 = vpack.c.b16 %v5189, %v5186
        %v5217 = vpack.c.b16 %v5190, %v5187
        %v5218 = vpack.c.b16 %v5194, %v5191
        %v5219 = vpack.c.b16 %v5195, %v5192
        %v5220 = vpack.c.b16 %v5196, %v5193
        %5245 = vmatprep.subr.bf16.mxu0 %v5198
        %5246 = vmatpush1.bf16.msra.mxu0 %v5197
        %5247 = vmatprep.subr.bf16.mxu0 %v5201
        %5248 = vmatpush1.bf16.msra.mxu0 %v5200
        %5249 = vmatprep.subr.bf16.mxu0 %v5204
        %5250 = vmatpush1.bf16.msra.mxu0 %v5203
        %5251 = vmatprep.subr.bf16.mxu0 %v5207
        %5252 = vmatpush1.bf16.msra.mxu0 %v5206
        %5253 = vmatprep.subr.bf16.mxu0 %v5210
        %5254 = vmatpush1.bf16.msra.mxu0 %v5209
        %5255 = vmatprep.subr.bf16.mxu0 %v5213
        %5256 = vmatpush1.bf16.msra.mxu0 %v5212
        %5257 = vmatprep.subr.bf16.mxu0 %v5216
        %5258 = vmatpush1.bf16.msra.mxu0 %v5215
        %5259 = vmatprep.subr.bf16.mxu0 %v5219
        %5260 = vmatpush1.bf16.msra.mxu0 %v5218
        %5261 = vmatprep.subr.bf16.mxu0 0
        %5262 = vmatpush1.bf16.msra.mxu0 0
        %5263 = vmatprep.subr.bf16.mxu0 0
        %5264 = vmatpush1.bf16.msra.mxu0 0
        %5265 = vmatprep.subr.bf16.mxu0 0
        %5266 = vmatpush1.bf16.msra.mxu0 0
        %5267 = vmatprep.subr.bf16.mxu0 0
        %5268 = vmatpush1.bf16.msra.mxu0 0
        %5269 = vmatprep.subr.bf16.mxu0 0
        %5270 = vmatpush1.bf16.msra.mxu0 0
        %5271 = vmatprep.subr.bf16.mxu0 0
        %5272 = vmatpush1.bf16.msra.mxu0 0
        %5273 = vmatprep.subr.bf16.mxu0 0
        %5274 = vmatpush1.bf16.msra.mxu0 0
        %5275 = vmatprep.subr.bf16.mxu0 0
        %5276 = vmatpush1.bf16.msra.mxu0 0
        %5277 = vmatprep.mubr.bf16.mxu0 0
        %5278 = vmatmul.mubr.bf16.gmra.mrb[0].mxu0 %v4857
        %v5279 = vpop.f32.mrb[0].mxu0
        %v5280 = vadd.f32 0.0, %v5279
        %v5281 = vpop.f32.mrb[0].mxu0
        %v5282 = vadd.f32 0.0, %v5281
        %v5283 = vpop.f32.mrb[0].mxu0
        %v5284 = vpop.f32.mrb[0].mxu0
        %5285 = vdwg.mxu0
        %5286 = vmatprep.subr.bf16.mxu0 0
        %5287 = vmatpush1.bf16.msra.mxu0 %v5199
        %5288 = vmatprep.subr.bf16.mxu0 0
        %5289 = vmatpush1.bf16.msra.mxu0 %v5202
        %5290 = vmatprep.subr.bf16.mxu0 0
        %5291 = vmatpush1.bf16.msra.mxu0 %v5205
        %5292 = vmatprep.subr.bf16.mxu0 0
        %5293 = vmatpush1.bf16.msra.mxu0 %v5208
        %5294 = vmatprep.subr.bf16.mxu0 0
        %5295 = vmatpush1.bf16.msra.mxu0 %v5211
        %5296 = vmatprep.subr.bf16.mxu0 0
        %5297 = vmatpush1.bf16.msra.mxu0 %v5214
        %5298 = vmatprep.subr.bf16.mxu0 0
        %5299 = vmatpush1.bf16.msra.mxu0 %v5217
        %5300 = vmatprep.subr.bf16.mxu0 0
        %5301 = vmatpush1.bf16.msra.mxu0 %v5220
        %5302 = vmatprep.subr.bf16.mxu0 0
        %5303 = vmatpush1.bf16.msra.mxu0 0
        %5304 = vmatprep.subr.bf16.mxu0 0
        %5305 = vmatpush1.bf16.msra.mxu0 0
        %5306 = vmatprep.subr.bf16.mxu0 0
        %5307 = vmatpush1.bf16.msra.mxu0 0
        %5308 = vmatprep.subr.bf16.mxu0 0
        %5309 = vmatpush1.bf16.msra.mxu0 0
        %5310 = vmatprep.subr.bf16.mxu0 0
        %5311 = vmatpush1.bf16.msra.mxu0 0
        %5312 = vmatprep.subr.bf16.mxu0 0
        %5313 = vmatpush1.bf16.msra.mxu0 0
        %5314 = vmatprep.subr.bf16.mxu0 0
        %5315 = vmatpush1.bf16.msra.mxu0 0
        %5316 = vmatprep.subr.bf16.mxu0 0
        %5317 = vmatpush1.bf16.msra.mxu0 0
        %5318 = vmatprep.mubr.bf16.mxu0 0
        %5319 = vmatmul.mubr.bf16.gmra.mrb[0].mxu0 %v4857
        %v5320 = vpop.f32.mrb[0].mxu0
        %v5321 = vadd.f32 0.0, %v5320
        %v5322 = vpop.f32.mrb[0].mxu0
        %v5323 = vpop.f32.mrb[0].mxu0
        %v5324 = vpop.f32.mrb[0].mxu0
        %5325 = vdwg.mxu0
        %v5358 = vunpack.c.l.b16 %v5053
        %v5359 = vunpack.c.h.b16 %v5053
        %v5360 = vunpack.c.l.b16 %v5054
        %v5361 = vunpack.c.l.b16 %v5055
        %v5362 = vunpack.c.h.b16 %v5055
        %v5363 = vunpack.c.l.b16 %v5056
        %v5364 = vunpack.c.l.b16 %v5057
        %v5365 = vunpack.c.h.b16 %v5057
        %v5366 = vunpack.c.l.b16 %v5058
        %v5367 = vunpack.c.l.b16 %v5059
        %v5368 = vunpack.c.h.b16 %v5059
        %v5369 = vunpack.c.l.b16 %v5060
        %v5370 = vunpack.c.l.b16 %v5061
        %v5371 = vunpack.c.h.b16 %v5061
        %v5372 = vunpack.c.l.b16 %v5062
        %v5373 = vunpack.c.l.b16 %v5063
        %v5374 = vunpack.c.h.b16 %v5063
        %v5375 = vunpack.c.l.b16 %v5064
        %v5376 = vunpack.c.l.b16 %v5065
        %v5377 = vunpack.c.h.b16 %v5065
        %v5378 = vunpack.c.l.b16 %v5066
        %v5379 = vunpack.c.l.b16 %v5067
        %v5380 = vunpack.c.h.b16 %v5067
        %v5381 = vunpack.c.l.b16 %v5068
        %v5382 = vunpack.c.l.b16 %v5069
        %v5383 = vunpack.c.h.b16 %v5069
        %v5384 = vunpack.c.l.b16 %v5070
        %v5385 = vunpack.c.l.b16 %v5071
        %v5386 = vunpack.c.h.b16 %v5071
        %v5387 = vunpack.c.l.b16 %v5072
        %v5388 = vunpack.c.l.b16 %v5073
        %v5389 = vunpack.c.h.b16 %v5073
        %v5390 = vunpack.c.l.b16 %v5074
        %v5391 = vunpack.c.l.b16 %v5075
        %v5392 = vunpack.c.h.b16 %v5075
        %v5393 = vunpack.c.l.b16 %v5076
        %v5394 = vunpack.c.l.b16 %v5077
        %v5395 = vunpack.c.h.b16 %v5077
        %v5396 = vunpack.c.l.b16 %v5078
        %v5397 = vunpack.c.l.b16 %v5079
        %v5398 = vunpack.c.h.b16 %v5079
        %v5399 = vunpack.c.l.b16 %v5080
        %v5400 = vunpack.c.l.b16 %v5081
        %v5401 = vunpack.c.h.b16 %v5081
        %v5402 = vunpack.c.l.b16 %v5082
        %v5403 = vunpack.c.l.b16 %v5083
        %v5404 = vunpack.c.h.b16 %v5083
        %v5405 = vunpack.c.l.b16 %v5084
        %v5406 = vpack.c.b16 %v5361, %v5358
        %v5407 = vpack.c.b16 %v5362, %v5359
        %v5408 = vpack.c.b16 %v5363, %v5360
        %v5409 = vpack.c.b16 %v5367, %v5364
        %v5410 = vpack.c.b16 %v5368, %v5365
        %v5411 = vpack.c.b16 %v5369, %v5366
        %v5412 = vpack.c.b16 %v5373, %v5370
        %v5413 = vpack.c.b16 %v5374, %v5371
        %v5414 = vpack.c.b16 %v5375, %v5372
        %v5415 = vpack.c.b16 %v5379, %v5376
        %v5416 = vpack.c.b16 %v5380, %v5377
        %v5417 = vpack.c.b16 %v5381, %v5378
        %v5418 = vpack.c.b16 %v5385, %v5382
        %v5419 = vpack.c.b16 %v5386, %v5383
        %v5420 = vpack.c.b16 %v5387, %v5384
        %v5421 = vpack.c.b16 %v5391, %v5388
        %v5422 = vpack.c.b16 %v5392, %v5389
        %v5423 = vpack.c.b16 %v5393, %v5390
        %v5424 = vpack.c.b16 %v5397, %v5394
        %v5425 = vpack.c.b16 %v5398, %v5395
        %v5426 = vpack.c.b16 %v5399, %v5396
        %v5427 = vpack.c.b16 %v5403, %v5400
        %v5428 = vpack.c.b16 %v5404, %v5401
        %v5429 = vpack.c.b16 %v5405, %v5402
        %5454 = vmatprep.subr.bf16.mxu0 %v5407
        %5455 = vmatpush1.bf16.msra.mxu0 %v5406
        %5456 = vmatprep.subr.bf16.mxu0 %v5410
        %5457 = vmatpush1.bf16.msra.mxu0 %v5409
        %5458 = vmatprep.subr.bf16.mxu0 %v5413
        %5459 = vmatpush1.bf16.msra.mxu0 %v5412
        %5460 = vmatprep.subr.bf16.mxu0 %v5416
        %5461 = vmatpush1.bf16.msra.mxu0 %v5415
        %5462 = vmatprep.subr.bf16.mxu0 %v5419
        %5463 = vmatpush1.bf16.msra.mxu0 %v5418
        %5464 = vmatprep.subr.bf16.mxu0 %v5422
        %5465 = vmatpush1.bf16.msra.mxu0 %v5421
        %5466 = vmatprep.subr.bf16.mxu0 %v5425
        %5467 = vmatpush1.bf16.msra.mxu0 %v5424
        %5468 = vmatprep.subr.bf16.mxu0 %v5428
        %5469 = vmatpush1.bf16.msra.mxu0 %v5427
        %5470 = vmatprep.subr.bf16.mxu0 0
        %5471 = vmatpush1.bf16.msra.mxu0 0
        %5472 = vmatprep.subr.bf16.mxu0 0
        %5473 = vmatpush1.bf16.msra.mxu0 0
        %5474 = vmatprep.subr.bf16.mxu0 0
        %5475 = vmatpush1.bf16.msra.mxu0 0
        %5476 = vmatprep.subr.bf16.mxu0 0
        %5477 = vmatpush1.bf16.msra.mxu0 0
        %5478 = vmatprep.subr.bf16.mxu0 0
        %5479 = vmatpush1.bf16.msra.mxu0 0
        %5480 = vmatprep.subr.bf16.mxu0 0
        %5481 = vmatpush1.bf16.msra.mxu0 0
        %5482 = vmatprep.subr.bf16.mxu0 0
        %5483 = vmatpush1.bf16.msra.mxu0 0
        %5484 = vmatprep.subr.bf16.mxu0 0
        %5485 = vmatpush1.bf16.msra.mxu0 0
        %5486 = vmatprep.mubr.bf16.mxu0 0
        %5487 = vmatmul.mubr.bf16.gmra.mrb[0].mxu0 %v5052
        %v5488 = vpop.f32.mrb[0].mxu0
        %v5489 = vadd.f32 %v5280, %v5488
        %v5490 = vpop.f32.mrb[0].mxu0
        %v5491 = vadd.f32 %v5282, %v5490
        %v5492 = vpop.f32.mrb[0].mxu0
        %v5493 = vpop.f32.mrb[0].mxu0
        %5494 = vdwg.mxu0
        %5495 = vmatprep.subr.bf16.mxu0 0
        %5496 = vmatpush1.bf16.msra.mxu0 %v5408
        %5497 = vmatprep.subr.bf16.mxu0 0
        %5498 = vmatpush1.bf16.msra.mxu0 %v5411
        %5499 = vmatprep.subr.bf16.mxu0 0
        %5500 = vmatpush1.bf16.msra.mxu0 %v5414
        %5501 = vmatprep.subr.bf16.mxu0 0
        %5502 = vmatpush1.bf16.msra.mxu0 %v5417
        %5503 = vmatprep.subr.bf16.mxu0 0
        %5504 = vmatpush1.bf16.msra.mxu0 %v5420
        %5505 = vmatprep.subr.bf16.mxu0 0
        %5506 = vmatpush1.bf16.msra.mxu0 %v5423
        %5507 = vmatprep.subr.bf16.mxu0 0
        %5508 = vmatpush1.bf16.msra.mxu0 %v5426
        %5509 = vmatprep.subr.bf16.mxu0 0
        %5510 = vmatpush1.bf16.msra.mxu0 %v5429
        %5511 = vmatprep.subr.bf16.mxu0 0
        %5512 = vmatpush1.bf16.msra.mxu0 0
        %5513 = vmatprep.subr.bf16.mxu0 0
        %5514 = vmatpush1.bf16.msra.mxu0 0
        %5515 = vmatprep.subr.bf16.mxu0 0
        %5516 = vmatpush1.bf16.msra.mxu0 0
        %5517 = vmatprep.subr.bf16.mxu0 0
        %5518 = vmatpush1.bf16.msra.mxu0 0
        %5519 = vmatprep.subr.bf16.mxu0 0
        %5520 = vmatpush1.bf16.msra.mxu0 0
        %5521 = vmatprep.subr.bf16.mxu0 0
        %5522 = vmatpush1.bf16.msra.mxu0 0
        %5523 = vmatprep.subr.bf16.mxu0 0
        %5524 = vmatpush1.bf16.msra.mxu0 0
        %5525 = vmatprep.subr.bf16.mxu0 0
        %5526 = vmatpush1.bf16.msra.mxu0 0
        %5527 = vmatprep.mubr.bf16.mxu0 0
        %5528 = vmatmul.mubr.bf16.gmra.mrb[0].mxu0 %v5052
        %v5529 = vpop.f32.mrb[0].mxu0
        %v5530 = vadd.f32 %v5321, %v5529
        %v5531 = vpop.f32.mrb[0].mxu0
        %v5532 = vpop.f32.mrb[0].mxu0
        %v5533 = vpop.f32.mrb[0].mxu0
        %5534 = vdwg.mxu0
        %v5535 = vld [vmem:[%s8] sm:$0x7]
        %v5537 = vlaneseq
        %v5538 = vshrl.u32 %v5537, 7
        %v5539 = vsub.s32 0, %v5538
        %v5540 = vrot.slane %v5535, %v5539
        %v5541 = vlaneseq
        %v5542 = vshrl.u32 %v5541, 7
        %v5543 = vsub.s32 1, %v5542
        %v5544 = vrot.slane %v5535, %v5543
        %v5545 = vlaneseq
        %v5546 = vshrl.u32 %v5545, 7
        %v5547 = vsub.s32 2, %v5546
        %v5548 = vrot.slane %v5535, %v5547
        %v5552 = vadd.f32 %v5489, %v5540
        %v5553 = vadd.f32 %v5491, %v5544
        %v5554 = vadd.f32 %v5530, %v5548
        %v5555 = vld [vmem:[%s7] sm:$0xff]
        %v5556 = vld [vmem:[%s7 + $0x8] sm:$0xf]
        %v5557 = vld [vmem:[%s7 + $0xc] sm:$0xff]
        %v5558 = vld [vmem:[%s7 + $0x14] sm:$0xf]
        %v5559 = vld [vmem:[%s7 + $0x18] sm:$0xff]
        %v5560 = vld [vmem:[%s7 + $0x20] sm:$0xf]
        %v5561 = vld [vmem:[%s7 + $0x24] sm:$0xff]
        %v5562 = vld [vmem:[%s7 + $0x2c] sm:$0xf]
        %v5563 = vld [vmem:[%s7 + $0x30] sm:$0xff]
        %v5564 = vld [vmem:[%s7 + $0x38] sm:$0xf]
        %v5565 = vld [vmem:[%s7 + $0x3c] sm:$0xff]
        %v5566 = vld [vmem:[%s7 + $0x44] sm:$0xf]
        %v5567 = vld [vmem:[%s7 + $0x48] sm:$0xff]
        %v5568 = vld [vmem:[%s7 + $0x50] sm:$0xf]
        %v5569 = vld [vmem:[%s7 + $0x54] sm:$0xff]
        %v5570 = vld [vmem:[%s7 + $0x5c] sm:$0xf]
        %v5571 = vld [vmem:[%s7 + $0x60] sm:$0xff]
        %v5572 = vld [vmem:[%s7 + $0x68] sm:$0xf]
        %v5573 = vld [vmem:[%s7 + $0x6c] sm:$0xff]
        %v5574 = vld [vmem:[%s7 + $0x74] sm:$0xf]
        %v5575 = vld [vmem:[%s7 + $0x78] sm:$0xff]
        %v5576 = vld [vmem:[%s7 + $0x80] sm:$0xf]
        %v5577 = vld [vmem:[%s7 + $0x84] sm:$0xff]
        %v5578 = vld [vmem:[%s7 + $0x8c] sm:$0xf]
        %v5579 = vld [vmem:[%s7 + $0x90] sm:$0xff]
        %v5580 = vld [vmem:[%s7 + $0x98] sm:$0xf]
        %v5581 = vld [vmem:[%s7 + $0x9c] sm:$0xff]
        %v5582 = vld [vmem:[%s7 + $0xa4] sm:$0xf]
        %v5583 = vld [vmem:[%s7 + $0xa8] sm:$0xff]
        %v5584 = vld [vmem:[%s7 + $0xb0] sm:$0xf]
        %v5585 = vld [vmem:[%s7 + $0xb4] sm:$0xff]
        %v5586 = vld [vmem:[%s7 + $0xbc] sm:$0xf]
        %v5587 = vld [vmem:[%s9] sm:$0x7]
        %v5589 = vlaneseq
        %v5590 = vshrl.u32 %v5589, 7
        %v5591 = vsub.s32 0, %v5590
        %v5592 = vrot.slane %v5587, %v5591
        %v5593 = vlaneseq
        %v5594 = vshrl.u32 %v5593, 7
        %v5595 = vsub.s32 1, %v5594
        %v5596 = vrot.slane %v5587, %v5595
        %v5597 = vlaneseq
        %v5598 = vshrl.u32 %v5597, 7
        %v5599 = vsub.s32 2, %v5598
        %v5600 = vrot.slane %v5587, %v5599
        %v5636 = vunpack.c.l.b16 %v5555
        %v5637 = vunpack.c.h.b16 %v5555
        %v5638 = vunpack.c.l.b16 %v5556
        %v5639 = vunpack.c.l.b16 %v5557
        %v5640 = vunpack.c.h.b16 %v5557
        %v5641 = vunpack.c.l.b16 %v5558
        %v5642 = vunpack.c.l.b16 %v5559
        %v5643 = vunpack.c.h.b16 %v5559
        %v5644 = vunpack.c.l.b16 %v5560
        %v5645 = vunpack.c.l.b16 %v5561
        %v5646 = vunpack.c.h.b16 %v5561
        %v5647 = vunpack.c.l.b16 %v5562
        %v5648 = vunpack.c.l.b16 %v5563
        %v5649 = vunpack.c.h.b16 %v5563
        %v5650 = vunpack.c.l.b16 %v5564
        %v5651 = vunpack.c.l.b16 %v5565
        %v5652 = vunpack.c.h.b16 %v5565
        %v5653 = vunpack.c.l.b16 %v5566
        %v5654 = vunpack.c.l.b16 %v5567
        %v5655 = vunpack.c.h.b16 %v5567
        %v5656 = vunpack.c.l.b16 %v5568
        %v5657 = vunpack.c.l.b16 %v5569
        %v5658 = vunpack.c.h.b16 %v5569
        %v5659 = vunpack.c.l.b16 %v5570
        %v5660 = vunpack.c.l.b16 %v5571
        %v5661 = vunpack.c.h.b16 %v5571
        %v5662 = vunpack.c.l.b16 %v5572
        %v5663 = vunpack.c.l.b16 %v5573
        %v5664 = vunpack.c.h.b16 %v5573
        %v5665 = vunpack.c.l.b16 %v5574
        %v5666 = vunpack.c.l.b16 %v5575
        %v5667 = vunpack.c.h.b16 %v5575
        %v5668 = vunpack.c.l.b16 %v5576
        %v5669 = vunpack.c.l.b16 %v5577
        %v5670 = vunpack.c.h.b16 %v5577
        %v5671 = vunpack.c.l.b16 %v5578
        %v5672 = vunpack.c.l.b16 %v5579
        %v5673 = vunpack.c.h.b16 %v5579
        %v5674 = vunpack.c.l.b16 %v5580
        %v5675 = vunpack.c.l.b16 %v5581
        %v5676 = vunpack.c.h.b16 %v5581
        %v5677 = vunpack.c.l.b16 %v5582
        %v5678 = vunpack.c.l.b16 %v5583
        %v5679 = vunpack.c.h.b16 %v5583
        %v5680 = vunpack.c.l.b16 %v5584
        %v5681 = vunpack.c.l.b16 %v5585
        %v5682 = vunpack.c.h.b16 %v5585
        %v5683 = vunpack.c.l.b16 %v5586
        %v5684 = vpack.c.b16 %v5639, %v5636
        %v5685 = vpack.c.b16 %v5640, %v5637
        %v5686 = vpack.c.b16 %v5641, %v5638
        %v5687 = vpack.c.b16 %v5645, %v5642
        %v5688 = vpack.c.b16 %v5646, %v5643
        %v5689 = vpack.c.b16 %v5647, %v5644
        %v5690 = vpack.c.b16 %v5651, %v5648
        %v5691 = vpack.c.b16 %v5652, %v5649
        %v5692 = vpack.c.b16 %v5653, %v5650
        %v5693 = vpack.c.b16 %v5657, %v5654
        %v5694 = vpack.c.b16 %v5658, %v5655
        %v5695 = vpack.c.b16 %v5659, %v5656
        %v5696 = vpack.c.b16 %v5663, %v5660
        %v5697 = vpack.c.b16 %v5664, %v5661
        %v5698 = vpack.c.b16 %v5665, %v5662
        %v5699 = vpack.c.b16 %v5669, %v5666
        %v5700 = vpack.c.b16 %v5670, %v5667
        %v5701 = vpack.c.b16 %v5671, %v5668
        %v5702 = vpack.c.b16 %v5675, %v5672
        %v5703 = vpack.c.b16 %v5676, %v5673
        %v5704 = vpack.c.b16 %v5677, %v5674
        %v5705 = vpack.c.b16 %v5681, %v5678
        %v5706 = vpack.c.b16 %v5682, %v5679
        %v5707 = vpack.c.b16 %v5683, %v5680
        %5732 = vmatprep.subr.bf16.mxu0 %v5685
        %5733 = vmatpush1.bf16.msra.mxu0 %v5684
        %5734 = vmatprep.subr.bf16.mxu0 %v5688
        %5735 = vmatpush1.bf16.msra.mxu0 %v5687
        %5736 = vmatprep.subr.bf16.mxu0 %v5691
        %5737 = vmatpush1.bf16.msra.mxu0 %v5690
        %5738 = vmatprep.subr.bf16.mxu0 %v5694
        %5739 = vmatpush1.bf16.msra.mxu0 %v5693
        %5740 = vmatprep.subr.bf16.mxu0 %v5697
        %5741 = vmatpush1.bf16.msra.mxu0 %v5696
        %5742 = vmatprep.subr.bf16.mxu0 %v5700
        %5743 = vmatpush1.bf16.msra.mxu0 %v5699
        %5744 = vmatprep.subr.bf16.mxu0 %v5703
        %5745 = vmatpush1.bf16.msra.mxu0 %v5702
        %5746 = vmatprep.subr.bf16.mxu0 %v5706
        %5747 = vmatpush1.bf16.msra.mxu0 %v5705
        %5748 = vmatprep.subr.bf16.mxu0 0
        %5749 = vmatpush1.bf16.msra.mxu0 0
        %5750 = vmatprep.subr.bf16.mxu0 0
        %5751 = vmatpush1.bf16.msra.mxu0 0
        %5752 = vmatprep.subr.bf16.mxu0 0
        %5753 = vmatpush1.bf16.msra.mxu0 0
        %5754 = vmatprep.subr.bf16.mxu0 0
        %5755 = vmatpush1.bf16.msra.mxu0 0
        %5756 = vmatprep.subr.bf16.mxu0 0
        %5757 = vmatpush1.bf16.msra.mxu0 0
        %5758 = vmatprep.subr.bf16.mxu0 0
        %5759 = vmatpush1.bf16.msra.mxu0 0
        %5760 = vmatprep.subr.bf16.mxu0 0
        %5761 = vmatpush1.bf16.msra.mxu0 0
        %5762 = vmatprep.subr.bf16.mxu0 0
        %5763 = vmatpush1.bf16.msra.mxu0 0
        %5764 = vmatprep.mubr.bf16.mxu0 0
        %5765 = vmatmul.mubr.bf16.gmra.mrb[0].mxu0 %v3594
        %v5766 = vpop.f32.mrb[0].mxu0
        %v5767 = vadd.f32 %v5592, %v5766
        %v5768 = vpop.f32.mrb[0].mxu0
        %v5769 = vadd.f32 %v5596, %v5768
        %v5770 = vpop.f32.mrb[0].mxu0
        %v5771 = vpop.f32.mrb[0].mxu0
        %5772 = vdwg.mxu0
        %5773 = vmatprep.subr.bf16.mxu0 0
        %5774 = vmatpush1.bf16.msra.mxu0 %v5686
        %5775 = vmatprep.subr.bf16.mxu0 0
        %5776 = vmatpush1.bf16.msra.mxu0 %v5689
        %5777 = vmatprep.subr.bf16.mxu0 0
        %5778 = vmatpush1.bf16.msra.mxu0 %v5692
        %5779 = vmatprep.subr.bf16.mxu0 0
        %5780 = vmatpush1.bf16.msra.mxu0 %v5695
        %5781 = vmatprep.subr.bf16.mxu0 0
        %5782 = vmatpush1.bf16.msra.mxu0 %v5698
        %5783 = vmatprep.subr.bf16.mxu0 0
        %5784 = vmatpush1.bf16.msra.mxu0 %v5701
        %5785 = vmatprep.subr.bf16.mxu0 0
        %5786 = vmatpush1.bf16.msra.mxu0 %v5704
        %5787 = vmatprep.subr.bf16.mxu0 0
        %5788 = vmatpush1.bf16.msra.mxu0 %v5707
        %5789 = vmatprep.subr.bf16.mxu0 0
        %5790 = vmatpush1.bf16.msra.mxu0 0
        %5791 = vmatprep.subr.bf16.mxu0 0
        %5792 = vmatpush1.bf16.msra.mxu0 0
        %5793 = vmatprep.subr.bf16.mxu0 0
        %5794 = vmatpush1.bf16.msra.mxu0 0
        %5795 = vmatprep.subr.bf16.mxu0 0
        %5796 = vmatpush1.bf16.msra.mxu0 0
        %5797 = vmatprep.subr.bf16.mxu0 0
        %5798 = vmatpush1.bf16.msra.mxu0 0
        %5799 = vmatprep.subr.bf16.mxu0 0
        %5800 = vmatpush1.bf16.msra.mxu0 0
        %5801 = vmatprep.subr.bf16.mxu0 0
        %5802 = vmatpush1.bf16.msra.mxu0 0
        %5803 = vmatprep.subr.bf16.mxu0 0
        %5804 = vmatpush1.bf16.msra.mxu0 0
        %5805 = vmatprep.mubr.bf16.mxu0 0
        %5806 = vmatmul.mubr.bf16.gmra.mrb[0].mxu0 %v3594
        %v5807 = vpop.f32.mrb[0].mxu0
        %v5808 = vadd.f32 %v5600, %v5807
        %v5809 = vpop.f32.mrb[0].mxu0
        %v5810 = vpop.f32.mrb[0].mxu0
        %v5811 = vpop.f32.mrb[0].mxu0
        %5812 = vdwg.mxu0
        %v5813 = vadd.f32 %v5552, %v5767
        %v5814 = vsub.f32 0.0, %v5813
        %v5815 = vmul.f32 %v5814, 1.442695
        %v5816 = vpow.pop %v5815
        %v5817 = vadd.f32 %v5816, 1.0
        %v5818 = vrcp.pop %v5817
        %v5819 = vadd.f32 %v5553, %v5769
        %v5820 = vsub.f32 0.0, %v5819
        %v5821 = vmul.f32 %v5820, 1.442695
        %v5822 = vpow.pop %v5821
        %v5823 = vadd.f32 %v5822, 1.0
        %v5824 = vrcp.pop %v5823
        %v5825 = vmul.f32 %v5818, %v5808
        %v5826 = vadd.f32 %v5554, %v5825
        %v5827 = vtanh.pop %v5826
        %v5828 = vsub.f32 1.0, %v5824
        %v5829 = vmul.f32 %v5828, %v5827
        %v5830 = vmul.f32 %v5824, %v3593
        %v5831 = vadd.f32 %v5829, %v5830
        %v5832 = vpack.c.bf16 %v5831, %v5831
        %v5833 = vld [vmem:[%s10] sm:$0xf]
        %v5834 = vld [vmem:[%s10 + $0x4] sm:$0xf]
        %v5835 = vld [vmem:[%s10 + $0x8] sm:$0xf]
        %v5836 = vld [vmem:[%s10 + $0xc] sm:$0xf]
        %v5837 = vld [vmem:[%s10 + $0x10] sm:$0xf]
        %v5838 = vld [vmem:[%s10 + $0x14] sm:$0xf]
        %v5839 = vld [vmem:[%s10 + $0x18] sm:$0xf]
        %v5840 = vld [vmem:[%s10 + $0x1c] sm:$0xf]
        %v5841 = vld [vmem:[%s10 + $0x20] sm:$0xf]
        %v5842 = vld [vmem:[%s10 + $0x24] sm:$0xf]
        %v5843 = vld [vmem:[%s10 + $0x28] sm:$0xf]
        %v5844 = vld [vmem:[%s10 + $0x2c] sm:$0xf]
        %v5845 = vld [vmem:[%s10 + $0x30] sm:$0xf]
        %v5846 = vld [vmem:[%s10 + $0x34] sm:$0xf]
        %v5847 = vld [vmem:[%s10 + $0x38] sm:$0xf]
        %v5848 = vld [vmem:[%s10 + $0x3c] sm:$0xf]
        %v5865 = vunpack.c.l.b16 %v5833
        %v5866 = vunpack.c.l.b16 %v5834
        %v5867 = vunpack.c.l.b16 %v5835
        %v5868 = vunpack.c.l.b16 %v5836
        %v5869 = vunpack.c.l.b16 %v5837
        %v5870 = vunpack.c.l.b16 %v5838
        %v5871 = vunpack.c.l.b16 %v5839
        %v5872 = vunpack.c.l.b16 %v5840
        %v5873 = vunpack.c.l.b16 %v5841
        %v5874 = vunpack.c.l.b16 %v5842
        %v5875 = vunpack.c.l.b16 %v5843
        %v5876 = vunpack.c.l.b16 %v5844
        %v5877 = vunpack.c.l.b16 %v5845
        %v5878 = vunpack.c.l.b16 %v5846
        %v5879 = vunpack.c.l.b16 %v5847
        %v5880 = vunpack.c.l.b16 %v5848
        %v5881 = vpack.c.b16 %v5866, %v5865
        %v5882 = vpack.c.b16 %v5868, %v5867
        %v5883 = vpack.c.b16 %v5870, %v5869
        %v5884 = vpack.c.b16 %v5872, %v5871
        %v5885 = vpack.c.b16 %v5874, %v5873
        %v5886 = vpack.c.b16 %v5876, %v5875
        %v5887 = vpack.c.b16 %v5878, %v5877
        %v5888 = vpack.c.b16 %v5880, %v5879
        %5897 = vmatprep.subr.bf16.mxu0 0
        %5898 = vmatpush1.bf16.msra.mxu0 %v5881
        %5899 = vmatprep.subr.bf16.mxu0 0
        %5900 = vmatpush1.bf16.msra.mxu0 %v5882
        %5901 = vmatprep.subr.bf16.mxu0 0
        %5902 = vmatpush1.bf16.msra.mxu0 %v5883
        %5903 = vmatprep.subr.bf16.mxu0 0
        %5904 = vmatpush1.bf16.msra.mxu0 %v5884
        %5905 = vmatprep.subr.bf16.mxu0 0
        %5906 = vmatpush1.bf16.msra.mxu0 %v5885
        %5907 = vmatprep.subr.bf16.mxu0 0
        %5908 = vmatpush1.bf16.msra.mxu0 %v5886
        %5909 = vmatprep.subr.bf16.mxu0 0
        %5910 = vmatpush1.bf16.msra.mxu0 %v5887
        %5911 = vmatprep.subr.bf16.mxu0 0
        %5912 = vmatpush1.bf16.msra.mxu0 %v5888
        %5913 = vmatprep.subr.bf16.mxu0 0
        %5914 = vmatpush1.bf16.msra.mxu0 0
        %5915 = vmatprep.subr.bf16.mxu0 0
        %5916 = vmatpush1.bf16.msra.mxu0 0
        %5917 = vmatprep.subr.bf16.mxu0 0
        %5918 = vmatpush1.bf16.msra.mxu0 0
        %5919 = vmatprep.subr.bf16.mxu0 0
        %5920 = vmatpush1.bf16.msra.mxu0 0
        %5921 = vmatprep.subr.bf16.mxu0 0
        %5922 = vmatpush1.bf16.msra.mxu0 0
        %5923 = vmatprep.subr.bf16.mxu0 0
        %5924 = vmatpush1.bf16.msra.mxu0 0
        %5925 = vmatprep.subr.bf16.mxu0 0
        %5926 = vmatpush1.bf16.msra.mxu0 0
        %5927 = vmatprep.subr.bf16.mxu0 0
        %5928 = vmatpush1.bf16.msra.mxu0 0
        %5929 = vmatprep.mubr.bf16.mxu0 0
        %5930 = vmatmul.mubr.bf16.gmra.mrb[0].mxu0 %v5832
        %v5931 = vpop.f32.mrb[0].mxu0
        %v5932 = vadd.f32 0.0, %v5931
        %v5933 = vpop.f32.mrb[0].mxu0
        %v5934 = vpop.f32.mrb[0].mxu0
        %v5935 = vpop.f32.mrb[0].mxu0
        %5936 = vdwg.mxu0
        %v5939 = vunpack.c.l.s4 1966171168
        %v5940 = vunpack.c.0.s8 %v5939
        %v5941 = vlaneseq
        %v5942 = vshrl.u32 %v5941, 7
        %v5943 = vsub.s32 %v5940, %v5942
        %v5944 = vrot.slane %v5932, %v5943
        %v5945 = vcombine.high %v5944, %v5944
        %v5947 = vunpack.c.l.s4 1966171168
        %v5948 = vunpack.c.0.s8 %v5947
        %v5949 = vlaneseq
        %v5950 = vshrl.u32 %v5949, 7
        %v5951 = vsub.s32 %v5948, %v5950
        %v5952 = vrot.slane %v5944, %v5951
        %v5954 = vunpack.c.l.s4 1966171168
        %v5955 = vunpack.c.0.s8 %v5954
        %v5956 = vlaneseq
        %v5957 = vshrl.u32 %v5956, 7
        %v5958 = vsub.s32 %v5955, %v5957
        %v5959 = vrot.slane %v5945, %v5958
        %v5960 = vcombine.high %v5952, %v5952
        %v5961 = vcombine.high %v5959, %v5959
        %v5966 = vpack.c.bf16 %v5952, %v5952
        %v5967 = vpack.c.bf16 %v5959, %v5959
        %v5968 = vpack.c.bf16 %v5960, %v5960
        %v5969 = vpack.c.bf16 %v5961, %v5961
        %v5970 = vld [vmem:[%s3] sm:$0xf]
        %v5971 = vld [vmem:[%s3 + $0x4] sm:$0xf]
        %v5972 = vld [vmem:[%s3 + $0x8] sm:$0xf]
        %v5973 = vld [vmem:[%s3 + $0xc] sm:$0xf]
        %v5974 = vld [vmem:[%s3 + $0x10] sm:$0xf]
        %v5975 = vld [vmem:[%s3 + $0x14] sm:$0xf]
        %v5976 = vld [vmem:[%s3 + $0x18] sm:$0xf]
        %v5977 = vld [vmem:[%s3 + $0x1c] sm:$0xf]
        %v5978 = vld [vmem:[%s3 + $0x20] sm:$0xf]
        %v5979 = vld [vmem:[%s3 + $0x24] sm:$0xf]
        %v5980 = vld [vmem:[%s3 + $0x28] sm:$0xf]
        %v5981 = vld [vmem:[%s3 + $0x2c] sm:$0xf]
        %v5982 = vld [vmem:[%s3 + $0x30] sm:$0xf]
        %v5983 = vld [vmem:[%s3 + $0x34] sm:$0xf]
        %v5984 = vld [vmem:[%s3 + $0x38] sm:$0xf]
        %v5985 = vld [vmem:[%s3 + $0x3c] sm:$0xf]
        %v5986 = vld [vmem:[%s3 + $0x40] sm:$0xf]
        %v5987 = vld [vmem:[%s3 + $0x44] sm:$0xf]
        %v5988 = vld [vmem:[%s3 + $0x48] sm:$0xf]
        %v5989 = vld [vmem:[%s3 + $0x4c] sm:$0xf]
        %v5990 = vld [vmem:[%s3 + $0x50] sm:$0xf]
        %v5991 = vld [vmem:[%s3 + $0x54] sm:$0xf]
        %v5992 = vld [vmem:[%s3 + $0x58] sm:$0xf]
        %v5993 = vld [vmem:[%s3 + $0x5c] sm:$0xf]
        %v5994 = vld [vmem:[%s3 + $0x60] sm:$0xf]
        %v5995 = vld [vmem:[%s3 + $0x64] sm:$0xf]
        %v5996 = vld [vmem:[%s3 + $0x68] sm:$0xf]
        %v5997 = vld [vmem:[%s3 + $0x6c] sm:$0xf]
        %v5998 = vld [vmem:[%s3 + $0x70] sm:$0xf]
        %v5999 = vld [vmem:[%s3 + $0x74] sm:$0xf]
        %v6000 = vld [vmem:[%s3 + $0x78] sm:$0xf]
        %v6001 = vld [vmem:[%s3 + $0x7c] sm:$0xf]
        %v6002 = vld [vmem:[%s3 + $0x80] sm:$0xf]
        %v6003 = vld [vmem:[%s3 + $0x84] sm:$0xf]
        %v6004 = vld [vmem:[%s3 + $0x88] sm:$0xf]
        %v6005 = vld [vmem:[%s3 + $0x8c] sm:$0xf]
        %v6006 = vld [vmem:[%s3 + $0x90] sm:$0xf]
        %v6007 = vld [vmem:[%s3 + $0x94] sm:$0xf]
        %v6008 = vld [vmem:[%s3 + $0x98] sm:$0xf]
        %v6009 = vld [vmem:[%s3 + $0x9c] sm:$0xf]
        %v6010 = vld [vmem:[%s3 + $0xa0] sm:$0xf]
        %v6011 = vld [vmem:[%s3 + $0xa4] sm:$0xf]
        %v6012 = vld [vmem:[%s3 + $0xa8] sm:$0xf]
        %v6013 = vld [vmem:[%s3 + $0xac] sm:$0xf]
        %v6014 = vld [vmem:[%s3 + $0xb0] sm:$0xf]
        %v6015 = vld [vmem:[%s3 + $0xb4] sm:$0xf]
        %v6016 = vld [vmem:[%s3 + $0xb8] sm:$0xf]
        %v6017 = vld [vmem:[%s3 + $0xbc] sm:$0xf]
        %v6018 = vld [vmem:[%s3 + $0xc0] sm:$0xf]
        %v6019 = vld [vmem:[%s3 + $0xc4] sm:$0xf]
        %v6020 = vld [vmem:[%s3 + $0xc8] sm:$0xf]
        %v6021 = vld [vmem:[%s3 + $0xcc] sm:$0xf]
        %v6022 = vld [vmem:[%s3 + $0xd0] sm:$0xf]
        %v6023 = vld [vmem:[%s3 + $0xd4] sm:$0xf]
        %v6024 = vld [vmem:[%s3 + $0xd8] sm:$0xf]
        %v6025 = vld [vmem:[%s3 + $0xdc] sm:$0xf]
        %v6026 = vld [vmem:[%s3 + $0xe0] sm:$0xf]
        %v6027 = vld [vmem:[%s3 + $0xe4] sm:$0xf]
        %v6028 = vld [vmem:[%s3 + $0xe8] sm:$0xf]
        %v6029 = vld [vmem:[%s3 + $0xec] sm:$0xf]
        %v6030 = vld [vmem:[%s3 + $0xf0] sm:$0xf]
        %v6031 = vld [vmem:[%s3 + $0xf4] sm:$0xf]
        %v6032 = vld [vmem:[%s3 + $0xf8] sm:$0xf]
        %v6033 = vld [vmem:[%s3 + $0xfc] sm:$0xf]
        %v6050 = vunpack.c.l.b16 %v5970
        %v6051 = vunpack.c.l.b16 %v5971
        %v6052 = vunpack.c.l.b16 %v5972
        %v6053 = vunpack.c.l.b16 %v5973
        %v6054 = vunpack.c.l.b16 %v5974
        %v6055 = vunpack.c.l.b16 %v5975
        %v6056 = vunpack.c.l.b16 %v5976
        %v6057 = vunpack.c.l.b16 %v5977
        %v6058 = vunpack.c.l.b16 %v5978
        %v6059 = vunpack.c.l.b16 %v5979
        %v6060 = vunpack.c.l.b16 %v5980
        %v6061 = vunpack.c.l.b16 %v5981
        %v6062 = vunpack.c.l.b16 %v5982
        %v6063 = vunpack.c.l.b16 %v5983
        %v6064 = vunpack.c.l.b16 %v5984
        %v6065 = vunpack.c.l.b16 %v5985
        %v6066 = vpack.c.b16 %v6051, %v6050
        %v6067 = vpack.c.b16 %v6053, %v6052
        %v6068 = vpack.c.b16 %v6055, %v6054
        %v6069 = vpack.c.b16 %v6057, %v6056
        %v6070 = vpack.c.b16 %v6059, %v6058
        %v6071 = vpack.c.b16 %v6061, %v6060
        %v6072 = vpack.c.b16 %v6063, %v6062
        %v6073 = vpack.c.b16 %v6065, %v6064
        %6082 = vmatprep.subr.bf16.mxu0 0
        %6083 = vmatpush1.bf16.xpose.msra.mxu0 %v6066
        %6084 = vmatprep.subr.bf16.mxu0 0
        %6085 = vmatpush1.bf16.xpose.msra.mxu0 %v6067
        %6086 = vmatprep.subr.bf16.mxu0 0
        %6087 = vmatpush1.bf16.xpose.msra.mxu0 %v6068
        %6088 = vmatprep.subr.bf16.mxu0 0
        %6089 = vmatpush1.bf16.xpose.msra.mxu0 %v6069
        %6090 = vmatprep.subr.bf16.mxu0 0
        %6091 = vmatpush1.bf16.xpose.msra.mxu0 %v6070
        %6092 = vmatprep.subr.bf16.mxu0 0
        %6093 = vmatpush1.bf16.xpose.msra.mxu0 %v6071
        %6094 = vmatprep.subr.bf16.mxu0 0
        %6095 = vmatpush1.bf16.xpose.msra.mxu0 %v6072
        %6096 = vmatprep.subr.bf16.mxu0 0
        %6097 = vmatpush1.bf16.xpose.msra.mxu0 %v6073
        %6098 = vmatprep.subr.bf16.mxu0 0
        %6099 = vmatpush1.bf16.xpose.msra.mxu0 0
        %6100 = vmatprep.subr.bf16.mxu0 0
        %6101 = vmatpush1.bf16.xpose.msra.mxu0 0
        %6102 = vmatprep.subr.bf16.mxu0 0
        %6103 = vmatpush1.bf16.xpose.msra.mxu0 0
        %6104 = vmatprep.subr.bf16.mxu0 0
        %6105 = vmatpush1.bf16.xpose.msra.mxu0 0
        %6106 = vmatprep.subr.bf16.mxu0 0
        %6107 = vmatpush1.bf16.xpose.msra.mxu0 0
        %6108 = vmatprep.subr.bf16.mxu0 0
        %6109 = vmatpush1.bf16.xpose.msra.mxu0 0
        %6110 = vmatprep.subr.bf16.mxu0 0
        %6111 = vmatpush1.bf16.xpose.msra.mxu0 0
        %6112 = vmatprep.subr.bf16.mxu0 0
        %6113 = vmatpush1.bf16.xpose.msra.mxu0 0
        %6114 = vmatprep.mubr.bf16.mxu0 0
        %6115 = vmatmul.mubr.bf16.gmra.mrb[0].mxu0 %v5966
        %v6116 = vpop.f32.mrb[0].mxu0
        %v6117 = vadd.f32 0.0, %v6116
        %v6118 = vpop.f32.mrb[0].mxu0
        %v6119 = vpop.f32.mrb[0].mxu0
        %v6120 = vpop.f32.mrb[0].mxu0
        %6121 = vdwg.mxu0
        %v6138 = vunpack.c.l.b16 %v5986
        %v6139 = vunpack.c.l.b16 %v5987
        %v6140 = vunpack.c.l.b16 %v5988
        %v6141 = vunpack.c.l.b16 %v5989
        %v6142 = vunpack.c.l.b16 %v5990
        %v6143 = vunpack.c.l.b16 %v5991
        %v6144 = vunpack.c.l.b16 %v5992
        %v6145 = vunpack.c.l.b16 %v5993
        %v6146 = vunpack.c.l.b16 %v5994
        %v6147 = vunpack.c.l.b16 %v5995
        %v6148 = vunpack.c.l.b16 %v5996
        %v6149 = vunpack.c.l.b16 %v5997
        %v6150 = vunpack.c.l.b16 %v5998
        %v6151 = vunpack.c.l.b16 %v5999
        %v6152 = vunpack.c.l.b16 %v6000
        %v6153 = vunpack.c.l.b16 %v6001
        %v6154 = vpack.c.b16 %v6139, %v6138
        %v6155 = vpack.c.b16 %v6141, %v6140
        %v6156 = vpack.c.b16 %v6143, %v6142
        %v6157 = vpack.c.b16 %v6145, %v6144
        %v6158 = vpack.c.b16 %v6147, %v6146
        %v6159 = vpack.c.b16 %v6149, %v6148
        %v6160 = vpack.c.b16 %v6151, %v6150
        %v6161 = vpack.c.b16 %v6153, %v6152
        %6170 = vmatprep.subr.bf16.mxu0 0
        %6171 = vmatpush1.bf16.xpose.msra.mxu0 %v6154
        %6172 = vmatprep.subr.bf16.mxu0 0
        %6173 = vmatpush1.bf16.xpose.msra.mxu0 %v6155
        %6174 = vmatprep.subr.bf16.mxu0 0
        %6175 = vmatpush1.bf16.xpose.msra.mxu0 %v6156
        %6176 = vmatprep.subr.bf16.mxu0 0
        %6177 = vmatpush1.bf16.xpose.msra.mxu0 %v6157
        %6178 = vmatprep.subr.bf16.mxu0 0
        %6179 = vmatpush1.bf16.xpose.msra.mxu0 %v6158
        %6180 = vmatprep.subr.bf16.mxu0 0
        %6181 = vmatpush1.bf16.xpose.msra.mxu0 %v6159
        %6182 = vmatprep.subr.bf16.mxu0 0
        %6183 = vmatpush1.bf16.xpose.msra.mxu0 %v6160
        %6184 = vmatprep.subr.bf16.mxu0 0
        %6185 = vmatpush1.bf16.xpose.msra.mxu0 %v6161
        %6186 = vmatprep.subr.bf16.mxu0 0
        %6187 = vmatpush1.bf16.xpose.msra.mxu0 0
        %6188 = vmatprep.subr.bf16.mxu0 0
        %6189 = vmatpush1.bf16.xpose.msra.mxu0 0
        %6190 = vmatprep.subr.bf16.mxu0 0
        %6191 = vmatpush1.bf16.xpose.msra.mxu0 0
        %6192 = vmatprep.subr.bf16.mxu0 0
        %6193 = vmatpush1.bf16.xpose.msra.mxu0 0
        %6194 = vmatprep.subr.bf16.mxu0 0
        %6195 = vmatpush1.bf16.xpose.msra.mxu0 0
        %6196 = vmatprep.subr.bf16.mxu0 0
        %6197 = vmatpush1.bf16.xpose.msra.mxu0 0
        %6198 = vmatprep.subr.bf16.mxu0 0
        %6199 = vmatpush1.bf16.xpose.msra.mxu0 0
        %6200 = vmatprep.subr.bf16.mxu0 0
        %6201 = vmatpush1.bf16.xpose.msra.mxu0 0
        %6202 = vmatprep.mubr.bf16.mxu0 0
        %6203 = vmatmul.mubr.bf16.gmra.mrb[0].mxu0 %v5967
        %v6204 = vpop.f32.mrb[0].mxu0
        %v6205 = vadd.f32 0.0, %v6204
        %v6206 = vpop.f32.mrb[0].mxu0
        %v6207 = vpop.f32.mrb[0].mxu0
        %v6208 = vpop.f32.mrb[0].mxu0
        %6209 = vdwg.mxu0
        %v6226 = vunpack.c.l.b16 %v6002
        %v6227 = vunpack.c.l.b16 %v6003
        %v6228 = vunpack.c.l.b16 %v6004
        %v6229 = vunpack.c.l.b16 %v6005
        %v6230 = vunpack.c.l.b16 %v6006
        %v6231 = vunpack.c.l.b16 %v6007
        %v6232 = vunpack.c.l.b16 %v6008
        %v6233 = vunpack.c.l.b16 %v6009
        %v6234 = vunpack.c.l.b16 %v6010
        %v6235 = vunpack.c.l.b16 %v6011
        %v6236 = vunpack.c.l.b16 %v6012
        %v6237 = vunpack.c.l.b16 %v6013
        %v6238 = vunpack.c.l.b16 %v6014
        %v6239 = vunpack.c.l.b16 %v6015
        %v6240 = vunpack.c.l.b16 %v6016
        %v6241 = vunpack.c.l.b16 %v6017
        %v6242 = vpack.c.b16 %v6227, %v6226
        %v6243 = vpack.c.b16 %v6229, %v6228
        %v6244 = vpack.c.b16 %v6231, %v6230
        %v6245 = vpack.c.b16 %v6233, %v6232
        %v6246 = vpack.c.b16 %v6235, %v6234
        %v6247 = vpack.c.b16 %v6237, %v6236
        %v6248 = vpack.c.b16 %v6239, %v6238
        %v6249 = vpack.c.b16 %v6241, %v6240
        %6258 = vmatprep.subr.bf16.mxu0 0
        %6259 = vmatpush1.bf16.xpose.msra.mxu0 %v6242
        %6260 = vmatprep.subr.bf16.mxu0 0
        %6261 = vmatpush1.bf16.xpose.msra.mxu0 %v6243
        %6262 = vmatprep.subr.bf16.mxu0 0
        %6263 = vmatpush1.bf16.xpose.msra.mxu0 %v6244
        %6264 = vmatprep.subr.bf16.mxu0 0
        %6265 = vmatpush1.bf16.xpose.msra.mxu0 %v6245
        %6266 = vmatprep.subr.bf16.mxu0 0
        %6267 = vmatpush1.bf16.xpose.msra.mxu0 %v6246
        %6268 = vmatprep.subr.bf16.mxu0 0
        %6269 = vmatpush1.bf16.xpose.msra.mxu0 %v6247
        %6270 = vmatprep.subr.bf16.mxu0 0
        %6271 = vmatpush1.bf16.xpose.msra.mxu0 %v6248
        %6272 = vmatprep.subr.bf16.mxu0 0
        %6273 = vmatpush1.bf16.xpose.msra.mxu0 %v6249
        %6274 = vmatprep.subr.bf16.mxu0 0
        %6275 = vmatpush1.bf16.xpose.msra.mxu0 0
        %6276 = vmatprep.subr.bf16.mxu0 0
        %6277 = vmatpush1.bf16.xpose.msra.mxu0 0
        %6278 = vmatprep.subr.bf16.mxu0 0
        %6279 = vmatpush1.bf16.xpose.msra.mxu0 0
        %6280 = vmatprep.subr.bf16.mxu0 0
        %6281 = vmatpush1.bf16.xpose.msra.mxu0 0
        %6282 = vmatprep.subr.bf16.mxu0 0
        %6283 = vmatpush1.bf16.xpose.msra.mxu0 0
        %6284 = vmatprep.subr.bf16.mxu0 0
        %6285 = vmatpush1.bf16.xpose.msra.mxu0 0
        %6286 = vmatprep.subr.bf16.mxu0 0
        %6287 = vmatpush1.bf16.xpose.msra.mxu0 0
        %6288 = vmatprep.subr.bf16.mxu0 0
        %6289 = vmatpush1.bf16.xpose.msra.mxu0 0
        %6290 = vmatprep.mubr.bf16.mxu0 0
        %6291 = vmatmul.mubr.bf16.gmra.mrb[0].mxu0 %v5968
        %v6292 = vpop.f32.mrb[0].mxu0
        %v6293 = vadd.f32 0.0, %v6292
        %v6294 = vpop.f32.mrb[0].mxu0
        %v6295 = vpop.f32.mrb[0].mxu0
        %v6296 = vpop.f32.mrb[0].mxu0
        %6297 = vdwg.mxu0
        %v6314 = vunpack.c.l.b16 %v6018
        %v6315 = vunpack.c.l.b16 %v6019
        %v6316 = vunpack.c.l.b16 %v6020
        %v6317 = vunpack.c.l.b16 %v6021
        %v6318 = vunpack.c.l.b16 %v6022
        %v6319 = vunpack.c.l.b16 %v6023
        %v6320 = vunpack.c.l.b16 %v6024
        %v6321 = vunpack.c.l.b16 %v6025
        %v6322 = vunpack.c.l.b16 %v6026
        %v6323 = vunpack.c.l.b16 %v6027
        %v6324 = vunpack.c.l.b16 %v6028
        %v6325 = vunpack.c.l.b16 %v6029
        %v6326 = vunpack.c.l.b16 %v6030
        %v6327 = vunpack.c.l.b16 %v6031
        %v6328 = vunpack.c.l.b16 %v6032
        %v6329 = vunpack.c.l.b16 %v6033
        %v6330 = vpack.c.b16 %v6315, %v6314
        %v6331 = vpack.c.b16 %v6317, %v6316
        %v6332 = vpack.c.b16 %v6319, %v6318
        %v6333 = vpack.c.b16 %v6321, %v6320
        %v6334 = vpack.c.b16 %v6323, %v6322
        %v6335 = vpack.c.b16 %v6325, %v6324
        %v6336 = vpack.c.b16 %v6327, %v6326
        %v6337 = vpack.c.b16 %v6329, %v6328
        %6346 = vmatprep.subr.bf16.mxu0 0
        %6347 = vmatpush1.bf16.xpose.msra.mxu0 %v6330
        %6348 = vmatprep.subr.bf16.mxu0 0
        %6349 = vmatpush1.bf16.xpose.msra.mxu0 %v6331
        %6350 = vmatprep.subr.bf16.mxu0 0
        %6351 = vmatpush1.bf16.xpose.msra.mxu0 %v6332
        %6352 = vmatprep.subr.bf16.mxu0 0
        %6353 = vmatpush1.bf16.xpose.msra.mxu0 %v6333
        %6354 = vmatprep.subr.bf16.mxu0 0
        %6355 = vmatpush1.bf16.xpose.msra.mxu0 %v6334
        %6356 = vmatprep.subr.bf16.mxu0 0
        %6357 = vmatpush1.bf16.xpose.msra.mxu0 %v6335
        %6358 = vmatprep.subr.bf16.mxu0 0
        %6359 = vmatpush1.bf16.xpose.msra.mxu0 %v6336
        %6360 = vmatprep.subr.bf16.mxu0 0
        %6361 = vmatpush1.bf16.xpose.msra.mxu0 %v6337
        %6362 = vmatprep.subr.bf16.mxu0 0
        %6363 = vmatpush1.bf16.xpose.msra.mxu0 0
        %6364 = vmatprep.subr.bf16.mxu0 0
        %6365 = vmatpush1.bf16.xpose.msra.mxu0 0
        %6366 = vmatprep.subr.bf16.mxu0 0
        %6367 = vmatpush1.bf16.xpose.msra.mxu0 0
        %6368 = vmatprep.subr.bf16.mxu0 0
        %6369 = vmatpush1.bf16.xpose.msra.mxu0 0
        %6370 = vmatprep.subr.bf16.mxu0 0
        %6371 = vmatpush1.bf16.xpose.msra.mxu0 0
        %6372 = vmatprep.subr.bf16.mxu0 0
        %6373 = vmatpush1.bf16.xpose.msra.mxu0 0
        %6374 = vmatprep.subr.bf16.mxu0 0
        %6375 = vmatpush1.bf16.xpose.msra.mxu0 0
        %6376 = vmatprep.subr.bf16.mxu0 0
        %6377 = vmatpush1.bf16.xpose.msra.mxu0 0
        %6378 = vmatprep.mubr.bf16.mxu0 0
        %6379 = vmatmul.mubr.bf16.gmra.mrb[0].mxu0 %v5969
        %v6380 = vpop.f32.mrb[0].mxu0
        %v6381 = vadd.f32 0.0, %v6380
        %v6382 = vpop.f32.mrb[0].mxu0
        %v6383 = vpop.f32.mrb[0].mxu0
        %v6384 = vpop.f32.mrb[0].mxu0
        %6385 = vdwg.mxu0
        %v6386 = vld [vmem:[%s4] sm:$0x1]
        %v6387 = vld [vmem:[%s4 + $0x1] sm:$0x1]
        %v6388 = vld [vmem:[%s4 + $0x2] sm:$0x1]
        %v6389 = vld [vmem:[%s4 + $0x3] sm:$0x1]
        %v6390 = vmul.f32 %v6386, %v6117
        %v6391 = vmul.f32 %v6387, %v6205
        %v6392 = vmul.f32 %v6388, %v6293
        %v6393 = vmul.f32 %v6389, %v6381
        %vm6394 = vcmp.eq.f32.partialorder %v6390, 0.0
        %vm6395 = vcmp.eq.f32.partialorder %v6391, 0.0
        %vm6396 = vcmp.eq.f32.partialorder %v6392, 0.0
        %vm6397 = vcmp.eq.f32.partialorder %v6393, 0.0
        %v6398 = vsel %vm6394, -1e+10, %v6390
        %v6399 = vsel %vm6395, -1e+10, %v6391
        %v6400 = vsel %vm6396, -1e+10, %v6392
        %v6401 = vsel %vm6397, -1e+10, %v6393
        %v6402 = vsel %vm566, %v6398, -inf
        %6403 = vmax.xlane.f32.xlu0 %v6402
        %v6404 = vpop.xlane.xlu0 %6403
        %v6405 = vsel %vm566, %v6399, -inf
        %6406 = vmax.xlane.f32.xlu0 %v6405
        %v6407 = vpop.xlane.xlu0 %6406
        %v6408 = vsel %vm566, %v6400, -inf
        %6409 = vmax.xlane.f32.xlu0 %v6408
        %v6410 = vpop.xlane.xlu0 %6409
        %v6411 = vsel %vm566, %v6401, -inf
        %6412 = vmax.xlane.f32.xlu0 %v6411
        %v6413 = vpop.xlane.xlu0 %6412
        %v6414 = vsub.f32 %v6398, %v6404
        %v6415 = vsub.f32 %v6399, %v6407
        %v6416 = vsub.f32 %v6400, %v6410
        %v6417 = vsub.f32 %v6401, %v6413
        %v6418 = vmul.f32 %v6414, 1.442695
        %v6419 = vpow.pop %v6418
        %v6420 = vmul.f32 %v6415, 1.442695
        %v6421 = vpow.pop %v6420
        %v6422 = vmul.f32 %v6416, 1.442695
        %v6423 = vpow.pop %v6422
        %v6424 = vmul.f32 %v6417, 1.442695
        %v6425 = vpow.pop %v6424
        %v6426 = vsel %vm566, %v6419, 0.0
        %6427 = vadd.xlane.f32.xlu0 %v6426
        %v6428 = vpop.xlane.xlu0 %6427
        %v6429 = vsel %vm566, %v6421, 0.0
        %6430 = vadd.xlane.f32.xlu0 %v6429
        %v6431 = vpop.xlane.xlu0 %6430
        %v6432 = vsel %vm566, %v6423, 0.0
        %6433 = vadd.xlane.f32.xlu0 %v6432
        %v6434 = vpop.xlane.xlu0 %6433
        %v6435 = vsel %vm566, %v6425, 0.0
        %6436 = vadd.xlane.f32.xlu0 %v6435
        %v6437 = vpop.xlane.xlu0 %6436
        %v6438 = vrcp.pop %v6428
        %v6439 = vrcp.pop %v6431
        %v6440 = vrcp.pop %v6434
        %v6441 = vrcp.pop %v6437
        %v6442 = vmul.f32 %v6419, %v6438
        %v6443 = vmul.f32 %v6421, %v6439
        %v6444 = vmul.f32 %v6423, %v6440
        %v6445 = vmul.f32 %v6425, %v6441
        %v6446 = vpack.c.bf16 %v6442, %v6442
        %v6447 = vpack.c.bf16 %v6443, %v6443
        %v6448 = vpack.c.bf16 %v6444, %v6444
        %v6449 = vpack.c.bf16 %v6445, %v6445
        %v6450 = vld [vmem:[%s3] sm:$0xf]
        %v6451 = vld [vmem:[%s3 + $0x4] sm:$0xf]
        %v6452 = vld [vmem:[%s3 + $0x8] sm:$0xf]
        %v6453 = vld [vmem:[%s3 + $0xc] sm:$0xf]
        %v6454 = vld [vmem:[%s3 + $0x10] sm:$0xf]
        %v6455 = vld [vmem:[%s3 + $0x14] sm:$0xf]
        %v6456 = vld [vmem:[%s3 + $0x18] sm:$0xf]
        %v6457 = vld [vmem:[%s3 + $0x1c] sm:$0xf]
        %v6458 = vld [vmem:[%s3 + $0x20] sm:$0xf]
        %v6459 = vld [vmem:[%s3 + $0x24] sm:$0xf]
        %v6460 = vld [vmem:[%s3 + $0x28] sm:$0xf]
        %v6461 = vld [vmem:[%s3 + $0x2c] sm:$0xf]
        %v6462 = vld [vmem:[%s3 + $0x30] sm:$0xf]
        %v6463 = vld [vmem:[%s3 + $0x34] sm:$0xf]
        %v6464 = vld [vmem:[%s3 + $0x38] sm:$0xf]
        %v6465 = vld [vmem:[%s3 + $0x3c] sm:$0xf]
        %v6466 = vld [vmem:[%s3 + $0x40] sm:$0xf]
        %v6467 = vld [vmem:[%s3 + $0x44] sm:$0xf]
        %v6468 = vld [vmem:[%s3 + $0x48] sm:$0xf]
        %v6469 = vld [vmem:[%s3 + $0x4c] sm:$0xf]
        %v6470 = vld [vmem:[%s3 + $0x50] sm:$0xf]
        %v6471 = vld [vmem:[%s3 + $0x54] sm:$0xf]
        %v6472 = vld [vmem:[%s3 + $0x58] sm:$0xf]
        %v6473 = vld [vmem:[%s3 + $0x5c] sm:$0xf]
        %v6474 = vld [vmem:[%s3 + $0x60] sm:$0xf]
        %v6475 = vld [vmem:[%s3 + $0x64] sm:$0xf]
        %v6476 = vld [vmem:[%s3 + $0x68] sm:$0xf]
        %v6477 = vld [vmem:[%s3 + $0x6c] sm:$0xf]
        %v6478 = vld [vmem:[%s3 + $0x70] sm:$0xf]
        %v6479 = vld [vmem:[%s3 + $0x74] sm:$0xf]
        %v6480 = vld [vmem:[%s3 + $0x78] sm:$0xf]
        %v6481 = vld [vmem:[%s3 + $0x7c] sm:$0xf]
        %v6482 = vld [vmem:[%s3 + $0x80] sm:$0xf]
        %v6483 = vld [vmem:[%s3 + $0x84] sm:$0xf]
        %v6484 = vld [vmem:[%s3 + $0x88] sm:$0xf]
        %v6485 = vld [vmem:[%s3 + $0x8c] sm:$0xf]
        %v6486 = vld [vmem:[%s3 + $0x90] sm:$0xf]
        %v6487 = vld [vmem:[%s3 + $0x94] sm:$0xf]
        %v6488 = vld [vmem:[%s3 + $0x98] sm:$0xf]
        %v6489 = vld [vmem:[%s3 + $0x9c] sm:$0xf]
        %v6490 = vld [vmem:[%s3 + $0xa0] sm:$0xf]
        %v6491 = vld [vmem:[%s3 + $0xa4] sm:$0xf]
        %v6492 = vld [vmem:[%s3 + $0xa8] sm:$0xf]
        %v6493 = vld [vmem:[%s3 + $0xac] sm:$0xf]
        %v6494 = vld [vmem:[%s3 + $0xb0] sm:$0xf]
        %v6495 = vld [vmem:[%s3 + $0xb4] sm:$0xf]
        %v6496 = vld [vmem:[%s3 + $0xb8] sm:$0xf]
        %v6497 = vld [vmem:[%s3 + $0xbc] sm:$0xf]
        %v6498 = vld [vmem:[%s3 + $0xc0] sm:$0xf]
        %v6499 = vld [vmem:[%s3 + $0xc4] sm:$0xf]
        %v6500 = vld [vmem:[%s3 + $0xc8] sm:$0xf]
        %v6501 = vld [vmem:[%s3 + $0xcc] sm:$0xf]
        %v6502 = vld [vmem:[%s3 + $0xd0] sm:$0xf]
        %v6503 = vld [vmem:[%s3 + $0xd4] sm:$0xf]
        %v6504 = vld [vmem:[%s3 + $0xd8] sm:$0xf]
        %v6505 = vld [vmem:[%s3 + $0xdc] sm:$0xf]
        %v6506 = vld [vmem:[%s3 + $0xe0] sm:$0xf]
        %v6507 = vld [vmem:[%s3 + $0xe4] sm:$0xf]
        %v6508 = vld [vmem:[%s3 + $0xe8] sm:$0xf]
        %v6509 = vld [vmem:[%s3 + $0xec] sm:$0xf]
        %v6510 = vld [vmem:[%s3 + $0xf0] sm:$0xf]
        %v6511 = vld [vmem:[%s3 + $0xf4] sm:$0xf]
        %v6512 = vld [vmem:[%s3 + $0xf8] sm:$0xf]
        %v6513 = vld [vmem:[%s3 + $0xfc] sm:$0xf]
        %v6530 = vunpack.c.l.b16 %v6450
        %v6531 = vunpack.c.l.b16 %v6451
        %v6532 = vunpack.c.l.b16 %v6452
        %v6533 = vunpack.c.l.b16 %v6453
        %v6534 = vunpack.c.l.b16 %v6454
        %v6535 = vunpack.c.l.b16 %v6455
        %v6536 = vunpack.c.l.b16 %v6456
        %v6537 = vunpack.c.l.b16 %v6457
        %v6538 = vunpack.c.l.b16 %v6458
        %v6539 = vunpack.c.l.b16 %v6459
        %v6540 = vunpack.c.l.b16 %v6460
        %v6541 = vunpack.c.l.b16 %v6461
        %v6542 = vunpack.c.l.b16 %v6462
        %v6543 = vunpack.c.l.b16 %v6463
        %v6544 = vunpack.c.l.b16 %v6464
        %v6545 = vunpack.c.l.b16 %v6465
        %v6546 = vpack.c.b16 %v6531, %v6530
        %v6547 = vpack.c.b16 %v6533, %v6532
        %v6548 = vpack.c.b16 %v6535, %v6534
        %v6549 = vpack.c.b16 %v6537, %v6536
        %v6550 = vpack.c.b16 %v6539, %v6538
        %v6551 = vpack.c.b16 %v6541, %v6540
        %v6552 = vpack.c.b16 %v6543, %v6542
        %v6553 = vpack.c.b16 %v6545, %v6544
        %6562 = vmatprep.subr.bf16.mxu0 0
        %6563 = vmatpush1.bf16.msra.mxu0 %v6546
        %6564 = vmatprep.subr.bf16.mxu0 0
        %6565 = vmatpush1.bf16.msra.mxu0 %v6547
        %6566 = vmatprep.subr.bf16.mxu0 0
        %6567 = vmatpush1.bf16.msra.mxu0 %v6548
        %6568 = vmatprep.subr.bf16.mxu0 0
        %6569 = vmatpush1.bf16.msra.mxu0 %v6549
        %6570 = vmatprep.subr.bf16.mxu0 0
        %6571 = vmatpush1.bf16.msra.mxu0 %v6550
        %6572 = vmatprep.subr.bf16.mxu0 0
        %6573 = vmatpush1.bf16.msra.mxu0 %v6551
        %6574 = vmatprep.subr.bf16.mxu0 0
        %6575 = vmatpush1.bf16.msra.mxu0 %v6552
        %6576 = vmatprep.subr.bf16.mxu0 0
        %6577 = vmatpush1.bf16.msra.mxu0 %v6553
        %6578 = vmatprep.subr.bf16.mxu0 0
        %6579 = vmatpush1.bf16.msra.mxu0 0
        %6580 = vmatprep.subr.bf16.mxu0 0
        %6581 = vmatpush1.bf16.msra.mxu0 0
        %6582 = vmatprep.subr.bf16.mxu0 0
        %6583 = vmatpush1.bf16.msra.mxu0 0
        %6584 = vmatprep.subr.bf16.mxu0 0
        %6585 = vmatpush1.bf16.msra.mxu0 0
        %6586 = vmatprep.subr.bf16.mxu0 0
        %6587 = vmatpush1.bf16.msra.mxu0 0
        %6588 = vmatprep.subr.bf16.mxu0 0
        %6589 = vmatpush1.bf16.msra.mxu0 0
        %6590 = vmatprep.subr.bf16.mxu0 0
        %6591 = vmatpush1.bf16.msra.mxu0 0
        %6592 = vmatprep.subr.bf16.mxu0 0
        %6593 = vmatpush1.bf16.msra.mxu0 0
        %6594 = vmatprep.mubr.bf16.mxu0 0
        %6595 = vmatmul.mubr.bf16.gmra.mrb[0].mxu0 %v6446
        %v6596 = vpop.f32.mrb[0].mxu0
        %v6597 = vadd.f32 0.0, %v6596
        %v6598 = vpop.f32.mrb[0].mxu0
        %v6599 = vpop.f32.mrb[0].mxu0
        %v6600 = vpop.f32.mrb[0].mxu0
        %6601 = vdwg.mxu0
        %v6618 = vunpack.c.l.b16 %v6466
        %v6619 = vunpack.c.l.b16 %v6467
        %v6620 = vunpack.c.l.b16 %v6468
        %v6621 = vunpack.c.l.b16 %v6469
        %v6622 = vunpack.c.l.b16 %v6470
        %v6623 = vunpack.c.l.b16 %v6471
        %v6624 = vunpack.c.l.b16 %v6472
        %v6625 = vunpack.c.l.b16 %v6473
        %v6626 = vunpack.c.l.b16 %v6474
        %v6627 = vunpack.c.l.b16 %v6475
        %v6628 = vunpack.c.l.b16 %v6476
        %v6629 = vunpack.c.l.b16 %v6477
        %v6630 = vunpack.c.l.b16 %v6478
        %v6631 = vunpack.c.l.b16 %v6479
        %v6632 = vunpack.c.l.b16 %v6480
        %v6633 = vunpack.c.l.b16 %v6481
        %v6634 = vpack.c.b16 %v6619, %v6618
        %v6635 = vpack.c.b16 %v6621, %v6620
        %v6636 = vpack.c.b16 %v6623, %v6622
        %v6637 = vpack.c.b16 %v6625, %v6624
        %v6638 = vpack.c.b16 %v6627, %v6626
        %v6639 = vpack.c.b16 %v6629, %v6628
        %v6640 = vpack.c.b16 %v6631, %v6630
        %v6641 = vpack.c.b16 %v6633, %v6632
        %6650 = vmatprep.subr.bf16.mxu0 0
        %6651 = vmatpush1.bf16.msra.mxu0 %v6634
        %6652 = vmatprep.subr.bf16.mxu0 0
        %6653 = vmatpush1.bf16.msra.mxu0 %v6635
        %6654 = vmatprep.subr.bf16.mxu0 0
        %6655 = vmatpush1.bf16.msra.mxu0 %v6636
        %6656 = vmatprep.subr.bf16.mxu0 0
        %6657 = vmatpush1.bf16.msra.mxu0 %v6637
        %6658 = vmatprep.subr.bf16.mxu0 0
        %6659 = vmatpush1.bf16.msra.mxu0 %v6638
        %6660 = vmatprep.subr.bf16.mxu0 0
        %6661 = vmatpush1.bf16.msra.mxu0 %v6639
        %6662 = vmatprep.subr.bf16.mxu0 0
        %6663 = vmatpush1.bf16.msra.mxu0 %v6640
        %6664 = vmatprep.subr.bf16.mxu0 0
        %6665 = vmatpush1.bf16.msra.mxu0 %v6641
        %6666 = vmatprep.subr.bf16.mxu0 0
        %6667 = vmatpush1.bf16.msra.mxu0 0
        %6668 = vmatprep.subr.bf16.mxu0 0
        %6669 = vmatpush1.bf16.msra.mxu0 0
        %6670 = vmatprep.subr.bf16.mxu0 0
        %6671 = vmatpush1.bf16.msra.mxu0 0
        %6672 = vmatprep.subr.bf16.mxu0 0
        %6673 = vmatpush1.bf16.msra.mxu0 0
        %6674 = vmatprep.subr.bf16.mxu0 0
        %6675 = vmatpush1.bf16.msra.mxu0 0
        %6676 = vmatprep.subr.bf16.mxu0 0
        %6677 = vmatpush1.bf16.msra.mxu0 0
        %6678 = vmatprep.subr.bf16.mxu0 0
        %6679 = vmatpush1.bf16.msra.mxu0 0
        %6680 = vmatprep.subr.bf16.mxu0 0
        %6681 = vmatpush1.bf16.msra.mxu0 0
        %6682 = vmatprep.mubr.bf16.mxu0 0
        %6683 = vmatmul.mubr.bf16.gmra.mrb[0].mxu0 %v6447
        %v6684 = vpop.f32.mrb[0].mxu0
        %v6685 = vadd.f32 0.0, %v6684
        %v6686 = vpop.f32.mrb[0].mxu0
        %v6687 = vpop.f32.mrb[0].mxu0
        %v6688 = vpop.f32.mrb[0].mxu0
        %6689 = vdwg.mxu0
        %v6706 = vunpack.c.l.b16 %v6482
        %v6707 = vunpack.c.l.b16 %v6483
        %v6708 = vunpack.c.l.b16 %v6484
        %v6709 = vunpack.c.l.b16 %v6485
        %v6710 = vunpack.c.l.b16 %v6486
        %v6711 = vunpack.c.l.b16 %v6487
        %v6712 = vunpack.c.l.b16 %v6488
        %v6713 = vunpack.c.l.b16 %v6489
        %v6714 = vunpack.c.l.b16 %v6490
        %v6715 = vunpack.c.l.b16 %v6491
        %v6716 = vunpack.c.l.b16 %v6492
        %v6717 = vunpack.c.l.b16 %v6493
        %v6718 = vunpack.c.l.b16 %v6494
        %v6719 = vunpack.c.l.b16 %v6495
        %v6720 = vunpack.c.l.b16 %v6496
        %v6721 = vunpack.c.l.b16 %v6497
        %v6722 = vpack.c.b16 %v6707, %v6706
        %v6723 = vpack.c.b16 %v6709, %v6708
        %v6724 = vpack.c.b16 %v6711, %v6710
        %v6725 = vpack.c.b16 %v6713, %v6712
        %v6726 = vpack.c.b16 %v6715, %v6714
        %v6727 = vpack.c.b16 %v6717, %v6716
        %v6728 = vpack.c.b16 %v6719, %v6718
        %v6729 = vpack.c.b16 %v6721, %v6720
        %6738 = vmatprep.subr.bf16.mxu0 0
        %6739 = vmatpush1.bf16.msra.mxu0 %v6722
        %6740 = vmatprep.subr.bf16.mxu0 0
        %6741 = vmatpush1.bf16.msra.mxu0 %v6723
        %6742 = vmatprep.subr.bf16.mxu0 0
        %6743 = vmatpush1.bf16.msra.mxu0 %v6724
        %6744 = vmatprep.subr.bf16.mxu0 0
        %6745 = vmatpush1.bf16.msra.mxu0 %v6725
        %6746 = vmatprep.subr.bf16.mxu0 0
        %6747 = vmatpush1.bf16.msra.mxu0 %v6726
        %6748 = vmatprep.subr.bf16.mxu0 0
        %6749 = vmatpush1.bf16.msra.mxu0 %v6727
        %6750 = vmatprep.subr.bf16.mxu0 0
        %6751 = vmatpush1.bf16.msra.mxu0 %v6728
        %6752 = vmatprep.subr.bf16.mxu0 0
        %6753 = vmatpush1.bf16.msra.mxu0 %v6729
        %6754 = vmatprep.subr.bf16.mxu0 0
        %6755 = vmatpush1.bf16.msra.mxu0 0
        %6756 = vmatprep.subr.bf16.mxu0 0
        %6757 = vmatpush1.bf16.msra.mxu0 0
        %6758 = vmatprep.subr.bf16.mxu0 0
        %6759 = vmatpush1.bf16.msra.mxu0 0
        %6760 = vmatprep.subr.bf16.mxu0 0
        %6761 = vmatpush1.bf16.msra.mxu0 0
        %6762 = vmatprep.subr.bf16.mxu0 0
        %6763 = vmatpush1.bf16.msra.mxu0 0
        %6764 = vmatprep.subr.bf16.mxu0 0
        %6765 = vmatpush1.bf16.msra.mxu0 0
        %6766 = vmatprep.subr.bf16.mxu0 0
        %6767 = vmatpush1.bf16.msra.mxu0 0
        %6768 = vmatprep.subr.bf16.mxu0 0
        %6769 = vmatpush1.bf16.msra.mxu0 0
        %6770 = vmatprep.mubr.bf16.mxu0 0
        %6771 = vmatmul.mubr.bf16.gmra.mrb[0].mxu0 %v6448
        %v6772 = vpop.f32.mrb[0].mxu0
        %v6773 = vadd.f32 0.0, %v6772
        %v6774 = vpop.f32.mrb[0].mxu0
        %v6775 = vpop.f32.mrb[0].mxu0
        %v6776 = vpop.f32.mrb[0].mxu0
        %6777 = vdwg.mxu0
        %v6794 = vunpack.c.l.b16 %v6498
        %v6795 = vunpack.c.l.b16 %v6499
        %v6796 = vunpack.c.l.b16 %v6500
        %v6797 = vunpack.c.l.b16 %v6501
        %v6798 = vunpack.c.l.b16 %v6502
        %v6799 = vunpack.c.l.b16 %v6503
        %v6800 = vunpack.c.l.b16 %v6504
        %v6801 = vunpack.c.l.b16 %v6505
        %v6802 = vunpack.c.l.b16 %v6506
        %v6803 = vunpack.c.l.b16 %v6507
        %v6804 = vunpack.c.l.b16 %v6508
        %v6805 = vunpack.c.l.b16 %v6509
        %v6806 = vunpack.c.l.b16 %v6510
        %v6807 = vunpack.c.l.b16 %v6511
        %v6808 = vunpack.c.l.b16 %v6512
        %v6809 = vunpack.c.l.b16 %v6513
        %v6810 = vpack.c.b16 %v6795, %v6794
        %v6811 = vpack.c.b16 %v6797, %v6796
        %v6812 = vpack.c.b16 %v6799, %v6798
        %v6813 = vpack.c.b16 %v6801, %v6800
        %v6814 = vpack.c.b16 %v6803, %v6802
        %v6815 = vpack.c.b16 %v6805, %v6804
        %v6816 = vpack.c.b16 %v6807, %v6806
        %v6817 = vpack.c.b16 %v6809, %v6808
        %6826 = vmatprep.subr.bf16.mxu0 0
        %6827 = vmatpush1.bf16.msra.mxu0 %v6810
        %6828 = vmatprep.subr.bf16.mxu0 0
        %6829 = vmatpush1.bf16.msra.mxu0 %v6811
        %6830 = vmatprep.subr.bf16.mxu0 0
        %6831 = vmatpush1.bf16.msra.mxu0 %v6812
        %6832 = vmatprep.subr.bf16.mxu0 0
        %6833 = vmatpush1.bf16.msra.mxu0 %v6813
        %6834 = vmatprep.subr.bf16.mxu0 0
        %6835 = vmatpush1.bf16.msra.mxu0 %v6814
        %6836 = vmatprep.subr.bf16.mxu0 0
        %6837 = vmatpush1.bf16.msra.mxu0 %v6815
        %6838 = vmatprep.subr.bf16.mxu0 0
        %6839 = vmatpush1.bf16.msra.mxu0 %v6816
        %6840 = vmatprep.subr.bf16.mxu0 0
        %6841 = vmatpush1.bf16.msra.mxu0 %v6817
        %6842 = vmatprep.subr.bf16.mxu0 0
        %6843 = vmatpush1.bf16.msra.mxu0 0
        %6844 = vmatprep.subr.bf16.mxu0 0
        %6845 = vmatpush1.bf16.msra.mxu0 0
        %6846 = vmatprep.subr.bf16.mxu0 0
        %6847 = vmatpush1.bf16.msra.mxu0 0
        %6848 = vmatprep.subr.bf16.mxu0 0
        %6849 = vmatpush1.bf16.msra.mxu0 0
        %6850 = vmatprep.subr.bf16.mxu0 0
        %6851 = vmatpush1.bf16.msra.mxu0 0
        %6852 = vmatprep.subr.bf16.mxu0 0
        %6853 = vmatpush1.bf16.msra.mxu0 0
        %6854 = vmatprep.subr.bf16.mxu0 0
        %6855 = vmatpush1.bf16.msra.mxu0 0
        %6856 = vmatprep.subr.bf16.mxu0 0
        %6857 = vmatpush1.bf16.msra.mxu0 0
        %6858 = vmatprep.mubr.bf16.mxu0 0
        %6859 = vmatmul.mubr.bf16.gmra.mrb[0].mxu0 %v6449
        %v6860 = vpop.f32.mrb[0].mxu0
        %v6861 = vadd.f32 0.0, %v6860
        %v6862 = vpop.f32.mrb[0].mxu0
        %v6863 = vpop.f32.mrb[0].mxu0
        %v6864 = vpop.f32.mrb[0].mxu0
        %6865 = vdwg.mxu0
        %v6866 = vpack.c.bf16 %v6597, %v6597
        %v6867 = vpack.c.bf16 %v6685, %v6685
        %v6868 = vpack.c.bf16 %v6773, %v6773
        %v6869 = vpack.c.bf16 %v6861, %v6861
        %v6870 = vld [vmem:[%s11] sm:$0xf]
        %v6871 = vld [vmem:[%s11 + $0x4] sm:$0xf]
        %v6872 = vld [vmem:[%s11 + $0x8] sm:$0xf]
        %v6873 = vld [vmem:[%s11 + $0xc] sm:$0xf]
        %v6874 = vld [vmem:[%s11 + $0x10] sm:$0xf]
        %v6875 = vld [vmem:[%s11 + $0x14] sm:$0xf]
        %v6876 = vld [vmem:[%s11 + $0x18] sm:$0xf]
        %v6877 = vld [vmem:[%s11 + $0x1c] sm:$0xf]
        %v6878 = vld [vmem:[%s11 + $0x20] sm:$0xf]
        %v6879 = vld [vmem:[%s11 + $0x24] sm:$0xf]
        %v6880 = vld [vmem:[%s11 + $0x28] sm:$0xf]
        %v6881 = vld [vmem:[%s11 + $0x2c] sm:$0xf]
        %v6882 = vld [vmem:[%s11 + $0x30] sm:$0xf]
        %v6883 = vld [vmem:[%s11 + $0x34] sm:$0xf]
        %v6884 = vld [vmem:[%s11 + $0x38] sm:$0xf]
        %v6885 = vld [vmem:[%s11 + $0x3c] sm:$0xf]
        %v6886 = vld [vmem:[%s11 + $0x40] sm:$0xf]
        %v6887 = vld [vmem:[%s11 + $0x44] sm:$0xf]
        %v6888 = vld [vmem:[%s11 + $0x48] sm:$0xf]
        %v6889 = vld [vmem:[%s11 + $0x4c] sm:$0xf]
        %v6890 = vld [vmem:[%s11 + $0x50] sm:$0xf]
        %v6891 = vld [vmem:[%s11 + $0x54] sm:$0xf]
        %v6892 = vld [vmem:[%s11 + $0x58] sm:$0xf]
        %v6893 = vld [vmem:[%s11 + $0x5c] sm:$0xf]
        %v6894 = vld [vmem:[%s11 + $0x60] sm:$0xf]
        %v6895 = vld [vmem:[%s11 + $0x64] sm:$0xf]
        %v6896 = vld [vmem:[%s11 + $0x68] sm:$0xf]
        %v6897 = vld [vmem:[%s11 + $0x6c] sm:$0xf]
        %v6898 = vld [vmem:[%s11 + $0x70] sm:$0xf]
        %v6899 = vld [vmem:[%s11 + $0x74] sm:$0xf]
        %v6900 = vld [vmem:[%s11 + $0x78] sm:$0xf]
        %v6901 = vld [vmem:[%s11 + $0x7c] sm:$0xf]
        %v6918 = vunpack.c.l.b16 %v6886
        %v6919 = vunpack.c.l.b16 %v6887
        %v6920 = vunpack.c.l.b16 %v6888
        %v6921 = vunpack.c.l.b16 %v6889
        %v6922 = vunpack.c.l.b16 %v6890
        %v6923 = vunpack.c.l.b16 %v6891
        %v6924 = vunpack.c.l.b16 %v6892
        %v6925 = vunpack.c.l.b16 %v6893
        %v6926 = vunpack.c.l.b16 %v6894
        %v6927 = vunpack.c.l.b16 %v6895
        %v6928 = vunpack.c.l.b16 %v6896
        %v6929 = vunpack.c.l.b16 %v6897
        %v6930 = vunpack.c.l.b16 %v6898
        %v6931 = vunpack.c.l.b16 %v6899
        %v6932 = vunpack.c.l.b16 %v6900
        %v6933 = vunpack.c.l.b16 %v6901
        %v6934 = vpack.c.b16 %v6919, %v6918
        %v6935 = vpack.c.b16 %v6921, %v6920
        %v6936 = vpack.c.b16 %v6923, %v6922
        %v6937 = vpack.c.b16 %v6925, %v6924
        %v6938 = vpack.c.b16 %v6927, %v6926
        %v6939 = vpack.c.b16 %v6929, %v6928
        %v6940 = vpack.c.b16 %v6931, %v6930
        %v6941 = vpack.c.b16 %v6933, %v6932
        %6950 = vmatprep.subr.bf16.mxu0 0
        %6951 = vmatpush1.bf16.msra.mxu0 %v6934
        %6952 = vmatprep.subr.bf16.mxu0 0
        %6953 = vmatpush1.bf16.msra.mxu0 %v6935
        %6954 = vmatprep.subr.bf16.mxu0 0
        %6955 = vmatpush1.bf16.msra.mxu0 %v6936
        %6956 = vmatprep.subr.bf16.mxu0 0
        %6957 = vmatpush1.bf16.msra.mxu0 %v6937
        %6958 = vmatprep.subr.bf16.mxu0 0
        %6959 = vmatpush1.bf16.msra.mxu0 %v6938
        %6960 = vmatprep.subr.bf16.mxu0 0
        %6961 = vmatpush1.bf16.msra.mxu0 %v6939
        %6962 = vmatprep.subr.bf16.mxu0 0
        %6963 = vmatpush1.bf16.msra.mxu0 %v6940
        %6964 = vmatprep.subr.bf16.mxu0 0
        %6965 = vmatpush1.bf16.msra.mxu0 %v6941
        %6966 = vmatprep.subr.bf16.mxu0 0
        %6967 = vmatpush1.bf16.msra.mxu0 0
        %6968 = vmatprep.subr.bf16.mxu0 0
        %6969 = vmatpush1.bf16.msra.mxu0 0
        %6970 = vmatprep.subr.bf16.mxu0 0
        %6971 = vmatpush1.bf16.msra.mxu0 0
        %6972 = vmatprep.subr.bf16.mxu0 0
        %6973 = vmatpush1.bf16.msra.mxu0 0
        %6974 = vmatprep.subr.bf16.mxu0 0
        %6975 = vmatpush1.bf16.msra.mxu0 0
        %6976 = vmatprep.subr.bf16.mxu0 0
        %6977 = vmatpush1.bf16.msra.mxu0 0
        %6978 = vmatprep.subr.bf16.mxu0 0
        %6979 = vmatpush1.bf16.msra.mxu0 0
        %6980 = vmatprep.subr.bf16.mxu0 0
        %6981 = vmatpush1.bf16.msra.mxu0 0
        %6982 = vmatprep.mubr.bf16.mxu0 0
        %6983 = vmatmul.mubr.bf16.gmra.mrb[0].mxu0 %v5832
        %v6984 = vpop.f32.mrb[0].mxu0
        %v6985 = vadd.f32 0.0, %v6984
        %v6986 = vpop.f32.mrb[0].mxu0
        %v6987 = vpop.f32.mrb[0].mxu0
        %v6988 = vpop.f32.mrb[0].mxu0
        %6989 = vdwg.mxu0
        %v6994 = vunpack.c.l.b16 %v6866
        %v6995 = vunpack.c.l.b16 %v6867
        %v6996 = vunpack.c.l.b16 %v6868
        %v6997 = vunpack.c.l.b16 %v6869
        %v6998 = vrot.slane %v6995, 7
        %v6999 = vsel %vm2521, %v6998, %v6994
        %v7000 = vrot.slane %v6996, 6
        %v7001 = vsel %vm2524, %v7000, %v6999
        %v7002 = vrot.slane %v6997, 5
        %v7003 = vsel %vm2527, %v7002, %v7001
        %v7004 = vpack.c.b16 %v7003, %v7003
        %v7022 = vunpack.c.l.b16 %v6870
        %v7023 = vunpack.c.l.b16 %v6871
        %v7024 = vunpack.c.l.b16 %v6872
        %v7025 = vunpack.c.l.b16 %v6873
        %v7026 = vunpack.c.l.b16 %v6874
        %v7027 = vunpack.c.l.b16 %v6875
        %v7028 = vunpack.c.l.b16 %v6876
        %v7029 = vunpack.c.l.b16 %v6877
        %v7030 = vunpack.c.l.b16 %v6878
        %v7031 = vunpack.c.l.b16 %v6879
        %v7032 = vunpack.c.l.b16 %v6880
        %v7033 = vunpack.c.l.b16 %v6881
        %v7034 = vunpack.c.l.b16 %v6882
        %v7035 = vunpack.c.l.b16 %v6883
        %v7036 = vunpack.c.l.b16 %v6884
        %v7037 = vunpack.c.l.b16 %v6885
        %v7038 = vpack.c.b16 %v7023, %v7022
        %v7039 = vpack.c.b16 %v7025, %v7024
        %v7040 = vpack.c.b16 %v7027, %v7026
        %v7041 = vpack.c.b16 %v7029, %v7028
        %v7042 = vpack.c.b16 %v7031, %v7030
        %v7043 = vpack.c.b16 %v7033, %v7032
        %v7044 = vpack.c.b16 %v7035, %v7034
        %v7045 = vpack.c.b16 %v7037, %v7036
        %7054 = vmatprep.subr.bf16.mxu0 0
        %7055 = vmatpush1.bf16.msra.mxu0 %v7038
        %7056 = vmatprep.subr.bf16.mxu0 0
        %7057 = vmatpush1.bf16.msra.mxu0 %v7039
        %7058 = vmatprep.subr.bf16.mxu0 0
        %7059 = vmatpush1.bf16.msra.mxu0 %v7040
        %7060 = vmatprep.subr.bf16.mxu0 0
        %7061 = vmatpush1.bf16.msra.mxu0 %v7041
        %7062 = vmatprep.subr.bf16.mxu0 0
        %7063 = vmatpush1.bf16.msra.mxu0 %v7042
        %7064 = vmatprep.subr.bf16.mxu0 0
        %7065 = vmatpush1.bf16.msra.mxu0 %v7043
        %7066 = vmatprep.subr.bf16.mxu0 0
        %7067 = vmatpush1.bf16.msra.mxu0 %v7044
        %7068 = vmatprep.subr.bf16.mxu0 0
        %7069 = vmatpush1.bf16.msra.mxu0 %v7045
        %7070 = vmatprep.subr.bf16.mxu0 0
        %7071 = vmatpush1.bf16.msra.mxu0 0
        %7072 = vmatprep.subr.bf16.mxu0 0
        %7073 = vmatpush1.bf16.msra.mxu0 0
        %7074 = vmatprep.subr.bf16.mxu0 0
        %7075 = vmatpush1.bf16.msra.mxu0 0
        %7076 = vmatprep.subr.bf16.mxu0 0
        %7077 = vmatpush1.bf16.msra.mxu0 0
        %7078 = vmatprep.subr.bf16.mxu0 0
        %7079 = vmatpush1.bf16.msra.mxu0 0
        %7080 = vmatprep.subr.bf16.mxu0 0
        %7081 = vmatpush1.bf16.msra.mxu0 0
        %7082 = vmatprep.subr.bf16.mxu0 0
        %7083 = vmatpush1.bf16.msra.mxu0 0
        %7084 = vmatprep.subr.bf16.mxu0 0
        %7085 = vmatpush1.bf16.msra.mxu0 0
        %7086 = vmatprep.mubr.bf16.mxu0 0
        %7087 = vmatmul.mubr.bf16.gmra.mrb[0].mxu0 %v7004
        %v7088 = vpop.f32.mrb[0].mxu0
        %v7089 = vadd.f32 %v6985, %v7088
        %v7090 = vpop.f32.mrb[0].mxu0
        %v7091 = vpop.f32.mrb[0].mxu0
        %v7092 = vpop.f32.mrb[0].mxu0
        %7093 = vdwg.mxu0
        %v7094 = vtanh.pop %v7089
        %v7095 = vpack.c.bf16 %v7094, %v7094
        %v7096 = vld [vmem:[%s12] sm:$0xf]
        %v7097 = vld [vmem:[%s12 + $0x4] sm:$0xf]
        %v7098 = vld [vmem:[%s12 + $0x8] sm:$0xf]
        %v7099 = vld [vmem:[%s12 + $0xc] sm:$0xf]
        %v7100 = vld [vmem:[%s12 + $0x10] sm:$0xf]
        %v7101 = vld [vmem:[%s12 + $0x14] sm:$0xf]
        %v7102 = vld [vmem:[%s12 + $0x18] sm:$0xf]
        %v7103 = vld [vmem:[%s12 + $0x1c] sm:$0xf]
        %v7104 = vld [vmem:[%s12 + $0x20] sm:$0xf]
        %v7105 = vld [vmem:[%s12 + $0x24] sm:$0xf]
        %v7106 = vld [vmem:[%s12 + $0x28] sm:$0xf]
        %v7107 = vld [vmem:[%s12 + $0x2c] sm:$0xf]
        %v7108 = vld [vmem:[%s12 + $0x30] sm:$0xf]
        %v7109 = vld [vmem:[%s12 + $0x34] sm:$0xf]
        %v7110 = vld [vmem:[%s12 + $0x38] sm:$0xf]
        %v7111 = vld [vmem:[%s12 + $0x3c] sm:$0xf]
        %v7112 = vld [vmem:[%s13] sm:$0x1]
        %v7114 = vlaneseq
        %v7115 = vshrl.u32 %v7114, 7
        %v7116 = vsub.s32 0, %v7115
        %v7117 = vrot.slane %v7112, %v7116
        %v7135 = vunpack.c.l.b16 %v7096
        %v7136 = vunpack.c.l.b16 %v7097
        %v7137 = vunpack.c.l.b16 %v7098
        %v7138 = vunpack.c.l.b16 %v7099
        %v7139 = vunpack.c.l.b16 %v7100
        %v7140 = vunpack.c.l.b16 %v7101
        %v7141 = vunpack.c.l.b16 %v7102
        %v7142 = vunpack.c.l.b16 %v7103
        %v7143 = vunpack.c.l.b16 %v7104
        %v7144 = vunpack.c.l.b16 %v7105
        %v7145 = vunpack.c.l.b16 %v7106
        %v7146 = vunpack.c.l.b16 %v7107
        %v7147 = vunpack.c.l.b16 %v7108
        %v7148 = vunpack.c.l.b16 %v7109
        %v7149 = vunpack.c.l.b16 %v7110
        %v7150 = vunpack.c.l.b16 %v7111
        %v7151 = vpack.c.b16 %v7136, %v7135
        %v7152 = vpack.c.b16 %v7138, %v7137
        %v7153 = vpack.c.b16 %v7140, %v7139
        %v7154 = vpack.c.b16 %v7142, %v7141
        %v7155 = vpack.c.b16 %v7144, %v7143
        %v7156 = vpack.c.b16 %v7146, %v7145
        %v7157 = vpack.c.b16 %v7148, %v7147
        %v7158 = vpack.c.b16 %v7150, %v7149
        %7167 = vmatprep.subr.bf16.mxu0 0
        %7168 = vmatpush1.bf16.msra.mxu0 %v7151
        %7169 = vmatprep.subr.bf16.mxu0 0
        %7170 = vmatpush1.bf16.msra.mxu0 %v7152
        %7171 = vmatprep.subr.bf16.mxu0 0
        %7172 = vmatpush1.bf16.msra.mxu0 %v7153
        %7173 = vmatprep.subr.bf16.mxu0 0
        %7174 = vmatpush1.bf16.msra.mxu0 %v7154
        %7175 = vmatprep.subr.bf16.mxu0 0
        %7176 = vmatpush1.bf16.msra.mxu0 %v7155
        %7177 = vmatprep.subr.bf16.mxu0 0
        %7178 = vmatpush1.bf16.msra.mxu0 %v7156
        %7179 = vmatprep.subr.bf16.mxu0 0
        %7180 = vmatpush1.bf16.msra.mxu0 %v7157
        %7181 = vmatprep.subr.bf16.mxu0 0
        %7182 = vmatpush1.bf16.msra.mxu0 %v7158
        %7183 = vmatprep.subr.bf16.mxu0 0
        %7184 = vmatpush1.bf16.msra.mxu0 0
        %7185 = vmatprep.subr.bf16.mxu0 0
        %7186 = vmatpush1.bf16.msra.mxu0 0
        %7187 = vmatprep.subr.bf16.mxu0 0
        %7188 = vmatpush1.bf16.msra.mxu0 0
        %7189 = vmatprep.subr.bf16.mxu0 0
        %7190 = vmatpush1.bf16.msra.mxu0 0
        %7191 = vmatprep.subr.bf16.mxu0 0
        %7192 = vmatpush1.bf16.msra.mxu0 0
        %7193 = vmatprep.subr.bf16.mxu0 0
        %7194 = vmatpush1.bf16.msra.mxu0 0
        %7195 = vmatprep.subr.bf16.mxu0 0
        %7196 = vmatpush1.bf16.msra.mxu0 0
        %7197 = vmatprep.subr.bf16.mxu0 0
        %7198 = vmatpush1.bf16.msra.mxu0 0
        %7199 = vmatprep.mubr.bf16.mxu0 0
        %7200 = vmatmul.mubr.bf16.gmra.mrb[0].mxu0 %v7095
        %v7201 = vpop.f32.mrb[0].mxu0
        %v7202 = vadd.f32 %v7117, %v7201
        %v7203 = vpop.f32.mrb[0].mxu0
        %v7204 = vpop.f32.mrb[0].mxu0
        %v7205 = vpop.f32.mrb[0].mxu0
        %7206 = vdwg.mxu0
        %v7207 = vsel %vm2732, %v7202, -inf
        %7208 = vmax.xlane.f32.xlu0 %v7207
        %v7209 = vpop.xlane.xlu0 %7208
        %v7210 = vsub.f32 %v7202, %v7209
        %v7211 = vmul.f32 %v7210, 1.442695
        %v7212 = vpow.pop %v7211
        %v7213 = vsel %vm2732, %v7212, 0.0
        %7214 = vadd.xlane.f32.xlu0 %v7213
        %v7215 = vpop.xlane.xlu0 %7214
        %v7216 = vlog2.pop %v7215
        %v7217 = vmul.f32 %v7216, 0.6931472
        %v7218 = vsub.f32 %v7210, %v7217
        %s7219 = scalar_lea.vmem %s512, 8
        %7220 = vst [vmem:[%s7219] sm:$0xf] %v7218
        %v7225 = vcombine.low %v6442, %v6443
        %v7226 = vcombine.low %v6444, %v6445
        %v7228 = vunpack.c.l.s4 1966171168
        %v7229 = vunpack.c.0.s8 %v7228
        %v7230 = vlaneseq
        %v7231 = vshrl.u32 %v7230, 7
        %v7232 = vsub.s32 %v7229, %v7231
        %v7233 = vrot.slane %v7225, %v7232
        %v7235 = vunpack.c.l.s4 1966171168
        %v7236 = vunpack.c.0.s8 %v7235
        %v7237 = vlaneseq
        %v7238 = vshrl.u32 %v7237, 7
        %v7239 = vsub.s32 %v7236, %v7238
        %v7240 = vrot.slane %v7226, %v7239
        %v7241 = vcombine.low %v7233, %v7240
        %v7243 = vunpack.c.l.s4 1966171168
        %v7244 = vunpack.c.0.s8 %v7243
        %v7245 = vlaneseq
        %v7246 = vshrl.u32 %v7245, 7
        %v7247 = vsub.s32 %v7244, %v7246
        %v7248 = vrot.slane %v7241, %v7247
        %s7250 = scalar_lea.vmem %s518, 8
        %7251 = vst [vmem:[%s7250] sm:$0xf] %v7248
        %s7252 = sadd.s32 %s531, 3
        %s7253 = smul.u32 %s7252, 128
        %s7254 = sld [smem:[#allocation5 + %s7253]]
        %s7255 = scalar_lea.vmem %s5, %s7254
        %v7256 = vld [vmem:[%s7255] sm:$0x1]
        %s7257 = sadd.s32 %s7253, 1
        %s7258 = sld [smem:[#allocation5 + %s7257]]
        %s7259 = scalar_lea.vmem %s5, %s7258
        %v7260 = vld [vmem:[%s7259] sm:$0x1]
        %s7261 = sadd.s32 %s7253, 2
        %s7262 = sld [smem:[#allocation5 + %s7261]]
        %s7263 = scalar_lea.vmem %s5, %s7262
        %v7264 = vld [vmem:[%s7263] sm:$0x1]
        %s7265 = sadd.s32 %s7253, 3
        %s7266 = sld [smem:[#allocation5 + %s7265]]
        %s7267 = scalar_lea.vmem %s5, %s7266
        %v7268 = vld [vmem:[%s7267] sm:$0x1]
        %v7270 = vlaneseq
        %v7271 = vshrl.u32 %v7270, 7
        %v7272 = vsub.s32 0, %v7271
        %v7273 = vrot.slane %v7260, %v7272
        %v7276 = vlaneseq
        %v7277 = vshrl.u32 %v7276, 7
        %v7278 = vsub.s32 0, %v7277
        %v7279 = vrot.slane %v7264, %v7278
        %v7282 = vlaneseq
        %v7283 = vshrl.u32 %v7282, 7
        %v7284 = vsub.s32 0, %v7283
        %v7285 = vrot.slane %v7268, %v7284
        %v7287 = vsel %vm566, %v7256, %v7273
        %v7288 = vsel %vm568, %v7287, %v7279
        %v7289 = vsel %vm570, %v7288, %v7285
        %v7290 = vpack.c.bf16 %v7289, %v7289
        %v7291 = vld [vmem:[%s6] sm:$0xff]
        %v7292 = vld [vmem:[%s6 + $0x8] sm:$0xf]
        %v7293 = vld [vmem:[%s6 + $0xc] sm:$0xff]
        %v7294 = vld [vmem:[%s6 + $0x14] sm:$0xf]
        %v7295 = vld [vmem:[%s6 + $0x18] sm:$0xff]
        %v7296 = vld [vmem:[%s6 + $0x20] sm:$0xf]
        %v7297 = vld [vmem:[%s6 + $0x24] sm:$0xff]
        %v7298 = vld [vmem:[%s6 + $0x2c] sm:$0xf]
        %v7299 = vld [vmem:[%s6 + $0x30] sm:$0xff]
        %v7300 = vld [vmem:[%s6 + $0x38] sm:$0xf]
        %v7301 = vld [vmem:[%s6 + $0x3c] sm:$0xff]
        %v7302 = vld [vmem:[%s6 + $0x44] sm:$0xf]
        %v7303 = vld [vmem:[%s6 + $0x48] sm:$0xff]
        %v7304 = vld [vmem:[%s6 + $0x50] sm:$0xf]
        %v7305 = vld [vmem:[%s6 + $0x54] sm:$0xff]
        %v7306 = vld [vmem:[%s6 + $0x5c] sm:$0xf]
        %v7307 = vld [vmem:[%s6 + $0x60] sm:$0xff]
        %v7308 = vld [vmem:[%s6 + $0x68] sm:$0xf]
        %v7309 = vld [vmem:[%s6 + $0x6c] sm:$0xff]
        %v7310 = vld [vmem:[%s6 + $0x74] sm:$0xf]
        %v7311 = vld [vmem:[%s6 + $0x78] sm:$0xff]
        %v7312 = vld [vmem:[%s6 + $0x80] sm:$0xf]
        %v7313 = vld [vmem:[%s6 + $0x84] sm:$0xff]
        %v7314 = vld [vmem:[%s6 + $0x8c] sm:$0xf]
        %v7315 = vld [vmem:[%s6 + $0x90] sm:$0xff]
        %v7316 = vld [vmem:[%s6 + $0x98] sm:$0xf]
        %v7317 = vld [vmem:[%s6 + $0x9c] sm:$0xff]
        %v7318 = vld [vmem:[%s6 + $0xa4] sm:$0xf]
        %v7319 = vld [vmem:[%s6 + $0xa8] sm:$0xff]
        %v7320 = vld [vmem:[%s6 + $0xb0] sm:$0xf]
        %v7321 = vld [vmem:[%s6 + $0xb4] sm:$0xff]
        %v7322 = vld [vmem:[%s6 + $0xbc] sm:$0xf]
        %v7323 = vld [vmem:[%s6 + $0xc0] sm:$0xff]
        %v7324 = vld [vmem:[%s6 + $0xc8] sm:$0xf]
        %v7325 = vld [vmem:[%s6 + $0xcc] sm:$0xff]
        %v7326 = vld [vmem:[%s6 + $0xd4] sm:$0xf]
        %v7327 = vld [vmem:[%s6 + $0xd8] sm:$0xff]
        %v7328 = vld [vmem:[%s6 + $0xe0] sm:$0xf]
        %v7329 = vld [vmem:[%s6 + $0xe4] sm:$0xff]
        %v7330 = vld [vmem:[%s6 + $0xec] sm:$0xf]
        %v7331 = vld [vmem:[%s6 + $0xf0] sm:$0xff]
        %v7332 = vld [vmem:[%s6 + $0xf8] sm:$0xf]
        %v7333 = vld [vmem:[%s6 + $0xfc] sm:$0xff]
        %v7334 = vld [vmem:[%s6 + $0x104] sm:$0xf]
        %v7335 = vld [vmem:[%s6 + $0x108] sm:$0xff]
        %v7336 = vld [vmem:[%s6 + $0x110] sm:$0xf]
        %v7337 = vld [vmem:[%s6 + $0x114] sm:$0xff]
        %v7338 = vld [vmem:[%s6 + $0x11c] sm:$0xf]
        %v7339 = vld [vmem:[%s6 + $0x120] sm:$0xff]
        %v7340 = vld [vmem:[%s6 + $0x128] sm:$0xf]
        %v7341 = vld [vmem:[%s6 + $0x12c] sm:$0xff]
        %v7342 = vld [vmem:[%s6 + $0x134] sm:$0xf]
        %v7343 = vld [vmem:[%s6 + $0x138] sm:$0xff]
        %v7344 = vld [vmem:[%s6 + $0x140] sm:$0xf]
        %v7345 = vld [vmem:[%s6 + $0x144] sm:$0xff]
        %v7346 = vld [vmem:[%s6 + $0x14c] sm:$0xf]
        %v7347 = vld [vmem:[%s6 + $0x150] sm:$0xff]
        %v7348 = vld [vmem:[%s6 + $0x158] sm:$0xf]
        %v7349 = vld [vmem:[%s6 + $0x15c] sm:$0xff]
        %v7350 = vld [vmem:[%s6 + $0x164] sm:$0xf]
        %v7351 = vld [vmem:[%s6 + $0x168] sm:$0xff]
        %v7352 = vld [vmem:[%s6 + $0x170] sm:$0xf]
        %v7353 = vld [vmem:[%s6 + $0x174] sm:$0xff]
        %v7354 = vld [vmem:[%s6 + $0x17c] sm:$0xf]
        %v7387 = vunpack.c.l.b16 %v7323
        %v7388 = vunpack.c.h.b16 %v7323
        %v7389 = vunpack.c.l.b16 %v7324
        %v7390 = vunpack.c.l.b16 %v7325
        %v7391 = vunpack.c.h.b16 %v7325
        %v7392 = vunpack.c.l.b16 %v7326
        %v7393 = vunpack.c.l.b16 %v7327
        %v7394 = vunpack.c.h.b16 %v7327
        %v7395 = vunpack.c.l.b16 %v7328
        %v7396 = vunpack.c.l.b16 %v7329
        %v7397 = vunpack.c.h.b16 %v7329
        %v7398 = vunpack.c.l.b16 %v7330
        %v7399 = vunpack.c.l.b16 %v7331
        %v7400 = vunpack.c.h.b16 %v7331
        %v7401 = vunpack.c.l.b16 %v7332
        %v7402 = vunpack.c.l.b16 %v7333
        %v7403 = vunpack.c.h.b16 %v7333
        %v7404 = vunpack.c.l.b16 %v7334
        %v7405 = vunpack.c.l.b16 %v7335
        %v7406 = vunpack.c.h.b16 %v7335
        %v7407 = vunpack.c.l.b16 %v7336
        %v7408 = vunpack.c.l.b16 %v7337
        %v7409 = vunpack.c.h.b16 %v7337
        %v7410 = vunpack.c.l.b16 %v7338
        %v7411 = vunpack.c.l.b16 %v7339
        %v7412 = vunpack.c.h.b16 %v7339
        %v7413 = vunpack.c.l.b16 %v7340
        %v7414 = vunpack.c.l.b16 %v7341
        %v7415 = vunpack.c.h.b16 %v7341
        %v7416 = vunpack.c.l.b16 %v7342
        %v7417 = vunpack.c.l.b16 %v7343
        %v7418 = vunpack.c.h.b16 %v7343
        %v7419 = vunpack.c.l.b16 %v7344
        %v7420 = vunpack.c.l.b16 %v7345
        %v7421 = vunpack.c.h.b16 %v7345
        %v7422 = vunpack.c.l.b16 %v7346
        %v7423 = vunpack.c.l.b16 %v7347
        %v7424 = vunpack.c.h.b16 %v7347
        %v7425 = vunpack.c.l.b16 %v7348
        %v7426 = vunpack.c.l.b16 %v7349
        %v7427 = vunpack.c.h.b16 %v7349
        %v7428 = vunpack.c.l.b16 %v7350
        %v7429 = vunpack.c.l.b16 %v7351
        %v7430 = vunpack.c.h.b16 %v7351
        %v7431 = vunpack.c.l.b16 %v7352
        %v7432 = vunpack.c.l.b16 %v7353
        %v7433 = vunpack.c.h.b16 %v7353
        %v7434 = vunpack.c.l.b16 %v7354
        %v7435 = vpack.c.b16 %v7390, %v7387
        %v7436 = vpack.c.b16 %v7391, %v7388
        %v7437 = vpack.c.b16 %v7392, %v7389
        %v7438 = vpack.c.b16 %v7396, %v7393
        %v7439 = vpack.c.b16 %v7397, %v7394
        %v7440 = vpack.c.b16 %v7398, %v7395
        %v7441 = vpack.c.b16 %v7402, %v7399
        %v7442 = vpack.c.b16 %v7403, %v7400
        %v7443 = vpack.c.b16 %v7404, %v7401
        %v7444 = vpack.c.b16 %v7408, %v7405
        %v7445 = vpack.c.b16 %v7409, %v7406
        %v7446 = vpack.c.b16 %v7410, %v7407
        %v7447 = vpack.c.b16 %v7414, %v7411
        %v7448 = vpack.c.b16 %v7415, %v7412
        %v7449 = vpack.c.b16 %v7416, %v7413
        %v7450 = vpack.c.b16 %v7420, %v7417
        %v7451 = vpack.c.b16 %v7421, %v7418
        %v7452 = vpack.c.b16 %v7422, %v7419
        %v7453 = vpack.c.b16 %v7426, %v7423
        %v7454 = vpack.c.b16 %v7427, %v7424
        %v7455 = vpack.c.b16 %v7428, %v7425
        %v7456 = vpack.c.b16 %v7432, %v7429
        %v7457 = vpack.c.b16 %v7433, %v7430
        %v7458 = vpack.c.b16 %v7434, %v7431
        %7483 = vmatprep.subr.bf16.mxu0 %v7436
        %7484 = vmatpush1.bf16.msra.mxu0 %v7435
        %7485 = vmatprep.subr.bf16.mxu0 %v7439
        %7486 = vmatpush1.bf16.msra.mxu0 %v7438
        %7487 = vmatprep.subr.bf16.mxu0 %v7442
        %7488 = vmatpush1.bf16.msra.mxu0 %v7441
        %7489 = vmatprep.subr.bf16.mxu0 %v7445
        %7490 = vmatpush1.bf16.msra.mxu0 %v7444
        %7491 = vmatprep.subr.bf16.mxu0 %v7448
        %7492 = vmatpush1.bf16.msra.mxu0 %v7447
        %7493 = vmatprep.subr.bf16.mxu0 %v7451
        %7494 = vmatpush1.bf16.msra.mxu0 %v7450
        %7495 = vmatprep.subr.bf16.mxu0 %v7454
        %7496 = vmatpush1.bf16.msra.mxu0 %v7453
        %7497 = vmatprep.subr.bf16.mxu0 %v7457
        %7498 = vmatpush1.bf16.msra.mxu0 %v7456
        %7499 = vmatprep.subr.bf16.mxu0 0
        %7500 = vmatpush1.bf16.msra.mxu0 0
        %7501 = vmatprep.subr.bf16.mxu0 0
        %7502 = vmatpush1.bf16.msra.mxu0 0
        %7503 = vmatprep.subr.bf16.mxu0 0
        %7504 = vmatpush1.bf16.msra.mxu0 0
        %7505 = vmatprep.subr.bf16.mxu0 0
        %7506 = vmatpush1.bf16.msra.mxu0 0
        %7507 = vmatprep.subr.bf16.mxu0 0
        %7508 = vmatpush1.bf16.msra.mxu0 0
        %7509 = vmatprep.subr.bf16.mxu0 0
        %7510 = vmatpush1.bf16.msra.mxu0 0
        %7511 = vmatprep.subr.bf16.mxu0 0
        %7512 = vmatpush1.bf16.msra.mxu0 0
        %7513 = vmatprep.subr.bf16.mxu0 0
        %7514 = vmatpush1.bf16.msra.mxu0 0
        %7515 = vmatprep.mubr.bf16.mxu0 0
        %7516 = vmatmul.mubr.bf16.gmra.mrb[0].mxu0 %v7095
        %v7517 = vpop.f32.mrb[0].mxu0
        %v7518 = vadd.f32 0.0, %v7517
        %v7519 = vpop.f32.mrb[0].mxu0
        %v7520 = vadd.f32 0.0, %v7519
        %v7521 = vpop.f32.mrb[0].mxu0
        %v7522 = vpop.f32.mrb[0].mxu0
        %7523 = vdwg.mxu0
        %7524 = vmatprep.subr.bf16.mxu0 0
        %7525 = vmatpush1.bf16.msra.mxu0 %v7437
        %7526 = vmatprep.subr.bf16.mxu0 0
        %7527 = vmatpush1.bf16.msra.mxu0 %v7440
        %7528 = vmatprep.subr.bf16.mxu0 0
        %7529 = vmatpush1.bf16.msra.mxu0 %v7443
        %7530 = vmatprep.subr.bf16.mxu0 0
        %7531 = vmatpush1.bf16.msra.mxu0 %v7446
        %7532 = vmatprep.subr.bf16.mxu0 0
        %7533 = vmatpush1.bf16.msra.mxu0 %v7449
        %7534 = vmatprep.subr.bf16.mxu0 0
        %7535 = vmatpush1.bf16.msra.mxu0 %v7452
        %7536 = vmatprep.subr.bf16.mxu0 0
        %7537 = vmatpush1.bf16.msra.mxu0 %v7455
        %7538 = vmatprep.subr.bf16.mxu0 0
        %7539 = vmatpush1.bf16.msra.mxu0 %v7458
        %7540 = vmatprep.subr.bf16.mxu0 0
        %7541 = vmatpush1.bf16.msra.mxu0 0
        %7542 = vmatprep.subr.bf16.mxu0 0
        %7543 = vmatpush1.bf16.msra.mxu0 0
        %7544 = vmatprep.subr.bf16.mxu0 0
        %7545 = vmatpush1.bf16.msra.mxu0 0
        %7546 = vmatprep.subr.bf16.mxu0 0
        %7547 = vmatpush1.bf16.msra.mxu0 0
        %7548 = vmatprep.subr.bf16.mxu0 0
        %7549 = vmatpush1.bf16.msra.mxu0 0
        %7550 = vmatprep.subr.bf16.mxu0 0
        %7551 = vmatpush1.bf16.msra.mxu0 0
        %7552 = vmatprep.subr.bf16.mxu0 0
        %7553 = vmatpush1.bf16.msra.mxu0 0
        %7554 = vmatprep.subr.bf16.mxu0 0
        %7555 = vmatpush1.bf16.msra.mxu0 0
        %7556 = vmatprep.mubr.bf16.mxu0 0
        %7557 = vmatmul.mubr.bf16.gmra.mrb[0].mxu0 %v7095
        %v7558 = vpop.f32.mrb[0].mxu0
        %v7559 = vadd.f32 0.0, %v7558
        %v7560 = vpop.f32.mrb[0].mxu0
        %v7561 = vpop.f32.mrb[0].mxu0
        %v7562 = vpop.f32.mrb[0].mxu0
        %7563 = vdwg.mxu0
        %v7596 = vunpack.c.l.b16 %v7291
        %v7597 = vunpack.c.h.b16 %v7291
        %v7598 = vunpack.c.l.b16 %v7292
        %v7599 = vunpack.c.l.b16 %v7293
        %v7600 = vunpack.c.h.b16 %v7293
        %v7601 = vunpack.c.l.b16 %v7294
        %v7602 = vunpack.c.l.b16 %v7295
        %v7603 = vunpack.c.h.b16 %v7295
        %v7604 = vunpack.c.l.b16 %v7296
        %v7605 = vunpack.c.l.b16 %v7297
        %v7606 = vunpack.c.h.b16 %v7297
        %v7607 = vunpack.c.l.b16 %v7298
        %v7608 = vunpack.c.l.b16 %v7299
        %v7609 = vunpack.c.h.b16 %v7299
        %v7610 = vunpack.c.l.b16 %v7300
        %v7611 = vunpack.c.l.b16 %v7301
        %v7612 = vunpack.c.h.b16 %v7301
        %v7613 = vunpack.c.l.b16 %v7302
        %v7614 = vunpack.c.l.b16 %v7303
        %v7615 = vunpack.c.h.b16 %v7303
        %v7616 = vunpack.c.l.b16 %v7304
        %v7617 = vunpack.c.l.b16 %v7305
        %v7618 = vunpack.c.h.b16 %v7305
        %v7619 = vunpack.c.l.b16 %v7306
        %v7620 = vunpack.c.l.b16 %v7307
        %v7621 = vunpack.c.h.b16 %v7307
        %v7622 = vunpack.c.l.b16 %v7308
        %v7623 = vunpack.c.l.b16 %v7309
        %v7624 = vunpack.c.h.b16 %v7309
        %v7625 = vunpack.c.l.b16 %v7310
        %v7626 = vunpack.c.l.b16 %v7311
        %v7627 = vunpack.c.h.b16 %v7311
        %v7628 = vunpack.c.l.b16 %v7312
        %v7629 = vunpack.c.l.b16 %v7313
        %v7630 = vunpack.c.h.b16 %v7313
        %v7631 = vunpack.c.l.b16 %v7314
        %v7632 = vunpack.c.l.b16 %v7315
        %v7633 = vunpack.c.h.b16 %v7315
        %v7634 = vunpack.c.l.b16 %v7316
        %v7635 = vunpack.c.l.b16 %v7317
        %v7636 = vunpack.c.h.b16 %v7317
        %v7637 = vunpack.c.l.b16 %v7318
        %v7638 = vunpack.c.l.b16 %v7319
        %v7639 = vunpack.c.h.b16 %v7319
        %v7640 = vunpack.c.l.b16 %v7320
        %v7641 = vunpack.c.l.b16 %v7321
        %v7642 = vunpack.c.h.b16 %v7321
        %v7643 = vunpack.c.l.b16 %v7322
        %v7644 = vpack.c.b16 %v7599, %v7596
        %v7645 = vpack.c.b16 %v7600, %v7597
        %v7646 = vpack.c.b16 %v7601, %v7598
        %v7647 = vpack.c.b16 %v7605, %v7602
        %v7648 = vpack.c.b16 %v7606, %v7603
        %v7649 = vpack.c.b16 %v7607, %v7604
        %v7650 = vpack.c.b16 %v7611, %v7608
        %v7651 = vpack.c.b16 %v7612, %v7609
        %v7652 = vpack.c.b16 %v7613, %v7610
        %v7653 = vpack.c.b16 %v7617, %v7614
        %v7654 = vpack.c.b16 %v7618, %v7615
        %v7655 = vpack.c.b16 %v7619, %v7616
        %v7656 = vpack.c.b16 %v7623, %v7620
        %v7657 = vpack.c.b16 %v7624, %v7621
        %v7658 = vpack.c.b16 %v7625, %v7622
        %v7659 = vpack.c.b16 %v7629, %v7626
        %v7660 = vpack.c.b16 %v7630, %v7627
        %v7661 = vpack.c.b16 %v7631, %v7628
        %v7662 = vpack.c.b16 %v7635, %v7632
        %v7663 = vpack.c.b16 %v7636, %v7633
        %v7664 = vpack.c.b16 %v7637, %v7634
        %v7665 = vpack.c.b16 %v7641, %v7638
        %v7666 = vpack.c.b16 %v7642, %v7639
        %v7667 = vpack.c.b16 %v7643, %v7640
        %7692 = vmatprep.subr.bf16.mxu0 %v7645
        %7693 = vmatpush1.bf16.msra.mxu0 %v7644
        %7694 = vmatprep.subr.bf16.mxu0 %v7648
        %7695 = vmatpush1.bf16.msra.mxu0 %v7647
        %7696 = vmatprep.subr.bf16.mxu0 %v7651
        %7697 = vmatpush1.bf16.msra.mxu0 %v7650
        %7698 = vmatprep.subr.bf16.mxu0 %v7654
        %7699 = vmatpush1.bf16.msra.mxu0 %v7653
        %7700 = vmatprep.subr.bf16.mxu0 %v7657
        %7701 = vmatpush1.bf16.msra.mxu0 %v7656
        %7702 = vmatprep.subr.bf16.mxu0 %v7660
        %7703 = vmatpush1.bf16.msra.mxu0 %v7659
        %7704 = vmatprep.subr.bf16.mxu0 %v7663
        %7705 = vmatpush1.bf16.msra.mxu0 %v7662
        %7706 = vmatprep.subr.bf16.mxu0 %v7666
        %7707 = vmatpush1.bf16.msra.mxu0 %v7665
        %7708 = vmatprep.subr.bf16.mxu0 0
        %7709 = vmatpush1.bf16.msra.mxu0 0
        %7710 = vmatprep.subr.bf16.mxu0 0
        %7711 = vmatpush1.bf16.msra.mxu0 0
        %7712 = vmatprep.subr.bf16.mxu0 0
        %7713 = vmatpush1.bf16.msra.mxu0 0
        %7714 = vmatprep.subr.bf16.mxu0 0
        %7715 = vmatpush1.bf16.msra.mxu0 0
        %7716 = vmatprep.subr.bf16.mxu0 0
        %7717 = vmatpush1.bf16.msra.mxu0 0
        %7718 = vmatprep.subr.bf16.mxu0 0
        %7719 = vmatpush1.bf16.msra.mxu0 0
        %7720 = vmatprep.subr.bf16.mxu0 0
        %7721 = vmatpush1.bf16.msra.mxu0 0
        %7722 = vmatprep.subr.bf16.mxu0 0
        %7723 = vmatpush1.bf16.msra.mxu0 0
        %7724 = vmatprep.mubr.bf16.mxu0 0
        %7725 = vmatmul.mubr.bf16.gmra.mrb[0].mxu0 %v7290
        %v7726 = vpop.f32.mrb[0].mxu0
        %v7727 = vadd.f32 %v7518, %v7726
        %v7728 = vpop.f32.mrb[0].mxu0
        %v7729 = vadd.f32 %v7520, %v7728
        %v7730 = vpop.f32.mrb[0].mxu0
        %v7731 = vpop.f32.mrb[0].mxu0
        %7732 = vdwg.mxu0
        %7733 = vmatprep.subr.bf16.mxu0 0
        %7734 = vmatpush1.bf16.msra.mxu0 %v7646
        %7735 = vmatprep.subr.bf16.mxu0 0
        %7736 = vmatpush1.bf16.msra.mxu0 %v7649
        %7737 = vmatprep.subr.bf16.mxu0 0
        %7738 = vmatpush1.bf16.msra.mxu0 %v7652
        %7739 = vmatprep.subr.bf16.mxu0 0
        %7740 = vmatpush1.bf16.msra.mxu0 %v7655
        %7741 = vmatprep.subr.bf16.mxu0 0
        %7742 = vmatpush1.bf16.msra.mxu0 %v7658
        %7743 = vmatprep.subr.bf16.mxu0 0
        %7744 = vmatpush1.bf16.msra.mxu0 %v7661
        %7745 = vmatprep.subr.bf16.mxu0 0
        %7746 = vmatpush1.bf16.msra.mxu0 %v7664
        %7747 = vmatprep.subr.bf16.mxu0 0
        %7748 = vmatpush1.bf16.msra.mxu0 %v7667
        %7749 = vmatprep.subr.bf16.mxu0 0
        %7750 = vmatpush1.bf16.msra.mxu0 0
        %7751 = vmatprep.subr.bf16.mxu0 0
        %7752 = vmatpush1.bf16.msra.mxu0 0
        %7753 = vmatprep.subr.bf16.mxu0 0
        %7754 = vmatpush1.bf16.msra.mxu0 0
        %7755 = vmatprep.subr.bf16.mxu0 0
        %7756 = vmatpush1.bf16.msra.mxu0 0
        %7757 = vmatprep.subr.bf16.mxu0 0
        %7758 = vmatpush1.bf16.msra.mxu0 0
        %7759 = vmatprep.subr.bf16.mxu0 0
        %7760 = vmatpush1.bf16.msra.mxu0 0
        %7761 = vmatprep.subr.bf16.mxu0 0
        %7762 = vmatpush1.bf16.msra.mxu0 0
        %7763 = vmatprep.subr.bf16.mxu0 0
        %7764 = vmatpush1.bf16.msra.mxu0 0
        %7765 = vmatprep.mubr.bf16.mxu0 0
        %7766 = vmatmul.mubr.bf16.gmra.mrb[0].mxu0 %v7290
        %v7767 = vpop.f32.mrb[0].mxu0
        %v7768 = vadd.f32 %v7559, %v7767
        %v7769 = vpop.f32.mrb[0].mxu0
        %v7770 = vpop.f32.mrb[0].mxu0
        %v7771 = vpop.f32.mrb[0].mxu0
        %7772 = vdwg.mxu0
        %v7773 = vld [vmem:[%s8] sm:$0x7]
        %v7775 = vlaneseq
        %v7776 = vshrl.u32 %v7775, 7
        %v7777 = vsub.s32 0, %v7776
        %v7778 = vrot.slane %v7773, %v7777
        %v7779 = vlaneseq
        %v7780 = vshrl.u32 %v7779, 7
        %v7781 = vsub.s32 1, %v7780
        %v7782 = vrot.slane %v7773, %v7781
        %v7783 = vlaneseq
        %v7784 = vshrl.u32 %v7783, 7
        %v7785 = vsub.s32 2, %v7784
        %v7786 = vrot.slane %v7773, %v7785
        %v7790 = vadd.f32 %v7727, %v7778
        %v7791 = vadd.f32 %v7729, %v7782
        %v7792 = vadd.f32 %v7768, %v7786
        %v7793 = vld [vmem:[%s7] sm:$0xff]
        %v7794 = vld [vmem:[%s7 + $0x8] sm:$0xf]
        %v7795 = vld [vmem:[%s7 + $0xc] sm:$0xff]
        %v7796 = vld [vmem:[%s7 + $0x14] sm:$0xf]
        %v7797 = vld [vmem:[%s7 + $0x18] sm:$0xff]
        %v7798 = vld [vmem:[%s7 + $0x20] sm:$0xf]
        %v7799 = vld [vmem:[%s7 + $0x24] sm:$0xff]
        %v7800 = vld [vmem:[%s7 + $0x2c] sm:$0xf]
        %v7801 = vld [vmem:[%s7 + $0x30] sm:$0xff]
        %v7802 = vld [vmem:[%s7 + $0x38] sm:$0xf]
        %v7803 = vld [vmem:[%s7 + $0x3c] sm:$0xff]
        %v7804 = vld [vmem:[%s7 + $0x44] sm:$0xf]
        %v7805 = vld [vmem:[%s7 + $0x48] sm:$0xff]
        %v7806 = vld [vmem:[%s7 + $0x50] sm:$0xf]
        %v7807 = vld [vmem:[%s7 + $0x54] sm:$0xff]
        %v7808 = vld [vmem:[%s7 + $0x5c] sm:$0xf]
        %v7809 = vld [vmem:[%s7 + $0x60] sm:$0xff]
        %v7810 = vld [vmem:[%s7 + $0x68] sm:$0xf]
        %v7811 = vld [vmem:[%s7 + $0x6c] sm:$0xff]
        %v7812 = vld [vmem:[%s7 + $0x74] sm:$0xf]
        %v7813 = vld [vmem:[%s7 + $0x78] sm:$0xff]
        %v7814 = vld [vmem:[%s7 + $0x80] sm:$0xf]
        %v7815 = vld [vmem:[%s7 + $0x84] sm:$0xff]
        %v7816 = vld [vmem:[%s7 + $0x8c] sm:$0xf]
        %v7817 = vld [vmem:[%s7 + $0x90] sm:$0xff]
        %v7818 = vld [vmem:[%s7 + $0x98] sm:$0xf]
        %v7819 = vld [vmem:[%s7 + $0x9c] sm:$0xff]
        %v7820 = vld [vmem:[%s7 + $0xa4] sm:$0xf]
        %v7821 = vld [vmem:[%s7 + $0xa8] sm:$0xff]
        %v7822 = vld [vmem:[%s7 + $0xb0] sm:$0xf]
        %v7823 = vld [vmem:[%s7 + $0xb4] sm:$0xff]
        %v7824 = vld [vmem:[%s7 + $0xbc] sm:$0xf]
        %v7825 = vld [vmem:[%s9] sm:$0x7]
        %v7827 = vlaneseq
        %v7828 = vshrl.u32 %v7827, 7
        %v7829 = vsub.s32 0, %v7828
        %v7830 = vrot.slane %v7825, %v7829
        %v7831 = vlaneseq
        %v7832 = vshrl.u32 %v7831, 7
        %v7833 = vsub.s32 1, %v7832
        %v7834 = vrot.slane %v7825, %v7833
        %v7835 = vlaneseq
        %v7836 = vshrl.u32 %v7835, 7
        %v7837 = vsub.s32 2, %v7836
        %v7838 = vrot.slane %v7825, %v7837
        %v7874 = vunpack.c.l.b16 %v7793
        %v7875 = vunpack.c.h.b16 %v7793
        %v7876 = vunpack.c.l.b16 %v7794
        %v7877 = vunpack.c.l.b16 %v7795
        %v7878 = vunpack.c.h.b16 %v7795
        %v7879 = vunpack.c.l.b16 %v7796
        %v7880 = vunpack.c.l.b16 %v7797
        %v7881 = vunpack.c.h.b16 %v7797
        %v7882 = vunpack.c.l.b16 %v7798
        %v7883 = vunpack.c.l.b16 %v7799
        %v7884 = vunpack.c.h.b16 %v7799
        %v7885 = vunpack.c.l.b16 %v7800
        %v7886 = vunpack.c.l.b16 %v7801
        %v7887 = vunpack.c.h.b16 %v7801
        %v7888 = vunpack.c.l.b16 %v7802
        %v7889 = vunpack.c.l.b16 %v7803
        %v7890 = vunpack.c.h.b16 %v7803
        %v7891 = vunpack.c.l.b16 %v7804
        %v7892 = vunpack.c.l.b16 %v7805
        %v7893 = vunpack.c.h.b16 %v7805
        %v7894 = vunpack.c.l.b16 %v7806
        %v7895 = vunpack.c.l.b16 %v7807
        %v7896 = vunpack.c.h.b16 %v7807
        %v7897 = vunpack.c.l.b16 %v7808
        %v7898 = vunpack.c.l.b16 %v7809
        %v7899 = vunpack.c.h.b16 %v7809
        %v7900 = vunpack.c.l.b16 %v7810
        %v7901 = vunpack.c.l.b16 %v7811
        %v7902 = vunpack.c.h.b16 %v7811
        %v7903 = vunpack.c.l.b16 %v7812
        %v7904 = vunpack.c.l.b16 %v7813
        %v7905 = vunpack.c.h.b16 %v7813
        %v7906 = vunpack.c.l.b16 %v7814
        %v7907 = vunpack.c.l.b16 %v7815
        %v7908 = vunpack.c.h.b16 %v7815
        %v7909 = vunpack.c.l.b16 %v7816
        %v7910 = vunpack.c.l.b16 %v7817
        %v7911 = vunpack.c.h.b16 %v7817
        %v7912 = vunpack.c.l.b16 %v7818
        %v7913 = vunpack.c.l.b16 %v7819
        %v7914 = vunpack.c.h.b16 %v7819
        %v7915 = vunpack.c.l.b16 %v7820
        %v7916 = vunpack.c.l.b16 %v7821
        %v7917 = vunpack.c.h.b16 %v7821
        %v7918 = vunpack.c.l.b16 %v7822
        %v7919 = vunpack.c.l.b16 %v7823
        %v7920 = vunpack.c.h.b16 %v7823
        %v7921 = vunpack.c.l.b16 %v7824
        %v7922 = vpack.c.b16 %v7877, %v7874
        %v7923 = vpack.c.b16 %v7878, %v7875
        %v7924 = vpack.c.b16 %v7879, %v7876
        %v7925 = vpack.c.b16 %v7883, %v7880
        %v7926 = vpack.c.b16 %v7884, %v7881
        %v7927 = vpack.c.b16 %v7885, %v7882
        %v7928 = vpack.c.b16 %v7889, %v7886
        %v7929 = vpack.c.b16 %v7890, %v7887
        %v7930 = vpack.c.b16 %v7891, %v7888
        %v7931 = vpack.c.b16 %v7895, %v7892
        %v7932 = vpack.c.b16 %v7896, %v7893
        %v7933 = vpack.c.b16 %v7897, %v7894
        %v7934 = vpack.c.b16 %v7901, %v7898
        %v7935 = vpack.c.b16 %v7902, %v7899
        %v7936 = vpack.c.b16 %v7903, %v7900
        %v7937 = vpack.c.b16 %v7907, %v7904
        %v7938 = vpack.c.b16 %v7908, %v7905
        %v7939 = vpack.c.b16 %v7909, %v7906
        %v7940 = vpack.c.b16 %v7913, %v7910
        %v7941 = vpack.c.b16 %v7914, %v7911
        %v7942 = vpack.c.b16 %v7915, %v7912
        %v7943 = vpack.c.b16 %v7919, %v7916
        %v7944 = vpack.c.b16 %v7920, %v7917
        %v7945 = vpack.c.b16 %v7921, %v7918
        %7970 = vmatprep.subr.bf16.mxu0 %v7923
        %7971 = vmatpush1.bf16.msra.mxu0 %v7922
        %7972 = vmatprep.subr.bf16.mxu0 %v7926
        %7973 = vmatpush1.bf16.msra.mxu0 %v7925
        %7974 = vmatprep.subr.bf16.mxu0 %v7929
        %7975 = vmatpush1.bf16.msra.mxu0 %v7928
        %7976 = vmatprep.subr.bf16.mxu0 %v7932
        %7977 = vmatpush1.bf16.msra.mxu0 %v7931
        %7978 = vmatprep.subr.bf16.mxu0 %v7935
        %7979 = vmatpush1.bf16.msra.mxu0 %v7934
        %7980 = vmatprep.subr.bf16.mxu0 %v7938
        %7981 = vmatpush1.bf16.msra.mxu0 %v7937
        %7982 = vmatprep.subr.bf16.mxu0 %v7941
        %7983 = vmatpush1.bf16.msra.mxu0 %v7940
        %7984 = vmatprep.subr.bf16.mxu0 %v7944
        %7985 = vmatpush1.bf16.msra.mxu0 %v7943
        %7986 = vmatprep.subr.bf16.mxu0 0
        %7987 = vmatpush1.bf16.msra.mxu0 0
        %7988 = vmatprep.subr.bf16.mxu0 0
        %7989 = vmatpush1.bf16.msra.mxu0 0
        %7990 = vmatprep.subr.bf16.mxu0 0
        %7991 = vmatpush1.bf16.msra.mxu0 0
        %7992 = vmatprep.subr.bf16.mxu0 0
        %7993 = vmatpush1.bf16.msra.mxu0 0
        %7994 = vmatprep.subr.bf16.mxu0 0
        %7995 = vmatpush1.bf16.msra.mxu0 0
        %7996 = vmatprep.subr.bf16.mxu0 0
        %7997 = vmatpush1.bf16.msra.mxu0 0
        %7998 = vmatprep.subr.bf16.mxu0 0
        %7999 = vmatpush1.bf16.msra.mxu0 0
        %8000 = vmatprep.subr.bf16.mxu0 0
        %8001 = vmatpush1.bf16.msra.mxu0 0
        %8002 = vmatprep.mubr.bf16.mxu0 0
        %8003 = vmatmul.mubr.bf16.gmra.mrb[0].mxu0 %v5832
        %v8004 = vpop.f32.mrb[0].mxu0
        %v8005 = vadd.f32 %v7830, %v8004
        %v8006 = vpop.f32.mrb[0].mxu0
        %v8007 = vadd.f32 %v7834, %v8006
        %v8008 = vpop.f32.mrb[0].mxu0
        %v8009 = vpop.f32.mrb[0].mxu0
        %8010 = vdwg.mxu0
        %8011 = vmatprep.subr.bf16.mxu0 0
        %8012 = vmatpush1.bf16.msra.mxu0 %v7924
        %8013 = vmatprep.subr.bf16.mxu0 0
        %8014 = vmatpush1.bf16.msra.mxu0 %v7927
        %8015 = vmatprep.subr.bf16.mxu0 0
        %8016 = vmatpush1.bf16.msra.mxu0 %v7930
        %8017 = vmatprep.subr.bf16.mxu0 0
        %8018 = vmatpush1.bf16.msra.mxu0 %v7933
        %8019 = vmatprep.subr.bf16.mxu0 0
        %8020 = vmatpush1.bf16.msra.mxu0 %v7936
        %8021 = vmatprep.subr.bf16.mxu0 0
        %8022 = vmatpush1.bf16.msra.mxu0 %v7939
        %8023 = vmatprep.subr.bf16.mxu0 0
        %8024 = vmatpush1.bf16.msra.mxu0 %v7942
        %8025 = vmatprep.subr.bf16.mxu0 0
        %8026 = vmatpush1.bf16.msra.mxu0 %v7945
        %8027 = vmatprep.subr.bf16.mxu0 0
        %8028 = vmatpush1.bf16.msra.mxu0 0
        %8029 = vmatprep.subr.bf16.mxu0 0
        %8030 = vmatpush1.bf16.msra.mxu0 0
        %8031 = vmatprep.subr.bf16.mxu0 0
        %8032 = vmatpush1.bf16.msra.mxu0 0
        %8033 = vmatprep.subr.bf16.mxu0 0
        %8034 = vmatpush1.bf16.msra.mxu0 0
        %8035 = vmatprep.subr.bf16.mxu0 0
        %8036 = vmatpush1.bf16.msra.mxu0 0
        %8037 = vmatprep.subr.bf16.mxu0 0
        %8038 = vmatpush1.bf16.msra.mxu0 0
        %8039 = vmatprep.subr.bf16.mxu0 0
        %8040 = vmatpush1.bf16.msra.mxu0 0
        %8041 = vmatprep.subr.bf16.mxu0 0
        %8042 = vmatpush1.bf16.msra.mxu0 0
        %8043 = vmatprep.mubr.bf16.mxu0 0
        %8044 = vmatmul.mubr.bf16.gmra.mrb[0].mxu0 %v5832
        %v8045 = vpop.f32.mrb[0].mxu0
        %v8046 = vadd.f32 %v7838, %v8045
        %v8047 = vpop.f32.mrb[0].mxu0
        %v8048 = vpop.f32.mrb[0].mxu0
        %v8049 = vpop.f32.mrb[0].mxu0
        %8050 = vdwg.mxu0
        %v8051 = vadd.f32 %v7790, %v8005
        %v8052 = vsub.f32 0.0, %v8051
        %v8053 = vmul.f32 %v8052, 1.442695
        %v8054 = vpow.pop %v8053
        %v8055 = vadd.f32 %v8054, 1.0
        %v8056 = vrcp.pop %v8055
        %v8057 = vadd.f32 %v7791, %v8007
        %v8058 = vsub.f32 0.0, %v8057
        %v8059 = vmul.f32 %v8058, 1.442695
        %v8060 = vpow.pop %v8059
        %v8061 = vadd.f32 %v8060, 1.0
        %v8062 = vrcp.pop %v8061
        %v8063 = vmul.f32 %v8056, %v8046
        %v8064 = vadd.f32 %v7792, %v8063
        %v8065 = vtanh.pop %v8064
        %v8066 = vsub.f32 1.0, %v8062
        %v8067 = vmul.f32 %v8066, %v8065
        %v8068 = vmul.f32 %v8062, %v5831
        %v8069 = vadd.f32 %v8067, %v8068
        %v8070 = vpack.c.bf16 %v8069, %v8069
        %v8071 = vld [vmem:[%s10] sm:$0xf]
        %v8072 = vld [vmem:[%s10 + $0x4] sm:$0xf]
        %v8073 = vld [vmem:[%s10 + $0x8] sm:$0xf]
        %v8074 = vld [vmem:[%s10 + $0xc] sm:$0xf]
        %v8075 = vld [vmem:[%s10 + $0x10] sm:$0xf]
        %v8076 = vld [vmem:[%s10 + $0x14] sm:$0xf]
        %v8077 = vld [vmem:[%s10 + $0x18] sm:$0xf]
        %v8078 = vld [vmem:[%s10 + $0x1c] sm:$0xf]
        %v8079 = vld [vmem:[%s10 + $0x20] sm:$0xf]
        %v8080 = vld [vmem:[%s10 + $0x24] sm:$0xf]
        %v8081 = vld [vmem:[%s10 + $0x28] sm:$0xf]
        %v8082 = vld [vmem:[%s10 + $0x2c] sm:$0xf]
        %v8083 = vld [vmem:[%s10 + $0x30] sm:$0xf]
        %v8084 = vld [vmem:[%s10 + $0x34] sm:$0xf]
        %v8085 = vld [vmem:[%s10 + $0x38] sm:$0xf]
        %v8086 = vld [vmem:[%s10 + $0x3c] sm:$0xf]
        %v8103 = vunpack.c.l.b16 %v8071
        %v8104 = vunpack.c.l.b16 %v8072
        %v8105 = vunpack.c.l.b16 %v8073
        %v8106 = vunpack.c.l.b16 %v8074
        %v8107 = vunpack.c.l.b16 %v8075
        %v8108 = vunpack.c.l.b16 %v8076
        %v8109 = vunpack.c.l.b16 %v8077
        %v8110 = vunpack.c.l.b16 %v8078
        %v8111 = vunpack.c.l.b16 %v8079
        %v8112 = vunpack.c.l.b16 %v8080
        %v8113 = vunpack.c.l.b16 %v8081
        %v8114 = vunpack.c.l.b16 %v8082
        %v8115 = vunpack.c.l.b16 %v8083
        %v8116 = vunpack.c.l.b16 %v8084
        %v8117 = vunpack.c.l.b16 %v8085
        %v8118 = vunpack.c.l.b16 %v8086
        %v8119 = vpack.c.b16 %v8104, %v8103
        %v8120 = vpack.c.b16 %v8106, %v8105
        %v8121 = vpack.c.b16 %v8108, %v8107
        %v8122 = vpack.c.b16 %v8110, %v8109
        %v8123 = vpack.c.b16 %v8112, %v8111
        %v8124 = vpack.c.b16 %v8114, %v8113
        %v8125 = vpack.c.b16 %v8116, %v8115
        %v8126 = vpack.c.b16 %v8118, %v8117
        %8135 = vmatprep.subr.bf16.mxu0 0
        %8136 = vmatpush1.bf16.msra.mxu0 %v8119
        %8137 = vmatprep.subr.bf16.mxu0 0
        %8138 = vmatpush1.bf16.msra.mxu0 %v8120
        %8139 = vmatprep.subr.bf16.mxu0 0
        %8140 = vmatpush1.bf16.msra.mxu0 %v8121
        %8141 = vmatprep.subr.bf16.mxu0 0
        %8142 = vmatpush1.bf16.msra.mxu0 %v8122
        %8143 = vmatprep.subr.bf16.mxu0 0
        %8144 = vmatpush1.bf16.msra.mxu0 %v8123
        %8145 = vmatprep.subr.bf16.mxu0 0
        %8146 = vmatpush1.bf16.msra.mxu0 %v8124
        %8147 = vmatprep.subr.bf16.mxu0 0
        %8148 = vmatpush1.bf16.msra.mxu0 %v8125
        %8149 = vmatprep.subr.bf16.mxu0 0
        %8150 = vmatpush1.bf16.msra.mxu0 %v8126
        %8151 = vmatprep.subr.bf16.mxu0 0
        %8152 = vmatpush1.bf16.msra.mxu0 0
        %8153 = vmatprep.subr.bf16.mxu0 0
        %8154 = vmatpush1.bf16.msra.mxu0 0
        %8155 = vmatprep.subr.bf16.mxu0 0
        %8156 = vmatpush1.bf16.msra.mxu0 0
        %8157 = vmatprep.subr.bf16.mxu0 0
        %8158 = vmatpush1.bf16.msra.mxu0 0
        %8159 = vmatprep.subr.bf16.mxu0 0
        %8160 = vmatpush1.bf16.msra.mxu0 0
        %8161 = vmatprep.subr.bf16.mxu0 0
        %8162 = vmatpush1.bf16.msra.mxu0 0
        %8163 = vmatprep.subr.bf16.mxu0 0
        %8164 = vmatpush1.bf16.msra.mxu0 0
        %8165 = vmatprep.subr.bf16.mxu0 0
        %8166 = vmatpush1.bf16.msra.mxu0 0
        %8167 = vmatprep.mubr.bf16.mxu0 0
        %8168 = vmatmul.mubr.bf16.gmra.mrb[0].mxu0 %v8070
        %v8169 = vpop.f32.mrb[0].mxu0
        %v8170 = vadd.f32 0.0, %v8169
        %v8171 = vpop.f32.mrb[0].mxu0
        %v8172 = vpop.f32.mrb[0].mxu0
        %v8173 = vpop.f32.mrb[0].mxu0
        %8174 = vdwg.mxu0
        %v8177 = vunpack.c.l.s4 1966171168
        %v8178 = vunpack.c.0.s8 %v8177
        %v8179 = vlaneseq
        %v8180 = vshrl.u32 %v8179, 7
        %v8181 = vsub.s32 %v8178, %v8180
        %v8182 = vrot.slane %v8170, %v8181
        %v8183 = vcombine.high %v8182, %v8182
        %v8185 = vunpack.c.l.s4 1966171168
        %v8186 = vunpack.c.0.s8 %v8185
        %v8187 = vlaneseq
        %v8188 = vshrl.u32 %v8187, 7
        %v8189 = vsub.s32 %v8186, %v8188
        %v8190 = vrot.slane %v8182, %v8189
        %v8192 = vunpack.c.l.s4 1966171168
        %v8193 = vunpack.c.0.s8 %v8192
        %v8194 = vlaneseq
        %v8195 = vshrl.u32 %v8194, 7
        %v8196 = vsub.s32 %v8193, %v8195
        %v8197 = vrot.slane %v8183, %v8196
        %v8198 = vcombine.high %v8190, %v8190
        %v8199 = vcombine.high %v8197, %v8197
        %v8204 = vpack.c.bf16 %v8190, %v8190
        %v8205 = vpack.c.bf16 %v8197, %v8197
        %v8206 = vpack.c.bf16 %v8198, %v8198
        %v8207 = vpack.c.bf16 %v8199, %v8199
        %v8208 = vld [vmem:[%s3] sm:$0xf]
        %v8209 = vld [vmem:[%s3 + $0x4] sm:$0xf]
        %v8210 = vld [vmem:[%s3 + $0x8] sm:$0xf]
        %v8211 = vld [vmem:[%s3 + $0xc] sm:$0xf]
        %v8212 = vld [vmem:[%s3 + $0x10] sm:$0xf]
        %v8213 = vld [vmem:[%s3 + $0x14] sm:$0xf]
        %v8214 = vld [vmem:[%s3 + $0x18] sm:$0xf]
        %v8215 = vld [vmem:[%s3 + $0x1c] sm:$0xf]
        %v8216 = vld [vmem:[%s3 + $0x20] sm:$0xf]
        %v8217 = vld [vmem:[%s3 + $0x24] sm:$0xf]
        %v8218 = vld [vmem:[%s3 + $0x28] sm:$0xf]
        %v8219 = vld [vmem:[%s3 + $0x2c] sm:$0xf]
        %v8220 = vld [vmem:[%s3 + $0x30] sm:$0xf]
        %v8221 = vld [vmem:[%s3 + $0x34] sm:$0xf]
        %v8222 = vld [vmem:[%s3 + $0x38] sm:$0xf]
        %v8223 = vld [vmem:[%s3 + $0x3c] sm:$0xf]
        %v8224 = vld [vmem:[%s3 + $0x40] sm:$0xf]
        %v8225 = vld [vmem:[%s3 + $0x44] sm:$0xf]
        %v8226 = vld [vmem:[%s3 + $0x48] sm:$0xf]
        %v8227 = vld [vmem:[%s3 + $0x4c] sm:$0xf]
        %v8228 = vld [vmem:[%s3 + $0x50] sm:$0xf]
        %v8229 = vld [vmem:[%s3 + $0x54] sm:$0xf]
        %v8230 = vld [vmem:[%s3 + $0x58] sm:$0xf]
        %v8231 = vld [vmem:[%s3 + $0x5c] sm:$0xf]
        %v8232 = vld [vmem:[%s3 + $0x60] sm:$0xf]
        %v8233 = vld [vmem:[%s3 + $0x64] sm:$0xf]
        %v8234 = vld [vmem:[%s3 + $0x68] sm:$0xf]
        %v8235 = vld [vmem:[%s3 + $0x6c] sm:$0xf]
        %v8236 = vld [vmem:[%s3 + $0x70] sm:$0xf]
        %v8237 = vld [vmem:[%s3 + $0x74] sm:$0xf]
        %v8238 = vld [vmem:[%s3 + $0x78] sm:$0xf]
        %v8239 = vld [vmem:[%s3 + $0x7c] sm:$0xf]
        %v8240 = vld [vmem:[%s3 + $0x80] sm:$0xf]
        %v8241 = vld [vmem:[%s3 + $0x84] sm:$0xf]
        %v8242 = vld [vmem:[%s3 + $0x88] sm:$0xf]
        %v8243 = vld [vmem:[%s3 + $0x8c] sm:$0xf]
        %v8244 = vld [vmem:[%s3 + $0x90] sm:$0xf]
        %v8245 = vld [vmem:[%s3 + $0x94] sm:$0xf]
        %v8246 = vld [vmem:[%s3 + $0x98] sm:$0xf]
        %v8247 = vld [vmem:[%s3 + $0x9c] sm:$0xf]
        %v8248 = vld [vmem:[%s3 + $0xa0] sm:$0xf]
        %v8249 = vld [vmem:[%s3 + $0xa4] sm:$0xf]
        %v8250 = vld [vmem:[%s3 + $0xa8] sm:$0xf]
        %v8251 = vld [vmem:[%s3 + $0xac] sm:$0xf]
        %v8252 = vld [vmem:[%s3 + $0xb0] sm:$0xf]
        %v8253 = vld [vmem:[%s3 + $0xb4] sm:$0xf]
        %v8254 = vld [vmem:[%s3 + $0xb8] sm:$0xf]
        %v8255 = vld [vmem:[%s3 + $0xbc] sm:$0xf]
        %v8256 = vld [vmem:[%s3 + $0xc0] sm:$0xf]
        %v8257 = vld [vmem:[%s3 + $0xc4] sm:$0xf]
        %v8258 = vld [vmem:[%s3 + $0xc8] sm:$0xf]
        %v8259 = vld [vmem:[%s3 + $0xcc] sm:$0xf]
        %v8260 = vld [vmem:[%s3 + $0xd0] sm:$0xf]
        %v8261 = vld [vmem:[%s3 + $0xd4] sm:$0xf]
        %v8262 = vld [vmem:[%s3 + $0xd8] sm:$0xf]
        %v8263 = vld [vmem:[%s3 + $0xdc] sm:$0xf]
        %v8264 = vld [vmem:[%s3 + $0xe0] sm:$0xf]
        %v8265 = vld [vmem:[%s3 + $0xe4] sm:$0xf]
        %v8266 = vld [vmem:[%s3 + $0xe8] sm:$0xf]
        %v8267 = vld [vmem:[%s3 + $0xec] sm:$0xf]
        %v8268 = vld [vmem:[%s3 + $0xf0] sm:$0xf]
        %v8269 = vld [vmem:[%s3 + $0xf4] sm:$0xf]
        %v8270 = vld [vmem:[%s3 + $0xf8] sm:$0xf]
        %v8271 = vld [vmem:[%s3 + $0xfc] sm:$0xf]
        %v8288 = vunpack.c.l.b16 %v8208
        %v8289 = vunpack.c.l.b16 %v8209
        %v8290 = vunpack.c.l.b16 %v8210
        %v8291 = vunpack.c.l.b16 %v8211
        %v8292 = vunpack.c.l.b16 %v8212
        %v8293 = vunpack.c.l.b16 %v8213
        %v8294 = vunpack.c.l.b16 %v8214
        %v8295 = vunpack.c.l.b16 %v8215
        %v8296 = vunpack.c.l.b16 %v8216
        %v8297 = vunpack.c.l.b16 %v8217
        %v8298 = vunpack.c.l.b16 %v8218
        %v8299 = vunpack.c.l.b16 %v8219
        %v8300 = vunpack.c.l.b16 %v8220
        %v8301 = vunpack.c.l.b16 %v8221
        %v8302 = vunpack.c.l.b16 %v8222
        %v8303 = vunpack.c.l.b16 %v8223
        %v8304 = vpack.c.b16 %v8289, %v8288
        %v8305 = vpack.c.b16 %v8291, %v8290
        %v8306 = vpack.c.b16 %v8293, %v8292
        %v8307 = vpack.c.b16 %v8295, %v8294
        %v8308 = vpack.c.b16 %v8297, %v8296
        %v8309 = vpack.c.b16 %v8299, %v8298
        %v8310 = vpack.c.b16 %v8301, %v8300
        %v8311 = vpack.c.b16 %v8303, %v8302
        %8320 = vmatprep.subr.bf16.mxu0 0
        %8321 = vmatpush1.bf16.xpose.msra.mxu0 %v8304
        %8322 = vmatprep.subr.bf16.mxu0 0
        %8323 = vmatpush1.bf16.xpose.msra.mxu0 %v8305
        %8324 = vmatprep.subr.bf16.mxu0 0
        %8325 = vmatpush1.bf16.xpose.msra.mxu0 %v8306
        %8326 = vmatprep.subr.bf16.mxu0 0
        %8327 = vmatpush1.bf16.xpose.msra.mxu0 %v8307
        %8328 = vmatprep.subr.bf16.mxu0 0
        %8329 = vmatpush1.bf16.xpose.msra.mxu0 %v8308
        %8330 = vmatprep.subr.bf16.mxu0 0
        %8331 = vmatpush1.bf16.xpose.msra.mxu0 %v8309
        %8332 = vmatprep.subr.bf16.mxu0 0
        %8333 = vmatpush1.bf16.xpose.msra.mxu0 %v8310
        %8334 = vmatprep.subr.bf16.mxu0 0
        %8335 = vmatpush1.bf16.xpose.msra.mxu0 %v8311
        %8336 = vmatprep.subr.bf16.mxu0 0
        %8337 = vmatpush1.bf16.xpose.msra.mxu0 0
        %8338 = vmatprep.subr.bf16.mxu0 0
        %8339 = vmatpush1.bf16.xpose.msra.mxu0 0
        %8340 = vmatprep.subr.bf16.mxu0 0
        %8341 = vmatpush1.bf16.xpose.msra.mxu0 0
        %8342 = vmatprep.subr.bf16.mxu0 0
        %8343 = vmatpush1.bf16.xpose.msra.mxu0 0
        %8344 = vmatprep.subr.bf16.mxu0 0
        %8345 = vmatpush1.bf16.xpose.msra.mxu0 0
        %8346 = vmatprep.subr.bf16.mxu0 0
        %8347 = vmatpush1.bf16.xpose.msra.mxu0 0
        %8348 = vmatprep.subr.bf16.mxu0 0
        %8349 = vmatpush1.bf16.xpose.msra.mxu0 0
        %8350 = vmatprep.subr.bf16.mxu0 0
        %8351 = vmatpush1.bf16.xpose.msra.mxu0 0
        %8352 = vmatprep.mubr.bf16.mxu0 0
        %8353 = vmatmul.mubr.bf16.gmra.mrb[0].mxu0 %v8204
        %v8354 = vpop.f32.mrb[0].mxu0
        %v8355 = vadd.f32 0.0, %v8354
        %v8356 = vpop.f32.mrb[0].mxu0
        %v8357 = vpop.f32.mrb[0].mxu0
        %v8358 = vpop.f32.mrb[0].mxu0
        %8359 = vdwg.mxu0
        %v8376 = vunpack.c.l.b16 %v8224
        %v8377 = vunpack.c.l.b16 %v8225
        %v8378 = vunpack.c.l.b16 %v8226
        %v8379 = vunpack.c.l.b16 %v8227
        %v8380 = vunpack.c.l.b16 %v8228
        %v8381 = vunpack.c.l.b16 %v8229
        %v8382 = vunpack.c.l.b16 %v8230
        %v8383 = vunpack.c.l.b16 %v8231
        %v8384 = vunpack.c.l.b16 %v8232
        %v8385 = vunpack.c.l.b16 %v8233
        %v8386 = vunpack.c.l.b16 %v8234
        %v8387 = vunpack.c.l.b16 %v8235
        %v8388 = vunpack.c.l.b16 %v8236
        %v8389 = vunpack.c.l.b16 %v8237
        %v8390 = vunpack.c.l.b16 %v8238
        %v8391 = vunpack.c.l.b16 %v8239
        %v8392 = vpack.c.b16 %v8377, %v8376
        %v8393 = vpack.c.b16 %v8379, %v8378
        %v8394 = vpack.c.b16 %v8381, %v8380
        %v8395 = vpack.c.b16 %v8383, %v8382
        %v8396 = vpack.c.b16 %v8385, %v8384
        %v8397 = vpack.c.b16 %v8387, %v8386
        %v8398 = vpack.c.b16 %v8389, %v8388
        %v8399 = vpack.c.b16 %v8391, %v8390
        %8408 = vmatprep.subr.bf16.mxu0 0
        %8409 = vmatpush1.bf16.xpose.msra.mxu0 %v8392
        %8410 = vmatprep.subr.bf16.mxu0 0
        %8411 = vmatpush1.bf16.xpose.msra.mxu0 %v8393
        %8412 = vmatprep.subr.bf16.mxu0 0
        %8413 = vmatpush1.bf16.xpose.msra.mxu0 %v8394
        %8414 = vmatprep.subr.bf16.mxu0 0
        %8415 = vmatpush1.bf16.xpose.msra.mxu0 %v8395
        %8416 = vmatprep.subr.bf16.mxu0 0
        %8417 = vmatpush1.bf16.xpose.msra.mxu0 %v8396
        %8418 = vmatprep.subr.bf16.mxu0 0
        %8419 = vmatpush1.bf16.xpose.msra.mxu0 %v8397
        %8420 = vmatprep.subr.bf16.mxu0 0
        %8421 = vmatpush1.bf16.xpose.msra.mxu0 %v8398
        %8422 = vmatprep.subr.bf16.mxu0 0
        %8423 = vmatpush1.bf16.xpose.msra.mxu0 %v8399
        %8424 = vmatprep.subr.bf16.mxu0 0
        %8425 = vmatpush1.bf16.xpose.msra.mxu0 0
        %8426 = vmatprep.subr.bf16.mxu0 0
        %8427 = vmatpush1.bf16.xpose.msra.mxu0 0
        %8428 = vmatprep.subr.bf16.mxu0 0
        %8429 = vmatpush1.bf16.xpose.msra.mxu0 0
        %8430 = vmatprep.subr.bf16.mxu0 0
        %8431 = vmatpush1.bf16.xpose.msra.mxu0 0
        %8432 = vmatprep.subr.bf16.mxu0 0
        %8433 = vmatpush1.bf16.xpose.msra.mxu0 0
        %8434 = vmatprep.subr.bf16.mxu0 0
        %8435 = vmatpush1.bf16.xpose.msra.mxu0 0
        %8436 = vmatprep.subr.bf16.mxu0 0
        %8437 = vmatpush1.bf16.xpose.msra.mxu0 0
        %8438 = vmatprep.subr.bf16.mxu0 0
        %8439 = vmatpush1.bf16.xpose.msra.mxu0 0
        %8440 = vmatprep.mubr.bf16.mxu0 0
        %8441 = vmatmul.mubr.bf16.gmra.mrb[0].mxu0 %v8205
        %v8442 = vpop.f32.mrb[0].mxu0
        %v8443 = vadd.f32 0.0, %v8442
        %v8444 = vpop.f32.mrb[0].mxu0
        %v8445 = vpop.f32.mrb[0].mxu0
        %v8446 = vpop.f32.mrb[0].mxu0
        %8447 = vdwg.mxu0
        %v8464 = vunpack.c.l.b16 %v8240
        %v8465 = vunpack.c.l.b16 %v8241
        %v8466 = vunpack.c.l.b16 %v8242
        %v8467 = vunpack.c.l.b16 %v8243
        %v8468 = vunpack.c.l.b16 %v8244
        %v8469 = vunpack.c.l.b16 %v8245
        %v8470 = vunpack.c.l.b16 %v8246
        %v8471 = vunpack.c.l.b16 %v8247
        %v8472 = vunpack.c.l.b16 %v8248
        %v8473 = vunpack.c.l.b16 %v8249
        %v8474 = vunpack.c.l.b16 %v8250
        %v8475 = vunpack.c.l.b16 %v8251
        %v8476 = vunpack.c.l.b16 %v8252
        %v8477 = vunpack.c.l.b16 %v8253
        %v8478 = vunpack.c.l.b16 %v8254
        %v8479 = vunpack.c.l.b16 %v8255
        %v8480 = vpack.c.b16 %v8465, %v8464
        %v8481 = vpack.c.b16 %v8467, %v8466
        %v8482 = vpack.c.b16 %v8469, %v8468
        %v8483 = vpack.c.b16 %v8471, %v8470
        %v8484 = vpack.c.b16 %v8473, %v8472
        %v8485 = vpack.c.b16 %v8475, %v8474
        %v8486 = vpack.c.b16 %v8477, %v8476
        %v8487 = vpack.c.b16 %v8479, %v8478
        %8496 = vmatprep.subr.bf16.mxu0 0
        %8497 = vmatpush1.bf16.xpose.msra.mxu0 %v8480
        %8498 = vmatprep.subr.bf16.mxu0 0
        %8499 = vmatpush1.bf16.xpose.msra.mxu0 %v8481
        %8500 = vmatprep.subr.bf16.mxu0 0
        %8501 = vmatpush1.bf16.xpose.msra.mxu0 %v8482
        %8502 = vmatprep.subr.bf16.mxu0 0
        %8503 = vmatpush1.bf16.xpose.msra.mxu0 %v8483
        %8504 = vmatprep.subr.bf16.mxu0 0
        %8505 = vmatpush1.bf16.xpose.msra.mxu0 %v8484
        %8506 = vmatprep.subr.bf16.mxu0 0
        %8507 = vmatpush1.bf16.xpose.msra.mxu0 %v8485
        %8508 = vmatprep.subr.bf16.mxu0 0
        %8509 = vmatpush1.bf16.xpose.msra.mxu0 %v8486
        %8510 = vmatprep.subr.bf16.mxu0 0
        %8511 = vmatpush1.bf16.xpose.msra.mxu0 %v8487
        %8512 = vmatprep.subr.bf16.mxu0 0
        %8513 = vmatpush1.bf16.xpose.msra.mxu0 0
        %8514 = vmatprep.subr.bf16.mxu0 0
        %8515 = vmatpush1.bf16.xpose.msra.mxu0 0
        %8516 = vmatprep.subr.bf16.mxu0 0
        %8517 = vmatpush1.bf16.xpose.msra.mxu0 0
        %8518 = vmatprep.subr.bf16.mxu0 0
        %8519 = vmatpush1.bf16.xpose.msra.mxu0 0
        %8520 = vmatprep.subr.bf16.mxu0 0
        %8521 = vmatpush1.bf16.xpose.msra.mxu0 0
        %8522 = vmatprep.subr.bf16.mxu0 0
        %8523 = vmatpush1.bf16.xpose.msra.mxu0 0
        %8524 = vmatprep.subr.bf16.mxu0 0
        %8525 = vmatpush1.bf16.xpose.msra.mxu0 0
        %8526 = vmatprep.subr.bf16.mxu0 0
        %8527 = vmatpush1.bf16.xpose.msra.mxu0 0
        %8528 = vmatprep.mubr.bf16.mxu0 0
        %8529 = vmatmul.mubr.bf16.gmra.mrb[0].mxu0 %v8206
        %v8530 = vpop.f32.mrb[0].mxu0
        %v8531 = vadd.f32 0.0, %v8530
        %v8532 = vpop.f32.mrb[0].mxu0
        %v8533 = vpop.f32.mrb[0].mxu0
        %v8534 = vpop.f32.mrb[0].mxu0
        %8535 = vdwg.mxu0
        %v8552 = vunpack.c.l.b16 %v8256
        %v8553 = vunpack.c.l.b16 %v8257
        %v8554 = vunpack.c.l.b16 %v8258
        %v8555 = vunpack.c.l.b16 %v8259
        %v8556 = vunpack.c.l.b16 %v8260
        %v8557 = vunpack.c.l.b16 %v8261
        %v8558 = vunpack.c.l.b16 %v8262
        %v8559 = vunpack.c.l.b16 %v8263
        %v8560 = vunpack.c.l.b16 %v8264
        %v8561 = vunpack.c.l.b16 %v8265
        %v8562 = vunpack.c.l.b16 %v8266
        %v8563 = vunpack.c.l.b16 %v8267
        %v8564 = vunpack.c.l.b16 %v8268
        %v8565 = vunpack.c.l.b16 %v8269
        %v8566 = vunpack.c.l.b16 %v8270
        %v8567 = vunpack.c.l.b16 %v8271
        %v8568 = vpack.c.b16 %v8553, %v8552
        %v8569 = vpack.c.b16 %v8555, %v8554
        %v8570 = vpack.c.b16 %v8557, %v8556
        %v8571 = vpack.c.b16 %v8559, %v8558
        %v8572 = vpack.c.b16 %v8561, %v8560
        %v8573 = vpack.c.b16 %v8563, %v8562
        %v8574 = vpack.c.b16 %v8565, %v8564
        %v8575 = vpack.c.b16 %v8567, %v8566
        %8584 = vmatprep.subr.bf16.mxu0 0
        %8585 = vmatpush1.bf16.xpose.msra.mxu0 %v8568
        %8586 = vmatprep.subr.bf16.mxu0 0
        %8587 = vmatpush1.bf16.xpose.msra.mxu0 %v8569
        %8588 = vmatprep.subr.bf16.mxu0 0
        %8589 = vmatpush1.bf16.xpose.msra.mxu0 %v8570
        %8590 = vmatprep.subr.bf16.mxu0 0
        %8591 = vmatpush1.bf16.xpose.msra.mxu0 %v8571
        %8592 = vmatprep.subr.bf16.mxu0 0
        %8593 = vmatpush1.bf16.xpose.msra.mxu0 %v8572
        %8594 = vmatprep.subr.bf16.mxu0 0
        %8595 = vmatpush1.bf16.xpose.msra.mxu0 %v8573
        %8596 = vmatprep.subr.bf16.mxu0 0
        %8597 = vmatpush1.bf16.xpose.msra.mxu0 %v8574
        %8598 = vmatprep.subr.bf16.mxu0 0
        %8599 = vmatpush1.bf16.xpose.msra.mxu0 %v8575
        %8600 = vmatprep.subr.bf16.mxu0 0
        %8601 = vmatpush1.bf16.xpose.msra.mxu0 0
        %8602 = vmatprep.subr.bf16.mxu0 0
        %8603 = vmatpush1.bf16.xpose.msra.mxu0 0
        %8604 = vmatprep.subr.bf16.mxu0 0
        %8605 = vmatpush1.bf16.xpose.msra.mxu0 0
        %8606 = vmatprep.subr.bf16.mxu0 0
        %8607 = vmatpush1.bf16.xpose.msra.mxu0 0
        %8608 = vmatprep.subr.bf16.mxu0 0
        %8609 = vmatpush1.bf16.xpose.msra.mxu0 0
        %8610 = vmatprep.subr.bf16.mxu0 0
        %8611 = vmatpush1.bf16.xpose.msra.mxu0 0
        %8612 = vmatprep.subr.bf16.mxu0 0
        %8613 = vmatpush1.bf16.xpose.msra.mxu0 0
        %8614 = vmatprep.subr.bf16.mxu0 0
        %8615 = vmatpush1.bf16.xpose.msra.mxu0 0
        %8616 = vmatprep.mubr.bf16.mxu0 0
        %8617 = vmatmul.mubr.bf16.gmra.mrb[0].mxu0 %v8207
        %v8618 = vpop.f32.mrb[0].mxu0
        %v8619 = vadd.f32 0.0, %v8618
        %v8620 = vpop.f32.mrb[0].mxu0
        %v8621 = vpop.f32.mrb[0].mxu0
        %v8622 = vpop.f32.mrb[0].mxu0
        %8623 = vdwg.mxu0
        %v8624 = vld [vmem:[%s4] sm:$0x1]
        %v8625 = vld [vmem:[%s4 + $0x1] sm:$0x1]
        %v8626 = vld [vmem:[%s4 + $0x2] sm:$0x1]
        %v8627 = vld [vmem:[%s4 + $0x3] sm:$0x1]
        %v8628 = vmul.f32 %v8624, %v8355
        %v8629 = vmul.f32 %v8625, %v8443
        %v8630 = vmul.f32 %v8626, %v8531
        %v8631 = vmul.f32 %v8627, %v8619
        %vm8632 = vcmp.eq.f32.partialorder %v8628, 0.0
        %vm8633 = vcmp.eq.f32.partialorder %v8629, 0.0
        %vm8634 = vcmp.eq.f32.partialorder %v8630, 0.0
        %vm8635 = vcmp.eq.f32.partialorder %v8631, 0.0
        %v8636 = vsel %vm8632, -1e+10, %v8628
        %v8637 = vsel %vm8633, -1e+10, %v8629
        %v8638 = vsel %vm8634, -1e+10, %v8630
        %v8639 = vsel %vm8635, -1e+10, %v8631
        %v8640 = vsel %vm566, %v8636, -inf
        %8641 = vmax.xlane.f32.xlu0 %v8640
        %v8642 = vpop.xlane.xlu0 %8641
        %v8643 = vsel %vm566, %v8637, -inf
        %8644 = vmax.xlane.f32.xlu0 %v8643
        %v8645 = vpop.xlane.xlu0 %8644
        %v8646 = vsel %vm566, %v8638, -inf
        %8647 = vmax.xlane.f32.xlu0 %v8646
        %v8648 = vpop.xlane.xlu0 %8647
        %v8649 = vsel %vm566, %v8639, -inf
        %8650 = vmax.xlane.f32.xlu0 %v8649
        %v8651 = vpop.xlane.xlu0 %8650
        %v8652 = vsub.f32 %v8636, %v8642
        %v8653 = vsub.f32 %v8637, %v8645
        %v8654 = vsub.f32 %v8638, %v8648
        %v8655 = vsub.f32 %v8639, %v8651
        %v8656 = vmul.f32 %v8652, 1.442695
        %v8657 = vpow.pop %v8656
        %v8658 = vmul.f32 %v8653, 1.442695
        %v8659 = vpow.pop %v8658
        %v8660 = vmul.f32 %v8654, 1.442695
        %v8661 = vpow.pop %v8660
        %v8662 = vmul.f32 %v8655, 1.442695
        %v8663 = vpow.pop %v8662
        %v8664 = vsel %vm566, %v8657, 0.0
        %8665 = vadd.xlane.f32.xlu0 %v8664
        %v8666 = vpop.xlane.xlu0 %8665
        %v8667 = vsel %vm566, %v8659, 0.0
        %8668 = vadd.xlane.f32.xlu0 %v8667
        %v8669 = vpop.xlane.xlu0 %8668
        %v8670 = vsel %vm566, %v8661, 0.0
        %8671 = vadd.xlane.f32.xlu0 %v8670
        %v8672 = vpop.xlane.xlu0 %8671
        %v8673 = vsel %vm566, %v8663, 0.0
        %8674 = vadd.xlane.f32.xlu0 %v8673
        %v8675 = vpop.xlane.xlu0 %8674
        %v8676 = vrcp.pop %v8666
        %v8677 = vrcp.pop %v8669
        %v8678 = vrcp.pop %v8672
        %v8679 = vrcp.pop %v8675
        %v8680 = vmul.f32 %v8657, %v8676
        %v8681 = vmul.f32 %v8659, %v8677
        %v8682 = vmul.f32 %v8661, %v8678
        %v8683 = vmul.f32 %v8663, %v8679
        %v8684 = vpack.c.bf16 %v8680, %v8680
        %v8685 = vpack.c.bf16 %v8681, %v8681
        %v8686 = vpack.c.bf16 %v8682, %v8682
        %v8687 = vpack.c.bf16 %v8683, %v8683
        %v8688 = vld [vmem:[%s3] sm:$0xf]
        %v8689 = vld [vmem:[%s3 + $0x4] sm:$0xf]
        %v8690 = vld [vmem:[%s3 + $0x8] sm:$0xf]
        %v8691 = vld [vmem:[%s3 + $0xc] sm:$0xf]
        %v8692 = vld [vmem:[%s3 + $0x10] sm:$0xf]
        %v8693 = vld [vmem:[%s3 + $0x14] sm:$0xf]
        %v8694 = vld [vmem:[%s3 + $0x18] sm:$0xf]
        %v8695 = vld [vmem:[%s3 + $0x1c] sm:$0xf]
        %v8696 = vld [vmem:[%s3 + $0x20] sm:$0xf]
        %v8697 = vld [vmem:[%s3 + $0x24] sm:$0xf]
        %v8698 = vld [vmem:[%s3 + $0x28] sm:$0xf]
        %v8699 = vld [vmem:[%s3 + $0x2c] sm:$0xf]
        %v8700 = vld [vmem:[%s3 + $0x30] sm:$0xf]
        %v8701 = vld [vmem:[%s3 + $0x34] sm:$0xf]
        %v8702 = vld [vmem:[%s3 + $0x38] sm:$0xf]
        %v8703 = vld [vmem:[%s3 + $0x3c] sm:$0xf]
        %v8704 = vld [vmem:[%s3 + $0x40] sm:$0xf]
        %v8705 = vld [vmem:[%s3 + $0x44] sm:$0xf]
        %v8706 = vld [vmem:[%s3 + $0x48] sm:$0xf]
        %v8707 = vld [vmem:[%s3 + $0x4c] sm:$0xf]
        %v8708 = vld [vmem:[%s3 + $0x50] sm:$0xf]
        %v8709 = vld [vmem:[%s3 + $0x54] sm:$0xf]
        %v8710 = vld [vmem:[%s3 + $0x58] sm:$0xf]
        %v8711 = vld [vmem:[%s3 + $0x5c] sm:$0xf]
        %v8712 = vld [vmem:[%s3 + $0x60] sm:$0xf]
        %v8713 = vld [vmem:[%s3 + $0x64] sm:$0xf]
        %v8714 = vld [vmem:[%s3 + $0x68] sm:$0xf]
        %v8715 = vld [vmem:[%s3 + $0x6c] sm:$0xf]
        %v8716 = vld [vmem:[%s3 + $0x70] sm:$0xf]
        %v8717 = vld [vmem:[%s3 + $0x74] sm:$0xf]
        %v8718 = vld [vmem:[%s3 + $0x78] sm:$0xf]
        %v8719 = vld [vmem:[%s3 + $0x7c] sm:$0xf]
        %v8720 = vld [vmem:[%s3 + $0x80] sm:$0xf]
        %v8721 = vld [vmem:[%s3 + $0x84] sm:$0xf]
        %v8722 = vld [vmem:[%s3 + $0x88] sm:$0xf]
        %v8723 = vld [vmem:[%s3 + $0x8c] sm:$0xf]
        %v8724 = vld [vmem:[%s3 + $0x90] sm:$0xf]
        %v8725 = vld [vmem:[%s3 + $0x94] sm:$0xf]
        %v8726 = vld [vmem:[%s3 + $0x98] sm:$0xf]
        %v8727 = vld [vmem:[%s3 + $0x9c] sm:$0xf]
        %v8728 = vld [vmem:[%s3 + $0xa0] sm:$0xf]
        %v8729 = vld [vmem:[%s3 + $0xa4] sm:$0xf]
        %v8730 = vld [vmem:[%s3 + $0xa8] sm:$0xf]
        %v8731 = vld [vmem:[%s3 + $0xac] sm:$0xf]
        %v8732 = vld [vmem:[%s3 + $0xb0] sm:$0xf]
        %v8733 = vld [vmem:[%s3 + $0xb4] sm:$0xf]
        %v8734 = vld [vmem:[%s3 + $0xb8] sm:$0xf]
        %v8735 = vld [vmem:[%s3 + $0xbc] sm:$0xf]
        %v8736 = vld [vmem:[%s3 + $0xc0] sm:$0xf]
        %v8737 = vld [vmem:[%s3 + $0xc4] sm:$0xf]
        %v8738 = vld [vmem:[%s3 + $0xc8] sm:$0xf]
        %v8739 = vld [vmem:[%s3 + $0xcc] sm:$0xf]
        %v8740 = vld [vmem:[%s3 + $0xd0] sm:$0xf]
        %v8741 = vld [vmem:[%s3 + $0xd4] sm:$0xf]
        %v8742 = vld [vmem:[%s3 + $0xd8] sm:$0xf]
        %v8743 = vld [vmem:[%s3 + $0xdc] sm:$0xf]
        %v8744 = vld [vmem:[%s3 + $0xe0] sm:$0xf]
        %v8745 = vld [vmem:[%s3 + $0xe4] sm:$0xf]
        %v8746 = vld [vmem:[%s3 + $0xe8] sm:$0xf]
        %v8747 = vld [vmem:[%s3 + $0xec] sm:$0xf]
        %v8748 = vld [vmem:[%s3 + $0xf0] sm:$0xf]
        %v8749 = vld [vmem:[%s3 + $0xf4] sm:$0xf]
        %v8750 = vld [vmem:[%s3 + $0xf8] sm:$0xf]
        %v8751 = vld [vmem:[%s3 + $0xfc] sm:$0xf]
        %v8768 = vunpack.c.l.b16 %v8688
        %v8769 = vunpack.c.l.b16 %v8689
        %v8770 = vunpack.c.l.b16 %v8690
        %v8771 = vunpack.c.l.b16 %v8691
        %v8772 = vunpack.c.l.b16 %v8692
        %v8773 = vunpack.c.l.b16 %v8693
        %v8774 = vunpack.c.l.b16 %v8694
        %v8775 = vunpack.c.l.b16 %v8695
        %v8776 = vunpack.c.l.b16 %v8696
        %v8777 = vunpack.c.l.b16 %v8697
        %v8778 = vunpack.c.l.b16 %v8698
        %v8779 = vunpack.c.l.b16 %v8699
        %v8780 = vunpack.c.l.b16 %v8700
        %v8781 = vunpack.c.l.b16 %v8701
        %v8782 = vunpack.c.l.b16 %v8702
        %v8783 = vunpack.c.l.b16 %v8703
        %v8784 = vpack.c.b16 %v8769, %v8768
        %v8785 = vpack.c.b16 %v8771, %v8770
        %v8786 = vpack.c.b16 %v8773, %v8772
        %v8787 = vpack.c.b16 %v8775, %v8774
        %v8788 = vpack.c.b16 %v8777, %v8776
        %v8789 = vpack.c.b16 %v8779, %v8778
        %v8790 = vpack.c.b16 %v8781, %v8780
        %v8791 = vpack.c.b16 %v8783, %v8782
        %8800 = vmatprep.subr.bf16.mxu0 0
        %8801 = vmatpush1.bf16.msra.mxu0 %v8784
        %8802 = vmatprep.subr.bf16.mxu0 0
        %8803 = vmatpush1.bf16.msra.mxu0 %v8785
        %8804 = vmatprep.subr.bf16.mxu0 0
        %8805 = vmatpush1.bf16.msra.mxu0 %v8786
        %8806 = vmatprep.subr.bf16.mxu0 0
        %8807 = vmatpush1.bf16.msra.mxu0 %v8787
        %8808 = vmatprep.subr.bf16.mxu0 0
        %8809 = vmatpush1.bf16.msra.mxu0 %v8788
        %8810 = vmatprep.subr.bf16.mxu0 0
        %8811 = vmatpush1.bf16.msra.mxu0 %v8789
        %8812 = vmatprep.subr.bf16.mxu0 0
        %8813 = vmatpush1.bf16.msra.mxu0 %v8790
        %8814 = vmatprep.subr.bf16.mxu0 0
        %8815 = vmatpush1.bf16.msra.mxu0 %v8791
        %8816 = vmatprep.subr.bf16.mxu0 0
        %8817 = vmatpush1.bf16.msra.mxu0 0
        %8818 = vmatprep.subr.bf16.mxu0 0
        %8819 = vmatpush1.bf16.msra.mxu0 0
        %8820 = vmatprep.subr.bf16.mxu0 0
        %8821 = vmatpush1.bf16.msra.mxu0 0
        %8822 = vmatprep.subr.bf16.mxu0 0
        %8823 = vmatpush1.bf16.msra.mxu0 0
        %8824 = vmatprep.subr.bf16.mxu0 0
        %8825 = vmatpush1.bf16.msra.mxu0 0
        %8826 = vmatprep.subr.bf16.mxu0 0
        %8827 = vmatpush1.bf16.msra.mxu0 0
        %8828 = vmatprep.subr.bf16.mxu0 0
        %8829 = vmatpush1.bf16.msra.mxu0 0
        %8830 = vmatprep.subr.bf16.mxu0 0
        %8831 = vmatpush1.bf16.msra.mxu0 0
        %8832 = vmatprep.mubr.bf16.mxu0 0
        %8833 = vmatmul.mubr.bf16.gmra.mrb[0].mxu0 %v8684
        %v8834 = vpop.f32.mrb[0].mxu0
        %v8835 = vadd.f32 0.0, %v8834
        %v8836 = vpop.f32.mrb[0].mxu0
        %v8837 = vpop.f32.mrb[0].mxu0
        %v8838 = vpop.f32.mrb[0].mxu0
        %8839 = vdwg.mxu0
        %v8856 = vunpack.c.l.b16 %v8704
        %v8857 = vunpack.c.l.b16 %v8705
        %v8858 = vunpack.c.l.b16 %v8706
        %v8859 = vunpack.c.l.b16 %v8707
        %v8860 = vunpack.c.l.b16 %v8708
        %v8861 = vunpack.c.l.b16 %v8709
        %v8862 = vunpack.c.l.b16 %v8710
        %v8863 = vunpack.c.l.b16 %v8711
        %v8864 = vunpack.c.l.b16 %v8712
        %v8865 = vunpack.c.l.b16 %v8713
        %v8866 = vunpack.c.l.b16 %v8714
        %v8867 = vunpack.c.l.b16 %v8715
        %v8868 = vunpack.c.l.b16 %v8716
        %v8869 = vunpack.c.l.b16 %v8717
        %v8870 = vunpack.c.l.b16 %v8718
        %v8871 = vunpack.c.l.b16 %v8719
        %v8872 = vpack.c.b16 %v8857, %v8856
        %v8873 = vpack.c.b16 %v8859, %v8858
        %v8874 = vpack.c.b16 %v8861, %v8860
        %v8875 = vpack.c.b16 %v8863, %v8862
        %v8876 = vpack.c.b16 %v8865, %v8864
        %v8877 = vpack.c.b16 %v8867, %v8866
        %v8878 = vpack.c.b16 %v8869, %v8868
        %v8879 = vpack.c.b16 %v8871, %v8870
        %8888 = vmatprep.subr.bf16.mxu0 0
        %8889 = vmatpush1.bf16.msra.mxu0 %v8872
        %8890 = vmatprep.subr.bf16.mxu0 0
        %8891 = vmatpush1.bf16.msra.mxu0 %v8873
        %8892 = vmatprep.subr.bf16.mxu0 0
        %8893 = vmatpush1.bf16.msra.mxu0 %v8874
        %8894 = vmatprep.subr.bf16.mxu0 0
        %8895 = vmatpush1.bf16.msra.mxu0 %v8875
        %8896 = vmatprep.subr.bf16.mxu0 0
        %8897 = vmatpush1.bf16.msra.mxu0 %v8876
        %8898 = vmatprep.subr.bf16.mxu0 0
        %8899 = vmatpush1.bf16.msra.mxu0 %v8877
        %8900 = vmatprep.subr.bf16.mxu0 0
        %8901 = vmatpush1.bf16.msra.mxu0 %v8878
        %8902 = vmatprep.subr.bf16.mxu0 0
        %8903 = vmatpush1.bf16.msra.mxu0 %v8879
        %8904 = vmatprep.subr.bf16.mxu0 0
        %8905 = vmatpush1.bf16.msra.mxu0 0
        %8906 = vmatprep.subr.bf16.mxu0 0
        %8907 = vmatpush1.bf16.msra.mxu0 0
        %8908 = vmatprep.subr.bf16.mxu0 0
        %8909 = vmatpush1.bf16.msra.mxu0 0
        %8910 = vmatprep.subr.bf16.mxu0 0
        %8911 = vmatpush1.bf16.msra.mxu0 0
        %8912 = vmatprep.subr.bf16.mxu0 0
        %8913 = vmatpush1.bf16.msra.mxu0 0
        %8914 = vmatprep.subr.bf16.mxu0 0
        %8915 = vmatpush1.bf16.msra.mxu0 0
        %8916 = vmatprep.subr.bf16.mxu0 0
        %8917 = vmatpush1.bf16.msra.mxu0 0
        %8918 = vmatprep.subr.bf16.mxu0 0
        %8919 = vmatpush1.bf16.msra.mxu0 0
        %8920 = vmatprep.mubr.bf16.mxu0 0
        %8921 = vmatmul.mubr.bf16.gmra.mrb[0].mxu0 %v8685
        %v8922 = vpop.f32.mrb[0].mxu0
        %v8923 = vadd.f32 0.0, %v8922
        %v8924 = vpop.f32.mrb[0].mxu0
        %v8925 = vpop.f32.mrb[0].mxu0
        %v8926 = vpop.f32.mrb[0].mxu0
        %8927 = vdwg.mxu0
        %v8944 = vunpack.c.l.b16 %v8720
        %v8945 = vunpack.c.l.b16 %v8721
        %v8946 = vunpack.c.l.b16 %v8722
        %v8947 = vunpack.c.l.b16 %v8723
        %v8948 = vunpack.c.l.b16 %v8724
        %v8949 = vunpack.c.l.b16 %v8725
        %v8950 = vunpack.c.l.b16 %v8726
        %v8951 = vunpack.c.l.b16 %v8727
        %v8952 = vunpack.c.l.b16 %v8728
        %v8953 = vunpack.c.l.b16 %v8729
        %v8954 = vunpack.c.l.b16 %v8730
        %v8955 = vunpack.c.l.b16 %v8731
        %v8956 = vunpack.c.l.b16 %v8732
        %v8957 = vunpack.c.l.b16 %v8733
        %v8958 = vunpack.c.l.b16 %v8734
        %v8959 = vunpack.c.l.b16 %v8735
        %v8960 = vpack.c.b16 %v8945, %v8944
        %v8961 = vpack.c.b16 %v8947, %v8946
        %v8962 = vpack.c.b16 %v8949, %v8948
        %v8963 = vpack.c.b16 %v8951, %v8950
        %v8964 = vpack.c.b16 %v8953, %v8952
        %v8965 = vpack.c.b16 %v8955, %v8954
        %v8966 = vpack.c.b16 %v8957, %v8956
        %v8967 = vpack.c.b16 %v8959, %v8958
        %8976 = vmatprep.subr.bf16.mxu0 0
        %8977 = vmatpush1.bf16.msra.mxu0 %v8960
        %8978 = vmatprep.subr.bf16.mxu0 0
        %8979 = vmatpush1.bf16.msra.mxu0 %v8961
        %8980 = vmatprep.subr.bf16.mxu0 0
        %8981 = vmatpush1.bf16.msra.mxu0 %v8962
        %8982 = vmatprep.subr.bf16.mxu0 0
        %8983 = vmatpush1.bf16.msra.mxu0 %v8963
        %8984 = vmatprep.subr.bf16.mxu0 0
        %8985 = vmatpush1.bf16.msra.mxu0 %v8964
        %8986 = vmatprep.subr.bf16.mxu0 0
        %8987 = vmatpush1.bf16.msra.mxu0 %v8965
        %8988 = vmatprep.subr.bf16.mxu0 0
        %8989 = vmatpush1.bf16.msra.mxu0 %v8966
        %8990 = vmatprep.subr.bf16.mxu0 0
        %8991 = vmatpush1.bf16.msra.mxu0 %v8967
        %8992 = vmatprep.subr.bf16.mxu0 0
        %8993 = vmatpush1.bf16.msra.mxu0 0
        %8994 = vmatprep.subr.bf16.mxu0 0
        %8995 = vmatpush1.bf16.msra.mxu0 0
        %8996 = vmatprep.subr.bf16.mxu0 0
        %8997 = vmatpush1.bf16.msra.mxu0 0
        %8998 = vmatprep.subr.bf16.mxu0 0
        %8999 = vmatpush1.bf16.msra.mxu0 0
        %9000 = vmatprep.subr.bf16.mxu0 0
        %9001 = vmatpush1.bf16.msra.mxu0 0
        %9002 = vmatprep.subr.bf16.mxu0 0
        %9003 = vmatpush1.bf16.msra.mxu0 0
        %9004 = vmatprep.subr.bf16.mxu0 0
        %9005 = vmatpush1.bf16.msra.mxu0 0
        %9006 = vmatprep.subr.bf16.mxu0 0
        %9007 = vmatpush1.bf16.msra.mxu0 0
        %9008 = vmatprep.mubr.bf16.mxu0 0
        %9009 = vmatmul.mubr.bf16.gmra.mrb[0].mxu0 %v8686
        %v9010 = vpop.f32.mrb[0].mxu0
        %v9011 = vadd.f32 0.0, %v9010
        %v9012 = vpop.f32.mrb[0].mxu0
        %v9013 = vpop.f32.mrb[0].mxu0
        %v9014 = vpop.f32.mrb[0].mxu0
        %9015 = vdwg.mxu0
        %v9032 = vunpack.c.l.b16 %v8736
        %v9033 = vunpack.c.l.b16 %v8737
        %v9034 = vunpack.c.l.b16 %v8738
        %v9035 = vunpack.c.l.b16 %v8739
        %v9036 = vunpack.c.l.b16 %v8740
        %v9037 = vunpack.c.l.b16 %v8741
        %v9038 = vunpack.c.l.b16 %v8742
        %v9039 = vunpack.c.l.b16 %v8743
        %v9040 = vunpack.c.l.b16 %v8744
        %v9041 = vunpack.c.l.b16 %v8745
        %v9042 = vunpack.c.l.b16 %v8746
        %v9043 = vunpack.c.l.b16 %v8747
        %v9044 = vunpack.c.l.b16 %v8748
        %v9045 = vunpack.c.l.b16 %v8749
        %v9046 = vunpack.c.l.b16 %v8750
        %v9047 = vunpack.c.l.b16 %v8751
        %v9048 = vpack.c.b16 %v9033, %v9032
        %v9049 = vpack.c.b16 %v9035, %v9034
        %v9050 = vpack.c.b16 %v9037, %v9036
        %v9051 = vpack.c.b16 %v9039, %v9038
        %v9052 = vpack.c.b16 %v9041, %v9040
        %v9053 = vpack.c.b16 %v9043, %v9042
        %v9054 = vpack.c.b16 %v9045, %v9044
        %v9055 = vpack.c.b16 %v9047, %v9046
        %9064 = vmatprep.subr.bf16.mxu0 0
        %9065 = vmatpush1.bf16.msra.mxu0 %v9048
        %9066 = vmatprep.subr.bf16.mxu0 0
        %9067 = vmatpush1.bf16.msra.mxu0 %v9049
        %9068 = vmatprep.subr.bf16.mxu0 0
        %9069 = vmatpush1.bf16.msra.mxu0 %v9050
        %9070 = vmatprep.subr.bf16.mxu0 0
        %9071 = vmatpush1.bf16.msra.mxu0 %v9051
        %9072 = vmatprep.subr.bf16.mxu0 0
        %9073 = vmatpush1.bf16.msra.mxu0 %v9052
        %9074 = vmatprep.subr.bf16.mxu0 0
        %9075 = vmatpush1.bf16.msra.mxu0 %v9053
        %9076 = vmatprep.subr.bf16.mxu0 0
        %9077 = vmatpush1.bf16.msra.mxu0 %v9054
        %9078 = vmatprep.subr.bf16.mxu0 0
        %9079 = vmatpush1.bf16.msra.mxu0 %v9055
        %9080 = vmatprep.subr.bf16.mxu0 0
        %9081 = vmatpush1.bf16.msra.mxu0 0
        %9082 = vmatprep.subr.bf16.mxu0 0
        %9083 = vmatpush1.bf16.msra.mxu0 0
        %9084 = vmatprep.subr.bf16.mxu0 0
        %9085 = vmatpush1.bf16.msra.mxu0 0
        %9086 = vmatprep.subr.bf16.mxu0 0
        %9087 = vmatpush1.bf16.msra.mxu0 0
        %9088 = vmatprep.subr.bf16.mxu0 0
        %9089 = vmatpush1.bf16.msra.mxu0 0
        %9090 = vmatprep.subr.bf16.mxu0 0
        %9091 = vmatpush1.bf16.msra.mxu0 0
        %9092 = vmatprep.subr.bf16.mxu0 0
        %9093 = vmatpush1.bf16.msra.mxu0 0
        %9094 = vmatprep.subr.bf16.mxu0 0
        %9095 = vmatpush1.bf16.msra.mxu0 0
        %9096 = vmatprep.mubr.bf16.mxu0 0
        %9097 = vmatmul.mubr.bf16.gmra.mrb[0].mxu0 %v8687
        %v9098 = vpop.f32.mrb[0].mxu0
        %v9099 = vadd.f32 0.0, %v9098
        %v9100 = vpop.f32.mrb[0].mxu0
        %v9101 = vpop.f32.mrb[0].mxu0
        %v9102 = vpop.f32.mrb[0].mxu0
        %9103 = vdwg.mxu0
        %v9104 = vpack.c.bf16 %v8835, %v8835
        %v9105 = vpack.c.bf16 %v8923, %v8923
        %v9106 = vpack.c.bf16 %v9011, %v9011
        %v9107 = vpack.c.bf16 %v9099, %v9099
        %v9108 = vld [vmem:[%s11] sm:$0xf]
        %v9109 = vld [vmem:[%s11 + $0x4] sm:$0xf]
        %v9110 = vld [vmem:[%s11 + $0x8] sm:$0xf]
        %v9111 = vld [vmem:[%s11 + $0xc] sm:$0xf]
        %v9112 = vld [vmem:[%s11 + $0x10] sm:$0xf]
        %v9113 = vld [vmem:[%s11 + $0x14] sm:$0xf]
        %v9114 = vld [vmem:[%s11 + $0x18] sm:$0xf]
        %v9115 = vld [vmem:[%s11 + $0x1c] sm:$0xf]
        %v9116 = vld [vmem:[%s11 + $0x20] sm:$0xf]
        %v9117 = vld [vmem:[%s11 + $0x24] sm:$0xf]
        %v9118 = vld [vmem:[%s11 + $0x28] sm:$0xf]
        %v9119 = vld [vmem:[%s11 + $0x2c] sm:$0xf]
        %v9120 = vld [vmem:[%s11 + $0x30] sm:$0xf]
        %v9121 = vld [vmem:[%s11 + $0x34] sm:$0xf]
        %v9122 = vld [vmem:[%s11 + $0x38] sm:$0xf]
        %v9123 = vld [vmem:[%s11 + $0x3c] sm:$0xf]
        %v9124 = vld [vmem:[%s11 + $0x40] sm:$0xf]
        %v9125 = vld [vmem:[%s11 + $0x44] sm:$0xf]
        %v9126 = vld [vmem:[%s11 + $0x48] sm:$0xf]
        %v9127 = vld [vmem:[%s11 + $0x4c] sm:$0xf]
        %v9128 = vld [vmem:[%s11 + $0x50] sm:$0xf]
        %v9129 = vld [vmem:[%s11 + $0x54] sm:$0xf]
        %v9130 = vld [vmem:[%s11 + $0x58] sm:$0xf]
        %v9131 = vld [vmem:[%s11 + $0x5c] sm:$0xf]
        %v9132 = vld [vmem:[%s11 + $0x60] sm:$0xf]
        %v9133 = vld [vmem:[%s11 + $0x64] sm:$0xf]
        %v9134 = vld [vmem:[%s11 + $0x68] sm:$0xf]
        %v9135 = vld [vmem:[%s11 + $0x6c] sm:$0xf]
        %v9136 = vld [vmem:[%s11 + $0x70] sm:$0xf]
        %v9137 = vld [vmem:[%s11 + $0x74] sm:$0xf]
        %v9138 = vld [vmem:[%s11 + $0x78] sm:$0xf]
        %v9139 = vld [vmem:[%s11 + $0x7c] sm:$0xf]
        %v9156 = vunpack.c.l.b16 %v9124
        %v9157 = vunpack.c.l.b16 %v9125
        %v9158 = vunpack.c.l.b16 %v9126
        %v9159 = vunpack.c.l.b16 %v9127
        %v9160 = vunpack.c.l.b16 %v9128
        %v9161 = vunpack.c.l.b16 %v9129
        %v9162 = vunpack.c.l.b16 %v9130
        %v9163 = vunpack.c.l.b16 %v9131
        %v9164 = vunpack.c.l.b16 %v9132
        %v9165 = vunpack.c.l.b16 %v9133
        %v9166 = vunpack.c.l.b16 %v9134
        %v9167 = vunpack.c.l.b16 %v9135
        %v9168 = vunpack.c.l.b16 %v9136
        %v9169 = vunpack.c.l.b16 %v9137
        %v9170 = vunpack.c.l.b16 %v9138
        %v9171 = vunpack.c.l.b16 %v9139
        %v9172 = vpack.c.b16 %v9157, %v9156
        %v9173 = vpack.c.b16 %v9159, %v9158
        %v9174 = vpack.c.b16 %v9161, %v9160
        %v9175 = vpack.c.b16 %v9163, %v9162
        %v9176 = vpack.c.b16 %v9165, %v9164
        %v9177 = vpack.c.b16 %v9167, %v9166
        %v9178 = vpack.c.b16 %v9169, %v9168
        %v9179 = vpack.c.b16 %v9171, %v9170
        %9188 = vmatprep.subr.bf16.mxu0 0
        %9189 = vmatpush1.bf16.msra.mxu0 %v9172
        %9190 = vmatprep.subr.bf16.mxu0 0
        %9191 = vmatpush1.bf16.msra.mxu0 %v9173
        %9192 = vmatprep.subr.bf16.mxu0 0
        %9193 = vmatpush1.bf16.msra.mxu0 %v9174
        %9194 = vmatprep.subr.bf16.mxu0 0
        %9195 = vmatpush1.bf16.msra.mxu0 %v9175
        %9196 = vmatprep.subr.bf16.mxu0 0
        %9197 = vmatpush1.bf16.msra.mxu0 %v9176
        %9198 = vmatprep.subr.bf16.mxu0 0
        %9199 = vmatpush1.bf16.msra.mxu0 %v9177
        %9200 = vmatprep.subr.bf16.mxu0 0
        %9201 = vmatpush1.bf16.msra.mxu0 %v9178
        %9202 = vmatprep.subr.bf16.mxu0 0
        %9203 = vmatpush1.bf16.msra.mxu0 %v9179
        %9204 = vmatprep.subr.bf16.mxu0 0
        %9205 = vmatpush1.bf16.msra.mxu0 0
        %9206 = vmatprep.subr.bf16.mxu0 0
        %9207 = vmatpush1.bf16.msra.mxu0 0
        %9208 = vmatprep.subr.bf16.mxu0 0
        %9209 = vmatpush1.bf16.msra.mxu0 0
        %9210 = vmatprep.subr.bf16.mxu0 0
        %9211 = vmatpush1.bf16.msra.mxu0 0
        %9212 = vmatprep.subr.bf16.mxu0 0
        %9213 = vmatpush1.bf16.msra.mxu0 0
        %9214 = vmatprep.subr.bf16.mxu0 0
        %9215 = vmatpush1.bf16.msra.mxu0 0
        %9216 = vmatprep.subr.bf16.mxu0 0
        %9217 = vmatpush1.bf16.msra.mxu0 0
        %9218 = vmatprep.subr.bf16.mxu0 0
        %9219 = vmatpush1.bf16.msra.mxu0 0
        %9220 = vmatprep.mubr.bf16.mxu0 0
        %9221 = vmatmul.mubr.bf16.gmra.mrb[0].mxu0 %v8070
        %v9222 = vpop.f32.mrb[0].mxu0
        %v9223 = vadd.f32 0.0, %v9222
        %v9224 = vpop.f32.mrb[0].mxu0
        %v9225 = vpop.f32.mrb[0].mxu0
        %v9226 = vpop.f32.mrb[0].mxu0
        %9227 = vdwg.mxu0
        %v9232 = vunpack.c.l.b16 %v9104
        %v9233 = vunpack.c.l.b16 %v9105
        %v9234 = vunpack.c.l.b16 %v9106
        %v9235 = vunpack.c.l.b16 %v9107
        %v9236 = vrot.slane %v9233, 7
        %v9237 = vsel %vm2521, %v9236, %v9232
        %v9238 = vrot.slane %v9234, 6
        %v9239 = vsel %vm2524, %v9238, %v9237
        %v9240 = vrot.slane %v9235, 5
        %v9241 = vsel %vm2527, %v9240, %v9239
        %v9242 = vpack.c.b16 %v9241, %v9241
        %v9260 = vunpack.c.l.b16 %v9108
        %v9261 = vunpack.c.l.b16 %v9109
        %v9262 = vunpack.c.l.b16 %v9110
        %v9263 = vunpack.c.l.b16 %v9111
        %v9264 = vunpack.c.l.b16 %v9112
        %v9265 = vunpack.c.l.b16 %v9113
        %v9266 = vunpack.c.l.b16 %v9114
        %v9267 = vunpack.c.l.b16 %v9115
        %v9268 = vunpack.c.l.b16 %v9116
        %v9269 = vunpack.c.l.b16 %v9117
        %v9270 = vunpack.c.l.b16 %v9118
        %v9271 = vunpack.c.l.b16 %v9119
        %v9272 = vunpack.c.l.b16 %v9120
        %v9273 = vunpack.c.l.b16 %v9121
        %v9274 = vunpack.c.l.b16 %v9122
        %v9275 = vunpack.c.l.b16 %v9123
        %v9276 = vpack.c.b16 %v9261, %v9260
        %v9277 = vpack.c.b16 %v9263, %v9262
        %v9278 = vpack.c.b16 %v9265, %v9264
        %v9279 = vpack.c.b16 %v9267, %v9266
        %v9280 = vpack.c.b16 %v9269, %v9268
        %v9281 = vpack.c.b16 %v9271, %v9270
        %v9282 = vpack.c.b16 %v9273, %v9272
        %v9283 = vpack.c.b16 %v9275, %v9274
        %9292 = vmatprep.subr.bf16.mxu0 0
        %9293 = vmatpush1.bf16.msra.mxu0 %v9276
        %9294 = vmatprep.subr.bf16.mxu0 0
        %9295 = vmatpush1.bf16.msra.mxu0 %v9277
        %9296 = vmatprep.subr.bf16.mxu0 0
        %9297 = vmatpush1.bf16.msra.mxu0 %v9278
        %9298 = vmatprep.subr.bf16.mxu0 0
        %9299 = vmatpush1.bf16.msra.mxu0 %v9279
        %9300 = vmatprep.subr.bf16.mxu0 0
        %9301 = vmatpush1.bf16.msra.mxu0 %v9280
        %9302 = vmatprep.subr.bf16.mxu0 0
        %9303 = vmatpush1.bf16.msra.mxu0 %v9281
        %9304 = vmatprep.subr.bf16.mxu0 0
        %9305 = vmatpush1.bf16.msra.mxu0 %v9282
        %9306 = vmatprep.subr.bf16.mxu0 0
        %9307 = vmatpush1.bf16.msra.mxu0 %v9283
        %9308 = vmatprep.subr.bf16.mxu0 0
        %9309 = vmatpush1.bf16.msra.mxu0 0
        %9310 = vmatprep.subr.bf16.mxu0 0
        %9311 = vmatpush1.bf16.msra.mxu0 0
        %9312 = vmatprep.subr.bf16.mxu0 0
        %9313 = vmatpush1.bf16.msra.mxu0 0
        %9314 = vmatprep.subr.bf16.mxu0 0
        %9315 = vmatpush1.bf16.msra.mxu0 0
        %9316 = vmatprep.subr.bf16.mxu0 0
        %9317 = vmatpush1.bf16.msra.mxu0 0
        %9318 = vmatprep.subr.bf16.mxu0 0
        %9319 = vmatpush1.bf16.msra.mxu0 0
        %9320 = vmatprep.subr.bf16.mxu0 0
        %9321 = vmatpush1.bf16.msra.mxu0 0
        %9322 = vmatprep.subr.bf16.mxu0 0
        %9323 = vmatpush1.bf16.msra.mxu0 0
        %9324 = vmatprep.mubr.bf16.mxu0 0
        %9325 = vmatmul.mubr.bf16.gmra.mrb[0].mxu0 %v9242
        %v9326 = vpop.f32.mrb[0].mxu0
        %v9327 = vadd.f32 %v9223, %v9326
        %v9328 = vpop.f32.mrb[0].mxu0
        %v9329 = vpop.f32.mrb[0].mxu0
        %v9330 = vpop.f32.mrb[0].mxu0
        %9331 = vdwg.mxu0
        %v9332 = vtanh.pop %v9327
        %v9333 = vpack.c.bf16 %v9332, %v9332
        %v9334 = vld [vmem:[%s12] sm:$0xf]
        %v9335 = vld [vmem:[%s12 + $0x4] sm:$0xf]
        %v9336 = vld [vmem:[%s12 + $0x8] sm:$0xf]
        %v9337 = vld [vmem:[%s12 + $0xc] sm:$0xf]
        %v9338 = vld [vmem:[%s12 + $0x10] sm:$0xf]
        %v9339 = vld [vmem:[%s12 + $0x14] sm:$0xf]
        %v9340 = vld [vmem:[%s12 + $0x18] sm:$0xf]
        %v9341 = vld [vmem:[%s12 + $0x1c] sm:$0xf]
        %v9342 = vld [vmem:[%s12 + $0x20] sm:$0xf]
        %v9343 = vld [vmem:[%s12 + $0x24] sm:$0xf]
        %v9344 = vld [vmem:[%s12 + $0x28] sm:$0xf]
        %v9345 = vld [vmem:[%s12 + $0x2c] sm:$0xf]
        %v9346 = vld [vmem:[%s12 + $0x30] sm:$0xf]
        %v9347 = vld [vmem:[%s12 + $0x34] sm:$0xf]
        %v9348 = vld [vmem:[%s12 + $0x38] sm:$0xf]
        %v9349 = vld [vmem:[%s12 + $0x3c] sm:$0xf]
        %v9350 = vld [vmem:[%s13] sm:$0x1]
        %v9352 = vlaneseq
        %v9353 = vshrl.u32 %v9352, 7
        %v9354 = vsub.s32 0, %v9353
        %v9355 = vrot.slane %v9350, %v9354
        %v9373 = vunpack.c.l.b16 %v9334
        %v9374 = vunpack.c.l.b16 %v9335
        %v9375 = vunpack.c.l.b16 %v9336
        %v9376 = vunpack.c.l.b16 %v9337
        %v9377 = vunpack.c.l.b16 %v9338
        %v9378 = vunpack.c.l.b16 %v9339
        %v9379 = vunpack.c.l.b16 %v9340
        %v9380 = vunpack.c.l.b16 %v9341
        %v9381 = vunpack.c.l.b16 %v9342
        %v9382 = vunpack.c.l.b16 %v9343
        %v9383 = vunpack.c.l.b16 %v9344
        %v9384 = vunpack.c.l.b16 %v9345
        %v9385 = vunpack.c.l.b16 %v9346
        %v9386 = vunpack.c.l.b16 %v9347
        %v9387 = vunpack.c.l.b16 %v9348
        %v9388 = vunpack.c.l.b16 %v9349
        %v9389 = vpack.c.b16 %v9374, %v9373
        %v9390 = vpack.c.b16 %v9376, %v9375
        %v9391 = vpack.c.b16 %v9378, %v9377
        %v9392 = vpack.c.b16 %v9380, %v9379
        %v9393 = vpack.c.b16 %v9382, %v9381
        %v9394 = vpack.c.b16 %v9384, %v9383
        %v9395 = vpack.c.b16 %v9386, %v9385
        %v9396 = vpack.c.b16 %v9388, %v9387
        %9405 = vmatprep.subr.bf16.mxu0 0
        %9406 = vmatpush1.bf16.msra.mxu0 %v9389
        %9407 = vmatprep.subr.bf16.mxu0 0
        %9408 = vmatpush1.bf16.msra.mxu0 %v9390
        %9409 = vmatprep.subr.bf16.mxu0 0
        %9410 = vmatpush1.bf16.msra.mxu0 %v9391
        %9411 = vmatprep.subr.bf16.mxu0 0
        %9412 = vmatpush1.bf16.msra.mxu0 %v9392
        %9413 = vmatprep.subr.bf16.mxu0 0
        %9414 = vmatpush1.bf16.msra.mxu0 %v9393
        %9415 = vmatprep.subr.bf16.mxu0 0
        %9416 = vmatpush1.bf16.msra.mxu0 %v9394
        %9417 = vmatprep.subr.bf16.mxu0 0
        %9418 = vmatpush1.bf16.msra.mxu0 %v9395
        %9419 = vmatprep.subr.bf16.mxu0 0
        %9420 = vmatpush1.bf16.msra.mxu0 %v9396
        %9421 = vmatprep.subr.bf16.mxu0 0
        %9422 = vmatpush1.bf16.msra.mxu0 0
        %9423 = vmatprep.subr.bf16.mxu0 0
        %9424 = vmatpush1.bf16.msra.mxu0 0
        %9425 = vmatprep.subr.bf16.mxu0 0
        %9426 = vmatpush1.bf16.msra.mxu0 0
        %9427 = vmatprep.subr.bf16.mxu0 0
        %9428 = vmatpush1.bf16.msra.mxu0 0
        %9429 = vmatprep.subr.bf16.mxu0 0
        %9430 = vmatpush1.bf16.msra.mxu0 0
        %9431 = vmatprep.subr.bf16.mxu0 0
        %9432 = vmatpush1.bf16.msra.mxu0 0
        %9433 = vmatprep.subr.bf16.mxu0 0
        %9434 = vmatpush1.bf16.msra.mxu0 0
        %9435 = vmatprep.subr.bf16.mxu0 0
        %9436 = vmatpush1.bf16.msra.mxu0 0
        %9437 = vmatprep.mubr.bf16.mxu0 0
        %9438 = vmatmul.mubr.bf16.gmra.mrb[0].mxu0 %v9333
        %v9439 = vpop.f32.mrb[0].mxu0
        %v9440 = vadd.f32 %v9355, %v9439
        %v9441 = vpop.f32.mrb[0].mxu0
        %v9442 = vpop.f32.mrb[0].mxu0
        %v9443 = vpop.f32.mrb[0].mxu0
        %9444 = vdwg.mxu0
        %v9445 = vsel %vm2732, %v9440, -inf
        %9446 = vmax.xlane.f32.xlu0 %v9445
        %v9447 = vpop.xlane.xlu0 %9446
        %v9448 = vsub.f32 %v9440, %v9447
        %v9449 = vmul.f32 %v9448, 1.442695
        %v9450 = vpow.pop %v9449
        %v9451 = vsel %vm2732, %v9450, 0.0
        %9452 = vadd.xlane.f32.xlu0 %v9451
        %v9453 = vpop.xlane.xlu0 %9452
        %v9454 = vlog2.pop %v9453
        %v9455 = vmul.f32 %v9454, 0.6931472
        %v9456 = vsub.f32 %v9448, %v9455
        %s9457 = scalar_lea.vmem %s512, 12
        %9458 = vst [vmem:[%s9457] sm:$0xf] %v9456
        %v9463 = vcombine.low %v8680, %v8681
        %v9464 = vcombine.low %v8682, %v8683
        %v9466 = vunpack.c.l.s4 1966171168
        %v9467 = vunpack.c.0.s8 %v9466
        %v9468 = vlaneseq
        %v9469 = vshrl.u32 %v9468, 7
        %v9470 = vsub.s32 %v9467, %v9469
        %v9471 = vrot.slane %v9463, %v9470
        %v9473 = vunpack.c.l.s4 1966171168
        %v9474 = vunpack.c.0.s8 %v9473
        %v9475 = vlaneseq
        %v9476 = vshrl.u32 %v9475, 7
        %v9477 = vsub.s32 %v9474, %v9476
        %v9478 = vrot.slane %v9464, %v9477
        %v9479 = vcombine.low %v9471, %v9478
        %v9481 = vunpack.c.l.s4 1966171168
        %v9482 = vunpack.c.0.s8 %v9481
        %v9483 = vlaneseq
        %v9484 = vshrl.u32 %v9483, 7
        %v9485 = vsub.s32 %v9482, %v9484
        %v9486 = vrot.slane %v9479, %v9485
        %s9488 = scalar_lea.vmem %s518, 12
        %9489 = vst [vmem:[%s9488] sm:$0xf] %v9486
        %9490 = vst [vmem:[#allocation2] sm:$0xf] %v8069
        %9491 = vst [vmem:[#allocation3] sm:$0xf] %v9332
        %p9492 = scmp.eq.s32.totalorder %s37, 1
        // Predicated region
        $region77: #{attention_decoder_forward.1} parent=71 // pred_check
          %p9493 = pneg %p9492
        $region78: #{attention_decoder_forward.1} parent=71 // pred_check_branch
          %9495 = sbr.rel (%p9493) target = $region80
        $region79: #{attention_decoder_forward.1} parent=71 // pred_region
          %9496 = vst [vmem:[#allocation6] sm:$0xf] %v8069
          %9497 = vst [vmem:[#allocation8] sm:$0xf] %v9332
        $region80: #{attention_decoder_forward.1} parent=71 // pred_fallthru
          _
        %s9498 = smul.u32 4, %s37
        %p9499 = scmp.lt.s32.totalorder %s9498, 7
        %s9500 = scalar_select %p9499, %s9498, 7
        %s9501 = smul.addr %s9500, 4
        %s9502 = scalar_lea.vmem %s14, %s9501
        %s9503 = smul.u32 4, %s37
        %p9504 = scmp.lt.s32.totalorder %s9503, 7
        %s9505 = scalar_select %p9504, %s9503, 7
        %s9506 = smul.addr %s9505, 4
        %s9507 = scalar_lea.vmem %s15, %s9506
        // Predicated region
        $region81: #{attention_decoder_forward.1} parent=71 // pred_check
          %p9508 = pneg %p328
        $region82: #{attention_decoder_forward.1} parent=71 // pred_check_branch
          %9510 = sbr.rel (%p9508) target = $region84
        $region83: #{attention_decoder_forward.1} parent=71 // pred_region
          %s9511 = smul.u32 4, %s37
        $region84: #{attention_decoder_forward.1} parent=71 // pred_fallthru
          _
        // Predicated region
        $region85: #{attention_decoder_forward.1} parent=71 // pred_check
          %p9512 = pneg %p354
        $region86: #{attention_decoder_forward.1} parent=71 // pred_check_branch
          %9514 = sbr.rel (%p9512) target = $region88
        $region87: #{attention_decoder_forward.1} parent=71 // pred_region
          %s9515 = smul.u32 4, %s37
        $region88: #{attention_decoder_forward.1} parent=71 // pred_fallthru
          _
        // Predicated region
        $region89: #{attention_decoder_forward.1} parent=71 // pred_check
          %p9516 = pneg %p375
        $region90: #{attention_decoder_forward.1} parent=71 // pred_check_branch
          %9518 = sbr.rel (%p9516) target = $region92
        $region91: #{attention_decoder_forward.1} parent=71 // pred_region
          %s9520 = ssub.s32 64, 64
          %9521 = vsyncadd [#allocation7], %s9520
          %s9523 = sshll.u32 [#allocation6], 4
          %s9524 = int_to_ptr.vmem [resolvable:$true] %s9523
          %9526 = dma.vmem_to_hbm [thread:$0]  %s9524, 64, %s16, [#allocation7]
        $region92: #{attention_decoder_forward.1} parent=71 // pred_fallthru
          _
        // Predicated region
        $region93: #{attention_decoder_forward.1} parent=71 // pred_check
          %p9527 = pneg %p396
        $region94: #{attention_decoder_forward.1} parent=71 // pred_check_branch
          %9529 = sbr.rel (%p9527) target = $region96
        $region95: #{attention_decoder_forward.1} parent=71 // pred_region
          %s9531 = ssub.s32 64, 64
          %9532 = vsyncadd [#allocation9], %s9531
          %s9534 = sshll.u32 [#allocation8], 4
          %s9535 = int_to_ptr.vmem [resolvable:$true] %s9534
          %9537 = dma.vmem_to_hbm [thread:$0]  %s9535, 64, %s17, [#allocation9]
        $region96: #{attention_decoder_forward.1} parent=71 // pred_fallthru
          _
        // Predicated region
        $region97: #{attention_decoder_forward.1} parent=71 // pred_check
          %p9538 = pneg %p375
        $region98: #{attention_decoder_forward.1} parent=71 // pred_check_branch
          %9540 = sbr.rel (%p9538) target = $region100
        $region99: #{attention_decoder_forward.1} parent=71 // pred_region
          %9541 = dma.done [#allocation7], 64
        $region100: #{attention_decoder_forward.1} parent=71 // pred_fallthru
          _
        // Predicated region
        $region101: #{attention_decoder_forward.1} parent=71 // pred_check
          %p9542 = pneg %p396
        $region102: #{attention_decoder_forward.1} parent=71 // pred_check_branch
          %9544 = sbr.rel (%p9542) target = $region104
        $region103: #{attention_decoder_forward.1} parent=71 // pred_region
          %9545 = dma.done [#allocation9], 64
        $region104: #{attention_decoder_forward.1} parent=71 // pred_fallthru
          _
      $region72: #{attention_decoder_forward.1} parent=5 // pred_fallthru
        _
      %p9546 = scmp.le.s32.totalorder 2, %s32
      // Predicated region
      $region105: #{attention_decoder_forward.1} parent=5 // pred_check
        %p9547 = pneg %p9546
      $region106: #{attention_decoder_forward.1} parent=5 // pred_check_branch
        %9549 = sbr.rel (%p9547) target = $region108
      $region107: #{attention_decoder_forward.1} parent=5 // pred_region
        %s9550 = ssub.s32 %s32, 2
        // Predicated region
        $region109: #{attention_decoder_forward.1} parent=107 // pred_check
          %p9551 = pneg %p334
        $region110: #{attention_decoder_forward.1} parent=107 // pred_check_branch
          %9553 = sbr.rel (%p9551) target = $region112
        $region111: #{attention_decoder_forward.1} parent=107 // pred_region
          %s9554 = smul.u32 4, %s38
          %p9555 = scmp.lt.s32.totalorder %s9554, 7
          %s9556 = scalar_select %p9555, %s9554, 7
          %s9557 = smul.addr %s9556, 4
          %s9558 = scalar_lea.vmem %s14, %s9557
        $region112: #{attention_decoder_forward.1} parent=107 // pred_fallthru
          _
        // Predicated region
        $region113: #{attention_decoder_forward.1} parent=107 // pred_check
          %p9559 = pneg %p360
        $region114: #{attention_decoder_forward.1} parent=107 // pred_check_branch
          %9561 = sbr.rel (%p9559) target = $region116
        $region115: #{attention_decoder_forward.1} parent=107 // pred_region
          %s9562 = smul.u32 4, %s38
          %p9563 = scmp.lt.s32.totalorder %s9562, 7
          %s9564 = scalar_select %p9563, %s9562, 7
          %s9565 = smul.addr %s9564, 4
          %s9566 = scalar_lea.vmem %s15, %s9565
        $region116: #{attention_decoder_forward.1} parent=107 // pred_fallthru
          _
      $region108: #{attention_decoder_forward.1} parent=5 // pred_fallthru
        _
    $region6: #{attention_decoder_forward.1} parent=1 // loop_footer
      %s36 = sadd.s32 1, %s32
    $region7: #{attention_decoder_forward.1} parent=1 // loop_footer_branch
      %31 = sbr.rel target = $region3
    $region8: #{attention_decoder_forward.1} parent=1 // loop_exit
      _
    %9567 = vsyncpa [#allocation7], 1
    %s9568 = scalar_lea.sflag [#allocation7], 1
    %9569 = vsyncpa %s9568, 1
    %9570 = vsyncpa [#allocation9], 1

</llo_original>
